<compile_context>
chip_gen: v6e
topology: v6e:2x2x1
jax: 0.10.0
libtpu: 0.0.40
codegen_flags: <defaults>
</compile_context>

<pallas_src>
import jax
import jax.numpy as jnp
from jax.experimental import pallas as pl
from jax.experimental.pallas import tpu as pltpu


# ---------------------------------------------------------------------------
# Fused kernel: layers 1-3 + sigmoid, gridded over layer-3 output columns.
# ---------------------------------------------------------------------------
def _triplane_mlp_kernel(x_ref, w1_ref, b1_ref, w2_ref, b2_ref,
                         w3_ref, b3_ref, out_ref):
    # Layers 1-2: tiny, recomputed per column tile (keeps the grid axis
    # embarrassingly parallel so both v7x TensorCores can take tiles).
    h1 = jnp.dot(x_ref[...], w1_ref[...],
                 preferred_element_type=jnp.float32) + b1_ref[...]
    h1 = jnp.maximum(h1, 0.0).astype(jnp.bfloat16)

    h2 = jnp.dot(h1, w2_ref[...],
                 preferred_element_type=jnp.float32) + b2_ref[...]
    h2 = jnp.maximum(h2, 0.0).astype(jnp.bfloat16)

    # Layer 3 column tile (bf16 weight stream, f32 MXU accumulation).
    z = jnp.dot(h2, w3_ref[...],
                preferred_element_type=jnp.float32) + b3_ref[...]

    # Cheap sigmoid: exp (EUP) + approx reciprocal (EUP), bf16 writeback.
    sig = pl.reciprocal(1.0 + jnp.exp(-z), approx=True)
    out_ref[...] = sig.astype(out_ref.dtype)


def _choose_n_block(B, d_in, h1_dim, h2_dim, d_out):
    """Pick the layer-3 column-tile width from a VMEM budget.

    Budget = 16 MiB: inside the default scoped VMEM limit on every generation
    (v5e 16 MiB / v6e 32 MiB / v7x 32 MiB scoped of 64 MiB physical), so no
    vmem_limit_bytes override is needed and B-scaling cannot OOM v7x.
    Keeps >=2 tiles when possible so both v7x TensorCores get work; tiles are
    multiples of 128 (lane-dense stores) and >=512 wide for efficient strided
    DMA of the (h2_dim, d_out) weight whenever d_out allows it.
    """
    if d_out % 128 != 0:
        return d_out  # single full-width tile (block dim == full array dim)

    budget = 16 << 20
    # Resident (constant-index) blocks: x, w1, b1, w2, b2 -- double-buffered.
    resident = 2 * (B * d_in * 2 + d_in * h1_dim * 2 + h1_dim * 4
                    + h1_dim * h2_dim * 2 + h2_dim * 4)
    # In-kernel f32 temporaries (h1, h2, z uses the out-tile estimate below).
    resident += B * (h1_dim + h2_dim) * 4
    # Per output column: double-buffered bf16 w3 col + f32 b3 + bf16 out col,
    # plus the f32 z temporary.
    per_col = 2 * (h2_dim * 2 + 4 + B * 2) + B * 4

    n_fit = max(128, (budget - resident) // per_col)
    n_tgt = min(n_fit, max(128, d_out // 2))   # >=2 tiles for v7x's 2 TCs
    n_blk = (min(int(n_tgt), d_out) // 128) * 128
    while d_out % n_blk != 0:                  # terminates: 128 divides d_out
        n_blk -= 128
    return n_blk


def triplane_mlp_forward(x, params):
    """x: (B, input_dim) float32.  Returns (-1, 64, 64, 64) bfloat16."""
    w1, b1, w2, b2, w3, b3 = params
    B, d_in = x.shape
    h1_dim = w1.shape[1]          # 1024
    h2_dim = w2.shape[1]          # 512
    d_out = w3.shape[1]           # output_dim

    n_block = _choose_n_block(B, d_in, h1_dim, h2_dim, d_out)
    assert d_out % n_block == 0, (d_out, n_block)
    grid = (d_out // n_block,)

    x_bf16 = x.astype(jnp.bfloat16)   # host-side cast (free; keeps kernel lean)

    out = pl.pallas_call(
        _triplane_mlp_kernel,
        out_shape=jax.ShapeDtypeStruct((B, d_out), jnp.bfloat16),
        grid=grid,
        in_specs=[
            pl.BlockSpec((B, d_in),         lambda j: (0, 0)),   # x   (resident)
            pl.BlockSpec((d_in, h1_dim),    lambda j: (0, 0)),   # w1  (resident)
            pl.BlockSpec((1, h1_dim),       lambda j: (0, 0)),   # b1  (resident)
            pl.BlockSpec((h1_dim, h2_dim),  lambda j: (0, 0)),   # w2  (resident)
            pl.BlockSpec((1, h2_dim),       lambda j: (0, 0)),   # b2  (resident)
            pl.BlockSpec((h2_dim, n_block), lambda j: (0, j)),   # w3 column tile
            pl.BlockSpec((1, n_block),      lambda j: (0, j)),   # b3 column tile
        ],
        out_specs=pl.BlockSpec((B, n_block), lambda j: (0, j)),
        compiler_params=pltpu.CompilerParams(
            dimension_semantics=("parallel",),
        ),
    )(x_bf16, w1, b1, w2, b2, w3, b3)

    return out.reshape(-1, 64, 64, 64)


def init_params(key, input_dim, output_dim):
    """Deterministic init matching nn.Linear's U(-1/sqrt(fan_in), 1/sqrt(fan_in)).
    Weights stored as (in_features, out_features) in bfloat16 (streamed dtype);
    biases stay float32."""
    dims = [(input_dim, 1024), (1024, 512), (512, output_dim)]
    params = []
    for (fan_in, fan_out) in dims:
        key, kw, kb = jax.random.split(key, 3)
        bound = 1.0 / jnp.sqrt(fan_in)
        w = jax.random.uniform(kw, (fan_in, fan_out), jnp.float32, -bound, bound)
        b = jax.random.uniform(kb, (1, fan_out), jnp.float32, -bound, bound)
        params += [w.astype(jnp.bfloat16), b]
    return tuple(params)


def _reference(x, params):
    """Full-f32 reference using the same (bf16-stored) weights upcast to f32."""
    w1, b1, w2, b2, w3, b3 = params
    w1, w2, w3 = (w.astype(jnp.float32) for w in (w1, w2, w3))
    h = jnp.maximum(x @ w1 + b1, 0.0)
    h = jnp.maximum(h @ w2 + b2, 0.0)
    y = jax.nn.sigmoid(h @ w3 + b3)
    return y.reshape(-1, 64, 64, 64)


if __name__ == "__main__":
    # Smallest shapes consistent with the module: output_dim=4096 with batch=64
    # so the final view(-1, 64, 64, 64) yields (1, 64, 64, 64) (64*4096 = 64**3).
    input_dim = 32
    output_dim = 4096
    batch = 64

    key = jax.random.PRNGKey(0)
    kx, kp = jax.random.split(key)
    x = jax.random.normal(kx, (batch, input_dim), jnp.float32)
    params = init_params(kp, input_dim, output_dim)

    y = triplane_mlp_forward(x, params)
    y = jax.block_until_ready(y)

    assert y.shape == (1, 64, 64, 64), y.shape

    y_ref = _reference(x, params)
    # Tolerance covers bf16 activation/weight streaming + bf16 output rounding
    # (~2e-3) + approx-reciprocal sigmoid, with f32 accumulation throughout.
    err = float(jnp.max(jnp.abs(y.astype(jnp.float32) - y_ref)))
    assert err < 1.5e-2, err

    print("KERNEL_OK")
</pallas_src>

<mosaic_0001>
module attributes {stable_mosaic.version = 11 : i64} {
  func.func @_triplane_mlp_kernel(%arg0: i32, %arg1: memref<64x32xbf16, #tpu.memory_space<vmem>>, %arg2: memref<32x1024xbf16, #tpu.memory_space<vmem>>, %arg3: memref<1x1024xf32, #tpu.memory_space<vmem>>, %arg4: memref<1024x512xbf16, #tpu.memory_space<vmem>>, %arg5: memref<1x512xf32, #tpu.memory_space<vmem>>, %arg6: memref<512x2048xbf16, #tpu.memory_space<vmem>>, %arg7: memref<1x2048xf32, #tpu.memory_space<vmem>>, %arg8: memref<64x2048xbf16, #tpu.memory_space<vmem>>) attributes {dimension_semantics = [#tpu.dimension_semantics<parallel>], iteration_bounds = array<i64: 2>, scalar_prefetch = 0 : i64, scratch_operands = 0 : i64, tpu.core_type = #tpu.core_type<tc>, window_params = [{pipeline_mode = #tpu.pipeline_mode<synchronous>, transform_indices = @transform_0, window_bounds = array<i64: 64, 32>}, {pipeline_mode = #tpu.pipeline_mode<synchronous>, transform_indices = @transform_1, window_bounds = array<i64: 32, 1024>}, {pipeline_mode = #tpu.pipeline_mode<synchronous>, transform_indices = @transform_2, window_bounds = array<i64: 1, 1024>}, {pipeline_mode = #tpu.pipeline_mode<synchronous>, transform_indices = @transform_3, window_bounds = array<i64: 1024, 512>}, {pipeline_mode = #tpu.pipeline_mode<synchronous>, transform_indices = @transform_4, window_bounds = array<i64: 1, 512>}, {transform_indices = @transform_5, window_bounds = array<i64: 512, 2048>}, {transform_indices = @transform_6, window_bounds = array<i64: 1, 2048>}, {transform_indices = @transform_7, window_bounds = array<i64: 64, 2048>}]} {
    %c0 = arith.constant 0 : index
    %c0_0 = arith.constant 0 : index
    %0 = vector.load %arg1[%c0, %c0_0] : memref<64x32xbf16, #tpu.memory_space<vmem>>, vector<64x32xbf16>
    %c0_1 = arith.constant 0 : index
    %c0_2 = arith.constant 0 : index
    %1 = vector.load %arg2[%c0_1, %c0_2] : memref<32x1024xbf16, #tpu.memory_space<vmem>>, vector<32x1024xbf16>
    %cst = arith.constant dense<0.000000e+00> : vector<64x1024xf32>
    %2 = tpu.matmul %0, %1, %cst {dimension_numbers = #tpu.dot_dimension_numbers<[1], [0], [0], [1], [0, 0, 1, 1], [], []>} : vector<64x32xbf16>, vector<32x1024xbf16>, vector<64x1024xf32> -> vector<64x1024xf32>
    %c0_3 = arith.constant 0 : index
    %c0_4 = arith.constant 0 : index
    %3 = vector.load %arg3[%c0_3, %c0_4] : memref<1x1024xf32, #tpu.memory_space<vmem>>, vector<1x1024xf32>
    %4 = vector.broadcast %3 : vector<1x1024xf32> to vector<64x1024xf32>
    %5 = arith.addf %2, %4 : vector<64x1024xf32>
    %cst_5 = arith.constant 0.000000e+00 : f32
    %6 = vector.broadcast %cst_5 : f32 to vector<64x1024xf32>
    %7 = arith.maximumf %5, %6 : vector<64x1024xf32>
    %8 = arith.truncf %7 : vector<64x1024xf32> to vector<64x1024xbf16>
    %c0_6 = arith.constant 0 : index
    %c0_7 = arith.constant 0 : index
    %9 = vector.load %arg4[%c0_6, %c0_7] : memref<1024x512xbf16, #tpu.memory_space<vmem>>, vector<1024x512xbf16>
    %cst_8 = arith.constant dense<0.000000e+00> : vector<64x512xf32>
    %10 = tpu.matmul %8, %9, %cst_8 {dimension_numbers = #tpu.dot_dimension_numbers<[1], [0], [0], [1], [0, 0, 1, 1], [], []>} : vector<64x1024xbf16>, vector<1024x512xbf16>, vector<64x512xf32> -> vector<64x512xf32>
    %c0_9 = arith.constant 0 : index
    %c0_10 = arith.constant 0 : index
    %11 = vector.load %arg5[%c0_9, %c0_10] : memref<1x512xf32, #tpu.memory_space<vmem>>, vector<1x512xf32>
    %12 = vector.broadcast %11 : vector<1x512xf32> to vector<64x512xf32>
    %13 = arith.addf %10, %12 : vector<64x512xf32>
    %cst_11 = arith.constant 0.000000e+00 : f32
    %14 = vector.broadcast %cst_11 : f32 to vector<64x512xf32>
    %15 = arith.maximumf %13, %14 : vector<64x512xf32>
    %16 = arith.truncf %15 : vector<64x512xf32> to vector<64x512xbf16>
    %c0_12 = arith.constant 0 : index
    %c0_13 = arith.constant 0 : index
    %17 = vector.load %arg6[%c0_12, %c0_13] : memref<512x2048xbf16, #tpu.memory_space<vmem>>, vector<512x2048xbf16>
    %cst_14 = arith.constant dense<0.000000e+00> : vector<64x2048xf32>
    %18 = tpu.matmul %16, %17, %cst_14 {dimension_numbers = #tpu.dot_dimension_numbers<[1], [0], [0], [1], [0, 0, 1, 1], [], []>} : vector<64x512xbf16>, vector<512x2048xbf16>, vector<64x2048xf32> -> vector<64x2048xf32>
    %c0_15 = arith.constant 0 : index
    %c0_16 = arith.constant 0 : index
    %19 = vector.load %arg7[%c0_15, %c0_16] : memref<1x2048xf32, #tpu.memory_space<vmem>>, vector<1x2048xf32>
    %20 = vector.broadcast %19 : vector<1x2048xf32> to vector<64x2048xf32>
    %21 = arith.addf %18, %20 : vector<64x2048xf32>
    %cst_17 = arith.constant 0.000000e+00 : f32
    %22 = vector.broadcast %cst_17 : f32 to vector<64x2048xf32>
    %23 = arith.subf %22, %21 : vector<64x2048xf32>
    %24 = math.exp %23 : vector<64x2048xf32>
    %cst_18 = arith.constant 1.000000e+00 : f32
    %25 = vector.broadcast %cst_18 : f32 to vector<64x2048xf32>
    %26 = arith.addf %25, %24 : vector<64x2048xf32>
    %27 = tpu.reciprocal %26 {approx = true} : vector<64x2048xf32> -> vector<64x2048xf32>
    %28 = arith.truncf %27 : vector<64x2048xf32> to vector<64x2048xbf16>
    %c0_19 = arith.constant 0 : index
    %c0_20 = arith.constant 0 : index
    %29 = vector.load %arg8[%c0_19, %c0_20] : memref<64x2048xbf16, #tpu.memory_space<vmem>>, vector<64x2048xbf16>
    tpu.vector_store %arg8[%c0_19, %c0_20], %28 {strides = array<i32>} : memref<64x2048xbf16, #tpu.memory_space<vmem>>, vector<64x2048xbf16>,
    return
  }
  func.func @transform_0(%arg0: i32) -> (i32, i32) {
    %c0_i32 = arith.constant 0 : i32
    %c0_i32_0 = arith.constant 0 : i32
    %c0_i32_1 = arith.constant 0 : i32
    return %c0_i32, %c0_i32_0 : i32, i32
  }
  func.func @transform_1(%arg0: i32) -> (i32, i32) {
    %c0_i32 = arith.constant 0 : i32
    %c0_i32_0 = arith.constant 0 : i32
    %c0_i32_1 = arith.constant 0 : i32
    return %c0_i32, %c0_i32_0 : i32, i32
  }
  func.func @transform_2(%arg0: i32) -> (i32, i32) {
    %c0_i32 = arith.constant 0 : i32
    %c0_i32_0 = arith.constant 0 : i32
    %c0_i32_1 = arith.constant 0 : i32
    return %c0_i32, %c0_i32_0 : i32, i32
  }
  func.func @transform_3(%arg0: i32) -> (i32, i32) {
    %c0_i32 = arith.constant 0 : i32
    %c0_i32_0 = arith.constant 0 : i32
    %c0_i32_1 = arith.constant 0 : i32
    return %c0_i32, %c0_i32_0 : i32, i32
  }
  func.func @transform_4(%arg0: i32) -> (i32, i32) {
    %c0_i32 = arith.constant 0 : i32
    %c0_i32_0 = arith.constant 0 : i32
    %c0_i32_1 = arith.constant 0 : i32
    return %c0_i32, %c0_i32_0 : i32, i32
  }
  func.func @transform_5(%arg0: i32) -> (i32, i32) {
    %c0_i32 = arith.constant 0 : i32
    %c0_i32_0 = arith.constant 0 : i32
    return %c0_i32, %arg0 : i32, i32
  }
  func.func @transform_6(%arg0: i32) -> (i32, i32) {
    %c0_i32 = arith.constant 0 : i32
    %c0_i32_0 = arith.constant 0 : i32
    return %c0_i32, %arg0 : i32, i32
  }
  func.func @transform_7(%arg0: i32) -> (i32, i32) {
    %c0_i32 = arith.constant 0 : i32
    %c0_i32_0 = arith.constant 0 : i32
    return %c0_i32, %arg0 : i32, i32
  }
}

</mosaic_0001>

<llo_original>
// kernel: tpu_custom_call.1
$region0: #{tpu_custom_call.1}
  #allocation0 [shape = 'u32[]', space=smem, size = 0x4, offset = 0x4, fixed_abs, tag = 'smem constant byte address 0x4 - core index']
  #allocation1 [shape = 'u32[144,128]{1,0:T(1,128)}', space=vmem, size = 0x12000, scoped, tag = 'internal scratch']
  %s0 = inlined_call_operand.vmem [shape: bf16[64,32], index: 0, kind: input, shape index: {}]
  %s1 = inlined_call_operand.hbm [shape: bf16[32,1024], index: 1, kind: input, shape index: {}]
  %s2 = inlined_call_operand.hbm [shape: f32[1,1024], index: 2, kind: input, shape index: {}]
  %s3 = inlined_call_operand.hbm [shape: bf16[1024,512], index: 3, kind: input, shape index: {}]
  %s4 = inlined_call_operand.hbm [shape: f32[1,512], index: 4, kind: input, shape index: {}]
  %s5 = inlined_call_operand.hbm [shape: bf16[512,4096], index: 5, kind: input, shape index: {}]
  %s6 = inlined_call_operand.hbm [shape: f32[1,4096], index: 6, kind: input, shape index: {}]
  %s7 = inlined_call_operand.hbm [shape: bf16[64,4096], index: 7, kind: output, shape index: {}]
  %s8 = sld [smem:[#allocation0]]
  $region85: #{tpu_custom_call.1} parent=0
    _
  %s10 = ssub.s32 1, %s8
  %s11 = scalar_select 0, %s10, %s8
  $region1: #{tpu_custom_call.1} parent=0
    #allocation2 [shape = 'u8[65536]{0}', space=vmem, size = 0x10000, scoped, tag = 'input window, operand 1, single buffered']
    #allocation3 [shape = 's32[2]{0}', space=sflag, size = 0x8, scoped, tag = 'scoped memory for tpu_custom_call.1']
    #allocation4 [shape = 's32[2]{0}', space=sflag, size = 0x8, scoped, tag = 'scoped memory for tpu_custom_call.1']
    #allocation5 [shape = 'u8[4096]{0}', space=vmem, size = 0x1000, scoped, tag = 'input window, operand 2, single buffered']
    #allocation6 [shape = 's32[1]{0}', space=sflag, size = 0x4, scoped, tag = 'scoped memory for tpu_custom_call.1']
    #allocation7 [shape = 'u8[1048576]{0}', space=vmem, size = 0x100000, scoped, tag = 'input window, operand 3, single buffered']
    #allocation8 [shape = 'u8[2048]{0}', space=vmem, size = 0x800, scoped, tag = 'input window, operand 4, single buffered']
    #allocation9 [shape = 's32[1]{0}', space=sflag, size = 0x4, scoped, tag = 'scoped memory for tpu_custom_call.1']
    #allocation10 [shape = 'u8[4194304]{0}', space=vmem, size = 0x400000, scoped, tag = 'input window, operand 5']
    #allocation11 [shape = 'u8[16384]{0}', space=vmem, size = 0x4000, scoped, tag = 'input window, operand 6']
    #allocation12 [shape = 'u8[524288]{0}', space=vmem, size = 0x80000, scoped, tag = 'output window, operand 0']
    %12 = vsyncpa [#allocation3], 0
    %13 = vsyncpa [#allocation6], 0
    %14 = vsyncpa [#allocation9], 0
    %15 = vsyncpa [#allocation4], 0
    %s16 = scalar_lea.sflag [#allocation4], 1
    %17 = vsyncpa %s16, 0
    loop: start=0, step=1, limit=4
    $region2: #{tpu_custom_call.1} parent=1 // loop_pre_header
      _
    $region3: #{tpu_custom_call.1} parent=1 // loop_header
      %s19 = sphi 0, %s23
      %p20 = scmp.ge.s32.totalorder %s19, 4
      %s27 = sphi 0, %s27
      %s29 = sphi 0, %s27
      %s30 = sphi 0, %s29
      %s44 = sphi 0, %s30
      %s48 = sphi 0, %s48
      %s50 = sphi 0, %s48
      %s51 = sphi 0, %s50
      %s65 = sphi 0, %s51
      %s69 = sphi 0, %s69
      %s71 = sphi 0, %s69
      %s72 = sphi 0, %s71
      %s86 = sphi 0, %s72
      %s90 = sphi 0, %s90
      %s92 = sphi 0, %s90
      %s93 = sphi 0, %s92
      %s107 = sphi 0, %s93
      %s111 = sphi 0, %s111
      %s113 = sphi 0, %s111
      %s114 = sphi 0, %s113
      %s128 = sphi 0, %s114
      %s134 = sphi 0, %s136
      %s137 = sphi 0, %s134
      %s138 = sphi 0, %s137
      %s154 = sphi 0, %s138
      %s160 = sphi 0, %s162
      %s163 = sphi 0, %s160
      %s164 = sphi 0, %s163
      %s180 = sphi 0, %s164
      %s186 = sphi 0, %s188
      %s189 = sphi 0, %s186
      %s190 = sphi 0, %s189
      %s206 = sphi 0, %s190
    $region4: #{tpu_custom_call.1} parent=1 // loop_header_branch
      %22 = sbr.rel (%p20) target = $region8
    $region5: #{tpu_custom_call.1} parent=1 // loop_body
      %s24 = ssub.s32 %s19, 1
      %s25 = ssub.s32 %s19, 2
      %s26 = sadd.s32 %s19, 1
      %s28 = sadd.s32 %s27, 1
      %p31 = scmp.eq.s32.totalorder %s19, 1
      %p32 = scmp.ne.s32.totalorder %s27, %s29
      %p33 = scmp.eq.s32.totalorder %s19, 0
      %p34 = por %p32, %p33
      %p35 = scmp.ne.s32.totalorder %s27, %s29
      %p36 = scmp.eq.s32.totalorder %s24, 1
      %p37 = por %p35, %p36
      %p38 = scmp.ne.s32.totalorder %s29, %s30
      %p39 = scmp.eq.s32.totalorder %s24, 0
      %p40 = por %p38, %p39
      %p41 = scmp.ne.s32.totalorder %s29, %s30
      %p42 = scmp.eq.s32.totalorder %s25, 1
      %p43 = por %p41, %p42
      %p45 = scmp.ne.s32.totalorder %s30, %s44
      %p46 = scmp.eq.s32.totalorder %s25, 0
      %p47 = por %p45, %p46
      %s49 = sadd.s32 %s48, 1
      %p52 = scmp.eq.s32.totalorder %s19, 1
      %p53 = scmp.ne.s32.totalorder %s48, %s50
      %p54 = scmp.eq.s32.totalorder %s19, 0
      %p55 = por %p53, %p54
      %p56 = scmp.ne.s32.totalorder %s48, %s50
      %p57 = scmp.eq.s32.totalorder %s24, 1
      %p58 = por %p56, %p57
      %p59 = scmp.ne.s32.totalorder %s50, %s51
      %p60 = scmp.eq.s32.totalorder %s24, 0
      %p61 = por %p59, %p60
      %p62 = scmp.ne.s32.totalorder %s50, %s51
      %p63 = scmp.eq.s32.totalorder %s25, 1
      %p64 = por %p62, %p63
      %p66 = scmp.ne.s32.totalorder %s51, %s65
      %p67 = scmp.eq.s32.totalorder %s25, 0
      %p68 = por %p66, %p67
      %s70 = sadd.s32 %s69, 1
      %p73 = scmp.eq.s32.totalorder %s19, 1
      %p74 = scmp.ne.s32.totalorder %s69, %s71
      %p75 = scmp.eq.s32.totalorder %s19, 0
      %p76 = por %p74, %p75
      %p77 = scmp.ne.s32.totalorder %s69, %s71
      %p78 = scmp.eq.s32.totalorder %s24, 1
      %p79 = por %p77, %p78
      %p80 = scmp.ne.s32.totalorder %s71, %s72
      %p81 = scmp.eq.s32.totalorder %s24, 0
      %p82 = por %p80, %p81
      %p83 = scmp.ne.s32.totalorder %s71, %s72
      %p84 = scmp.eq.s32.totalorder %s25, 1
      %p85 = por %p83, %p84
      %p87 = scmp.ne.s32.totalorder %s72, %s86
      %p88 = scmp.eq.s32.totalorder %s25, 0
      %p89 = por %p87, %p88
      %s91 = sadd.s32 %s90, 1
      %p94 = scmp.eq.s32.totalorder %s19, 1
      %p95 = scmp.ne.s32.totalorder %s90, %s92
      %p96 = scmp.eq.s32.totalorder %s19, 0
      %p97 = por %p95, %p96
      %p98 = scmp.ne.s32.totalorder %s90, %s92
      %p99 = scmp.eq.s32.totalorder %s24, 1
      %p100 = por %p98, %p99
      %p101 = scmp.ne.s32.totalorder %s92, %s93
      %p102 = scmp.eq.s32.totalorder %s24, 0
      %p103 = por %p101, %p102
      %p104 = scmp.ne.s32.totalorder %s92, %s93
      %p105 = scmp.eq.s32.totalorder %s25, 1
      %p106 = por %p104, %p105
      %p108 = scmp.ne.s32.totalorder %s93, %s107
      %p109 = scmp.eq.s32.totalorder %s25, 0
      %p110 = por %p108, %p109
      %s112 = sadd.s32 %s111, 1
      %p115 = scmp.eq.s32.totalorder %s19, 1
      %p116 = scmp.ne.s32.totalorder %s111, %s113
      %p117 = scmp.eq.s32.totalorder %s19, 0
      %p118 = por %p116, %p117
      %p119 = scmp.ne.s32.totalorder %s111, %s113
      %p120 = scmp.eq.s32.totalorder %s24, 1
      %p121 = por %p119, %p120
      %p122 = scmp.ne.s32.totalorder %s113, %s114
      %p123 = scmp.eq.s32.totalorder %s24, 0
      %p124 = por %p122, %p123
      %p125 = scmp.ne.s32.totalorder %s113, %s114
      %p126 = scmp.eq.s32.totalorder %s25, 1
      %p127 = por %p125, %p126
      %p129 = scmp.ne.s32.totalorder %s114, %s128
      %p130 = scmp.eq.s32.totalorder %s25, 0
      %p131 = por %p129, %p130
      %s132 = ssub.s32 %s19, %s26
      %p133 = scmp.eq.s32.totalorder %s132, 0
      %s135 = sadd.s32 %s134, 1
      %s136 = scalar_select %p133, %s134, %s135
      %p139 = pneg %p133
      %p140 = scmp.eq.s32.totalorder %s19, 1
      %p141 = por %p139, %p140
      %p142 = scmp.ne.s32.totalorder %s134, %s137
      %p143 = scmp.eq.s32.totalorder %s19, 0
      %p144 = por %p142, %p143
      %p145 = scmp.ne.s32.totalorder %s134, %s137
      %p146 = scmp.eq.s32.totalorder %s24, 1
      %p147 = por %p145, %p146
      %p148 = scmp.ne.s32.totalorder %s137, %s138
      %p149 = scmp.eq.s32.totalorder %s24, 0
      %p150 = por %p148, %p149
      %p151 = scmp.ne.s32.totalorder %s137, %s138
      %p152 = scmp.eq.s32.totalorder %s25, 1
      %p153 = por %p151, %p152
      %p155 = scmp.ne.s32.totalorder %s138, %s154
      %p156 = scmp.eq.s32.totalorder %s25, 0
      %p157 = por %p155, %p156
      %s158 = ssub.s32 %s19, %s26
      %p159 = scmp.eq.s32.totalorder %s158, 0
      %s161 = sadd.s32 %s160, 1
      %s162 = scalar_select %p159, %s160, %s161
      %p165 = pneg %p159
      %p166 = scmp.eq.s32.totalorder %s19, 1
      %p167 = por %p165, %p166
      %p168 = scmp.ne.s32.totalorder %s160, %s163
      %p169 = scmp.eq.s32.totalorder %s19, 0
      %p170 = por %p168, %p169
      %p171 = scmp.ne.s32.totalorder %s160, %s163
      %p172 = scmp.eq.s32.totalorder %s24, 1
      %p173 = por %p171, %p172
      %p174 = scmp.ne.s32.totalorder %s163, %s164
      %p175 = scmp.eq.s32.totalorder %s24, 0
      %p176 = por %p174, %p175
      %p177 = scmp.ne.s32.totalorder %s163, %s164
      %p178 = scmp.eq.s32.totalorder %s25, 1
      %p179 = por %p177, %p178
      %p181 = scmp.ne.s32.totalorder %s164, %s180
      %p182 = scmp.eq.s32.totalorder %s25, 0
      %p183 = por %p181, %p182
      %s184 = ssub.s32 %s19, %s26
      %p185 = scmp.eq.s32.totalorder %s184, 0
      %s187 = sadd.s32 %s186, 1
      %s188 = scalar_select %p185, %s186, %s187
      %p191 = pneg %p185
      %p192 = scmp.eq.s32.totalorder %s19, 1
      %p193 = por %p191, %p192
      %p194 = scmp.ne.s32.totalorder %s186, %s189
      %p195 = scmp.eq.s32.totalorder %s19, 0
      %p196 = por %p194, %p195
      %p197 = scmp.ne.s32.totalorder %s186, %s189
      %p198 = scmp.eq.s32.totalorder %s24, 1
      %p199 = por %p197, %p198
      %p200 = scmp.ne.s32.totalorder %s189, %s190
      %p201 = scmp.eq.s32.totalorder %s24, 0
      %p202 = por %p200, %p201
      %p203 = scmp.ne.s32.totalorder %s189, %s190
      %p204 = scmp.eq.s32.totalorder %s25, 1
      %p205 = por %p203, %p204
      %p207 = scmp.ne.s32.totalorder %s190, %s206
      %p208 = scmp.eq.s32.totalorder %s25, 0
      %p209 = por %p207, %p208
      %p210 = scmp.le.s32.totalorder 1, %s19
      %p211 = scmp.lt.s32.totalorder %s19, 3
      %p212 = pnand %p210, %p211
      %p213 = pneg %p212
      // Predicated region
      $region9: #{tpu_custom_call.1} parent=5 // pred_check
        _
      $region10: #{tpu_custom_call.1} parent=5 // pred_check_branch
        %215 = sbr.rel (%p212) target = $region12
      $region11: #{tpu_custom_call.1} parent=5 // pred_region
        %s216 = ssub.s32 %s19, 1
        // Predicated region
        $region13: #{tpu_custom_call.1} parent=11 // pred_check
          %p217 = pneg %p40
        $region14: #{tpu_custom_call.1} parent=11 // pred_check_branch
          %219 = sbr.rel (%p217) target = $region16
        $region15: #{tpu_custom_call.1} parent=11 // pred_region
          _
        $region16: #{tpu_custom_call.1} parent=11 // pred_fallthru
          _
        // Predicated region
        $region17: #{tpu_custom_call.1} parent=11 // pred_check
          %p220 = pneg %p61
        $region18: #{tpu_custom_call.1} parent=11 // pred_check_branch
          %222 = sbr.rel (%p220) target = $region20
        $region19: #{tpu_custom_call.1} parent=11 // pred_region
          %s224 = ssub.s32 2048, 2048
          %225 = vsyncadd [#allocation3], %s224
          %s226 = sshll.u32 [#allocation2], 4
          %s227 = int_to_ptr.vmem [resolvable:$true] %s226
          %232 = dma.hbm_to_vmem [thread:$0]  %s1, 2048, %s227, [#allocation3], 512, 512, 32
        $region20: #{tpu_custom_call.1} parent=11 // pred_fallthru
          _
        // Predicated region
        $region21: #{tpu_custom_call.1} parent=11 // pred_check
          %p233 = pneg %p82
        $region22: #{tpu_custom_call.1} parent=11 // pred_check_branch
          %235 = sbr.rel (%p233) target = $region24
        $region23: #{tpu_custom_call.1} parent=11 // pred_region
          %s237 = ssub.s32 128, 128
          %238 = vsyncadd [#allocation6], %s237
          %s240 = sshll.u32 [#allocation5], 4
          %s241 = int_to_ptr.vmem [resolvable:$true] %s240
          %243 = dma.hbm_to_vmem [thread:$0]  %s2, 128, %s241, [#allocation6]
        $region24: #{tpu_custom_call.1} parent=11 // pred_fallthru
          _
        // Predicated region
        $region25: #{tpu_custom_call.1} parent=11 // pred_check
          %p244 = pneg %p103
        $region26: #{tpu_custom_call.1} parent=11 // pred_check_branch
          %246 = sbr.rel (%p244) target = $region28
        $region27: #{tpu_custom_call.1} parent=11 // pred_region
          %s248 = ssub.s32 32768, 32768
          %249 = vsyncadd [#allocation6], %s248
          %s250 = sshll.u32 [#allocation7], 4
          %s251 = int_to_ptr.vmem [resolvable:$true] %s250
          %256 = dma.hbm_to_vmem [thread:$0]  %s3, 32768, %s251, [#allocation6], 256, 256, 16
        $region28: #{tpu_custom_call.1} parent=11 // pred_fallthru
          _
        // Predicated region
        $region29: #{tpu_custom_call.1} parent=11 // pred_check
          %p257 = pneg %p124
        $region30: #{tpu_custom_call.1} parent=11 // pred_check_branch
          %259 = sbr.rel (%p257) target = $region32
        $region31: #{tpu_custom_call.1} parent=11 // pred_region
          %s261 = ssub.s32 64, 64
          %262 = vsyncadd [#allocation9], %s261
          %s264 = sshll.u32 [#allocation8], 4
          %s265 = int_to_ptr.vmem [resolvable:$true] %s264
          %267 = dma.hbm_to_vmem [thread:$0]  %s4, 64, %s265, [#allocation9]
        $region32: #{tpu_custom_call.1} parent=11 // pred_fallthru
          _
      $region12: #{tpu_custom_call.1} parent=5 // pred_fallthru
        _
      %p268 = scmp.lt.s32.totalorder %s19, 2
      // Predicated region
      $region33: #{tpu_custom_call.1} parent=5 // pred_check
        %p269 = pneg %p268
      $region34: #{tpu_custom_call.1} parent=5 // pred_check_branch
        %271 = sbr.rel (%p269) target = $region36
      $region35: #{tpu_custom_call.1} parent=5 // pred_region
        // Predicated region
        $region37: #{tpu_custom_call.1} parent=35 // pred_check
          %p272 = pneg %p144
        $region38: #{tpu_custom_call.1} parent=35 // pred_check_branch
          %274 = sbr.rel (%p272) target = $region40
        $region39: #{tpu_custom_call.1} parent=35 // pred_region
          %s275 = sand.u32 %s19, 1
          %s276 = scalar_lea.sflag [#allocation3], %s275
          %s277 = sand.u32 %s134, 1
          %s278 = smul.addr %s277, 4096
          %s279 = scalar_lea.vmem [#allocation10], %s278
          %s280 = smul.u32 16, %s19
          %s282 = ssub.s32 65536, 65536
          %283 = vsyncadd %s276, %s282
          %s284 = smul.addr %s280, 64
          %s285 = scalar_lea.hbm %s5, %s284
          %s286 = sshll.u32 %s279, 4
          %s287 = int_to_ptr.vmem [resolvable:$true] %s286
          %292 = dma.hbm_to_vmem [thread:$0]  %s285, 65536, %s287, %s276, 2048, 1024, 64
        $region40: #{tpu_custom_call.1} parent=35 // pred_fallthru
          _
        // Predicated region
        $region41: #{tpu_custom_call.1} parent=35 // pred_check
          %p293 = pneg %p170
        $region42: #{tpu_custom_call.1} parent=35 // pred_check_branch
          %295 = sbr.rel (%p293) target = $region44
        $region43: #{tpu_custom_call.1} parent=35 // pred_region
          %s296 = sand.u32 %s19, 1
          %s297 = scalar_lea.sflag [#allocation3], %s296
          %s298 = sand.u32 %s160, 1
          %s299 = smul.addr %s298, 16
          %s300 = scalar_lea.vmem [#allocation11], %s299
          %s301 = smul.u32 16, %s19
          %s303 = ssub.s32 256, 256
          %304 = vsyncadd %s297, %s303
          %s305 = smul.addr %s301, 16
          %s306 = scalar_lea.hbm %s6, %s305
          %s308 = sshll.u32 %s300, 4
          %s309 = int_to_ptr.vmem [resolvable:$true] %s308
          %311 = dma.hbm_to_vmem [thread:$0]  %s306, 256, %s309, %s297
        $region44: #{tpu_custom_call.1} parent=35 // pred_fallthru
          _
      $region36: #{tpu_custom_call.1} parent=5 // pred_fallthru
        _
      %p312 = scmp.le.s32.totalorder 1, %s19
      %p313 = scmp.lt.s32.totalorder %s19, 3
      %p314 = pnand %p312, %p313
      %p315 = pneg %p314
      // Predicated region
      $region45: #{tpu_custom_call.1} parent=5 // pred_check
        _
      $region46: #{tpu_custom_call.1} parent=5 // pred_check_branch
        %317 = sbr.rel (%p314) target = $region48
      $region47: #{tpu_custom_call.1} parent=5 // pred_region
        %s318 = ssub.s32 %s19, 1
        // Predicated region
        $region49: #{tpu_custom_call.1} parent=47 // pred_check
          %p319 = pneg %p61
        $region50: #{tpu_custom_call.1} parent=47 // pred_check_branch
          %321 = sbr.rel (%p319) target = $region52
        $region51: #{tpu_custom_call.1} parent=47 // pred_region
          %322 = dma.done [#allocation3], 2048
        $region52: #{tpu_custom_call.1} parent=47 // pred_fallthru
          _
        // Predicated region
        $region53: #{tpu_custom_call.1} parent=47 // pred_check
          %p323 = pneg %p82
        $region54: #{tpu_custom_call.1} parent=47 // pred_check_branch
          %325 = sbr.rel (%p323) target = $region56
        $region55: #{tpu_custom_call.1} parent=47 // pred_region
          %326 = dma.done [#allocation6], 128
        $region56: #{tpu_custom_call.1} parent=47 // pred_fallthru
          _
        // Predicated region
        $region57: #{tpu_custom_call.1} parent=47 // pred_check
          %p327 = pneg %p103
        $region58: #{tpu_custom_call.1} parent=47 // pred_check_branch
          %329 = sbr.rel (%p327) target = $region60
        $region59: #{tpu_custom_call.1} parent=47 // pred_region
          %330 = dma.done [#allocation6], 32768
        $region60: #{tpu_custom_call.1} parent=47 // pred_fallthru
          _
        // Predicated region
        $region61: #{tpu_custom_call.1} parent=47 // pred_check
          %p331 = pneg %p124
        $region62: #{tpu_custom_call.1} parent=47 // pred_check_branch
          %333 = sbr.rel (%p331) target = $region64
        $region63: #{tpu_custom_call.1} parent=47 // pred_region
          %334 = dma.done [#allocation9], 64
        $region64: #{tpu_custom_call.1} parent=47 // pred_fallthru
          _
        %s335 = sand.u32 %s24, 1
        %s336 = scalar_lea.sflag [#allocation3], %s335
        %s337 = sand.u32 %s137, 1
        %s338 = smul.addr %s337, 4096
        %s339 = scalar_lea.vmem [#allocation10], %s338
        // Predicated region
        $region65: #{tpu_custom_call.1} parent=47 // pred_check
          %p340 = pneg %p150
        $region66: #{tpu_custom_call.1} parent=47 // pred_check_branch
          %342 = sbr.rel (%p340) target = $region68
        $region67: #{tpu_custom_call.1} parent=47 // pred_region
          %343 = dma.done %s336, 65536
        $region68: #{tpu_custom_call.1} parent=47 // pred_fallthru
          _
        %s344 = sand.u32 %s24, 1
        %s345 = scalar_lea.sflag [#allocation3], %s344
        %s346 = sand.u32 %s163, 1
        %s347 = smul.addr %s346, 16
        %s348 = scalar_lea.vmem [#allocation11], %s347
        // Predicated region
        $region69: #{tpu_custom_call.1} parent=47 // pred_check
          %p349 = pneg %p176
        $region70: #{tpu_custom_call.1} parent=47 // pred_check_branch
          %351 = sbr.rel (%p349) target = $region72
        $region71: #{tpu_custom_call.1} parent=47 // pred_region
          %352 = dma.done %s345, 256
        $region72: #{tpu_custom_call.1} parent=47 // pred_fallthru
          _
        %p353 = pneg %p40
        %p354 = pneg %p37
        %p355 = pneg %p61
        %p356 = pneg %p58
        %p357 = pneg %p82
        %p358 = pneg %p79
        %p359 = pneg %p103
        %p360 = pneg %p100
        %p361 = pneg %p124
        %p362 = pneg %p121
        %s363 = sand.u32 %s24, 1
        %s364 = scalar_lea.sflag [#allocation3], %s363
        %s365 = sand.u32 %s137, 1
        %s366 = smul.addr %s365, 4096
        %s367 = scalar_lea.vmem [#allocation10], %s366
        %p368 = pneg %p150
        %p369 = pneg %p147
        %s370 = sand.u32 %s24, 1
        %s371 = scalar_lea.sflag [#allocation3], %s370
        %s372 = sand.u32 %s163, 1
        %s373 = smul.addr %s372, 16
        %s374 = scalar_lea.vmem [#allocation11], %s373
        %p375 = pneg %p176
        %p376 = pneg %p173
        %p377 = pneg %p202
        %p378 = pneg %p199
        %s379 = sand.u32 %s189, 1
        %s380 = scalar_lea.sflag [#allocation4], %s379
        %s381 = sand.u32 %s189, 1
        %s382 = smul.addr %s381, 512
        %s383 = scalar_lea.vmem [#allocation12], %s382
        %s384 = smul.u32 16, %s24
        %s385 = smul.u32 16, %s24
        %s386 = smul.u32 16, %s24
        %v388 = vld [vmem:[%s0] sm:$0xf]
        %v389 = vld [vmem:[%s0 + $0x4] sm:$0xf]
        %v390 = vld [vmem:[%s0 + $0x8] sm:$0xf]
        %v391 = vld [vmem:[%s0 + $0xc] sm:$0xf]
        %v392 = vld [vmem:[%s0 + $0x10] sm:$0xf]
        %v393 = vld [vmem:[%s0 + $0x14] sm:$0xf]
        %v394 = vld [vmem:[%s0 + $0x18] sm:$0xf]
        %v395 = vld [vmem:[%s0 + $0x1c] sm:$0xf]
        %v396 = vld [vmem:[#allocation2] sm:$0xff]
        %v397 = vld [vmem:[#allocation2 + $0x8] sm:$0xff]
        %v398 = vld [vmem:[#allocation2 + $0x10] sm:$0xff]
        %v399 = vld [vmem:[#allocation2 + $0x18] sm:$0xff]
        %v400 = vld [vmem:[#allocation2 + $0x20] sm:$0xff]
        %v401 = vld [vmem:[#allocation2 + $0x28] sm:$0xff]
        %v402 = vld [vmem:[#allocation2 + $0x30] sm:$0xff]
        %v403 = vld [vmem:[#allocation2 + $0x38] sm:$0xff]
        %v404 = vld [vmem:[#allocation2 + $0x40] sm:$0xff]
        %v405 = vld [vmem:[#allocation2 + $0x48] sm:$0xff]
        %v406 = vld [vmem:[#allocation2 + $0x50] sm:$0xff]
        %v407 = vld [vmem:[#allocation2 + $0x58] sm:$0xff]
        %v408 = vld [vmem:[#allocation2 + $0x60] sm:$0xff]
        %v409 = vld [vmem:[#allocation2 + $0x68] sm:$0xff]
        %v410 = vld [vmem:[#allocation2 + $0x70] sm:$0xff]
        %v411 = vld [vmem:[#allocation2 + $0x78] sm:$0xff]
        %v412 = vld [vmem:[#allocation5] sm:$0xff]
        %v414 = vlaneseq
        %v415 = vshrl.u32 %v414, 7
        %v416 = vsub.s32 0, %v415
        %v417 = vrot.slane %v412, %v416
        %v418 = vlaneseq
        %v419 = vshrl.u32 %v418, 7
        %v420 = vsub.s32 1, %v419
        %v421 = vrot.slane %v412, %v420
        %v422 = vlaneseq
        %v423 = vshrl.u32 %v422, 7
        %v424 = vsub.s32 2, %v423
        %v425 = vrot.slane %v412, %v424
        %v426 = vlaneseq
        %v427 = vshrl.u32 %v426, 7
        %v428 = vsub.s32 3, %v427
        %v429 = vrot.slane %v412, %v428
        %v430 = vlaneseq
        %v431 = vshrl.u32 %v430, 7
        %v432 = vsub.s32 4, %v431
        %v433 = vrot.slane %v412, %v432
        %v434 = vlaneseq
        %v435 = vshrl.u32 %v434, 7
        %v436 = vsub.s32 5, %v435
        %v437 = vrot.slane %v412, %v436
        %v438 = vlaneseq
        %v439 = vshrl.u32 %v438, 7
        %v440 = vsub.s32 6, %v439
        %v441 = vrot.slane %v412, %v440
        %v442 = vlaneseq
        %v443 = vshrl.u32 %v442, 7
        %v444 = vsub.s32 7, %v443
        %v445 = vrot.slane %v412, %v444
        %v462 = vunpack.c.l.b16 %v388
        %v463 = vunpack.c.l.b16 %v389
        %v464 = vunpack.c.l.b16 %v390
        %v465 = vunpack.c.l.b16 %v391
        %v466 = vunpack.c.l.b16 %v392
        %v467 = vunpack.c.l.b16 %v393
        %v468 = vunpack.c.l.b16 %v394
        %v469 = vunpack.c.l.b16 %v395
        %v470 = vpack.c.b16 %v463, %v462
        %v471 = vpack.c.b16 %v465, %v464
        %v472 = vpack.c.b16 %v467, %v466
        %v473 = vpack.c.b16 %v469, %v468
        %v490 = vunpack.c.l.b16 %v396
        %v491 = vunpack.c.h.b16 %v396
        %v492 = vunpack.c.l.b16 %v397
        %v493 = vunpack.c.h.b16 %v397
        %v494 = vunpack.c.l.b16 %v398
        %v495 = vunpack.c.h.b16 %v398
        %v496 = vunpack.c.l.b16 %v399
        %v497 = vunpack.c.h.b16 %v399
        %v498 = vunpack.c.l.b16 %v400
        %v499 = vunpack.c.h.b16 %v400
        %v500 = vunpack.c.l.b16 %v401
        %v501 = vunpack.c.h.b16 %v401
        %v502 = vunpack.c.l.b16 %v402
        %v503 = vunpack.c.h.b16 %v402
        %v504 = vunpack.c.l.b16 %v403
        %v505 = vunpack.c.h.b16 %v403
        %v506 = vunpack.c.l.b16 %v404
        %v507 = vunpack.c.h.b16 %v404
        %v508 = vunpack.c.l.b16 %v405
        %v509 = vunpack.c.h.b16 %v405
        %v510 = vunpack.c.l.b16 %v406
        %v511 = vunpack.c.h.b16 %v406
        %v512 = vunpack.c.l.b16 %v407
        %v513 = vunpack.c.h.b16 %v407
        %v514 = vunpack.c.l.b16 %v408
        %v515 = vunpack.c.h.b16 %v408
        %v516 = vunpack.c.l.b16 %v409
        %v517 = vunpack.c.h.b16 %v409
        %v518 = vunpack.c.l.b16 %v410
        %v519 = vunpack.c.h.b16 %v410
        %v520 = vunpack.c.l.b16 %v411
        %v521 = vunpack.c.h.b16 %v411
        %v522 = vpack.c.b16 %v498, %v490
        %v523 = vpack.c.b16 %v499, %v491
        %v524 = vpack.c.b16 %v500, %v492
        %v525 = vpack.c.b16 %v501, %v493
        %v526 = vpack.c.b16 %v502, %v494
        %v527 = vpack.c.b16 %v503, %v495
        %v528 = vpack.c.b16 %v504, %v496
        %v529 = vpack.c.b16 %v505, %v497
        %v530 = vpack.c.b16 %v514, %v506
        %v531 = vpack.c.b16 %v515, %v507
        %v532 = vpack.c.b16 %v516, %v508
        %v533 = vpack.c.b16 %v517, %v509
        %v534 = vpack.c.b16 %v518, %v510
        %v535 = vpack.c.b16 %v519, %v511
        %v536 = vpack.c.b16 %v520, %v512
        %v537 = vpack.c.b16 %v521, %v513
        %vm554 = vcmask 261120
        %v556 = vsel %vm554, %v470, 0
        %v559 = vsel %vm554, %v471, 0
        %v562 = vsel %vm554, %v472, 0
        %v565 = vsel %vm554, %v473, 0
        %567 = vmatprep.subr.bf16.mxu0 0
        %568 = vmatpush1.bf16.msra.mxu0 0
        %569 = vmatprep.subr.bf16.mxu0 0
        %570 = vmatpush1.bf16.msra.mxu0 0
        %571 = vmatprep.subr.bf16.mxu0 0
        %572 = vmatpush1.bf16.msra.mxu0 0
        %573 = vmatprep.subr.bf16.mxu0 0
        %574 = vmatpush1.bf16.msra.mxu0 0
        %575 = vmatprep.subr.bf16.mxu0 0
        %576 = vmatpush1.bf16.msra.mxu0 0
        %577 = vmatprep.subr.bf16.mxu0 0
        %578 = vmatpush1.bf16.msra.mxu0 0
        %579 = vmatprep.subr.bf16.mxu0 %v531
        %580 = vmatpush1.bf16.msra.mxu0 %v530
        %581 = vmatprep.subr.bf16.mxu0 %v523
        %582 = vmatpush1.bf16.msra.mxu0 %v522
        %583 = vmatprep.subr.bf16.mxu0 0
        %584 = vmatpush2.bf16.msra.mxu0 0
        %585 = vmatprep.subr.bf16.mxu0 0
        %586 = vmatpush2.bf16.msra.mxu0 0
        %587 = vmatprep.subr.bf16.mxu0 0
        %588 = vmatpush2.bf16.msra.mxu0 0
        %589 = vmatprep.subr.bf16.mxu0 0
        %590 = vmatpush2.bf16.msra.mxu0 0
        %591 = vmatprep.subr.bf16.mxu0 0
        %592 = vmatpush2.bf16.msra.mxu0 0
        %593 = vmatprep.subr.bf16.mxu0 0
        %594 = vmatpush2.bf16.msra.mxu0 0
        %595 = vmatprep.subr.bf16.mxu0 0
        %596 = vmatpush2.bf16.msra.mxu0 0
        %597 = vmatprep.subr.bf16.mxu0 0
        %598 = vmatpush2.bf16.msra.mxu0 0
        %599 = vmatprep.mubr.bf16.mxu0 0
        %600 = vmatmul.mubr.bf16.gmra.mxu0 %v556
        %v601 = vpop.f32.mrf.mxu0
        %v602 = vadd.f32 %v417, %v601
        %v603 = vpop.f32.mrf.mxu0
        %v604 = vadd.f32 %v421, %v603
        %v605 = vpop.f32.mrf.mxu0
        %v606 = vadd.f32 %v417, %v605
        %v607 = vpop.f32.mrf.mxu0
        %v608 = vadd.f32 %v421, %v607
        %609 = vmatprep.mubr.bf16.mxu0 0
        %610 = vmatmul.mubr.bf16.gmra.mxu0 %v559
        %v611 = vpop.f32.mrf.mxu0
        %v612 = vadd.f32 %v417, %v611
        %v613 = vpop.f32.mrf.mxu0
        %v614 = vadd.f32 %v421, %v613
        %v615 = vpop.f32.mrf.mxu0
        %v616 = vadd.f32 %v417, %v615
        %v617 = vpop.f32.mrf.mxu0
        %v618 = vadd.f32 %v421, %v617
        %619 = vmatprep.mubr.bf16.mxu0 0
        %620 = vmatmul.mubr.bf16.gmra.mxu0 %v562
        %v621 = vpop.f32.mrf.mxu0
        %v622 = vadd.f32 %v417, %v621
        %v623 = vpop.f32.mrf.mxu0
        %v624 = vadd.f32 %v421, %v623
        %v625 = vpop.f32.mrf.mxu0
        %v626 = vadd.f32 %v417, %v625
        %v627 = vpop.f32.mrf.mxu0
        %v628 = vadd.f32 %v421, %v627
        %629 = vmatprep.mubr.bf16.mxu0 0
        %630 = vmatmul.mubr.bf16.gmra.mxu0 %v565
        %v631 = vpop.f32.mrf.mxu0
        %v632 = vadd.f32 %v417, %v631
        %v633 = vpop.f32.mrf.mxu0
        %v634 = vadd.f32 %v421, %v633
        %v635 = vpop.f32.mrf.mxu0
        %v636 = vadd.f32 %v417, %v635
        %v637 = vpop.f32.mrf.mxu0
        %v638 = vadd.f32 %v421, %v637
        %639 = vdwg.mxu0
        %640 = vmatprep.subr.bf16.mxu0 0
        %641 = vmatpush1.bf16.msra.mxu0 0
        %642 = vmatprep.subr.bf16.mxu0 0
        %643 = vmatpush1.bf16.msra.mxu0 0
        %644 = vmatprep.subr.bf16.mxu0 0
        %645 = vmatpush1.bf16.msra.mxu0 0
        %646 = vmatprep.subr.bf16.mxu0 0
        %647 = vmatpush1.bf16.msra.mxu0 0
        %648 = vmatprep.subr.bf16.mxu0 0
        %649 = vmatpush1.bf16.msra.mxu0 0
        %650 = vmatprep.subr.bf16.mxu0 0
        %651 = vmatpush1.bf16.msra.mxu0 0
        %652 = vmatprep.subr.bf16.mxu0 %v533
        %653 = vmatpush1.bf16.msra.mxu0 %v532
        %654 = vmatprep.subr.bf16.mxu0 %v525
        %655 = vmatpush1.bf16.msra.mxu0 %v524
        %656 = vmatprep.subr.bf16.mxu0 0
        %657 = vmatpush2.bf16.msra.mxu0 0
        %658 = vmatprep.subr.bf16.mxu0 0
        %659 = vmatpush2.bf16.msra.mxu0 0
        %660 = vmatprep.subr.bf16.mxu0 0
        %661 = vmatpush2.bf16.msra.mxu0 0
        %662 = vmatprep.subr.bf16.mxu0 0
        %663 = vmatpush2.bf16.msra.mxu0 0
        %664 = vmatprep.subr.bf16.mxu0 0
        %665 = vmatpush2.bf16.msra.mxu0 0
        %666 = vmatprep.subr.bf16.mxu0 0
        %667 = vmatpush2.bf16.msra.mxu0 0
        %668 = vmatprep.subr.bf16.mxu0 0
        %669 = vmatpush2.bf16.msra.mxu0 0
        %670 = vmatprep.subr.bf16.mxu0 0
        %671 = vmatpush2.bf16.msra.mxu0 0
        %672 = vmatprep.mubr.bf16.mxu0 0
        %673 = vmatmul.mubr.bf16.gmra.mxu0 %v556
        %v674 = vpop.f32.mrf.mxu0
        %v675 = vadd.f32 %v425, %v674
        %v676 = vpop.f32.mrf.mxu0
        %v677 = vadd.f32 %v429, %v676
        %v678 = vpop.f32.mrf.mxu0
        %v679 = vadd.f32 %v425, %v678
        %v680 = vpop.f32.mrf.mxu0
        %v681 = vadd.f32 %v429, %v680
        %682 = vmatprep.mubr.bf16.mxu0 0
        %683 = vmatmul.mubr.bf16.gmra.mxu0 %v559
        %v684 = vpop.f32.mrf.mxu0
        %v685 = vadd.f32 %v425, %v684
        %v686 = vpop.f32.mrf.mxu0
        %v687 = vadd.f32 %v429, %v686
        %v688 = vpop.f32.mrf.mxu0
        %v689 = vadd.f32 %v425, %v688
        %v690 = vpop.f32.mrf.mxu0
        %v691 = vadd.f32 %v429, %v690
        %692 = vmatprep.mubr.bf16.mxu0 0
        %693 = vmatmul.mubr.bf16.gmra.mxu0 %v562
        %v694 = vpop.f32.mrf.mxu0
        %v695 = vadd.f32 %v425, %v694
        %v696 = vpop.f32.mrf.mxu0
        %v697 = vadd.f32 %v429, %v696
        %v698 = vpop.f32.mrf.mxu0
        %v699 = vadd.f32 %v425, %v698
        %v700 = vpop.f32.mrf.mxu0
        %v701 = vadd.f32 %v429, %v700
        %702 = vmatprep.mubr.bf16.mxu0 0
        %703 = vmatmul.mubr.bf16.gmra.mxu0 %v565
        %v704 = vpop.f32.mrf.mxu0
        %v705 = vadd.f32 %v425, %v704
        %v706 = vpop.f32.mrf.mxu0
        %v707 = vadd.f32 %v429, %v706
        %v708 = vpop.f32.mrf.mxu0
        %v709 = vadd.f32 %v425, %v708
        %v710 = vpop.f32.mrf.mxu0
        %v711 = vadd.f32 %v429, %v710
        %712 = vdwg.mxu0
        %713 = vmatprep.subr.bf16.mxu0 0
        %714 = vmatpush1.bf16.msra.mxu0 0
        %715 = vmatprep.subr.bf16.mxu0 0
        %716 = vmatpush1.bf16.msra.mxu0 0
        %717 = vmatprep.subr.bf16.mxu0 0
        %718 = vmatpush1.bf16.msra.mxu0 0
        %719 = vmatprep.subr.bf16.mxu0 0
        %720 = vmatpush1.bf16.msra.mxu0 0
        %721 = vmatprep.subr.bf16.mxu0 0
        %722 = vmatpush1.bf16.msra.mxu0 0
        %723 = vmatprep.subr.bf16.mxu0 0
        %724 = vmatpush1.bf16.msra.mxu0 0
        %725 = vmatprep.subr.bf16.mxu0 %v535
        %726 = vmatpush1.bf16.msra.mxu0 %v534
        %727 = vmatprep.subr.bf16.mxu0 %v527
        %728 = vmatpush1.bf16.msra.mxu0 %v526
        %729 = vmatprep.subr.bf16.mxu0 0
        %730 = vmatpush2.bf16.msra.mxu0 0
        %731 = vmatprep.subr.bf16.mxu0 0
        %732 = vmatpush2.bf16.msra.mxu0 0
        %733 = vmatprep.subr.bf16.mxu0 0
        %734 = vmatpush2.bf16.msra.mxu0 0
        %735 = vmatprep.subr.bf16.mxu0 0
        %736 = vmatpush2.bf16.msra.mxu0 0
        %737 = vmatprep.subr.bf16.mxu0 0
        %738 = vmatpush2.bf16.msra.mxu0 0
        %739 = vmatprep.subr.bf16.mxu0 0
        %740 = vmatpush2.bf16.msra.mxu0 0
        %741 = vmatprep.subr.bf16.mxu0 0
        %742 = vmatpush2.bf16.msra.mxu0 0
        %743 = vmatprep.subr.bf16.mxu0 0
        %744 = vmatpush2.bf16.msra.mxu0 0
        %745 = vmatprep.mubr.bf16.mxu0 0
        %746 = vmatmul.mubr.bf16.gmra.mxu0 %v556
        %v747 = vpop.f32.mrf.mxu0
        %v748 = vadd.f32 %v433, %v747
        %v749 = vpop.f32.mrf.mxu0
        %v750 = vadd.f32 %v437, %v749
        %v751 = vpop.f32.mrf.mxu0
        %v752 = vadd.f32 %v433, %v751
        %v753 = vpop.f32.mrf.mxu0
        %v754 = vadd.f32 %v437, %v753
        %755 = vmatprep.mubr.bf16.mxu0 0
        %756 = vmatmul.mubr.bf16.gmra.mxu0 %v559
        %v757 = vpop.f32.mrf.mxu0
        %v758 = vadd.f32 %v433, %v757
        %v759 = vpop.f32.mrf.mxu0
        %v760 = vadd.f32 %v437, %v759
        %v761 = vpop.f32.mrf.mxu0
        %v762 = vadd.f32 %v433, %v761
        %v763 = vpop.f32.mrf.mxu0
        %v764 = vadd.f32 %v437, %v763
        %765 = vmatprep.mubr.bf16.mxu0 0
        %766 = vmatmul.mubr.bf16.gmra.mxu0 %v562
        %v767 = vpop.f32.mrf.mxu0
        %v768 = vadd.f32 %v433, %v767
        %v769 = vpop.f32.mrf.mxu0
        %v770 = vadd.f32 %v437, %v769
        %v771 = vpop.f32.mrf.mxu0
        %v772 = vadd.f32 %v433, %v771
        %v773 = vpop.f32.mrf.mxu0
        %v774 = vadd.f32 %v437, %v773
        %775 = vmatprep.mubr.bf16.mxu0 0
        %776 = vmatmul.mubr.bf16.gmra.mxu0 %v565
        %v777 = vpop.f32.mrf.mxu0
        %v778 = vadd.f32 %v433, %v777
        %v779 = vpop.f32.mrf.mxu0
        %v780 = vadd.f32 %v437, %v779
        %v781 = vpop.f32.mrf.mxu0
        %v782 = vadd.f32 %v433, %v781
        %v783 = vpop.f32.mrf.mxu0
        %v784 = vadd.f32 %v437, %v783
        %785 = vdwg.mxu0
        %786 = vmatprep.subr.bf16.mxu0 0
        %787 = vmatpush1.bf16.msra.mxu0 0
        %788 = vmatprep.subr.bf16.mxu0 0
        %789 = vmatpush1.bf16.msra.mxu0 0
        %790 = vmatprep.subr.bf16.mxu0 0
        %791 = vmatpush1.bf16.msra.mxu0 0
        %792 = vmatprep.subr.bf16.mxu0 0
        %793 = vmatpush1.bf16.msra.mxu0 0
        %794 = vmatprep.subr.bf16.mxu0 0
        %795 = vmatpush1.bf16.msra.mxu0 0
        %796 = vmatprep.subr.bf16.mxu0 0
        %797 = vmatpush1.bf16.msra.mxu0 0
        %798 = vmatprep.subr.bf16.mxu0 %v537
        %799 = vmatpush1.bf16.msra.mxu0 %v536
        %800 = vmatprep.subr.bf16.mxu0 %v529
        %801 = vmatpush1.bf16.msra.mxu0 %v528
        %802 = vmatprep.subr.bf16.mxu0 0
        %803 = vmatpush2.bf16.msra.mxu0 0
        %804 = vmatprep.subr.bf16.mxu0 0
        %805 = vmatpush2.bf16.msra.mxu0 0
        %806 = vmatprep.subr.bf16.mxu0 0
        %807 = vmatpush2.bf16.msra.mxu0 0
        %808 = vmatprep.subr.bf16.mxu0 0
        %809 = vmatpush2.bf16.msra.mxu0 0
        %810 = vmatprep.subr.bf16.mxu0 0
        %811 = vmatpush2.bf16.msra.mxu0 0
        %812 = vmatprep.subr.bf16.mxu0 0
        %813 = vmatpush2.bf16.msra.mxu0 0
        %814 = vmatprep.subr.bf16.mxu0 0
        %815 = vmatpush2.bf16.msra.mxu0 0
        %816 = vmatprep.subr.bf16.mxu0 0
        %817 = vmatpush2.bf16.msra.mxu0 0
        %818 = vmatprep.mubr.bf16.mxu0 0
        %819 = vmatmul.mubr.bf16.gmra.mxu0 %v556
        %v820 = vpop.f32.mrf.mxu0
        %v821 = vadd.f32 %v441, %v820
        %v822 = vpop.f32.mrf.mxu0
        %v823 = vadd.f32 %v445, %v822
        %v824 = vpop.f32.mrf.mxu0
        %v825 = vadd.f32 %v441, %v824
        %v826 = vpop.f32.mrf.mxu0
        %v827 = vadd.f32 %v445, %v826
        %828 = vmatprep.mubr.bf16.mxu0 0
        %829 = vmatmul.mubr.bf16.gmra.mxu0 %v559
        %v830 = vpop.f32.mrf.mxu0
        %v831 = vadd.f32 %v441, %v830
        %v832 = vpop.f32.mrf.mxu0
        %v833 = vadd.f32 %v445, %v832
        %v834 = vpop.f32.mrf.mxu0
        %v835 = vadd.f32 %v441, %v834
        %v836 = vpop.f32.mrf.mxu0
        %v837 = vadd.f32 %v445, %v836
        %838 = vmatprep.mubr.bf16.mxu0 0
        %839 = vmatmul.mubr.bf16.gmra.mxu0 %v562
        %v840 = vpop.f32.mrf.mxu0
        %v841 = vadd.f32 %v441, %v840
        %v842 = vpop.f32.mrf.mxu0
        %v843 = vadd.f32 %v445, %v842
        %v844 = vpop.f32.mrf.mxu0
        %v845 = vadd.f32 %v441, %v844
        %v846 = vpop.f32.mrf.mxu0
        %v847 = vadd.f32 %v445, %v846
        %848 = vmatprep.mubr.bf16.mxu0 0
        %849 = vmatmul.mubr.bf16.gmra.mxu0 %v565
        %v850 = vpop.f32.mrf.mxu0
        %v851 = vadd.f32 %v441, %v850
        %v852 = vpop.f32.mrf.mxu0
        %v853 = vadd.f32 %v445, %v852
        %v854 = vpop.f32.mrf.mxu0
        %v855 = vadd.f32 %v441, %v854
        %v856 = vpop.f32.mrf.mxu0
        %v857 = vadd.f32 %v445, %v856
        %858 = vdwg.mxu0
        %v859 = vmax.f32 %v602, 0.0
        %v860 = vmax.f32 %v604, 0.0
        %v861 = vmax.f32 %v675, 0.0
        %v862 = vmax.f32 %v677, 0.0
        %v863 = vmax.f32 %v748, 0.0
        %v864 = vmax.f32 %v750, 0.0
        %v865 = vmax.f32 %v821, 0.0
        %v866 = vmax.f32 %v823, 0.0
        %v867 = vmax.f32 %v606, 0.0
        %v868 = vmax.f32 %v608, 0.0
        %v869 = vmax.f32 %v679, 0.0
        %v870 = vmax.f32 %v681, 0.0
        %v871 = vmax.f32 %v752, 0.0
        %v872 = vmax.f32 %v754, 0.0
        %v873 = vmax.f32 %v825, 0.0
        %v874 = vmax.f32 %v827, 0.0
        %v875 = vmax.f32 %v612, 0.0
        %v876 = vmax.f32 %v614, 0.0
        %v877 = vmax.f32 %v685, 0.0
        %v878 = vmax.f32 %v687, 0.0
        %v879 = vmax.f32 %v758, 0.0
        %v880 = vmax.f32 %v760, 0.0
        %v881 = vmax.f32 %v831, 0.0
        %v882 = vmax.f32 %v833, 0.0
        %v883 = vmax.f32 %v616, 0.0
        %v884 = vmax.f32 %v618, 0.0
        %v885 = vmax.f32 %v689, 0.0
        %v886 = vmax.f32 %v691, 0.0
        %v887 = vmax.f32 %v762, 0.0
        %v888 = vmax.f32 %v764, 0.0
        %v889 = vmax.f32 %v835, 0.0
        %v890 = vmax.f32 %v837, 0.0
        %v891 = vmax.f32 %v622, 0.0
        %v892 = vmax.f32 %v624, 0.0
        %v893 = vmax.f32 %v695, 0.0
        %v894 = vmax.f32 %v697, 0.0
        %v895 = vmax.f32 %v768, 0.0
        %v896 = vmax.f32 %v770, 0.0
        %v897 = vmax.f32 %v841, 0.0
        %v898 = vmax.f32 %v843, 0.0
        %v899 = vmax.f32 %v626, 0.0
        %v900 = vmax.f32 %v628, 0.0
        %v901 = vmax.f32 %v699, 0.0
        %v902 = vmax.f32 %v701, 0.0
        %v903 = vmax.f32 %v772, 0.0
        %v904 = vmax.f32 %v774, 0.0
        %v905 = vmax.f32 %v845, 0.0
        %v906 = vmax.f32 %v847, 0.0
        %v907 = vmax.f32 %v632, 0.0
        %v908 = vmax.f32 %v634, 0.0
        %v909 = vmax.f32 %v705, 0.0
        %v910 = vmax.f32 %v707, 0.0
        %v911 = vmax.f32 %v778, 0.0
        %v912 = vmax.f32 %v780, 0.0
        %v913 = vmax.f32 %v851, 0.0
        %v914 = vmax.f32 %v853, 0.0
        %v915 = vmax.f32 %v636, 0.0
        %v916 = vmax.f32 %v638, 0.0
        %v917 = vmax.f32 %v709, 0.0
        %v918 = vmax.f32 %v711, 0.0
        %v919 = vmax.f32 %v782, 0.0
        %v920 = vmax.f32 %v784, 0.0
        %v921 = vmax.f32 %v855, 0.0
        %v922 = vmax.f32 %v857, 0.0
        %v923 = vpack.c.bf16 %v867, %v859
        %v924 = vpack.c.bf16 %v868, %v860
        %v925 = vpack.c.bf16 %v869, %v861
        %v926 = vpack.c.bf16 %v870, %v862
        %v927 = vpack.c.bf16 %v871, %v863
        %v928 = vpack.c.bf16 %v872, %v864
        %v929 = vpack.c.bf16 %v873, %v865
        %v930 = vpack.c.bf16 %v874, %v866
        %v931 = vpack.c.bf16 %v883, %v875
        %v932 = vpack.c.bf16 %v884, %v876
        %v933 = vpack.c.bf16 %v885, %v877
        %v934 = vpack.c.bf16 %v886, %v878
        %v935 = vpack.c.bf16 %v887, %v879
        %v936 = vpack.c.bf16 %v888, %v880
        %v937 = vpack.c.bf16 %v889, %v881
        %v938 = vpack.c.bf16 %v890, %v882
        %v939 = vpack.c.bf16 %v899, %v891
        %v940 = vpack.c.bf16 %v900, %v892
        %v941 = vpack.c.bf16 %v901, %v893
        %v942 = vpack.c.bf16 %v902, %v894
        %v943 = vpack.c.bf16 %v903, %v895
        %v944 = vpack.c.bf16 %v904, %v896
        %v945 = vpack.c.bf16 %v905, %v897
        %v946 = vpack.c.bf16 %v906, %v898
        %v947 = vpack.c.bf16 %v915, %v907
        %v948 = vpack.c.bf16 %v916, %v908
        %v949 = vpack.c.bf16 %v917, %v909
        %v950 = vpack.c.bf16 %v918, %v910
        %v951 = vpack.c.bf16 %v919, %v911
        %v952 = vpack.c.bf16 %v920, %v912
        %v953 = vpack.c.bf16 %v921, %v913
        %v954 = vpack.c.bf16 %v922, %v914
        %v955 = vld [vmem:[#allocation7] sm:$0xff]
        %v956 = vld [vmem:[#allocation7 + $0x8] sm:$0xff]
        %v957 = vld [vmem:[#allocation7 + $0x10] sm:$0xff]
        %v958 = vld [vmem:[#allocation7 + $0x18] sm:$0xff]
        %v959 = vld [vmem:[#allocation7 + $0x20] sm:$0xff]
        %v960 = vld [vmem:[#allocation7 + $0x28] sm:$0xff]
        %v961 = vld [vmem:[#allocation7 + $0x30] sm:$0xff]
        %v962 = vld [vmem:[#allocation7 + $0x38] sm:$0xff]
        %v963 = vld [vmem:[#allocation7 + $0x40] sm:$0xff]
        %v964 = vld [vmem:[#allocation7 + $0x48] sm:$0xff]
        %v965 = vld [vmem:[#allocation7 + $0x50] sm:$0xff]
        %v966 = vld [vmem:[#allocation7 + $0x58] sm:$0xff]
        %v967 = vld [vmem:[#allocation7 + $0x60] sm:$0xff]
        %v968 = vld [vmem:[#allocation7 + $0x68] sm:$0xff]
        %v969 = vld [vmem:[#allocation7 + $0x70] sm:$0xff]
        %v970 = vld [vmem:[#allocation7 + $0x78] sm:$0xff]
        %v971 = vld [vmem:[#allocation7 + $0x80] sm:$0xff]
        %v972 = vld [vmem:[#allocation7 + $0x88] sm:$0xff]
        %v973 = vld [vmem:[#allocation7 + $0x90] sm:$0xff]
        %v974 = vld [vmem:[#allocation7 + $0x98] sm:$0xff]
        %v975 = vld [vmem:[#allocation7 + $0xa0] sm:$0xff]
        %v976 = vld [vmem:[#allocation7 + $0xa8] sm:$0xff]
        %v977 = vld [vmem:[#allocation7 + $0xb0] sm:$0xff]
        %v978 = vld [vmem:[#allocation7 + $0xb8] sm:$0xff]
        %v979 = vld [vmem:[#allocation7 + $0xc0] sm:$0xff]
        %v980 = vld [vmem:[#allocation7 + $0xc8] sm:$0xff]
        %v981 = vld [vmem:[#allocation7 + $0xd0] sm:$0xff]
        %v982 = vld [vmem:[#allocation7 + $0xd8] sm:$0xff]
        %v983 = vld [vmem:[#allocation7 + $0xe0] sm:$0xff]
        %v984 = vld [vmem:[#allocation7 + $0xe8] sm:$0xff]
        %v985 = vld [vmem:[#allocation7 + $0xf0] sm:$0xff]
        %v986 = vld [vmem:[#allocation7 + $0xf8] sm:$0xff]
        %v987 = vld [vmem:[#allocation7 + $0x100] sm:$0xff]
        %v988 = vld [vmem:[#allocation7 + $0x108] sm:$0xff]
        %v989 = vld [vmem:[#allocation7 + $0x110] sm:$0xff]
        %v990 = vld [vmem:[#allocation7 + $0x118] sm:$0xff]
        %v991 = vld [vmem:[#allocation7 + $0x120] sm:$0xff]
        %v992 = vld [vmem:[#allocation7 + $0x128] sm:$0xff]
        %v993 = vld [vmem:[#allocation7 + $0x130] sm:$0xff]
        %v994 = vld [vmem:[#allocation7 + $0x138] sm:$0xff]
        %v995 = vld [vmem:[#allocation7 + $0x140] sm:$0xff]
        %v996 = vld [vmem:[#allocation7 + $0x148] sm:$0xff]
        %v997 = vld [vmem:[#allocation7 + $0x150] sm:$0xff]
        %v998 = vld [vmem:[#allocation7 + $0x158] sm:$0xff]
        %v999 = vld [vmem:[#allocation7 + $0x160] sm:$0xff]
        %v1000 = vld [vmem:[#allocation7 + $0x168] sm:$0xff]
        %v1001 = vld [vmem:[#allocation7 + $0x170] sm:$0xff]
        %v1002 = vld [vmem:[#allocation7 + $0x178] sm:$0xff]
        %v1003 = vld [vmem:[#allocation7 + $0x180] sm:$0xff]
        %v1004 = vld [vmem:[#allocation7 + $0x188] sm:$0xff]
        %v1005 = vld [vmem:[#allocation7 + $0x190] sm:$0xff]
        %v1006 = vld [vmem:[#allocation7 + $0x198] sm:$0xff]
        %v1007 = vld [vmem:[#allocation7 + $0x1a0] sm:$0xff]
        %v1008 = vld [vmem:[#allocation7 + $0x1a8] sm:$0xff]
        %v1009 = vld [vmem:[#allocation7 + $0x1b0] sm:$0xff]
        %v1010 = vld [vmem:[#allocation7 + $0x1b8] sm:$0xff]
        %v1011 = vld [vmem:[#allocation7 + $0x1c0] sm:$0xff]
        %v1012 = vld [vmem:[#allocation7 + $0x1c8] sm:$0xff]
        %v1013 = vld [vmem:[#allocation7 + $0x1d0] sm:$0xff]
        %v1014 = vld [vmem:[#allocation7 + $0x1d8] sm:$0xff]
        %v1015 = vld [vmem:[#allocation7 + $0x1e0] sm:$0xff]
        %v1016 = vld [vmem:[#allocation7 + $0x1e8] sm:$0xff]
        %v1017 = vld [vmem:[#allocation7 + $0x1f0] sm:$0xff]
        %v1018 = vld [vmem:[#allocation7 + $0x1f8] sm:$0xff]
        %v1019 = vld [vmem:[#allocation7 + $0x200] sm:$0xff]
        %v1020 = vld [vmem:[#allocation7 + $0x208] sm:$0xff]
        %v1021 = vld [vmem:[#allocation7 + $0x210] sm:$0xff]
        %v1022 = vld [vmem:[#allocation7 + $0x218] sm:$0xff]
        %v1023 = vld [vmem:[#allocation7 + $0x220] sm:$0xff]
        %v1024 = vld [vmem:[#allocation7 + $0x228] sm:$0xff]
        %v1025 = vld [vmem:[#allocation7 + $0x230] sm:$0xff]
        %v1026 = vld [vmem:[#allocation7 + $0x238] sm:$0xff]
        %v1027 = vld [vmem:[#allocation7 + $0x240] sm:$0xff]
        %v1028 = vld [vmem:[#allocation7 + $0x248] sm:$0xff]
        %v1029 = vld [vmem:[#allocation7 + $0x250] sm:$0xff]
        %v1030 = vld [vmem:[#allocation7 + $0x258] sm:$0xff]
        %v1031 = vld [vmem:[#allocation7 + $0x260] sm:$0xff]
        %v1032 = vld [vmem:[#allocation7 + $0x268] sm:$0xff]
        %v1033 = vld [vmem:[#allocation7 + $0x270] sm:$0xff]
        %v1034 = vld [vmem:[#allocation7 + $0x278] sm:$0xff]
        %v1035 = vld [vmem:[#allocation7 + $0x280] sm:$0xff]
        %v1036 = vld [vmem:[#allocation7 + $0x288] sm:$0xff]
        %v1037 = vld [vmem:[#allocation7 + $0x290] sm:$0xff]
        %v1038 = vld [vmem:[#allocation7 + $0x298] sm:$0xff]
        %v1039 = vld [vmem:[#allocation7 + $0x2a0] sm:$0xff]
        %v1040 = vld [vmem:[#allocation7 + $0x2a8] sm:$0xff]
        %v1041 = vld [vmem:[#allocation7 + $0x2b0] sm:$0xff]
        %v1042 = vld [vmem:[#allocation7 + $0x2b8] sm:$0xff]
        %v1043 = vld [vmem:[#allocation7 + $0x2c0] sm:$0xff]
        %v1044 = vld [vmem:[#allocation7 + $0x2c8] sm:$0xff]
        %v1045 = vld [vmem:[#allocation7 + $0x2d0] sm:$0xff]
        %v1046 = vld [vmem:[#allocation7 + $0x2d8] sm:$0xff]
        %v1047 = vld [vmem:[#allocation7 + $0x2e0] sm:$0xff]
        %v1048 = vld [vmem:[#allocation7 + $0x2e8] sm:$0xff]
        %v1049 = vld [vmem:[#allocation7 + $0x2f0] sm:$0xff]
        %v1050 = vld [vmem:[#allocation7 + $0x2f8] sm:$0xff]
        %v1051 = vld [vmem:[#allocation7 + $0x300] sm:$0xff]
        %v1052 = vld [vmem:[#allocation7 + $0x308] sm:$0xff]
        %v1053 = vld [vmem:[#allocation7 + $0x310] sm:$0xff]
        %v1054 = vld [vmem:[#allocation7 + $0x318] sm:$0xff]
        %v1055 = vld [vmem:[#allocation7 + $0x320] sm:$0xff]
        %v1056 = vld [vmem:[#allocation7 + $0x328] sm:$0xff]
        %v1057 = vld [vmem:[#allocation7 + $0x330] sm:$0xff]
        %v1058 = vld [vmem:[#allocation7 + $0x338] sm:$0xff]
        %v1059 = vld [vmem:[#allocation7 + $0x340] sm:$0xff]
        %v1060 = vld [vmem:[#allocation7 + $0x348] sm:$0xff]
        %v1061 = vld [vmem:[#allocation7 + $0x350] sm:$0xff]
        %v1062 = vld [vmem:[#allocation7 + $0x358] sm:$0xff]
        %v1063 = vld [vmem:[#allocation7 + $0x360] sm:$0xff]
        %v1064 = vld [vmem:[#allocation7 + $0x368] sm:$0xff]
        %v1065 = vld [vmem:[#allocation7 + $0x370] sm:$0xff]
        %v1066 = vld [vmem:[#allocation7 + $0x378] sm:$0xff]
        %v1067 = vld [vmem:[#allocation7 + $0x380] sm:$0xff]
        %v1068 = vld [vmem:[#allocation7 + $0x388] sm:$0xff]
        %v1069 = vld [vmem:[#allocation7 + $0x390] sm:$0xff]
        %v1070 = vld [vmem:[#allocation7 + $0x398] sm:$0xff]
        %v1071 = vld [vmem:[#allocation7 + $0x3a0] sm:$0xff]
        %v1072 = vld [vmem:[#allocation7 + $0x3a8] sm:$0xff]
        %v1073 = vld [vmem:[#allocation7 + $0x3b0] sm:$0xff]
        %v1074 = vld [vmem:[#allocation7 + $0x3b8] sm:$0xff]
        %v1075 = vld [vmem:[#allocation7 + $0x3c0] sm:$0xff]
        %v1076 = vld [vmem:[#allocation7 + $0x3c8] sm:$0xff]
        %v1077 = vld [vmem:[#allocation7 + $0x3d0] sm:$0xff]
        %v1078 = vld [vmem:[#allocation7 + $0x3d8] sm:$0xff]
        %v1079 = vld [vmem:[#allocation7 + $0x3e0] sm:$0xff]
        %v1080 = vld [vmem:[#allocation7 + $0x3e8] sm:$0xff]
        %v1081 = vld [vmem:[#allocation7 + $0x3f0] sm:$0xff]
        %v1082 = vld [vmem:[#allocation7 + $0x3f8] sm:$0xff]
        %v1083 = vld [vmem:[#allocation7 + $0x400] sm:$0xff]
        %v1084 = vld [vmem:[#allocation7 + $0x408] sm:$0xff]
        %v1085 = vld [vmem:[#allocation7 + $0x410] sm:$0xff]
        %v1086 = vld [vmem:[#allocation7 + $0x418] sm:$0xff]
        %v1087 = vld [vmem:[#allocation7 + $0x420] sm:$0xff]
        %v1088 = vld [vmem:[#allocation7 + $0x428] sm:$0xff]
        %v1089 = vld [vmem:[#allocation7 + $0x430] sm:$0xff]
        %v1090 = vld [vmem:[#allocation7 + $0x438] sm:$0xff]
        %v1091 = vld [vmem:[#allocation7 + $0x440] sm:$0xff]
        %v1092 = vld [vmem:[#allocation7 + $0x448] sm:$0xff]
        %v1093 = vld [vmem:[#allocation7 + $0x450] sm:$0xff]
        %v1094 = vld [vmem:[#allocation7 + $0x458] sm:$0xff]
        %v1095 = vld [vmem:[#allocation7 + $0x460] sm:$0xff]
        %v1096 = vld [vmem:[#allocation7 + $0x468] sm:$0xff]
        %v1097 = vld [vmem:[#allocation7 + $0x470] sm:$0xff]
        %v1098 = vld [vmem:[#allocation7 + $0x478] sm:$0xff]
        %v1099 = vld [vmem:[#allocation7 + $0x480] sm:$0xff]
        %v1100 = vld [vmem:[#allocation7 + $0x488] sm:$0xff]
        %v1101 = vld [vmem:[#allocation7 + $0x490] sm:$0xff]
        %v1102 = vld [vmem:[#allocation7 + $0x498] sm:$0xff]
        %v1103 = vld [vmem:[#allocation7 + $0x4a0] sm:$0xff]
        %v1104 = vld [vmem:[#allocation7 + $0x4a8] sm:$0xff]
        %v1105 = vld [vmem:[#allocation7 + $0x4b0] sm:$0xff]
        %v1106 = vld [vmem:[#allocation7 + $0x4b8] sm:$0xff]
        %v1107 = vld [vmem:[#allocation7 + $0x4c0] sm:$0xff]
        %v1108 = vld [vmem:[#allocation7 + $0x4c8] sm:$0xff]
        %v1109 = vld [vmem:[#allocation7 + $0x4d0] sm:$0xff]
        %v1110 = vld [vmem:[#allocation7 + $0x4d8] sm:$0xff]
        %v1111 = vld [vmem:[#allocation7 + $0x4e0] sm:$0xff]
        %v1112 = vld [vmem:[#allocation7 + $0x4e8] sm:$0xff]
        %v1113 = vld [vmem:[#allocation7 + $0x4f0] sm:$0xff]
        %v1114 = vld [vmem:[#allocation7 + $0x4f8] sm:$0xff]
        %v1115 = vld [vmem:[#allocation7 + $0x500] sm:$0xff]
        %v1116 = vld [vmem:[#allocation7 + $0x508] sm:$0xff]
        %v1117 = vld [vmem:[#allocation7 + $0x510] sm:$0xff]
        %v1118 = vld [vmem:[#allocation7 + $0x518] sm:$0xff]
        %v1119 = vld [vmem:[#allocation7 + $0x520] sm:$0xff]
        %v1120 = vld [vmem:[#allocation7 + $0x528] sm:$0xff]
        %v1121 = vld [vmem:[#allocation7 + $0x530] sm:$0xff]
        %v1122 = vld [vmem:[#allocation7 + $0x538] sm:$0xff]
        %v1123 = vld [vmem:[#allocation7 + $0x540] sm:$0xff]
        %v1124 = vld [vmem:[#allocation7 + $0x548] sm:$0xff]
        %v1125 = vld [vmem:[#allocation7 + $0x550] sm:$0xff]
        %v1126 = vld [vmem:[#allocation7 + $0x558] sm:$0xff]
        %v1127 = vld [vmem:[#allocation7 + $0x560] sm:$0xff]
        %v1128 = vld [vmem:[#allocation7 + $0x568] sm:$0xff]
        %v1129 = vld [vmem:[#allocation7 + $0x570] sm:$0xff]
        %v1130 = vld [vmem:[#allocation7 + $0x578] sm:$0xff]
        %v1131 = vld [vmem:[#allocation7 + $0x580] sm:$0xff]
        %v1132 = vld [vmem:[#allocation7 + $0x588] sm:$0xff]
        %v1133 = vld [vmem:[#allocation7 + $0x590] sm:$0xff]
        %v1134 = vld [vmem:[#allocation7 + $0x598] sm:$0xff]
        %v1135 = vld [vmem:[#allocation7 + $0x5a0] sm:$0xff]
        %v1136 = vld [vmem:[#allocation7 + $0x5a8] sm:$0xff]
        %v1137 = vld [vmem:[#allocation7 + $0x5b0] sm:$0xff]
        %v1138 = vld [vmem:[#allocation7 + $0x5b8] sm:$0xff]
        %v1139 = vld [vmem:[#allocation7 + $0x5c0] sm:$0xff]
        %v1140 = vld [vmem:[#allocation7 + $0x5c8] sm:$0xff]
        %v1141 = vld [vmem:[#allocation7 + $0x5d0] sm:$0xff]
        %v1142 = vld [vmem:[#allocation7 + $0x5d8] sm:$0xff]
        %v1143 = vld [vmem:[#allocation7 + $0x5e0] sm:$0xff]
        %v1144 = vld [vmem:[#allocation7 + $0x5e8] sm:$0xff]
        %v1145 = vld [vmem:[#allocation7 + $0x5f0] sm:$0xff]
        %v1146 = vld [vmem:[#allocation7 + $0x5f8] sm:$0xff]
        %v1147 = vld [vmem:[#allocation7 + $0x600] sm:$0xff]
        %v1148 = vld [vmem:[#allocation7 + $0x608] sm:$0xff]
        %v1149 = vld [vmem:[#allocation7 + $0x610] sm:$0xff]
        %v1150 = vld [vmem:[#allocation7 + $0x618] sm:$0xff]
        %v1151 = vld [vmem:[#allocation7 + $0x620] sm:$0xff]
        %v1152 = vld [vmem:[#allocation7 + $0x628] sm:$0xff]
        %v1153 = vld [vmem:[#allocation7 + $0x630] sm:$0xff]
        %v1154 = vld [vmem:[#allocation7 + $0x638] sm:$0xff]
        %v1155 = vld [vmem:[#allocation7 + $0x640] sm:$0xff]
        %v1156 = vld [vmem:[#allocation7 + $0x648] sm:$0xff]
        %v1157 = vld [vmem:[#allocation7 + $0x650] sm:$0xff]
        %v1158 = vld [vmem:[#allocation7 + $0x658] sm:$0xff]
        %v1159 = vld [vmem:[#allocation7 + $0x660] sm:$0xff]
        %v1160 = vld [vmem:[#allocation7 + $0x668] sm:$0xff]
        %v1161 = vld [vmem:[#allocation7 + $0x670] sm:$0xff]
        %v1162 = vld [vmem:[#allocation7 + $0x678] sm:$0xff]
        %v1163 = vld [vmem:[#allocation7 + $0x680] sm:$0xff]
        %v1164 = vld [vmem:[#allocation7 + $0x688] sm:$0xff]
        %v1165 = vld [vmem:[#allocation7 + $0x690] sm:$0xff]
        %v1166 = vld [vmem:[#allocation7 + $0x698] sm:$0xff]
        %v1167 = vld [vmem:[#allocation7 + $0x6a0] sm:$0xff]
        %v1168 = vld [vmem:[#allocation7 + $0x6a8] sm:$0xff]
        %v1169 = vld [vmem:[#allocation7 + $0x6b0] sm:$0xff]
        %v1170 = vld [vmem:[#allocation7 + $0x6b8] sm:$0xff]
        %v1171 = vld [vmem:[#allocation7 + $0x6c0] sm:$0xff]
        %v1172 = vld [vmem:[#allocation7 + $0x6c8] sm:$0xff]
        %v1173 = vld [vmem:[#allocation7 + $0x6d0] sm:$0xff]
        %v1174 = vld [vmem:[#allocation7 + $0x6d8] sm:$0xff]
        %v1175 = vld [vmem:[#allocation7 + $0x6e0] sm:$0xff]
        %v1176 = vld [vmem:[#allocation7 + $0x6e8] sm:$0xff]
        %v1177 = vld [vmem:[#allocation7 + $0x6f0] sm:$0xff]
        %v1178 = vld [vmem:[#allocation7 + $0x6f8] sm:$0xff]
        %v1179 = vld [vmem:[#allocation7 + $0x700] sm:$0xff]
        %v1180 = vld [vmem:[#allocation7 + $0x708] sm:$0xff]
        %v1181 = vld [vmem:[#allocation7 + $0x710] sm:$0xff]
        %v1182 = vld [vmem:[#allocation7 + $0x718] sm:$0xff]
        %v1183 = vld [vmem:[#allocation7 + $0x720] sm:$0xff]
        %v1184 = vld [vmem:[#allocation7 + $0x728] sm:$0xff]
        %v1185 = vld [vmem:[#allocation7 + $0x730] sm:$0xff]
        %v1186 = vld [vmem:[#allocation7 + $0x738] sm:$0xff]
        %v1187 = vld [vmem:[#allocation7 + $0x740] sm:$0xff]
        %v1188 = vld [vmem:[#allocation7 + $0x748] sm:$0xff]
        %v1189 = vld [vmem:[#allocation7 + $0x750] sm:$0xff]
        %v1190 = vld [vmem:[#allocation7 + $0x758] sm:$0xff]
        %v1191 = vld [vmem:[#allocation7 + $0x760] sm:$0xff]
        %v1192 = vld [vmem:[#allocation7 + $0x768] sm:$0xff]
        %v1193 = vld [vmem:[#allocation7 + $0x770] sm:$0xff]
        %v1194 = vld [vmem:[#allocation7 + $0x778] sm:$0xff]
        %v1195 = vld [vmem:[#allocation7 + $0x780] sm:$0xff]
        %v1196 = vld [vmem:[#allocation7 + $0x788] sm:$0xff]
        %v1197 = vld [vmem:[#allocation7 + $0x790] sm:$0xff]
        %v1198 = vld [vmem:[#allocation7 + $0x798] sm:$0xff]
        %v1199 = vld [vmem:[#allocation7 + $0x7a0] sm:$0xff]
        %v1200 = vld [vmem:[#allocation7 + $0x7a8] sm:$0xff]
        %v1201 = vld [vmem:[#allocation7 + $0x7b0] sm:$0xff]
        %v1202 = vld [vmem:[#allocation7 + $0x7b8] sm:$0xff]
        %v1203 = vld [vmem:[#allocation7 + $0x7c0] sm:$0xff]
        %v1204 = vld [vmem:[#allocation7 + $0x7c8] sm:$0xff]
        %v1205 = vld [vmem:[#allocation7 + $0x7d0] sm:$0xff]
        %v1206 = vld [vmem:[#allocation7 + $0x7d8] sm:$0xff]
        %v1207 = vld [vmem:[#allocation7 + $0x7e0] sm:$0xff]
        %v1208 = vld [vmem:[#allocation7 + $0x7e8] sm:$0xff]
        %v1209 = vld [vmem:[#allocation7 + $0x7f0] sm:$0xff]
        %v1210 = vld [vmem:[#allocation7 + $0x7f8] sm:$0xff]
        %v1211 = vld [vmem:[#allocation8] sm:$0xf]
        %v1213 = vlaneseq
        %v1214 = vshrl.u32 %v1213, 7
        %v1215 = vsub.s32 0, %v1214
        %v1216 = vrot.slane %v1211, %v1215
        %v1217 = vlaneseq
        %v1218 = vshrl.u32 %v1217, 7
        %v1219 = vsub.s32 1, %v1218
        %v1220 = vrot.slane %v1211, %v1219
        %v1221 = vlaneseq
        %v1222 = vshrl.u32 %v1221, 7
        %v1223 = vsub.s32 2, %v1222
        %v1224 = vrot.slane %v1211, %v1223
        %v1225 = vlaneseq
        %v1226 = vshrl.u32 %v1225, 7
        %v1227 = vsub.s32 3, %v1226
        %v1228 = vrot.slane %v1211, %v1227
        %v1489 = vunpack.c.l.b16 %v955
        %v1490 = vunpack.c.h.b16 %v955
        %v1491 = vunpack.c.l.b16 %v956
        %v1492 = vunpack.c.h.b16 %v956
        %v1493 = vunpack.c.l.b16 %v957
        %v1494 = vunpack.c.h.b16 %v957
        %v1495 = vunpack.c.l.b16 %v958
        %v1496 = vunpack.c.h.b16 %v958
        %v1497 = vunpack.c.l.b16 %v959
        %v1498 = vunpack.c.h.b16 %v959
        %v1499 = vunpack.c.l.b16 %v960
        %v1500 = vunpack.c.h.b16 %v960
        %v1501 = vunpack.c.l.b16 %v961
        %v1502 = vunpack.c.h.b16 %v961
        %v1503 = vunpack.c.l.b16 %v962
        %v1504 = vunpack.c.h.b16 %v962
        %v1505 = vunpack.c.l.b16 %v963
        %v1506 = vunpack.c.h.b16 %v963
        %v1507 = vunpack.c.l.b16 %v964
        %v1508 = vunpack.c.h.b16 %v964
        %v1509 = vunpack.c.l.b16 %v965
        %v1510 = vunpack.c.h.b16 %v965
        %v1511 = vunpack.c.l.b16 %v966
        %v1512 = vunpack.c.h.b16 %v966
        %v1513 = vunpack.c.l.b16 %v967
        %v1514 = vunpack.c.h.b16 %v967
        %v1515 = vunpack.c.l.b16 %v968
        %v1516 = vunpack.c.h.b16 %v968
        %v1517 = vunpack.c.l.b16 %v969
        %v1518 = vunpack.c.h.b16 %v969
        %v1519 = vunpack.c.l.b16 %v970
        %v1520 = vunpack.c.h.b16 %v970
        %v1521 = vunpack.c.l.b16 %v971
        %v1522 = vunpack.c.h.b16 %v971
        %v1523 = vunpack.c.l.b16 %v972
        %v1524 = vunpack.c.h.b16 %v972
        %v1525 = vunpack.c.l.b16 %v973
        %v1526 = vunpack.c.h.b16 %v973
        %v1527 = vunpack.c.l.b16 %v974
        %v1528 = vunpack.c.h.b16 %v974
        %v1529 = vunpack.c.l.b16 %v975
        %v1530 = vunpack.c.h.b16 %v975
        %v1531 = vunpack.c.l.b16 %v976
        %v1532 = vunpack.c.h.b16 %v976
        %v1533 = vunpack.c.l.b16 %v977
        %v1534 = vunpack.c.h.b16 %v977
        %v1535 = vunpack.c.l.b16 %v978
        %v1536 = vunpack.c.h.b16 %v978
        %v1537 = vunpack.c.l.b16 %v979
        %v1538 = vunpack.c.h.b16 %v979
        %v1539 = vunpack.c.l.b16 %v980
        %v1540 = vunpack.c.h.b16 %v980
        %v1541 = vunpack.c.l.b16 %v981
        %v1542 = vunpack.c.h.b16 %v981
        %v1543 = vunpack.c.l.b16 %v982
        %v1544 = vunpack.c.h.b16 %v982
        %v1545 = vunpack.c.l.b16 %v983
        %v1546 = vunpack.c.h.b16 %v983
        %v1547 = vunpack.c.l.b16 %v984
        %v1548 = vunpack.c.h.b16 %v984
        %v1549 = vunpack.c.l.b16 %v985
        %v1550 = vunpack.c.h.b16 %v985
        %v1551 = vunpack.c.l.b16 %v986
        %v1552 = vunpack.c.h.b16 %v986
        %v1553 = vunpack.c.l.b16 %v987
        %v1554 = vunpack.c.h.b16 %v987
        %v1555 = vunpack.c.l.b16 %v988
        %v1556 = vunpack.c.h.b16 %v988
        %v1557 = vunpack.c.l.b16 %v989
        %v1558 = vunpack.c.h.b16 %v989
        %v1559 = vunpack.c.l.b16 %v990
        %v1560 = vunpack.c.h.b16 %v990
        %v1561 = vunpack.c.l.b16 %v991
        %v1562 = vunpack.c.h.b16 %v991
        %v1563 = vunpack.c.l.b16 %v992
        %v1564 = vunpack.c.h.b16 %v992
        %v1565 = vunpack.c.l.b16 %v993
        %v1566 = vunpack.c.h.b16 %v993
        %v1567 = vunpack.c.l.b16 %v994
        %v1568 = vunpack.c.h.b16 %v994
        %v1569 = vunpack.c.l.b16 %v995
        %v1570 = vunpack.c.h.b16 %v995
        %v1571 = vunpack.c.l.b16 %v996
        %v1572 = vunpack.c.h.b16 %v996
        %v1573 = vunpack.c.l.b16 %v997
        %v1574 = vunpack.c.h.b16 %v997
        %v1575 = vunpack.c.l.b16 %v998
        %v1576 = vunpack.c.h.b16 %v998
        %v1577 = vunpack.c.l.b16 %v999
        %v1578 = vunpack.c.h.b16 %v999
        %v1579 = vunpack.c.l.b16 %v1000
        %v1580 = vunpack.c.h.b16 %v1000
        %v1581 = vunpack.c.l.b16 %v1001
        %v1582 = vunpack.c.h.b16 %v1001
        %v1583 = vunpack.c.l.b16 %v1002
        %v1584 = vunpack.c.h.b16 %v1002
        %v1585 = vunpack.c.l.b16 %v1003
        %v1586 = vunpack.c.h.b16 %v1003
        %v1587 = vunpack.c.l.b16 %v1004
        %v1588 = vunpack.c.h.b16 %v1004
        %v1589 = vunpack.c.l.b16 %v1005
        %v1590 = vunpack.c.h.b16 %v1005
        %v1591 = vunpack.c.l.b16 %v1006
        %v1592 = vunpack.c.h.b16 %v1006
        %v1593 = vunpack.c.l.b16 %v1007
        %v1594 = vunpack.c.h.b16 %v1007
        %v1595 = vunpack.c.l.b16 %v1008
        %v1596 = vunpack.c.h.b16 %v1008
        %v1597 = vunpack.c.l.b16 %v1009
        %v1598 = vunpack.c.h.b16 %v1009
        %v1599 = vunpack.c.l.b16 %v1010
        %v1600 = vunpack.c.h.b16 %v1010
        %v1601 = vunpack.c.l.b16 %v1011
        %v1602 = vunpack.c.h.b16 %v1011
        %v1603 = vunpack.c.l.b16 %v1012
        %v1604 = vunpack.c.h.b16 %v1012
        %v1605 = vunpack.c.l.b16 %v1013
        %v1606 = vunpack.c.h.b16 %v1013
        %v1607 = vunpack.c.l.b16 %v1014
        %v1608 = vunpack.c.h.b16 %v1014
        %v1609 = vunpack.c.l.b16 %v1015
        %v1610 = vunpack.c.h.b16 %v1015
        %v1611 = vunpack.c.l.b16 %v1016
        %v1612 = vunpack.c.h.b16 %v1016
        %v1613 = vunpack.c.l.b16 %v1017
        %v1614 = vunpack.c.h.b16 %v1017
        %v1615 = vunpack.c.l.b16 %v1018
        %v1616 = vunpack.c.h.b16 %v1018
        %v1617 = vunpack.c.l.b16 %v1019
        %v1618 = vunpack.c.h.b16 %v1019
        %v1619 = vunpack.c.l.b16 %v1020
        %v1620 = vunpack.c.h.b16 %v1020
        %v1621 = vunpack.c.l.b16 %v1021
        %v1622 = vunpack.c.h.b16 %v1021
        %v1623 = vunpack.c.l.b16 %v1022
        %v1624 = vunpack.c.h.b16 %v1022
        %v1625 = vunpack.c.l.b16 %v1023
        %v1626 = vunpack.c.h.b16 %v1023
        %v1627 = vunpack.c.l.b16 %v1024
        %v1628 = vunpack.c.h.b16 %v1024
        %v1629 = vunpack.c.l.b16 %v1025
        %v1630 = vunpack.c.h.b16 %v1025
        %v1631 = vunpack.c.l.b16 %v1026
        %v1632 = vunpack.c.h.b16 %v1026
        %v1633 = vunpack.c.l.b16 %v1027
        %v1634 = vunpack.c.h.b16 %v1027
        %v1635 = vunpack.c.l.b16 %v1028
        %v1636 = vunpack.c.h.b16 %v1028
        %v1637 = vunpack.c.l.b16 %v1029
        %v1638 = vunpack.c.h.b16 %v1029
        %v1639 = vunpack.c.l.b16 %v1030
        %v1640 = vunpack.c.h.b16 %v1030
        %v1641 = vunpack.c.l.b16 %v1031
        %v1642 = vunpack.c.h.b16 %v1031
        %v1643 = vunpack.c.l.b16 %v1032
        %v1644 = vunpack.c.h.b16 %v1032
        %v1645 = vunpack.c.l.b16 %v1033
        %v1646 = vunpack.c.h.b16 %v1033
        %v1647 = vunpack.c.l.b16 %v1034
        %v1648 = vunpack.c.h.b16 %v1034
        %v1649 = vunpack.c.l.b16 %v1035
        %v1650 = vunpack.c.h.b16 %v1035
        %v1651 = vunpack.c.l.b16 %v1036
        %v1652 = vunpack.c.h.b16 %v1036
        %v1653 = vunpack.c.l.b16 %v1037
        %v1654 = vunpack.c.h.b16 %v1037
        %v1655 = vunpack.c.l.b16 %v1038
        %v1656 = vunpack.c.h.b16 %v1038
        %v1657 = vunpack.c.l.b16 %v1039
        %v1658 = vunpack.c.h.b16 %v1039
        %v1659 = vunpack.c.l.b16 %v1040
        %v1660 = vunpack.c.h.b16 %v1040
        %v1661 = vunpack.c.l.b16 %v1041
        %v1662 = vunpack.c.h.b16 %v1041
        %v1663 = vunpack.c.l.b16 %v1042
        %v1664 = vunpack.c.h.b16 %v1042
        %v1665 = vunpack.c.l.b16 %v1043
        %v1666 = vunpack.c.h.b16 %v1043
        %v1667 = vunpack.c.l.b16 %v1044
        %v1668 = vunpack.c.h.b16 %v1044
        %v1669 = vunpack.c.l.b16 %v1045
        %v1670 = vunpack.c.h.b16 %v1045
        %v1671 = vunpack.c.l.b16 %v1046
        %v1672 = vunpack.c.h.b16 %v1046
        %v1673 = vunpack.c.l.b16 %v1047
        %v1674 = vunpack.c.h.b16 %v1047
        %v1675 = vunpack.c.l.b16 %v1048
        %v1676 = vunpack.c.h.b16 %v1048
        %v1677 = vunpack.c.l.b16 %v1049
        %v1678 = vunpack.c.h.b16 %v1049
        %v1679 = vunpack.c.l.b16 %v1050
        %v1680 = vunpack.c.h.b16 %v1050
        %v1681 = vunpack.c.l.b16 %v1051
        %v1682 = vunpack.c.h.b16 %v1051
        %v1683 = vunpack.c.l.b16 %v1052
        %v1684 = vunpack.c.h.b16 %v1052
        %v1685 = vunpack.c.l.b16 %v1053
        %v1686 = vunpack.c.h.b16 %v1053
        %v1687 = vunpack.c.l.b16 %v1054
        %v1688 = vunpack.c.h.b16 %v1054
        %v1689 = vunpack.c.l.b16 %v1055
        %v1690 = vunpack.c.h.b16 %v1055
        %v1691 = vunpack.c.l.b16 %v1056
        %v1692 = vunpack.c.h.b16 %v1056
        %v1693 = vunpack.c.l.b16 %v1057
        %v1694 = vunpack.c.h.b16 %v1057
        %v1695 = vunpack.c.l.b16 %v1058
        %v1696 = vunpack.c.h.b16 %v1058
        %v1697 = vunpack.c.l.b16 %v1059
        %v1698 = vunpack.c.h.b16 %v1059
        %v1699 = vunpack.c.l.b16 %v1060
        %v1700 = vunpack.c.h.b16 %v1060
        %v1701 = vunpack.c.l.b16 %v1061
        %v1702 = vunpack.c.h.b16 %v1061
        %v1703 = vunpack.c.l.b16 %v1062
        %v1704 = vunpack.c.h.b16 %v1062
        %v1705 = vunpack.c.l.b16 %v1063
        %v1706 = vunpack.c.h.b16 %v1063
        %v1707 = vunpack.c.l.b16 %v1064
        %v1708 = vunpack.c.h.b16 %v1064
        %v1709 = vunpack.c.l.b16 %v1065
        %v1710 = vunpack.c.h.b16 %v1065
        %v1711 = vunpack.c.l.b16 %v1066
        %v1712 = vunpack.c.h.b16 %v1066
        %v1713 = vunpack.c.l.b16 %v1067
        %v1714 = vunpack.c.h.b16 %v1067
        %v1715 = vunpack.c.l.b16 %v1068
        %v1716 = vunpack.c.h.b16 %v1068
        %v1717 = vunpack.c.l.b16 %v1069
        %v1718 = vunpack.c.h.b16 %v1069
        %v1719 = vunpack.c.l.b16 %v1070
        %v1720 = vunpack.c.h.b16 %v1070
        %v1721 = vunpack.c.l.b16 %v1071
        %v1722 = vunpack.c.h.b16 %v1071
        %v1723 = vunpack.c.l.b16 %v1072
        %v1724 = vunpack.c.h.b16 %v1072
        %v1725 = vunpack.c.l.b16 %v1073
        %v1726 = vunpack.c.h.b16 %v1073
        %v1727 = vunpack.c.l.b16 %v1074
        %v1728 = vunpack.c.h.b16 %v1074
        %v1729 = vunpack.c.l.b16 %v1075
        %v1730 = vunpack.c.h.b16 %v1075
        %v1731 = vunpack.c.l.b16 %v1076
        %v1732 = vunpack.c.h.b16 %v1076
        %v1733 = vunpack.c.l.b16 %v1077
        %v1734 = vunpack.c.h.b16 %v1077
        %v1735 = vunpack.c.l.b16 %v1078
        %v1736 = vunpack.c.h.b16 %v1078
        %v1737 = vunpack.c.l.b16 %v1079
        %v1738 = vunpack.c.h.b16 %v1079
        %v1739 = vunpack.c.l.b16 %v1080
        %v1740 = vunpack.c.h.b16 %v1080
        %v1741 = vunpack.c.l.b16 %v1081
        %v1742 = vunpack.c.h.b16 %v1081
        %v1743 = vunpack.c.l.b16 %v1082
        %v1744 = vunpack.c.h.b16 %v1082
        %v1745 = vunpack.c.l.b16 %v1083
        %v1746 = vunpack.c.h.b16 %v1083
        %v1747 = vunpack.c.l.b16 %v1084
        %v1748 = vunpack.c.h.b16 %v1084
        %v1749 = vunpack.c.l.b16 %v1085
        %v1750 = vunpack.c.h.b16 %v1085
        %v1751 = vunpack.c.l.b16 %v1086
        %v1752 = vunpack.c.h.b16 %v1086
        %v1753 = vunpack.c.l.b16 %v1087
        %v1754 = vunpack.c.h.b16 %v1087
        %v1755 = vunpack.c.l.b16 %v1088
        %v1756 = vunpack.c.h.b16 %v1088
        %v1757 = vunpack.c.l.b16 %v1089
        %v1758 = vunpack.c.h.b16 %v1089
        %v1759 = vunpack.c.l.b16 %v1090
        %v1760 = vunpack.c.h.b16 %v1090
        %v1761 = vunpack.c.l.b16 %v1091
        %v1762 = vunpack.c.h.b16 %v1091
        %v1763 = vunpack.c.l.b16 %v1092
        %v1764 = vunpack.c.h.b16 %v1092
        %v1765 = vunpack.c.l.b16 %v1093
        %v1766 = vunpack.c.h.b16 %v1093
        %v1767 = vunpack.c.l.b16 %v1094
        %v1768 = vunpack.c.h.b16 %v1094
        %v1769 = vunpack.c.l.b16 %v1095
        %v1770 = vunpack.c.h.b16 %v1095
        %v1771 = vunpack.c.l.b16 %v1096
        %v1772 = vunpack.c.h.b16 %v1096
        %v1773 = vunpack.c.l.b16 %v1097
        %v1774 = vunpack.c.h.b16 %v1097
        %v1775 = vunpack.c.l.b16 %v1098
        %v1776 = vunpack.c.h.b16 %v1098
        %v1777 = vunpack.c.l.b16 %v1099
        %v1778 = vunpack.c.h.b16 %v1099
        %v1779 = vunpack.c.l.b16 %v1100
        %v1780 = vunpack.c.h.b16 %v1100
        %v1781 = vunpack.c.l.b16 %v1101
        %v1782 = vunpack.c.h.b16 %v1101
        %v1783 = vunpack.c.l.b16 %v1102
        %v1784 = vunpack.c.h.b16 %v1102
        %v1785 = vunpack.c.l.b16 %v1103
        %v1786 = vunpack.c.h.b16 %v1103
        %v1787 = vunpack.c.l.b16 %v1104
        %v1788 = vunpack.c.h.b16 %v1104
        %v1789 = vunpack.c.l.b16 %v1105
        %v1790 = vunpack.c.h.b16 %v1105
        %v1791 = vunpack.c.l.b16 %v1106
        %v1792 = vunpack.c.h.b16 %v1106
        %v1793 = vunpack.c.l.b16 %v1107
        %v1794 = vunpack.c.h.b16 %v1107
        %v1795 = vunpack.c.l.b16 %v1108
        %v1796 = vunpack.c.h.b16 %v1108
        %v1797 = vunpack.c.l.b16 %v1109
        %v1798 = vunpack.c.h.b16 %v1109
        %v1799 = vunpack.c.l.b16 %v1110
        %v1800 = vunpack.c.h.b16 %v1110
        %v1801 = vunpack.c.l.b16 %v1111
        %v1802 = vunpack.c.h.b16 %v1111
        %v1803 = vunpack.c.l.b16 %v1112
        %v1804 = vunpack.c.h.b16 %v1112
        %v1805 = vunpack.c.l.b16 %v1113
        %v1806 = vunpack.c.h.b16 %v1113
        %v1807 = vunpack.c.l.b16 %v1114
        %v1808 = vunpack.c.h.b16 %v1114
        %v1809 = vunpack.c.l.b16 %v1115
        %v1810 = vunpack.c.h.b16 %v1115
        %v1811 = vunpack.c.l.b16 %v1116
        %v1812 = vunpack.c.h.b16 %v1116
        %v1813 = vunpack.c.l.b16 %v1117
        %v1814 = vunpack.c.h.b16 %v1117
        %v1815 = vunpack.c.l.b16 %v1118
        %v1816 = vunpack.c.h.b16 %v1118
        %v1817 = vunpack.c.l.b16 %v1119
        %v1818 = vunpack.c.h.b16 %v1119
        %v1819 = vunpack.c.l.b16 %v1120
        %v1820 = vunpack.c.h.b16 %v1120
        %v1821 = vunpack.c.l.b16 %v1121
        %v1822 = vunpack.c.h.b16 %v1121
        %v1823 = vunpack.c.l.b16 %v1122
        %v1824 = vunpack.c.h.b16 %v1122
        %v1825 = vunpack.c.l.b16 %v1123
        %v1826 = vunpack.c.h.b16 %v1123
        %v1827 = vunpack.c.l.b16 %v1124
        %v1828 = vunpack.c.h.b16 %v1124
        %v1829 = vunpack.c.l.b16 %v1125
        %v1830 = vunpack.c.h.b16 %v1125
        %v1831 = vunpack.c.l.b16 %v1126
        %v1832 = vunpack.c.h.b16 %v1126
        %v1833 = vunpack.c.l.b16 %v1127
        %v1834 = vunpack.c.h.b16 %v1127
        %v1835 = vunpack.c.l.b16 %v1128
        %v1836 = vunpack.c.h.b16 %v1128
        %v1837 = vunpack.c.l.b16 %v1129
        %v1838 = vunpack.c.h.b16 %v1129
        %v1839 = vunpack.c.l.b16 %v1130
        %v1840 = vunpack.c.h.b16 %v1130
        %v1841 = vunpack.c.l.b16 %v1131
        %v1842 = vunpack.c.h.b16 %v1131
        %v1843 = vunpack.c.l.b16 %v1132
        %v1844 = vunpack.c.h.b16 %v1132
        %v1845 = vunpack.c.l.b16 %v1133
        %v1846 = vunpack.c.h.b16 %v1133
        %v1847 = vunpack.c.l.b16 %v1134
        %v1848 = vunpack.c.h.b16 %v1134
        %v1849 = vunpack.c.l.b16 %v1135
        %v1850 = vunpack.c.h.b16 %v1135
        %v1851 = vunpack.c.l.b16 %v1136
        %v1852 = vunpack.c.h.b16 %v1136
        %v1853 = vunpack.c.l.b16 %v1137
        %v1854 = vunpack.c.h.b16 %v1137
        %v1855 = vunpack.c.l.b16 %v1138
        %v1856 = vunpack.c.h.b16 %v1138
        %v1857 = vunpack.c.l.b16 %v1139
        %v1858 = vunpack.c.h.b16 %v1139
        %v1859 = vunpack.c.l.b16 %v1140
        %v1860 = vunpack.c.h.b16 %v1140
        %v1861 = vunpack.c.l.b16 %v1141
        %v1862 = vunpack.c.h.b16 %v1141
        %v1863 = vunpack.c.l.b16 %v1142
        %v1864 = vunpack.c.h.b16 %v1142
        %v1865 = vunpack.c.l.b16 %v1143
        %v1866 = vunpack.c.h.b16 %v1143
        %v1867 = vunpack.c.l.b16 %v1144
        %v1868 = vunpack.c.h.b16 %v1144
        %v1869 = vunpack.c.l.b16 %v1145
        %v1870 = vunpack.c.h.b16 %v1145
        %v1871 = vunpack.c.l.b16 %v1146
        %v1872 = vunpack.c.h.b16 %v1146
        %v1873 = vunpack.c.l.b16 %v1147
        %v1874 = vunpack.c.h.b16 %v1147
        %v1875 = vunpack.c.l.b16 %v1148
        %v1876 = vunpack.c.h.b16 %v1148
        %v1877 = vunpack.c.l.b16 %v1149
        %v1878 = vunpack.c.h.b16 %v1149
        %v1879 = vunpack.c.l.b16 %v1150
        %v1880 = vunpack.c.h.b16 %v1150
        %v1881 = vunpack.c.l.b16 %v1151
        %v1882 = vunpack.c.h.b16 %v1151
        %v1883 = vunpack.c.l.b16 %v1152
        %v1884 = vunpack.c.h.b16 %v1152
        %v1885 = vunpack.c.l.b16 %v1153
        %v1886 = vunpack.c.h.b16 %v1153
        %v1887 = vunpack.c.l.b16 %v1154
        %v1888 = vunpack.c.h.b16 %v1154
        %v1889 = vunpack.c.l.b16 %v1155
        %v1890 = vunpack.c.h.b16 %v1155
        %v1891 = vunpack.c.l.b16 %v1156
        %v1892 = vunpack.c.h.b16 %v1156
        %v1893 = vunpack.c.l.b16 %v1157
        %v1894 = vunpack.c.h.b16 %v1157
        %v1895 = vunpack.c.l.b16 %v1158
        %v1896 = vunpack.c.h.b16 %v1158
        %v1897 = vunpack.c.l.b16 %v1159
        %v1898 = vunpack.c.h.b16 %v1159
        %v1899 = vunpack.c.l.b16 %v1160
        %v1900 = vunpack.c.h.b16 %v1160
        %v1901 = vunpack.c.l.b16 %v1161
        %v1902 = vunpack.c.h.b16 %v1161
        %v1903 = vunpack.c.l.b16 %v1162
        %v1904 = vunpack.c.h.b16 %v1162
        %v1905 = vunpack.c.l.b16 %v1163
        %v1906 = vunpack.c.h.b16 %v1163
        %v1907 = vunpack.c.l.b16 %v1164
        %v1908 = vunpack.c.h.b16 %v1164
        %v1909 = vunpack.c.l.b16 %v1165
        %v1910 = vunpack.c.h.b16 %v1165
        %v1911 = vunpack.c.l.b16 %v1166
        %v1912 = vunpack.c.h.b16 %v1166
        %v1913 = vunpack.c.l.b16 %v1167
        %v1914 = vunpack.c.h.b16 %v1167
        %v1915 = vunpack.c.l.b16 %v1168
        %v1916 = vunpack.c.h.b16 %v1168
        %v1917 = vunpack.c.l.b16 %v1169
        %v1918 = vunpack.c.h.b16 %v1169
        %v1919 = vunpack.c.l.b16 %v1170
        %v1920 = vunpack.c.h.b16 %v1170
        %v1921 = vunpack.c.l.b16 %v1171
        %v1922 = vunpack.c.h.b16 %v1171
        %v1923 = vunpack.c.l.b16 %v1172
        %v1924 = vunpack.c.h.b16 %v1172
        %v1925 = vunpack.c.l.b16 %v1173
        %v1926 = vunpack.c.h.b16 %v1173
        %v1927 = vunpack.c.l.b16 %v1174
        %v1928 = vunpack.c.h.b16 %v1174
        %v1929 = vunpack.c.l.b16 %v1175
        %v1930 = vunpack.c.h.b16 %v1175
        %v1931 = vunpack.c.l.b16 %v1176
        %v1932 = vunpack.c.h.b16 %v1176
        %v1933 = vunpack.c.l.b16 %v1177
        %v1934 = vunpack.c.h.b16 %v1177
        %v1935 = vunpack.c.l.b16 %v1178
        %v1936 = vunpack.c.h.b16 %v1178
        %v1937 = vunpack.c.l.b16 %v1179
        %v1938 = vunpack.c.h.b16 %v1179
        %v1939 = vunpack.c.l.b16 %v1180
        %v1940 = vunpack.c.h.b16 %v1180
        %v1941 = vunpack.c.l.b16 %v1181
        %v1942 = vunpack.c.h.b16 %v1181
        %v1943 = vunpack.c.l.b16 %v1182
        %v1944 = vunpack.c.h.b16 %v1182
        %v1945 = vunpack.c.l.b16 %v1183
        %v1946 = vunpack.c.h.b16 %v1183
        %v1947 = vunpack.c.l.b16 %v1184
        %v1948 = vunpack.c.h.b16 %v1184
        %v1949 = vunpack.c.l.b16 %v1185
        %v1950 = vunpack.c.h.b16 %v1185
        %v1951 = vunpack.c.l.b16 %v1186
        %v1952 = vunpack.c.h.b16 %v1186
        %v1953 = vunpack.c.l.b16 %v1187
        %v1954 = vunpack.c.h.b16 %v1187
        %v1955 = vunpack.c.l.b16 %v1188
        %v1956 = vunpack.c.h.b16 %v1188
        %v1957 = vunpack.c.l.b16 %v1189
        %v1958 = vunpack.c.h.b16 %v1189
        %v1959 = vunpack.c.l.b16 %v1190
        %v1960 = vunpack.c.h.b16 %v1190
        %v1961 = vunpack.c.l.b16 %v1191
        %v1962 = vunpack.c.h.b16 %v1191
        %v1963 = vunpack.c.l.b16 %v1192
        %v1964 = vunpack.c.h.b16 %v1192
        %v1965 = vunpack.c.l.b16 %v1193
        %v1966 = vunpack.c.h.b16 %v1193
        %v1967 = vunpack.c.l.b16 %v1194
        %v1968 = vunpack.c.h.b16 %v1194
        %v1969 = vunpack.c.l.b16 %v1195
        %v1970 = vunpack.c.h.b16 %v1195
        %v1971 = vunpack.c.l.b16 %v1196
        %v1972 = vunpack.c.h.b16 %v1196
        %v1973 = vunpack.c.l.b16 %v1197
        %v1974 = vunpack.c.h.b16 %v1197
        %v1975 = vunpack.c.l.b16 %v1198
        %v1976 = vunpack.c.h.b16 %v1198
        %v1977 = vunpack.c.l.b16 %v1199
        %v1978 = vunpack.c.h.b16 %v1199
        %v1979 = vunpack.c.l.b16 %v1200
        %v1980 = vunpack.c.h.b16 %v1200
        %v1981 = vunpack.c.l.b16 %v1201
        %v1982 = vunpack.c.h.b16 %v1201
        %v1983 = vunpack.c.l.b16 %v1202
        %v1984 = vunpack.c.h.b16 %v1202
        %v1985 = vunpack.c.l.b16 %v1203
        %v1986 = vunpack.c.h.b16 %v1203
        %v1987 = vunpack.c.l.b16 %v1204
        %v1988 = vunpack.c.h.b16 %v1204
        %v1989 = vunpack.c.l.b16 %v1205
        %v1990 = vunpack.c.h.b16 %v1205
        %v1991 = vunpack.c.l.b16 %v1206
        %v1992 = vunpack.c.h.b16 %v1206
        %v1993 = vunpack.c.l.b16 %v1207
        %v1994 = vunpack.c.h.b16 %v1207
        %v1995 = vunpack.c.l.b16 %v1208
        %v1996 = vunpack.c.h.b16 %v1208
        %v1997 = vunpack.c.l.b16 %v1209
        %v1998 = vunpack.c.h.b16 %v1209
        %v1999 = vunpack.c.l.b16 %v1210
        %v2000 = vunpack.c.h.b16 %v1210
        %v2001 = vpack.c.b16 %v1493, %v1489
        %v2002 = vpack.c.b16 %v1494, %v1490
        %v2003 = vpack.c.b16 %v1495, %v1491
        %v2004 = vpack.c.b16 %v1496, %v1492
        %v2005 = vpack.c.b16 %v1501, %v1497
        %v2006 = vpack.c.b16 %v1502, %v1498
        %v2007 = vpack.c.b16 %v1503, %v1499
        %v2008 = vpack.c.b16 %v1504, %v1500
        %v2009 = vpack.c.b16 %v1509, %v1505
        %v2010 = vpack.c.b16 %v1510, %v1506
        %v2011 = vpack.c.b16 %v1511, %v1507
        %v2012 = vpack.c.b16 %v1512, %v1508
        %v2013 = vpack.c.b16 %v1517, %v1513
        %v2014 = vpack.c.b16 %v1518, %v1514
        %v2015 = vpack.c.b16 %v1519, %v1515
        %v2016 = vpack.c.b16 %v1520, %v1516
        %v2017 = vpack.c.b16 %v1525, %v1521
        %v2018 = vpack.c.b16 %v1526, %v1522
        %v2019 = vpack.c.b16 %v1527, %v1523
        %v2020 = vpack.c.b16 %v1528, %v1524
        %v2021 = vpack.c.b16 %v1533, %v1529
        %v2022 = vpack.c.b16 %v1534, %v1530
        %v2023 = vpack.c.b16 %v1535, %v1531
        %v2024 = vpack.c.b16 %v1536, %v1532
        %v2025 = vpack.c.b16 %v1541, %v1537
        %v2026 = vpack.c.b16 %v1542, %v1538
        %v2027 = vpack.c.b16 %v1543, %v1539
        %v2028 = vpack.c.b16 %v1544, %v1540
        %v2029 = vpack.c.b16 %v1549, %v1545
        %v2030 = vpack.c.b16 %v1550, %v1546
        %v2031 = vpack.c.b16 %v1551, %v1547
        %v2032 = vpack.c.b16 %v1552, %v1548
        %v2033 = vpack.c.b16 %v1557, %v1553
        %v2034 = vpack.c.b16 %v1558, %v1554
        %v2035 = vpack.c.b16 %v1559, %v1555
        %v2036 = vpack.c.b16 %v1560, %v1556
        %v2037 = vpack.c.b16 %v1565, %v1561
        %v2038 = vpack.c.b16 %v1566, %v1562
        %v2039 = vpack.c.b16 %v1567, %v1563
        %v2040 = vpack.c.b16 %v1568, %v1564
        %v2041 = vpack.c.b16 %v1573, %v1569
        %v2042 = vpack.c.b16 %v1574, %v1570
        %v2043 = vpack.c.b16 %v1575, %v1571
        %v2044 = vpack.c.b16 %v1576, %v1572
        %v2045 = vpack.c.b16 %v1581, %v1577
        %v2046 = vpack.c.b16 %v1582, %v1578
        %v2047 = vpack.c.b16 %v1583, %v1579
        %v2048 = vpack.c.b16 %v1584, %v1580
        %v2049 = vpack.c.b16 %v1589, %v1585
        %v2050 = vpack.c.b16 %v1590, %v1586
        %v2051 = vpack.c.b16 %v1591, %v1587
        %v2052 = vpack.c.b16 %v1592, %v1588
        %v2053 = vpack.c.b16 %v1597, %v1593
        %v2054 = vpack.c.b16 %v1598, %v1594
        %v2055 = vpack.c.b16 %v1599, %v1595
        %v2056 = vpack.c.b16 %v1600, %v1596
        %v2057 = vpack.c.b16 %v1605, %v1601
        %v2058 = vpack.c.b16 %v1606, %v1602
        %v2059 = vpack.c.b16 %v1607, %v1603
        %v2060 = vpack.c.b16 %v1608, %v1604
        %v2061 = vpack.c.b16 %v1613, %v1609
        %v2062 = vpack.c.b16 %v1614, %v1610
        %v2063 = vpack.c.b16 %v1615, %v1611
        %v2064 = vpack.c.b16 %v1616, %v1612
        %v2065 = vpack.c.b16 %v1621, %v1617
        %v2066 = vpack.c.b16 %v1622, %v1618
        %v2067 = vpack.c.b16 %v1623, %v1619
        %v2068 = vpack.c.b16 %v1624, %v1620
        %v2069 = vpack.c.b16 %v1629, %v1625
        %v2070 = vpack.c.b16 %v1630, %v1626
        %v2071 = vpack.c.b16 %v1631, %v1627
        %v2072 = vpack.c.b16 %v1632, %v1628
        %v2073 = vpack.c.b16 %v1637, %v1633
        %v2074 = vpack.c.b16 %v1638, %v1634
        %v2075 = vpack.c.b16 %v1639, %v1635
        %v2076 = vpack.c.b16 %v1640, %v1636
        %v2077 = vpack.c.b16 %v1645, %v1641
        %v2078 = vpack.c.b16 %v1646, %v1642
        %v2079 = vpack.c.b16 %v1647, %v1643
        %v2080 = vpack.c.b16 %v1648, %v1644
        %v2081 = vpack.c.b16 %v1653, %v1649
        %v2082 = vpack.c.b16 %v1654, %v1650
        %v2083 = vpack.c.b16 %v1655, %v1651
        %v2084 = vpack.c.b16 %v1656, %v1652
        %v2085 = vpack.c.b16 %v1661, %v1657
        %v2086 = vpack.c.b16 %v1662, %v1658
        %v2087 = vpack.c.b16 %v1663, %v1659
        %v2088 = vpack.c.b16 %v1664, %v1660
        %v2089 = vpack.c.b16 %v1669, %v1665
        %v2090 = vpack.c.b16 %v1670, %v1666
        %v2091 = vpack.c.b16 %v1671, %v1667
        %v2092 = vpack.c.b16 %v1672, %v1668
        %v2093 = vpack.c.b16 %v1677, %v1673
        %v2094 = vpack.c.b16 %v1678, %v1674
        %v2095 = vpack.c.b16 %v1679, %v1675
        %v2096 = vpack.c.b16 %v1680, %v1676
        %v2097 = vpack.c.b16 %v1685, %v1681
        %v2098 = vpack.c.b16 %v1686, %v1682
        %v2099 = vpack.c.b16 %v1687, %v1683
        %v2100 = vpack.c.b16 %v1688, %v1684
        %v2101 = vpack.c.b16 %v1693, %v1689
        %v2102 = vpack.c.b16 %v1694, %v1690
        %v2103 = vpack.c.b16 %v1695, %v1691
        %v2104 = vpack.c.b16 %v1696, %v1692
        %v2105 = vpack.c.b16 %v1701, %v1697
        %v2106 = vpack.c.b16 %v1702, %v1698
        %v2107 = vpack.c.b16 %v1703, %v1699
        %v2108 = vpack.c.b16 %v1704, %v1700
        %v2109 = vpack.c.b16 %v1709, %v1705
        %v2110 = vpack.c.b16 %v1710, %v1706
        %v2111 = vpack.c.b16 %v1711, %v1707
        %v2112 = vpack.c.b16 %v1712, %v1708
        %v2113 = vpack.c.b16 %v1717, %v1713
        %v2114 = vpack.c.b16 %v1718, %v1714
        %v2115 = vpack.c.b16 %v1719, %v1715
        %v2116 = vpack.c.b16 %v1720, %v1716
        %v2117 = vpack.c.b16 %v1725, %v1721
        %v2118 = vpack.c.b16 %v1726, %v1722
        %v2119 = vpack.c.b16 %v1727, %v1723
        %v2120 = vpack.c.b16 %v1728, %v1724
        %v2121 = vpack.c.b16 %v1733, %v1729
        %v2122 = vpack.c.b16 %v1734, %v1730
        %v2123 = vpack.c.b16 %v1735, %v1731
        %v2124 = vpack.c.b16 %v1736, %v1732
        %v2125 = vpack.c.b16 %v1741, %v1737
        %v2126 = vpack.c.b16 %v1742, %v1738
        %v2127 = vpack.c.b16 %v1743, %v1739
        %v2128 = vpack.c.b16 %v1744, %v1740
        %v2129 = vpack.c.b16 %v1749, %v1745
        %v2130 = vpack.c.b16 %v1750, %v1746
        %v2131 = vpack.c.b16 %v1751, %v1747
        %v2132 = vpack.c.b16 %v1752, %v1748
        %v2133 = vpack.c.b16 %v1757, %v1753
        %v2134 = vpack.c.b16 %v1758, %v1754
        %v2135 = vpack.c.b16 %v1759, %v1755
        %v2136 = vpack.c.b16 %v1760, %v1756
        %v2137 = vpack.c.b16 %v1765, %v1761
        %v2138 = vpack.c.b16 %v1766, %v1762
        %v2139 = vpack.c.b16 %v1767, %v1763
        %v2140 = vpack.c.b16 %v1768, %v1764
        %v2141 = vpack.c.b16 %v1773, %v1769
        %v2142 = vpack.c.b16 %v1774, %v1770
        %v2143 = vpack.c.b16 %v1775, %v1771
        %v2144 = vpack.c.b16 %v1776, %v1772
        %v2145 = vpack.c.b16 %v1781, %v1777
        %v2146 = vpack.c.b16 %v1782, %v1778
        %v2147 = vpack.c.b16 %v1783, %v1779
        %v2148 = vpack.c.b16 %v1784, %v1780
        %v2149 = vpack.c.b16 %v1789, %v1785
        %v2150 = vpack.c.b16 %v1790, %v1786
        %v2151 = vpack.c.b16 %v1791, %v1787
        %v2152 = vpack.c.b16 %v1792, %v1788
        %v2153 = vpack.c.b16 %v1797, %v1793
        %v2154 = vpack.c.b16 %v1798, %v1794
        %v2155 = vpack.c.b16 %v1799, %v1795
        %v2156 = vpack.c.b16 %v1800, %v1796
        %v2157 = vpack.c.b16 %v1805, %v1801
        %v2158 = vpack.c.b16 %v1806, %v1802
        %v2159 = vpack.c.b16 %v1807, %v1803
        %v2160 = vpack.c.b16 %v1808, %v1804
        %v2161 = vpack.c.b16 %v1813, %v1809
        %v2162 = vpack.c.b16 %v1814, %v1810
        %v2163 = vpack.c.b16 %v1815, %v1811
        %v2164 = vpack.c.b16 %v1816, %v1812
        %v2165 = vpack.c.b16 %v1821, %v1817
        %v2166 = vpack.c.b16 %v1822, %v1818
        %v2167 = vpack.c.b16 %v1823, %v1819
        %v2168 = vpack.c.b16 %v1824, %v1820
        %v2169 = vpack.c.b16 %v1829, %v1825
        %v2170 = vpack.c.b16 %v1830, %v1826
        %v2171 = vpack.c.b16 %v1831, %v1827
        %v2172 = vpack.c.b16 %v1832, %v1828
        %v2173 = vpack.c.b16 %v1837, %v1833
        %v2174 = vpack.c.b16 %v1838, %v1834
        %v2175 = vpack.c.b16 %v1839, %v1835
        %v2176 = vpack.c.b16 %v1840, %v1836
        %v2177 = vpack.c.b16 %v1845, %v1841
        %v2178 = vpack.c.b16 %v1846, %v1842
        %v2179 = vpack.c.b16 %v1847, %v1843
        %v2180 = vpack.c.b16 %v1848, %v1844
        %v2181 = vpack.c.b16 %v1853, %v1849
        %v2182 = vpack.c.b16 %v1854, %v1850
        %v2183 = vpack.c.b16 %v1855, %v1851
        %v2184 = vpack.c.b16 %v1856, %v1852
        %v2185 = vpack.c.b16 %v1861, %v1857
        %v2186 = vpack.c.b16 %v1862, %v1858
        %v2187 = vpack.c.b16 %v1863, %v1859
        %v2188 = vpack.c.b16 %v1864, %v1860
        %v2189 = vpack.c.b16 %v1869, %v1865
        %v2190 = vpack.c.b16 %v1870, %v1866
        %v2191 = vpack.c.b16 %v1871, %v1867
        %v2192 = vpack.c.b16 %v1872, %v1868
        %v2193 = vpack.c.b16 %v1877, %v1873
        %v2194 = vpack.c.b16 %v1878, %v1874
        %v2195 = vpack.c.b16 %v1879, %v1875
        %v2196 = vpack.c.b16 %v1880, %v1876
        %v2197 = vpack.c.b16 %v1885, %v1881
        %v2198 = vpack.c.b16 %v1886, %v1882
        %v2199 = vpack.c.b16 %v1887, %v1883
        %v2200 = vpack.c.b16 %v1888, %v1884
        %v2201 = vpack.c.b16 %v1893, %v1889
        %v2202 = vpack.c.b16 %v1894, %v1890
        %v2203 = vpack.c.b16 %v1895, %v1891
        %v2204 = vpack.c.b16 %v1896, %v1892
        %v2205 = vpack.c.b16 %v1901, %v1897
        %v2206 = vpack.c.b16 %v1902, %v1898
        %v2207 = vpack.c.b16 %v1903, %v1899
        %v2208 = vpack.c.b16 %v1904, %v1900
        %v2209 = vpack.c.b16 %v1909, %v1905
        %v2210 = vpack.c.b16 %v1910, %v1906
        %v2211 = vpack.c.b16 %v1911, %v1907
        %v2212 = vpack.c.b16 %v1912, %v1908
        %v2213 = vpack.c.b16 %v1917, %v1913
        %v2214 = vpack.c.b16 %v1918, %v1914
        %v2215 = vpack.c.b16 %v1919, %v1915
        %v2216 = vpack.c.b16 %v1920, %v1916
        %v2217 = vpack.c.b16 %v1925, %v1921
        %v2218 = vpack.c.b16 %v1926, %v1922
        %v2219 = vpack.c.b16 %v1927, %v1923
        %v2220 = vpack.c.b16 %v1928, %v1924
        %v2221 = vpack.c.b16 %v1933, %v1929
        %v2222 = vpack.c.b16 %v1934, %v1930
        %v2223 = vpack.c.b16 %v1935, %v1931
        %v2224 = vpack.c.b16 %v1936, %v1932
        %v2225 = vpack.c.b16 %v1941, %v1937
        %v2226 = vpack.c.b16 %v1942, %v1938
        %v2227 = vpack.c.b16 %v1943, %v1939
        %v2228 = vpack.c.b16 %v1944, %v1940
        %v2229 = vpack.c.b16 %v1949, %v1945
        %v2230 = vpack.c.b16 %v1950, %v1946
        %v2231 = vpack.c.b16 %v1951, %v1947
        %v2232 = vpack.c.b16 %v1952, %v1948
        %v2233 = vpack.c.b16 %v1957, %v1953
        %v2234 = vpack.c.b16 %v1958, %v1954
        %v2235 = vpack.c.b16 %v1959, %v1955
        %v2236 = vpack.c.b16 %v1960, %v1956
        %v2237 = vpack.c.b16 %v1965, %v1961
        %v2238 = vpack.c.b16 %v1966, %v1962
        %v2239 = vpack.c.b16 %v1967, %v1963
        %v2240 = vpack.c.b16 %v1968, %v1964
        %v2241 = vpack.c.b16 %v1973, %v1969
        %v2242 = vpack.c.b16 %v1974, %v1970
        %v2243 = vpack.c.b16 %v1975, %v1971
        %v2244 = vpack.c.b16 %v1976, %v1972
        %v2245 = vpack.c.b16 %v1981, %v1977
        %v2246 = vpack.c.b16 %v1982, %v1978
        %v2247 = vpack.c.b16 %v1983, %v1979
        %v2248 = vpack.c.b16 %v1984, %v1980
        %v2249 = vpack.c.b16 %v1989, %v1985
        %v2250 = vpack.c.b16 %v1990, %v1986
        %v2251 = vpack.c.b16 %v1991, %v1987
        %v2252 = vpack.c.b16 %v1992, %v1988
        %v2253 = vpack.c.b16 %v1997, %v1993
        %v2254 = vpack.c.b16 %v1998, %v1994
        %v2255 = vpack.c.b16 %v1999, %v1995
        %v2256 = vpack.c.b16 %v2000, %v1996
        %2513 = vmatprep.subr.bf16.mxu0 %v2030
        %2514 = vmatpush1.bf16.msra.mxu0 %v2029
        %2515 = vmatprep.subr.bf16.mxu0 %v2026
        %2516 = vmatpush1.bf16.msra.mxu0 %v2025
        %2517 = vmatprep.subr.bf16.mxu0 %v2022
        %2518 = vmatpush1.bf16.msra.mxu0 %v2021
        %2519 = vmatprep.subr.bf16.mxu0 %v2018
        %2520 = vmatpush1.bf16.msra.mxu0 %v2017
        %2521 = vmatprep.subr.bf16.mxu0 %v2014
        %2522 = vmatpush1.bf16.msra.mxu0 %v2013
        %2523 = vmatprep.subr.bf16.mxu0 %v2010
        %2524 = vmatpush1.bf16.msra.mxu0 %v2009
        %2525 = vmatprep.subr.bf16.mxu0 %v2006
        %2526 = vmatpush1.bf16.msra.mxu0 %v2005
        %2527 = vmatprep.subr.bf16.mxu0 %v2002
        %2528 = vmatpush1.bf16.msra.mxu0 %v2001
        %2529 = vmatprep.subr.bf16.mxu0 %v2062
        %2530 = vmatpush2.bf16.msra.mxu0 %v2061
        %2531 = vmatprep.subr.bf16.mxu0 %v2058
        %2532 = vmatpush2.bf16.msra.mxu0 %v2057
        %2533 = vmatprep.subr.bf16.mxu0 %v2054
        %2534 = vmatpush2.bf16.msra.mxu0 %v2053
        %2535 = vmatprep.subr.bf16.mxu0 %v2050
        %2536 = vmatpush2.bf16.msra.mxu0 %v2049
        %2537 = vmatprep.subr.bf16.mxu0 %v2046
        %2538 = vmatpush2.bf16.msra.mxu0 %v2045
        %2539 = vmatprep.subr.bf16.mxu0 %v2042
        %2540 = vmatpush2.bf16.msra.mxu0 %v2041
        %2541 = vmatprep.subr.bf16.mxu0 %v2038
        %2542 = vmatpush2.bf16.msra.mxu0 %v2037
        %2543 = vmatprep.subr.bf16.mxu0 %v2034
        %2544 = vmatpush2.bf16.msra.mxu0 %v2033
        %2545 = vmatprep.mubr.bf16.mxu0 %v924
        %2546 = vmatmul.mubr.bf16.gmra.mxu0 %v923
        %v2547 = vpop.f32.mrf.mxu0
        %v2548 = vadd.f32 %v1216, %v2547
        %v2549 = vpop.f32.mrf.mxu0
        %v2550 = vadd.f32 %v1220, %v2549
        %v2551 = vpop.f32.mrf.mxu0
        %v2552 = vadd.f32 %v1216, %v2551
        %v2553 = vpop.f32.mrf.mxu0
        %v2554 = vadd.f32 %v1220, %v2553
        %2555 = vmatprep.mubr.bf16.mxu0 %v932
        %2556 = vmatmul.mubr.bf16.gmra.mxu0 %v931
        %v2557 = vpop.f32.mrf.mxu0
        %v2558 = vadd.f32 %v1216, %v2557
        %v2559 = vpop.f32.mrf.mxu0
        %v2560 = vadd.f32 %v1220, %v2559
        %v2561 = vpop.f32.mrf.mxu0
        %v2562 = vadd.f32 %v1216, %v2561
        %v2563 = vpop.f32.mrf.mxu0
        %v2564 = vadd.f32 %v1220, %v2563
        %2565 = vmatprep.mubr.bf16.mxu0 %v940
        %2566 = vmatmul.mubr.bf16.gmra.mxu0 %v939
        %v2567 = vpop.f32.mrf.mxu0
        %v2568 = vadd.f32 %v1216, %v2567
        %v2569 = vpop.f32.mrf.mxu0
        %v2570 = vadd.f32 %v1220, %v2569
        %v2571 = vpop.f32.mrf.mxu0
        %v2572 = vadd.f32 %v1216, %v2571
        %v2573 = vpop.f32.mrf.mxu0
        %v2574 = vadd.f32 %v1220, %v2573
        %2575 = vmatprep.mubr.bf16.mxu0 %v948
        %2576 = vmatmul.mubr.bf16.gmra.mxu0 %v947
        %v2577 = vpop.f32.mrf.mxu0
        %v2578 = vadd.f32 %v1216, %v2577
        %v2579 = vpop.f32.mrf.mxu0
        %v2580 = vadd.f32 %v1220, %v2579
        %v2581 = vpop.f32.mrf.mxu0
        %v2582 = vadd.f32 %v1216, %v2581
        %v2583 = vpop.f32.mrf.mxu0
        %v2584 = vadd.f32 %v1220, %v2583
        %2585 = vdwg.mxu0
        %2586 = vmatprep.subr.bf16.mxu0 %v2094
        %2587 = vmatpush1.bf16.msra.mxu0 %v2093
        %2588 = vmatprep.subr.bf16.mxu0 %v2090
        %2589 = vmatpush1.bf16.msra.mxu0 %v2089
        %2590 = vmatprep.subr.bf16.mxu0 %v2086
        %2591 = vmatpush1.bf16.msra.mxu0 %v2085
        %2592 = vmatprep.subr.bf16.mxu0 %v2082
        %2593 = vmatpush1.bf16.msra.mxu0 %v2081
        %2594 = vmatprep.subr.bf16.mxu0 %v2078
        %2595 = vmatpush1.bf16.msra.mxu0 %v2077
        %2596 = vmatprep.subr.bf16.mxu0 %v2074
        %2597 = vmatpush1.bf16.msra.mxu0 %v2073
        %2598 = vmatprep.subr.bf16.mxu0 %v2070
        %2599 = vmatpush1.bf16.msra.mxu0 %v2069
        %2600 = vmatprep.subr.bf16.mxu0 %v2066
        %2601 = vmatpush1.bf16.msra.mxu0 %v2065
        %2602 = vmatprep.subr.bf16.mxu0 %v2126
        %2603 = vmatpush2.bf16.msra.mxu0 %v2125
        %2604 = vmatprep.subr.bf16.mxu0 %v2122
        %2605 = vmatpush2.bf16.msra.mxu0 %v2121
        %2606 = vmatprep.subr.bf16.mxu0 %v2118
        %2607 = vmatpush2.bf16.msra.mxu0 %v2117
        %2608 = vmatprep.subr.bf16.mxu0 %v2114
        %2609 = vmatpush2.bf16.msra.mxu0 %v2113
        %2610 = vmatprep.subr.bf16.mxu0 %v2110
        %2611 = vmatpush2.bf16.msra.mxu0 %v2109
        %2612 = vmatprep.subr.bf16.mxu0 %v2106
        %2613 = vmatpush2.bf16.msra.mxu0 %v2105
        %2614 = vmatprep.subr.bf16.mxu0 %v2102
        %2615 = vmatpush2.bf16.msra.mxu0 %v2101
        %2616 = vmatprep.subr.bf16.mxu0 %v2098
        %2617 = vmatpush2.bf16.msra.mxu0 %v2097
        %2618 = vmatprep.mubr.bf16.mxu0 %v926
        %2619 = vmatmul.mubr.bf16.gmra.mxu0 %v925
        %v2620 = vpop.f32.mrf.mxu0
        %v2621 = vadd.f32 %v2548, %v2620
        %v2622 = vpop.f32.mrf.mxu0
        %v2623 = vadd.f32 %v2550, %v2622
        %v2624 = vpop.f32.mrf.mxu0
        %v2625 = vadd.f32 %v2552, %v2624
        %v2626 = vpop.f32.mrf.mxu0
        %v2627 = vadd.f32 %v2554, %v2626
        %2628 = vmatprep.mubr.bf16.mxu0 %v934
        %2629 = vmatmul.mubr.bf16.gmra.mxu0 %v933
        %v2630 = vpop.f32.mrf.mxu0
        %v2631 = vadd.f32 %v2558, %v2630
        %v2632 = vpop.f32.mrf.mxu0
        %v2633 = vadd.f32 %v2560, %v2632
        %v2634 = vpop.f32.mrf.mxu0
        %v2635 = vadd.f32 %v2562, %v2634
        %v2636 = vpop.f32.mrf.mxu0
        %v2637 = vadd.f32 %v2564, %v2636
        %2638 = vmatprep.mubr.bf16.mxu0 %v942
        %2639 = vmatmul.mubr.bf16.gmra.mxu0 %v941
        %v2640 = vpop.f32.mrf.mxu0
        %v2641 = vadd.f32 %v2568, %v2640
        %v2642 = vpop.f32.mrf.mxu0
        %v2643 = vadd.f32 %v2570, %v2642
        %v2644 = vpop.f32.mrf.mxu0
        %v2645 = vadd.f32 %v2572, %v2644
        %v2646 = vpop.f32.mrf.mxu0
        %v2647 = vadd.f32 %v2574, %v2646
        %2648 = vmatprep.mubr.bf16.mxu0 %v950
        %2649 = vmatmul.mubr.bf16.gmra.mxu0 %v949
        %v2650 = vpop.f32.mrf.mxu0
        %v2651 = vadd.f32 %v2578, %v2650
        %v2652 = vpop.f32.mrf.mxu0
        %v2653 = vadd.f32 %v2580, %v2652
        %v2654 = vpop.f32.mrf.mxu0
        %v2655 = vadd.f32 %v2582, %v2654
        %v2656 = vpop.f32.mrf.mxu0
        %v2657 = vadd.f32 %v2584, %v2656
        %2658 = vdwg.mxu0
        %2659 = vmatprep.subr.bf16.mxu0 %v2158
        %2660 = vmatpush1.bf16.msra.mxu0 %v2157
        %2661 = vmatprep.subr.bf16.mxu0 %v2154
        %2662 = vmatpush1.bf16.msra.mxu0 %v2153
        %2663 = vmatprep.subr.bf16.mxu0 %v2150
        %2664 = vmatpush1.bf16.msra.mxu0 %v2149
        %2665 = vmatprep.subr.bf16.mxu0 %v2146
        %2666 = vmatpush1.bf16.msra.mxu0 %v2145
        %2667 = vmatprep.subr.bf16.mxu0 %v2142
        %2668 = vmatpush1.bf16.msra.mxu0 %v2141
        %2669 = vmatprep.subr.bf16.mxu0 %v2138
        %2670 = vmatpush1.bf16.msra.mxu0 %v2137
        %2671 = vmatprep.subr.bf16.mxu0 %v2134
        %2672 = vmatpush1.bf16.msra.mxu0 %v2133
        %2673 = vmatprep.subr.bf16.mxu0 %v2130
        %2674 = vmatpush1.bf16.msra.mxu0 %v2129
        %2675 = vmatprep.subr.bf16.mxu0 %v2190
        %2676 = vmatpush2.bf16.msra.mxu0 %v2189
        %2677 = vmatprep.subr.bf16.mxu0 %v2186
        %2678 = vmatpush2.bf16.msra.mxu0 %v2185
        %2679 = vmatprep.subr.bf16.mxu0 %v2182
        %2680 = vmatpush2.bf16.msra.mxu0 %v2181
        %2681 = vmatprep.subr.bf16.mxu0 %v2178
        %2682 = vmatpush2.bf16.msra.mxu0 %v2177
        %2683 = vmatprep.subr.bf16.mxu0 %v2174
        %2684 = vmatpush2.bf16.msra.mxu0 %v2173
        %2685 = vmatprep.subr.bf16.mxu0 %v2170
        %2686 = vmatpush2.bf16.msra.mxu0 %v2169
        %2687 = vmatprep.subr.bf16.mxu0 %v2166
        %2688 = vmatpush2.bf16.msra.mxu0 %v2165
        %2689 = vmatprep.subr.bf16.mxu0 %v2162
        %2690 = vmatpush2.bf16.msra.mxu0 %v2161
        %2691 = vmatprep.mubr.bf16.mxu0 %v928
        %2692 = vmatmul.mubr.bf16.gmra.mxu0 %v927
        %v2693 = vpop.f32.mrf.mxu0
        %v2694 = vadd.f32 %v2621, %v2693
        %v2695 = vpop.f32.mrf.mxu0
        %v2696 = vadd.f32 %v2623, %v2695
        %v2697 = vpop.f32.mrf.mxu0
        %v2698 = vadd.f32 %v2625, %v2697
        %v2699 = vpop.f32.mrf.mxu0
        %v2700 = vadd.f32 %v2627, %v2699
        %2701 = vmatprep.mubr.bf16.mxu0 %v936
        %2702 = vmatmul.mubr.bf16.gmra.mxu0 %v935
        %v2703 = vpop.f32.mrf.mxu0
        %v2704 = vadd.f32 %v2631, %v2703
        %v2705 = vpop.f32.mrf.mxu0
        %v2706 = vadd.f32 %v2633, %v2705
        %v2707 = vpop.f32.mrf.mxu0
        %v2708 = vadd.f32 %v2635, %v2707
        %v2709 = vpop.f32.mrf.mxu0
        %v2710 = vadd.f32 %v2637, %v2709
        %2711 = vmatprep.mubr.bf16.mxu0 %v944
        %2712 = vmatmul.mubr.bf16.gmra.mxu0 %v943
        %v2713 = vpop.f32.mrf.mxu0
        %v2714 = vadd.f32 %v2641, %v2713
        %v2715 = vpop.f32.mrf.mxu0
        %v2716 = vadd.f32 %v2643, %v2715
        %v2717 = vpop.f32.mrf.mxu0
        %v2718 = vadd.f32 %v2645, %v2717
        %v2719 = vpop.f32.mrf.mxu0
        %v2720 = vadd.f32 %v2647, %v2719
        %2721 = vmatprep.mubr.bf16.mxu0 %v952
        %2722 = vmatmul.mubr.bf16.gmra.mxu0 %v951
        %v2723 = vpop.f32.mrf.mxu0
        %v2724 = vadd.f32 %v2651, %v2723
        %v2725 = vpop.f32.mrf.mxu0
        %v2726 = vadd.f32 %v2653, %v2725
        %v2727 = vpop.f32.mrf.mxu0
        %v2728 = vadd.f32 %v2655, %v2727
        %v2729 = vpop.f32.mrf.mxu0
        %v2730 = vadd.f32 %v2657, %v2729
        %2731 = vdwg.mxu0
        %2732 = vmatprep.subr.bf16.mxu0 %v2222
        %2733 = vmatpush1.bf16.msra.mxu0 %v2221
        %2734 = vmatprep.subr.bf16.mxu0 %v2218
        %2735 = vmatpush1.bf16.msra.mxu0 %v2217
        %2736 = vmatprep.subr.bf16.mxu0 %v2214
        %2737 = vmatpush1.bf16.msra.mxu0 %v2213
        %2738 = vmatprep.subr.bf16.mxu0 %v2210
        %2739 = vmatpush1.bf16.msra.mxu0 %v2209
        %2740 = vmatprep.subr.bf16.mxu0 %v2206
        %2741 = vmatpush1.bf16.msra.mxu0 %v2205
        %2742 = vmatprep.subr.bf16.mxu0 %v2202
        %2743 = vmatpush1.bf16.msra.mxu0 %v2201
        %2744 = vmatprep.subr.bf16.mxu0 %v2198
        %2745 = vmatpush1.bf16.msra.mxu0 %v2197
        %2746 = vmatprep.subr.bf16.mxu0 %v2194
        %2747 = vmatpush1.bf16.msra.mxu0 %v2193
        %2748 = vmatprep.subr.bf16.mxu0 %v2254
        %2749 = vmatpush2.bf16.msra.mxu0 %v2253
        %2750 = vmatprep.subr.bf16.mxu0 %v2250
        %2751 = vmatpush2.bf16.msra.mxu0 %v2249
        %2752 = vmatprep.subr.bf16.mxu0 %v2246
        %2753 = vmatpush2.bf16.msra.mxu0 %v2245
        %2754 = vmatprep.subr.bf16.mxu0 %v2242
        %2755 = vmatpush2.bf16.msra.mxu0 %v2241
        %2756 = vmatprep.subr.bf16.mxu0 %v2238
        %2757 = vmatpush2.bf16.msra.mxu0 %v2237
        %2758 = vmatprep.subr.bf16.mxu0 %v2234
        %2759 = vmatpush2.bf16.msra.mxu0 %v2233
        %2760 = vmatprep.subr.bf16.mxu0 %v2230
        %2761 = vmatpush2.bf16.msra.mxu0 %v2229
        %2762 = vmatprep.subr.bf16.mxu0 %v2226
        %2763 = vmatpush2.bf16.msra.mxu0 %v2225
        %2764 = vmatprep.mubr.bf16.mxu0 %v930
        %2765 = vmatmul.mubr.bf16.gmra.mxu0 %v929
        %v2766 = vpop.f32.mrf.mxu0
        %v2767 = vadd.f32 %v2694, %v2766
        %v2768 = vpop.f32.mrf.mxu0
        %v2769 = vadd.f32 %v2696, %v2768
        %v2770 = vpop.f32.mrf.mxu0
        %v2771 = vadd.f32 %v2698, %v2770
        %v2772 = vpop.f32.mrf.mxu0
        %v2773 = vadd.f32 %v2700, %v2772
        %2774 = vmatprep.mubr.bf16.mxu0 %v938
        %2775 = vmatmul.mubr.bf16.gmra.mxu0 %v937
        %v2776 = vpop.f32.mrf.mxu0
        %v2777 = vadd.f32 %v2704, %v2776
        %v2778 = vpop.f32.mrf.mxu0
        %v2779 = vadd.f32 %v2706, %v2778
        %v2780 = vpop.f32.mrf.mxu0
        %v2781 = vadd.f32 %v2708, %v2780
        %v2782 = vpop.f32.mrf.mxu0
        %v2783 = vadd.f32 %v2710, %v2782
        %2784 = vmatprep.mubr.bf16.mxu0 %v946
        %2785 = vmatmul.mubr.bf16.gmra.mxu0 %v945
        %v2786 = vpop.f32.mrf.mxu0
        %v2787 = vadd.f32 %v2714, %v2786
        %v2788 = vpop.f32.mrf.mxu0
        %v2789 = vadd.f32 %v2716, %v2788
        %v2790 = vpop.f32.mrf.mxu0
        %v2791 = vadd.f32 %v2718, %v2790
        %v2792 = vpop.f32.mrf.mxu0
        %v2793 = vadd.f32 %v2720, %v2792
        %2794 = vmatprep.mubr.bf16.mxu0 %v954
        %2795 = vmatmul.mubr.bf16.gmra.mxu0 %v953
        %v2796 = vpop.f32.mrf.mxu0
        %v2797 = vadd.f32 %v2724, %v2796
        %v2798 = vpop.f32.mrf.mxu0
        %v2799 = vadd.f32 %v2726, %v2798
        %v2800 = vpop.f32.mrf.mxu0
        %v2801 = vadd.f32 %v2728, %v2800
        %v2802 = vpop.f32.mrf.mxu0
        %v2803 = vadd.f32 %v2730, %v2802
        %2804 = vdwg.mxu0
        %2805 = vmatprep.subr.bf16.mxu0 %v2032
        %2806 = vmatpush1.bf16.msra.mxu0 %v2031
        %2807 = vmatprep.subr.bf16.mxu0 %v2028
        %2808 = vmatpush1.bf16.msra.mxu0 %v2027
        %2809 = vmatprep.subr.bf16.mxu0 %v2024
        %2810 = vmatpush1.bf16.msra.mxu0 %v2023
        %2811 = vmatprep.subr.bf16.mxu0 %v2020
        %2812 = vmatpush1.bf16.msra.mxu0 %v2019
        %2813 = vmatprep.subr.bf16.mxu0 %v2016
        %2814 = vmatpush1.bf16.msra.mxu0 %v2015
        %2815 = vmatprep.subr.bf16.mxu0 %v2012
        %2816 = vmatpush1.bf16.msra.mxu0 %v2011
        %2817 = vmatprep.subr.bf16.mxu0 %v2008
        %2818 = vmatpush1.bf16.msra.mxu0 %v2007
        %2819 = vmatprep.subr.bf16.mxu0 %v2004
        %2820 = vmatpush1.bf16.msra.mxu0 %v2003
        %2821 = vmatprep.subr.bf16.mxu0 %v2064
        %2822 = vmatpush2.bf16.msra.mxu0 %v2063
        %2823 = vmatprep.subr.bf16.mxu0 %v2060
        %2824 = vmatpush2.bf16.msra.mxu0 %v2059
        %2825 = vmatprep.subr.bf16.mxu0 %v2056
        %2826 = vmatpush2.bf16.msra.mxu0 %v2055
        %2827 = vmatprep.subr.bf16.mxu0 %v2052
        %2828 = vmatpush2.bf16.msra.mxu0 %v2051
        %2829 = vmatprep.subr.bf16.mxu0 %v2048
        %2830 = vmatpush2.bf16.msra.mxu0 %v2047
        %2831 = vmatprep.subr.bf16.mxu0 %v2044
        %2832 = vmatpush2.bf16.msra.mxu0 %v2043
        %2833 = vmatprep.subr.bf16.mxu0 %v2040
        %2834 = vmatpush2.bf16.msra.mxu0 %v2039
        %2835 = vmatprep.subr.bf16.mxu0 %v2036
        %2836 = vmatpush2.bf16.msra.mxu0 %v2035
        %2837 = vmatprep.mubr.bf16.mxu0 %v924
        %2838 = vmatmul.mubr.bf16.gmra.mxu0 %v923
        %v2839 = vpop.f32.mrf.mxu0
        %v2840 = vadd.f32 %v1224, %v2839
        %v2841 = vpop.f32.mrf.mxu0
        %v2842 = vadd.f32 %v1228, %v2841
        %v2843 = vpop.f32.mrf.mxu0
        %v2844 = vadd.f32 %v1224, %v2843
        %v2845 = vpop.f32.mrf.mxu0
        %v2846 = vadd.f32 %v1228, %v2845
        %2847 = vmatprep.mubr.bf16.mxu0 %v932
        %2848 = vmatmul.mubr.bf16.gmra.mxu0 %v931
        %v2849 = vpop.f32.mrf.mxu0
        %v2850 = vadd.f32 %v1224, %v2849
        %v2851 = vpop.f32.mrf.mxu0
        %v2852 = vadd.f32 %v1228, %v2851
        %v2853 = vpop.f32.mrf.mxu0
        %v2854 = vadd.f32 %v1224, %v2853
        %v2855 = vpop.f32.mrf.mxu0
        %v2856 = vadd.f32 %v1228, %v2855
        %2857 = vmatprep.mubr.bf16.mxu0 %v940
        %2858 = vmatmul.mubr.bf16.gmra.mxu0 %v939
        %v2859 = vpop.f32.mrf.mxu0
        %v2860 = vadd.f32 %v1224, %v2859
        %v2861 = vpop.f32.mrf.mxu0
        %v2862 = vadd.f32 %v1228, %v2861
        %v2863 = vpop.f32.mrf.mxu0
        %v2864 = vadd.f32 %v1224, %v2863
        %v2865 = vpop.f32.mrf.mxu0
        %v2866 = vadd.f32 %v1228, %v2865
        %2867 = vmatprep.mubr.bf16.mxu0 %v948
        %2868 = vmatmul.mubr.bf16.gmra.mxu0 %v947
        %v2869 = vpop.f32.mrf.mxu0
        %v2870 = vadd.f32 %v1224, %v2869
        %v2871 = vpop.f32.mrf.mxu0
        %v2872 = vadd.f32 %v1228, %v2871
        %v2873 = vpop.f32.mrf.mxu0
        %v2874 = vadd.f32 %v1224, %v2873
        %v2875 = vpop.f32.mrf.mxu0
        %v2876 = vadd.f32 %v1228, %v2875
        %2877 = vdwg.mxu0
        %2878 = vmatprep.subr.bf16.mxu0 %v2096
        %2879 = vmatpush1.bf16.msra.mxu0 %v2095
        %2880 = vmatprep.subr.bf16.mxu0 %v2092
        %2881 = vmatpush1.bf16.msra.mxu0 %v2091
        %2882 = vmatprep.subr.bf16.mxu0 %v2088
        %2883 = vmatpush1.bf16.msra.mxu0 %v2087
        %2884 = vmatprep.subr.bf16.mxu0 %v2084
        %2885 = vmatpush1.bf16.msra.mxu0 %v2083
        %2886 = vmatprep.subr.bf16.mxu0 %v2080
        %2887 = vmatpush1.bf16.msra.mxu0 %v2079
        %2888 = vmatprep.subr.bf16.mxu0 %v2076
        %2889 = vmatpush1.bf16.msra.mxu0 %v2075
        %2890 = vmatprep.subr.bf16.mxu0 %v2072
        %2891 = vmatpush1.bf16.msra.mxu0 %v2071
        %2892 = vmatprep.subr.bf16.mxu0 %v2068
        %2893 = vmatpush1.bf16.msra.mxu0 %v2067
        %2894 = vmatprep.subr.bf16.mxu0 %v2128
        %2895 = vmatpush2.bf16.msra.mxu0 %v2127
        %2896 = vmatprep.subr.bf16.mxu0 %v2124
        %2897 = vmatpush2.bf16.msra.mxu0 %v2123
        %2898 = vmatprep.subr.bf16.mxu0 %v2120
        %2899 = vmatpush2.bf16.msra.mxu0 %v2119
        %2900 = vmatprep.subr.bf16.mxu0 %v2116
        %2901 = vmatpush2.bf16.msra.mxu0 %v2115
        %2902 = vmatprep.subr.bf16.mxu0 %v2112
        %2903 = vmatpush2.bf16.msra.mxu0 %v2111
        %2904 = vmatprep.subr.bf16.mxu0 %v2108
        %2905 = vmatpush2.bf16.msra.mxu0 %v2107
        %2906 = vmatprep.subr.bf16.mxu0 %v2104
        %2907 = vmatpush2.bf16.msra.mxu0 %v2103
        %2908 = vmatprep.subr.bf16.mxu0 %v2100
        %2909 = vmatpush2.bf16.msra.mxu0 %v2099
        %2910 = vmatprep.mubr.bf16.mxu0 %v926
        %2911 = vmatmul.mubr.bf16.gmra.mxu0 %v925
        %v2912 = vpop.f32.mrf.mxu0
        %v2913 = vadd.f32 %v2840, %v2912
        %v2914 = vpop.f32.mrf.mxu0
        %v2915 = vadd.f32 %v2842, %v2914
        %v2916 = vpop.f32.mrf.mxu0
        %v2917 = vadd.f32 %v2844, %v2916
        %v2918 = vpop.f32.mrf.mxu0
        %v2919 = vadd.f32 %v2846, %v2918
        %2920 = vmatprep.mubr.bf16.mxu0 %v934
        %2921 = vmatmul.mubr.bf16.gmra.mxu0 %v933
        %v2922 = vpop.f32.mrf.mxu0
        %v2923 = vadd.f32 %v2850, %v2922
        %v2924 = vpop.f32.mrf.mxu0
        %v2925 = vadd.f32 %v2852, %v2924
        %v2926 = vpop.f32.mrf.mxu0
        %v2927 = vadd.f32 %v2854, %v2926
        %v2928 = vpop.f32.mrf.mxu0
        %v2929 = vadd.f32 %v2856, %v2928
        %2930 = vmatprep.mubr.bf16.mxu0 %v942
        %2931 = vmatmul.mubr.bf16.gmra.mxu0 %v941
        %v2932 = vpop.f32.mrf.mxu0
        %v2933 = vadd.f32 %v2860, %v2932
        %v2934 = vpop.f32.mrf.mxu0
        %v2935 = vadd.f32 %v2862, %v2934
        %v2936 = vpop.f32.mrf.mxu0
        %v2937 = vadd.f32 %v2864, %v2936
        %v2938 = vpop.f32.mrf.mxu0
        %v2939 = vadd.f32 %v2866, %v2938
        %2940 = vmatprep.mubr.bf16.mxu0 %v950
        %2941 = vmatmul.mubr.bf16.gmra.mxu0 %v949
        %v2942 = vpop.f32.mrf.mxu0
        %v2943 = vadd.f32 %v2870, %v2942
        %v2944 = vpop.f32.mrf.mxu0
        %v2945 = vadd.f32 %v2872, %v2944
        %v2946 = vpop.f32.mrf.mxu0
        %v2947 = vadd.f32 %v2874, %v2946
        %v2948 = vpop.f32.mrf.mxu0
        %v2949 = vadd.f32 %v2876, %v2948
        %2950 = vdwg.mxu0
        %2951 = vmatprep.subr.bf16.mxu0 %v2160
        %2952 = vmatpush1.bf16.msra.mxu0 %v2159
        %2953 = vmatprep.subr.bf16.mxu0 %v2156
        %2954 = vmatpush1.bf16.msra.mxu0 %v2155
        %2955 = vmatprep.subr.bf16.mxu0 %v2152
        %2956 = vmatpush1.bf16.msra.mxu0 %v2151
        %2957 = vmatprep.subr.bf16.mxu0 %v2148
        %2958 = vmatpush1.bf16.msra.mxu0 %v2147
        %2959 = vmatprep.subr.bf16.mxu0 %v2144
        %2960 = vmatpush1.bf16.msra.mxu0 %v2143
        %2961 = vmatprep.subr.bf16.mxu0 %v2140
        %2962 = vmatpush1.bf16.msra.mxu0 %v2139
        %2963 = vmatprep.subr.bf16.mxu0 %v2136
        %2964 = vmatpush1.bf16.msra.mxu0 %v2135
        %2965 = vmatprep.subr.bf16.mxu0 %v2132
        %2966 = vmatpush1.bf16.msra.mxu0 %v2131
        %2967 = vmatprep.subr.bf16.mxu0 %v2192
        %2968 = vmatpush2.bf16.msra.mxu0 %v2191
        %2969 = vmatprep.subr.bf16.mxu0 %v2188
        %2970 = vmatpush2.bf16.msra.mxu0 %v2187
        %2971 = vmatprep.subr.bf16.mxu0 %v2184
        %2972 = vmatpush2.bf16.msra.mxu0 %v2183
        %2973 = vmatprep.subr.bf16.mxu0 %v2180
        %2974 = vmatpush2.bf16.msra.mxu0 %v2179
        %2975 = vmatprep.subr.bf16.mxu0 %v2176
        %2976 = vmatpush2.bf16.msra.mxu0 %v2175
        %2977 = vmatprep.subr.bf16.mxu0 %v2172
        %2978 = vmatpush2.bf16.msra.mxu0 %v2171
        %2979 = vmatprep.subr.bf16.mxu0 %v2168
        %2980 = vmatpush2.bf16.msra.mxu0 %v2167
        %2981 = vmatprep.subr.bf16.mxu0 %v2164
        %2982 = vmatpush2.bf16.msra.mxu0 %v2163
        %2983 = vmatprep.mubr.bf16.mxu0 %v928
        %2984 = vmatmul.mubr.bf16.gmra.mxu0 %v927
        %v2985 = vpop.f32.mrf.mxu0
        %v2986 = vadd.f32 %v2913, %v2985
        %v2987 = vpop.f32.mrf.mxu0
        %v2988 = vadd.f32 %v2915, %v2987
        %v2989 = vpop.f32.mrf.mxu0
        %v2990 = vadd.f32 %v2917, %v2989
        %v2991 = vpop.f32.mrf.mxu0
        %v2992 = vadd.f32 %v2919, %v2991
        %2993 = vmatprep.mubr.bf16.mxu0 %v936
        %2994 = vmatmul.mubr.bf16.gmra.mxu0 %v935
        %v2995 = vpop.f32.mrf.mxu0
        %v2996 = vadd.f32 %v2923, %v2995
        %v2997 = vpop.f32.mrf.mxu0
        %v2998 = vadd.f32 %v2925, %v2997
        %v2999 = vpop.f32.mrf.mxu0
        %v3000 = vadd.f32 %v2927, %v2999
        %v3001 = vpop.f32.mrf.mxu0
        %v3002 = vadd.f32 %v2929, %v3001
        %3003 = vmatprep.mubr.bf16.mxu0 %v944
        %3004 = vmatmul.mubr.bf16.gmra.mxu0 %v943
        %v3005 = vpop.f32.mrf.mxu0
        %v3006 = vadd.f32 %v2933, %v3005
        %v3007 = vpop.f32.mrf.mxu0
        %v3008 = vadd.f32 %v2935, %v3007
        %v3009 = vpop.f32.mrf.mxu0
        %v3010 = vadd.f32 %v2937, %v3009
        %v3011 = vpop.f32.mrf.mxu0
        %v3012 = vadd.f32 %v2939, %v3011
        %3013 = vmatprep.mubr.bf16.mxu0 %v952
        %3014 = vmatmul.mubr.bf16.gmra.mxu0 %v951
        %v3015 = vpop.f32.mrf.mxu0
        %v3016 = vadd.f32 %v2943, %v3015
        %v3017 = vpop.f32.mrf.mxu0
        %v3018 = vadd.f32 %v2945, %v3017
        %v3019 = vpop.f32.mrf.mxu0
        %v3020 = vadd.f32 %v2947, %v3019
        %v3021 = vpop.f32.mrf.mxu0
        %v3022 = vadd.f32 %v2949, %v3021
        %3023 = vdwg.mxu0
        %3024 = vmatprep.subr.bf16.mxu0 %v2224
        %3025 = vmatpush1.bf16.msra.mxu0 %v2223
        %3026 = vmatprep.subr.bf16.mxu0 %v2220
        %3027 = vmatpush1.bf16.msra.mxu0 %v2219
        %3028 = vmatprep.subr.bf16.mxu0 %v2216
        %3029 = vmatpush1.bf16.msra.mxu0 %v2215
        %3030 = vmatprep.subr.bf16.mxu0 %v2212
        %3031 = vmatpush1.bf16.msra.mxu0 %v2211
        %3032 = vmatprep.subr.bf16.mxu0 %v2208
        %3033 = vmatpush1.bf16.msra.mxu0 %v2207
        %3034 = vmatprep.subr.bf16.mxu0 %v2204
        %3035 = vmatpush1.bf16.msra.mxu0 %v2203
        %3036 = vmatprep.subr.bf16.mxu0 %v2200
        %3037 = vmatpush1.bf16.msra.mxu0 %v2199
        %3038 = vmatprep.subr.bf16.mxu0 %v2196
        %3039 = vmatpush1.bf16.msra.mxu0 %v2195
        %3040 = vmatprep.subr.bf16.mxu0 %v2256
        %3041 = vmatpush2.bf16.msra.mxu0 %v2255
        %3042 = vmatprep.subr.bf16.mxu0 %v2252
        %3043 = vmatpush2.bf16.msra.mxu0 %v2251
        %3044 = vmatprep.subr.bf16.mxu0 %v2248
        %3045 = vmatpush2.bf16.msra.mxu0 %v2247
        %3046 = vmatprep.subr.bf16.mxu0 %v2244
        %3047 = vmatpush2.bf16.msra.mxu0 %v2243
        %3048 = vmatprep.subr.bf16.mxu0 %v2240
        %3049 = vmatpush2.bf16.msra.mxu0 %v2239
        %3050 = vmatprep.subr.bf16.mxu0 %v2236
        %3051 = vmatpush2.bf16.msra.mxu0 %v2235
        %3052 = vmatprep.subr.bf16.mxu0 %v2232
        %3053 = vmatpush2.bf16.msra.mxu0 %v2231
        %3054 = vmatprep.subr.bf16.mxu0 %v2228
        %3055 = vmatpush2.bf16.msra.mxu0 %v2227
        %3056 = vmatprep.mubr.bf16.mxu0 %v930
        %3057 = vmatmul.mubr.bf16.gmra.mxu0 %v929
        %v3058 = vpop.f32.mrf.mxu0
        %v3059 = vadd.f32 %v2986, %v3058
        %v3060 = vpop.f32.mrf.mxu0
        %v3061 = vadd.f32 %v2988, %v3060
        %v3062 = vpop.f32.mrf.mxu0
        %v3063 = vadd.f32 %v2990, %v3062
        %v3064 = vpop.f32.mrf.mxu0
        %v3065 = vadd.f32 %v2992, %v3064
        %3066 = vmatprep.mubr.bf16.mxu0 %v938
        %3067 = vmatmul.mubr.bf16.gmra.mxu0 %v937
        %v3068 = vpop.f32.mrf.mxu0
        %v3069 = vadd.f32 %v2996, %v3068
        %v3070 = vpop.f32.mrf.mxu0
        %v3071 = vadd.f32 %v2998, %v3070
        %v3072 = vpop.f32.mrf.mxu0
        %v3073 = vadd.f32 %v3000, %v3072
        %v3074 = vpop.f32.mrf.mxu0
        %v3075 = vadd.f32 %v3002, %v3074
        %3076 = vmatprep.mubr.bf16.mxu0 %v946
        %3077 = vmatmul.mubr.bf16.gmra.mxu0 %v945
        %v3078 = vpop.f32.mrf.mxu0
        %v3079 = vadd.f32 %v3006, %v3078
        %v3080 = vpop.f32.mrf.mxu0
        %v3081 = vadd.f32 %v3008, %v3080
        %v3082 = vpop.f32.mrf.mxu0
        %v3083 = vadd.f32 %v3010, %v3082
        %v3084 = vpop.f32.mrf.mxu0
        %v3085 = vadd.f32 %v3012, %v3084
        %3086 = vmatprep.mubr.bf16.mxu0 %v954
        %3087 = vmatmul.mubr.bf16.gmra.mxu0 %v953
        %v3088 = vpop.f32.mrf.mxu0
        %v3089 = vadd.f32 %v3016, %v3088
        %v3090 = vpop.f32.mrf.mxu0
        %v3091 = vadd.f32 %v3018, %v3090
        %v3092 = vpop.f32.mrf.mxu0
        %v3093 = vadd.f32 %v3020, %v3092
        %v3094 = vpop.f32.mrf.mxu0
        %v3095 = vadd.f32 %v3022, %v3094
        %3096 = vdwg.mxu0
        %v3097 = vmax.f32 %v2767, 0.0
        %v3098 = vmax.f32 %v2769, 0.0
        %v3099 = vmax.f32 %v3059, 0.0
        %v3100 = vmax.f32 %v3061, 0.0
        %v3101 = vmax.f32 %v2771, 0.0
        %v3102 = vmax.f32 %v2773, 0.0
        %v3103 = vmax.f32 %v3063, 0.0
        %v3104 = vmax.f32 %v3065, 0.0
        %v3105 = vmax.f32 %v2777, 0.0
        %v3106 = vmax.f32 %v2779, 0.0
        %v3107 = vmax.f32 %v3069, 0.0
        %v3108 = vmax.f32 %v3071, 0.0
        %v3109 = vmax.f32 %v2781, 0.0
        %v3110 = vmax.f32 %v2783, 0.0
        %v3111 = vmax.f32 %v3073, 0.0
        %v3112 = vmax.f32 %v3075, 0.0
        %v3113 = vmax.f32 %v2787, 0.0
        %v3114 = vmax.f32 %v2789, 0.0
        %v3115 = vmax.f32 %v3079, 0.0
        %v3116 = vmax.f32 %v3081, 0.0
        %v3117 = vmax.f32 %v2791, 0.0
        %v3118 = vmax.f32 %v2793, 0.0
        %v3119 = vmax.f32 %v3083, 0.0
        %v3120 = vmax.f32 %v3085, 0.0
        %v3121 = vmax.f32 %v2797, 0.0
        %v3122 = vmax.f32 %v2799, 0.0
        %v3123 = vmax.f32 %v3089, 0.0
        %v3124 = vmax.f32 %v3091, 0.0
        %v3125 = vmax.f32 %v2801, 0.0
        %v3126 = vmax.f32 %v2803, 0.0
        %v3127 = vmax.f32 %v3093, 0.0
        %v3128 = vmax.f32 %v3095, 0.0
        %v3129 = vpack.c.bf16 %v3101, %v3097
        %v3130 = vpack.c.bf16 %v3102, %v3098
        %v3131 = vpack.c.bf16 %v3103, %v3099
        %v3132 = vpack.c.bf16 %v3104, %v3100
        %v3133 = vpack.c.bf16 %v3109, %v3105
        %v3134 = vpack.c.bf16 %v3110, %v3106
        %v3135 = vpack.c.bf16 %v3111, %v3107
        %v3136 = vpack.c.bf16 %v3112, %v3108
        %v3137 = vpack.c.bf16 %v3117, %v3113
        %v3138 = vpack.c.bf16 %v3118, %v3114
        %v3139 = vpack.c.bf16 %v3119, %v3115
        %v3140 = vpack.c.bf16 %v3120, %v3116
        %v3141 = vpack.c.bf16 %v3125, %v3121
        %v3142 = vpack.c.bf16 %v3126, %v3122
        %v3143 = vpack.c.bf16 %v3127, %v3123
        %v3144 = vpack.c.bf16 %v3128, %v3124
        %v3145 = vld [vmem:[%s339] sm:$0xff]
        %v3146 = vld [vmem:[%s339 + $0x8] sm:$0xff]
        %v3147 = vld [vmem:[%s339 + $0x10] sm:$0xff]
        %v3148 = vld [vmem:[%s339 + $0x18] sm:$0xff]
        %v3149 = vld [vmem:[%s339 + $0x20] sm:$0xff]
        %v3150 = vld [vmem:[%s339 + $0x28] sm:$0xff]
        %v3151 = vld [vmem:[%s339 + $0x30] sm:$0xff]
        %v3152 = vld [vmem:[%s339 + $0x38] sm:$0xff]
        %v3153 = vld [vmem:[%s339 + $0x40] sm:$0xff]
        %v3154 = vld [vmem:[%s339 + $0x48] sm:$0xff]
        %v3155 = vld [vmem:[%s339 + $0x50] sm:$0xff]
        %v3156 = vld [vmem:[%s339 + $0x58] sm:$0xff]
        %v3157 = vld [vmem:[%s339 + $0x60] sm:$0xff]
        %v3158 = vld [vmem:[%s339 + $0x68] sm:$0xff]
        %v3159 = vld [vmem:[%s339 + $0x70] sm:$0xff]
        %v3160 = vld [vmem:[%s339 + $0x78] sm:$0xff]
        %v3161 = vld [vmem:[%s339 + $0x80] sm:$0xff]
        %v3162 = vld [vmem:[%s339 + $0x88] sm:$0xff]
        %v3163 = vld [vmem:[%s339 + $0x90] sm:$0xff]
        %v3164 = vld [vmem:[%s339 + $0x98] sm:$0xff]
        %v3165 = vld [vmem:[%s339 + $0xa0] sm:$0xff]
        %v3166 = vld [vmem:[%s339 + $0xa8] sm:$0xff]
        %v3167 = vld [vmem:[%s339 + $0xb0] sm:$0xff]
        %v3168 = vld [vmem:[%s339 + $0xb8] sm:$0xff]
        %v3169 = vld [vmem:[%s339 + $0xc0] sm:$0xff]
        %v3170 = vld [vmem:[%s339 + $0xc8] sm:$0xff]
        %v3171 = vld [vmem:[%s339 + $0xd0] sm:$0xff]
        %v3172 = vld [vmem:[%s339 + $0xd8] sm:$0xff]
        %v3173 = vld [vmem:[%s339 + $0xe0] sm:$0xff]
        %v3174 = vld [vmem:[%s339 + $0xe8] sm:$0xff]
        %v3175 = vld [vmem:[%s339 + $0xf0] sm:$0xff]
        %v3176 = vld [vmem:[%s339 + $0xf8] sm:$0xff]
        %v3177 = vld [vmem:[%s339 + $0x100] sm:$0xff]
        %v3178 = vld [vmem:[%s339 + $0x108] sm:$0xff]
        %v3179 = vld [vmem:[%s339 + $0x110] sm:$0xff]
        %v3180 = vld [vmem:[%s339 + $0x118] sm:$0xff]
        %v3181 = vld [vmem:[%s339 + $0x120] sm:$0xff]
        %v3182 = vld [vmem:[%s339 + $0x128] sm:$0xff]
        %v3183 = vld [vmem:[%s339 + $0x130] sm:$0xff]
        %v3184 = vld [vmem:[%s339 + $0x138] sm:$0xff]
        %v3185 = vld [vmem:[%s339 + $0x140] sm:$0xff]
        %v3186 = vld [vmem:[%s339 + $0x148] sm:$0xff]
        %v3187 = vld [vmem:[%s339 + $0x150] sm:$0xff]
        %v3188 = vld [vmem:[%s339 + $0x158] sm:$0xff]
        %v3189 = vld [vmem:[%s339 + $0x160] sm:$0xff]
        %v3190 = vld [vmem:[%s339 + $0x168] sm:$0xff]
        %v3191 = vld [vmem:[%s339 + $0x170] sm:$0xff]
        %v3192 = vld [vmem:[%s339 + $0x178] sm:$0xff]
        %v3193 = vld [vmem:[%s339 + $0x180] sm:$0xff]
        %v3194 = vld [vmem:[%s339 + $0x188] sm:$0xff]
        %v3195 = vld [vmem:[%s339 + $0x190] sm:$0xff]
        %v3196 = vld [vmem:[%s339 + $0x198] sm:$0xff]
        %v3197 = vld [vmem:[%s339 + $0x1a0] sm:$0xff]
        %v3198 = vld [vmem:[%s339 + $0x1a8] sm:$0xff]
        %v3199 = vld [vmem:[%s339 + $0x1b0] sm:$0xff]
        %v3200 = vld [vmem:[%s339 + $0x1b8] sm:$0xff]
        %v3201 = vld [vmem:[%s339 + $0x1c0] sm:$0xff]
        %v3202 = vld [vmem:[%s339 + $0x1c8] sm:$0xff]
        %v3203 = vld [vmem:[%s339 + $0x1d0] sm:$0xff]
        %v3204 = vld [vmem:[%s339 + $0x1d8] sm:$0xff]
        %v3205 = vld [vmem:[%s339 + $0x1e0] sm:$0xff]
        %v3206 = vld [vmem:[%s339 + $0x1e8] sm:$0xff]
        %v3207 = vld [vmem:[%s339 + $0x1f0] sm:$0xff]
        %v3208 = vld [vmem:[%s339 + $0x1f8] sm:$0xff]
        %v3209 = vld [vmem:[%s339 + $0x200] sm:$0xff]
        %v3210 = vld [vmem:[%s339 + $0x208] sm:$0xff]
        %v3211 = vld [vmem:[%s339 + $0x210] sm:$0xff]
        %v3212 = vld [vmem:[%s339 + $0x218] sm:$0xff]
        %v3213 = vld [vmem:[%s339 + $0x220] sm:$0xff]
        %v3214 = vld [vmem:[%s339 + $0x228] sm:$0xff]
        %v3215 = vld [vmem:[%s339 + $0x230] sm:$0xff]
        %v3216 = vld [vmem:[%s339 + $0x238] sm:$0xff]
        %v3217 = vld [vmem:[%s339 + $0x240] sm:$0xff]
        %v3218 = vld [vmem:[%s339 + $0x248] sm:$0xff]
        %v3219 = vld [vmem:[%s339 + $0x250] sm:$0xff]
        %v3220 = vld [vmem:[%s339 + $0x258] sm:$0xff]
        %v3221 = vld [vmem:[%s339 + $0x260] sm:$0xff]
        %v3222 = vld [vmem:[%s339 + $0x268] sm:$0xff]
        %v3223 = vld [vmem:[%s339 + $0x270] sm:$0xff]
        %v3224 = vld [vmem:[%s339 + $0x278] sm:$0xff]
        %v3225 = vld [vmem:[%s339 + $0x280] sm:$0xff]
        %v3226 = vld [vmem:[%s339 + $0x288] sm:$0xff]
        %v3227 = vld [vmem:[%s339 + $0x290] sm:$0xff]
        %v3228 = vld [vmem:[%s339 + $0x298] sm:$0xff]
        %v3229 = vld [vmem:[%s339 + $0x2a0] sm:$0xff]
        %v3230 = vld [vmem:[%s339 + $0x2a8] sm:$0xff]
        %v3231 = vld [vmem:[%s339 + $0x2b0] sm:$0xff]
        %v3232 = vld [vmem:[%s339 + $0x2b8] sm:$0xff]
        %v3233 = vld [vmem:[%s339 + $0x2c0] sm:$0xff]
        %v3234 = vld [vmem:[%s339 + $0x2c8] sm:$0xff]
        %v3235 = vld [vmem:[%s339 + $0x2d0] sm:$0xff]
        %v3236 = vld [vmem:[%s339 + $0x2d8] sm:$0xff]
        %v3237 = vld [vmem:[%s339 + $0x2e0] sm:$0xff]
        %v3238 = vld [vmem:[%s339 + $0x2e8] sm:$0xff]
        %v3239 = vld [vmem:[%s339 + $0x2f0] sm:$0xff]
        %v3240 = vld [vmem:[%s339 + $0x2f8] sm:$0xff]
        %v3241 = vld [vmem:[%s339 + $0x300] sm:$0xff]
        %v3242 = vld [vmem:[%s339 + $0x308] sm:$0xff]
        %v3243 = vld [vmem:[%s339 + $0x310] sm:$0xff]
        %v3244 = vld [vmem:[%s339 + $0x318] sm:$0xff]
        %v3245 = vld [vmem:[%s339 + $0x320] sm:$0xff]
        %v3246 = vld [vmem:[%s339 + $0x328] sm:$0xff]
        %v3247 = vld [vmem:[%s339 + $0x330] sm:$0xff]
        %v3248 = vld [vmem:[%s339 + $0x338] sm:$0xff]
        %v3249 = vld [vmem:[%s339 + $0x340] sm:$0xff]
        %v3250 = vld [vmem:[%s339 + $0x348] sm:$0xff]
        %v3251 = vld [vmem:[%s339 + $0x350] sm:$0xff]
        %v3252 = vld [vmem:[%s339 + $0x358] sm:$0xff]
        %v3253 = vld [vmem:[%s339 + $0x360] sm:$0xff]
        %v3254 = vld [vmem:[%s339 + $0x368] sm:$0xff]
        %v3255 = vld [vmem:[%s339 + $0x370] sm:$0xff]
        %v3256 = vld [vmem:[%s339 + $0x378] sm:$0xff]
        %v3257 = vld [vmem:[%s339 + $0x380] sm:$0xff]
        %v3258 = vld [vmem:[%s339 + $0x388] sm:$0xff]
        %v3259 = vld [vmem:[%s339 + $0x390] sm:$0xff]
        %v3260 = vld [vmem:[%s339 + $0x398] sm:$0xff]
        %v3261 = vld [vmem:[%s339 + $0x3a0] sm:$0xff]
        %v3262 = vld [vmem:[%s339 + $0x3a8] sm:$0xff]
        %v3263 = vld [vmem:[%s339 + $0x3b0] sm:$0xff]
        %v3264 = vld [vmem:[%s339 + $0x3b8] sm:$0xff]
        %v3265 = vld [vmem:[%s339 + $0x3c0] sm:$0xff]
        %v3266 = vld [vmem:[%s339 + $0x3c8] sm:$0xff]
        %v3267 = vld [vmem:[%s339 + $0x3d0] sm:$0xff]
        %v3268 = vld [vmem:[%s339 + $0x3d8] sm:$0xff]
        %v3269 = vld [vmem:[%s339 + $0x3e0] sm:$0xff]
        %v3270 = vld [vmem:[%s339 + $0x3e8] sm:$0xff]
        %v3271 = vld [vmem:[%s339 + $0x3f0] sm:$0xff]
        %v3272 = vld [vmem:[%s339 + $0x3f8] sm:$0xff]
        %v3273 = vld [vmem:[%s339 + $0x400] sm:$0xff]
        %v3274 = vld [vmem:[%s339 + $0x408] sm:$0xff]
        %v3275 = vld [vmem:[%s339 + $0x410] sm:$0xff]
        %v3276 = vld [vmem:[%s339 + $0x418] sm:$0xff]
        %v3277 = vld [vmem:[%s339 + $0x420] sm:$0xff]
        %v3278 = vld [vmem:[%s339 + $0x428] sm:$0xff]
        %v3279 = vld [vmem:[%s339 + $0x430] sm:$0xff]
        %v3280 = vld [vmem:[%s339 + $0x438] sm:$0xff]
        %v3281 = vld [vmem:[%s339 + $0x440] sm:$0xff]
        %v3282 = vld [vmem:[%s339 + $0x448] sm:$0xff]
        %v3283 = vld [vmem:[%s339 + $0x450] sm:$0xff]
        %v3284 = vld [vmem:[%s339 + $0x458] sm:$0xff]
        %v3285 = vld [vmem:[%s339 + $0x460] sm:$0xff]
        %v3286 = vld [vmem:[%s339 + $0x468] sm:$0xff]
        %v3287 = vld [vmem:[%s339 + $0x470] sm:$0xff]
        %v3288 = vld [vmem:[%s339 + $0x478] sm:$0xff]
        %v3289 = vld [vmem:[%s339 + $0x480] sm:$0xff]
        %v3290 = vld [vmem:[%s339 + $0x488] sm:$0xff]
        %v3291 = vld [vmem:[%s339 + $0x490] sm:$0xff]
        %v3292 = vld [vmem:[%s339 + $0x498] sm:$0xff]
        %v3293 = vld [vmem:[%s339 + $0x4a0] sm:$0xff]
        %v3294 = vld [vmem:[%s339 + $0x4a8] sm:$0xff]
        %v3295 = vld [vmem:[%s339 + $0x4b0] sm:$0xff]
        %v3296 = vld [vmem:[%s339 + $0x4b8] sm:$0xff]
        %v3297 = vld [vmem:[%s339 + $0x4c0] sm:$0xff]
        %v3298 = vld [vmem:[%s339 + $0x4c8] sm:$0xff]
        %v3299 = vld [vmem:[%s339 + $0x4d0] sm:$0xff]
        %v3300 = vld [vmem:[%s339 + $0x4d8] sm:$0xff]
        %v3301 = vld [vmem:[%s339 + $0x4e0] sm:$0xff]
        %v3302 = vld [vmem:[%s339 + $0x4e8] sm:$0xff]
        %v3303 = vld [vmem:[%s339 + $0x4f0] sm:$0xff]
        %v3304 = vld [vmem:[%s339 + $0x4f8] sm:$0xff]
        %v3305 = vld [vmem:[%s339 + $0x500] sm:$0xff]
        %v3306 = vld [vmem:[%s339 + $0x508] sm:$0xff]
        %v3307 = vld [vmem:[%s339 + $0x510] sm:$0xff]
        %v3308 = vld [vmem:[%s339 + $0x518] sm:$0xff]
        %v3309 = vld [vmem:[%s339 + $0x520] sm:$0xff]
        %v3310 = vld [vmem:[%s339 + $0x528] sm:$0xff]
        %v3311 = vld [vmem:[%s339 + $0x530] sm:$0xff]
        %v3312 = vld [vmem:[%s339 + $0x538] sm:$0xff]
        %v3313 = vld [vmem:[%s339 + $0x540] sm:$0xff]
        %v3314 = vld [vmem:[%s339 + $0x548] sm:$0xff]
        %v3315 = vld [vmem:[%s339 + $0x550] sm:$0xff]
        %v3316 = vld [vmem:[%s339 + $0x558] sm:$0xff]
        %v3317 = vld [vmem:[%s339 + $0x560] sm:$0xff]
        %v3318 = vld [vmem:[%s339 + $0x568] sm:$0xff]
        %v3319 = vld [vmem:[%s339 + $0x570] sm:$0xff]
        %v3320 = vld [vmem:[%s339 + $0x578] sm:$0xff]
        %v3321 = vld [vmem:[%s339 + $0x580] sm:$0xff]
        %v3322 = vld [vmem:[%s339 + $0x588] sm:$0xff]
        %v3323 = vld [vmem:[%s339 + $0x590] sm:$0xff]
        %v3324 = vld [vmem:[%s339 + $0x598] sm:$0xff]
        %v3325 = vld [vmem:[%s339 + $0x5a0] sm:$0xff]
        %v3326 = vld [vmem:[%s339 + $0x5a8] sm:$0xff]
        %v3327 = vld [vmem:[%s339 + $0x5b0] sm:$0xff]
        %v3328 = vld [vmem:[%s339 + $0x5b8] sm:$0xff]
        %v3329 = vld [vmem:[%s339 + $0x5c0] sm:$0xff]
        %v3330 = vld [vmem:[%s339 + $0x5c8] sm:$0xff]
        %v3331 = vld [vmem:[%s339 + $0x5d0] sm:$0xff]
        %v3332 = vld [vmem:[%s339 + $0x5d8] sm:$0xff]
        %v3333 = vld [vmem:[%s339 + $0x5e0] sm:$0xff]
        %v3334 = vld [vmem:[%s339 + $0x5e8] sm:$0xff]
        %v3335 = vld [vmem:[%s339 + $0x5f0] sm:$0xff]
        %v3336 = vld [vmem:[%s339 + $0x5f8] sm:$0xff]
        %v3337 = vld [vmem:[%s339 + $0x600] sm:$0xff]
        %v3338 = vld [vmem:[%s339 + $0x608] sm:$0xff]
        %v3339 = vld [vmem:[%s339 + $0x610] sm:$0xff]
        %v3340 = vld [vmem:[%s339 + $0x618] sm:$0xff]
        %v3341 = vld [vmem:[%s339 + $0x620] sm:$0xff]
        %v3342 = vld [vmem:[%s339 + $0x628] sm:$0xff]
        %v3343 = vld [vmem:[%s339 + $0x630] sm:$0xff]
        %v3344 = vld [vmem:[%s339 + $0x638] sm:$0xff]
        %v3345 = vld [vmem:[%s339 + $0x640] sm:$0xff]
        %v3346 = vld [vmem:[%s339 + $0x648] sm:$0xff]
        %v3347 = vld [vmem:[%s339 + $0x650] sm:$0xff]
        %v3348 = vld [vmem:[%s339 + $0x658] sm:$0xff]
        %v3349 = vld [vmem:[%s339 + $0x660] sm:$0xff]
        %v3350 = vld [vmem:[%s339 + $0x668] sm:$0xff]
        %v3351 = vld [vmem:[%s339 + $0x670] sm:$0xff]
        %v3352 = vld [vmem:[%s339 + $0x678] sm:$0xff]
        %v3353 = vld [vmem:[%s339 + $0x680] sm:$0xff]
        %v3354 = vld [vmem:[%s339 + $0x688] sm:$0xff]
        %v3355 = vld [vmem:[%s339 + $0x690] sm:$0xff]
        %v3356 = vld [vmem:[%s339 + $0x698] sm:$0xff]
        %v3357 = vld [vmem:[%s339 + $0x6a0] sm:$0xff]
        %v3358 = vld [vmem:[%s339 + $0x6a8] sm:$0xff]
        %v3359 = vld [vmem:[%s339 + $0x6b0] sm:$0xff]
        %v3360 = vld [vmem:[%s339 + $0x6b8] sm:$0xff]
        %v3361 = vld [vmem:[%s339 + $0x6c0] sm:$0xff]
        %v3362 = vld [vmem:[%s339 + $0x6c8] sm:$0xff]
        %v3363 = vld [vmem:[%s339 + $0x6d0] sm:$0xff]
        %v3364 = vld [vmem:[%s339 + $0x6d8] sm:$0xff]
        %v3365 = vld [vmem:[%s339 + $0x6e0] sm:$0xff]
        %v3366 = vld [vmem:[%s339 + $0x6e8] sm:$0xff]
        %v3367 = vld [vmem:[%s339 + $0x6f0] sm:$0xff]
        %v3368 = vld [vmem:[%s339 + $0x6f8] sm:$0xff]
        %v3369 = vld [vmem:[%s339 + $0x700] sm:$0xff]
        %v3370 = vld [vmem:[%s339 + $0x708] sm:$0xff]
        %v3371 = vld [vmem:[%s339 + $0x710] sm:$0xff]
        %v3372 = vld [vmem:[%s339 + $0x718] sm:$0xff]
        %v3373 = vld [vmem:[%s339 + $0x720] sm:$0xff]
        %v3374 = vld [vmem:[%s339 + $0x728] sm:$0xff]
        %v3375 = vld [vmem:[%s339 + $0x730] sm:$0xff]
        %v3376 = vld [vmem:[%s339 + $0x738] sm:$0xff]
        %v3377 = vld [vmem:[%s339 + $0x740] sm:$0xff]
        %v3378 = vld [vmem:[%s339 + $0x748] sm:$0xff]
        %v3379 = vld [vmem:[%s339 + $0x750] sm:$0xff]
        %v3380 = vld [vmem:[%s339 + $0x758] sm:$0xff]
        %v3381 = vld [vmem:[%s339 + $0x760] sm:$0xff]
        %v3382 = vld [vmem:[%s339 + $0x768] sm:$0xff]
        %v3383 = vld [vmem:[%s339 + $0x770] sm:$0xff]
        %v3384 = vld [vmem:[%s339 + $0x778] sm:$0xff]
        %v3385 = vld [vmem:[%s339 + $0x780] sm:$0xff]
        %v3386 = vld [vmem:[%s339 + $0x788] sm:$0xff]
        %v3387 = vld [vmem:[%s339 + $0x790] sm:$0xff]
        %v3388 = vld [vmem:[%s339 + $0x798] sm:$0xff]
        %v3389 = vld [vmem:[%s339 + $0x7a0] sm:$0xff]
        %v3390 = vld [vmem:[%s339 + $0x7a8] sm:$0xff]
        %v3391 = vld [vmem:[%s339 + $0x7b0] sm:$0xff]
        %v3392 = vld [vmem:[%s339 + $0x7b8] sm:$0xff]
        %v3393 = vld [vmem:[%s339 + $0x7c0] sm:$0xff]
        %v3394 = vld [vmem:[%s339 + $0x7c8] sm:$0xff]
        %v3395 = vld [vmem:[%s339 + $0x7d0] sm:$0xff]
        %v3396 = vld [vmem:[%s339 + $0x7d8] sm:$0xff]
        %v3397 = vld [vmem:[%s339 + $0x7e0] sm:$0xff]
        %v3398 = vld [vmem:[%s339 + $0x7e8] sm:$0xff]
        %v3399 = vld [vmem:[%s339 + $0x7f0] sm:$0xff]
        %v3400 = vld [vmem:[%s339 + $0x7f8] sm:$0xff]
        %v3401 = vld [vmem:[%s339 + $0x800] sm:$0xff]
        %v3402 = vld [vmem:[%s339 + $0x808] sm:$0xff]
        %v3403 = vld [vmem:[%s339 + $0x810] sm:$0xff]
        %v3404 = vld [vmem:[%s339 + $0x818] sm:$0xff]
        %v3405 = vld [vmem:[%s339 + $0x820] sm:$0xff]
        %v3406 = vld [vmem:[%s339 + $0x828] sm:$0xff]
        %v3407 = vld [vmem:[%s339 + $0x830] sm:$0xff]
        %v3408 = vld [vmem:[%s339 + $0x838] sm:$0xff]
        %v3409 = vld [vmem:[%s339 + $0x840] sm:$0xff]
        %v3410 = vld [vmem:[%s339 + $0x848] sm:$0xff]
        %v3411 = vld [vmem:[%s339 + $0x850] sm:$0xff]
        %v3412 = vld [vmem:[%s339 + $0x858] sm:$0xff]
        %v3413 = vld [vmem:[%s339 + $0x860] sm:$0xff]
        %v3414 = vld [vmem:[%s339 + $0x868] sm:$0xff]
        %v3415 = vld [vmem:[%s339 + $0x870] sm:$0xff]
        %v3416 = vld [vmem:[%s339 + $0x878] sm:$0xff]
        %v3417 = vld [vmem:[%s339 + $0x880] sm:$0xff]
        %v3418 = vld [vmem:[%s339 + $0x888] sm:$0xff]
        %v3419 = vld [vmem:[%s339 + $0x890] sm:$0xff]
        %v3420 = vld [vmem:[%s339 + $0x898] sm:$0xff]
        %v3421 = vld [vmem:[%s339 + $0x8a0] sm:$0xff]
        %v3422 = vld [vmem:[%s339 + $0x8a8] sm:$0xff]
        %v3423 = vld [vmem:[%s339 + $0x8b0] sm:$0xff]
        %v3424 = vld [vmem:[%s339 + $0x8b8] sm:$0xff]
        %v3425 = vld [vmem:[%s339 + $0x8c0] sm:$0xff]
        %v3426 = vld [vmem:[%s339 + $0x8c8] sm:$0xff]
        %v3427 = vld [vmem:[%s339 + $0x8d0] sm:$0xff]
        %v3428 = vld [vmem:[%s339 + $0x8d8] sm:$0xff]
        %v3429 = vld [vmem:[%s339 + $0x8e0] sm:$0xff]
        %v3430 = vld [vmem:[%s339 + $0x8e8] sm:$0xff]
        %v3431 = vld [vmem:[%s339 + $0x8f0] sm:$0xff]
        %v3432 = vld [vmem:[%s339 + $0x8f8] sm:$0xff]
        %v3433 = vld [vmem:[%s339 + $0x900] sm:$0xff]
        %v3434 = vld [vmem:[%s339 + $0x908] sm:$0xff]
        %v3435 = vld [vmem:[%s339 + $0x910] sm:$0xff]
        %v3436 = vld [vmem:[%s339 + $0x918] sm:$0xff]
        %v3437 = vld [vmem:[%s339 + $0x920] sm:$0xff]
        %v3438 = vld [vmem:[%s339 + $0x928] sm:$0xff]
        %v3439 = vld [vmem:[%s339 + $0x930] sm:$0xff]
        %v3440 = vld [vmem:[%s339 + $0x938] sm:$0xff]
        %v3441 = vld [vmem:[%s339 + $0x940] sm:$0xff]
        %v3442 = vld [vmem:[%s339 + $0x948] sm:$0xff]
        %v3443 = vld [vmem:[%s339 + $0x950] sm:$0xff]
        %v3444 = vld [vmem:[%s339 + $0x958] sm:$0xff]
        %v3445 = vld [vmem:[%s339 + $0x960] sm:$0xff]
        %v3446 = vld [vmem:[%s339 + $0x968] sm:$0xff]
        %v3447 = vld [vmem:[%s339 + $0x970] sm:$0xff]
        %v3448 = vld [vmem:[%s339 + $0x978] sm:$0xff]
        %v3449 = vld [vmem:[%s339 + $0x980] sm:$0xff]
        %v3450 = vld [vmem:[%s339 + $0x988] sm:$0xff]
        %v3451 = vld [vmem:[%s339 + $0x990] sm:$0xff]
        %v3452 = vld [vmem:[%s339 + $0x998] sm:$0xff]
        %v3453 = vld [vmem:[%s339 + $0x9a0] sm:$0xff]
        %v3454 = vld [vmem:[%s339 + $0x9a8] sm:$0xff]
        %v3455 = vld [vmem:[%s339 + $0x9b0] sm:$0xff]
        %v3456 = vld [vmem:[%s339 + $0x9b8] sm:$0xff]
        %v3457 = vld [vmem:[%s339 + $0x9c0] sm:$0xff]
        %v3458 = vld [vmem:[%s339 + $0x9c8] sm:$0xff]
        %v3459 = vld [vmem:[%s339 + $0x9d0] sm:$0xff]
        %v3460 = vld [vmem:[%s339 + $0x9d8] sm:$0xff]
        %v3461 = vld [vmem:[%s339 + $0x9e0] sm:$0xff]
        %v3462 = vld [vmem:[%s339 + $0x9e8] sm:$0xff]
        %v3463 = vld [vmem:[%s339 + $0x9f0] sm:$0xff]
        %v3464 = vld [vmem:[%s339 + $0x9f8] sm:$0xff]
        %v3465 = vld [vmem:[%s339 + $0xa00] sm:$0xff]
        %v3466 = vld [vmem:[%s339 + $0xa08] sm:$0xff]
        %v3467 = vld [vmem:[%s339 + $0xa10] sm:$0xff]
        %v3468 = vld [vmem:[%s339 + $0xa18] sm:$0xff]
        %v3469 = vld [vmem:[%s339 + $0xa20] sm:$0xff]
        %v3470 = vld [vmem:[%s339 + $0xa28] sm:$0xff]
        %v3471 = vld [vmem:[%s339 + $0xa30] sm:$0xff]
        %v3472 = vld [vmem:[%s339 + $0xa38] sm:$0xff]
        %v3473 = vld [vmem:[%s339 + $0xa40] sm:$0xff]
        %v3474 = vld [vmem:[%s339 + $0xa48] sm:$0xff]
        %v3475 = vld [vmem:[%s339 + $0xa50] sm:$0xff]
        %v3476 = vld [vmem:[%s339 + $0xa58] sm:$0xff]
        %v3477 = vld [vmem:[%s339 + $0xa60] sm:$0xff]
        %v3478 = vld [vmem:[%s339 + $0xa68] sm:$0xff]
        %v3479 = vld [vmem:[%s339 + $0xa70] sm:$0xff]
        %v3480 = vld [vmem:[%s339 + $0xa78] sm:$0xff]
        %v3481 = vld [vmem:[%s339 + $0xa80] sm:$0xff]
        %v3482 = vld [vmem:[%s339 + $0xa88] sm:$0xff]
        %v3483 = vld [vmem:[%s339 + $0xa90] sm:$0xff]
        %v3484 = vld [vmem:[%s339 + $0xa98] sm:$0xff]
        %v3485 = vld [vmem:[%s339 + $0xaa0] sm:$0xff]
        %v3486 = vld [vmem:[%s339 + $0xaa8] sm:$0xff]
        %v3487 = vld [vmem:[%s339 + $0xab0] sm:$0xff]
        %v3488 = vld [vmem:[%s339 + $0xab8] sm:$0xff]
        %v3489 = vld [vmem:[%s339 + $0xac0] sm:$0xff]
        %v3490 = vld [vmem:[%s339 + $0xac8] sm:$0xff]
        %v3491 = vld [vmem:[%s339 + $0xad0] sm:$0xff]
        %v3492 = vld [vmem:[%s339 + $0xad8] sm:$0xff]
        %v3493 = vld [vmem:[%s339 + $0xae0] sm:$0xff]
        %v3494 = vld [vmem:[%s339 + $0xae8] sm:$0xff]
        %v3495 = vld [vmem:[%s339 + $0xaf0] sm:$0xff]
        %v3496 = vld [vmem:[%s339 + $0xaf8] sm:$0xff]
        %v3497 = vld [vmem:[%s339 + $0xb00] sm:$0xff]
        %v3498 = vld [vmem:[%s339 + $0xb08] sm:$0xff]
        %v3499 = vld [vmem:[%s339 + $0xb10] sm:$0xff]
        %v3500 = vld [vmem:[%s339 + $0xb18] sm:$0xff]
        %v3501 = vld [vmem:[%s339 + $0xb20] sm:$0xff]
        %v3502 = vld [vmem:[%s339 + $0xb28] sm:$0xff]
        %v3503 = vld [vmem:[%s339 + $0xb30] sm:$0xff]
        %v3504 = vld [vmem:[%s339 + $0xb38] sm:$0xff]
        %v3505 = vld [vmem:[%s339 + $0xb40] sm:$0xff]
        %v3506 = vld [vmem:[%s339 + $0xb48] sm:$0xff]
        %v3507 = vld [vmem:[%s339 + $0xb50] sm:$0xff]
        %v3508 = vld [vmem:[%s339 + $0xb58] sm:$0xff]
        %v3509 = vld [vmem:[%s339 + $0xb60] sm:$0xff]
        %v3510 = vld [vmem:[%s339 + $0xb68] sm:$0xff]
        %v3511 = vld [vmem:[%s339 + $0xb70] sm:$0xff]
        %v3512 = vld [vmem:[%s339 + $0xb78] sm:$0xff]
        %v3513 = vld [vmem:[%s339 + $0xb80] sm:$0xff]
        %v3514 = vld [vmem:[%s339 + $0xb88] sm:$0xff]
        %v3515 = vld [vmem:[%s339 + $0xb90] sm:$0xff]
        %v3516 = vld [vmem:[%s339 + $0xb98] sm:$0xff]
        %v3517 = vld [vmem:[%s339 + $0xba0] sm:$0xff]
        %v3518 = vld [vmem:[%s339 + $0xba8] sm:$0xff]
        %v3519 = vld [vmem:[%s339 + $0xbb0] sm:$0xff]
        %v3520 = vld [vmem:[%s339 + $0xbb8] sm:$0xff]
        %v3521 = vld [vmem:[%s339 + $0xbc0] sm:$0xff]
        %v3522 = vld [vmem:[%s339 + $0xbc8] sm:$0xff]
        %v3523 = vld [vmem:[%s339 + $0xbd0] sm:$0xff]
        %v3524 = vld [vmem:[%s339 + $0xbd8] sm:$0xff]
        %v3525 = vld [vmem:[%s339 + $0xbe0] sm:$0xff]
        %v3526 = vld [vmem:[%s339 + $0xbe8] sm:$0xff]
        %v3527 = vld [vmem:[%s339 + $0xbf0] sm:$0xff]
        %v3528 = vld [vmem:[%s339 + $0xbf8] sm:$0xff]
        %v3529 = vld [vmem:[%s339 + $0xc00] sm:$0xff]
        %v3530 = vld [vmem:[%s339 + $0xc08] sm:$0xff]
        %v3531 = vld [vmem:[%s339 + $0xc10] sm:$0xff]
        %v3532 = vld [vmem:[%s339 + $0xc18] sm:$0xff]
        %v3533 = vld [vmem:[%s339 + $0xc20] sm:$0xff]
        %v3534 = vld [vmem:[%s339 + $0xc28] sm:$0xff]
        %v3535 = vld [vmem:[%s339 + $0xc30] sm:$0xff]
        %v3536 = vld [vmem:[%s339 + $0xc38] sm:$0xff]
        %v3537 = vld [vmem:[%s339 + $0xc40] sm:$0xff]
        %v3538 = vld [vmem:[%s339 + $0xc48] sm:$0xff]
        %v3539 = vld [vmem:[%s339 + $0xc50] sm:$0xff]
        %v3540 = vld [vmem:[%s339 + $0xc58] sm:$0xff]
        %v3541 = vld [vmem:[%s339 + $0xc60] sm:$0xff]
        %v3542 = vld [vmem:[%s339 + $0xc68] sm:$0xff]
        %v3543 = vld [vmem:[%s339 + $0xc70] sm:$0xff]
        %v3544 = vld [vmem:[%s339 + $0xc78] sm:$0xff]
        %v3545 = vld [vmem:[%s339 + $0xc80] sm:$0xff]
        %v3546 = vld [vmem:[%s339 + $0xc88] sm:$0xff]
        %v3547 = vld [vmem:[%s339 + $0xc90] sm:$0xff]
        %v3548 = vld [vmem:[%s339 + $0xc98] sm:$0xff]
        %v3549 = vld [vmem:[%s339 + $0xca0] sm:$0xff]
        %v3550 = vld [vmem:[%s339 + $0xca8] sm:$0xff]
        %v3551 = vld [vmem:[%s339 + $0xcb0] sm:$0xff]
        %v3552 = vld [vmem:[%s339 + $0xcb8] sm:$0xff]
        %v3553 = vld [vmem:[%s339 + $0xcc0] sm:$0xff]
        %v3554 = vld [vmem:[%s339 + $0xcc8] sm:$0xff]
        %v3555 = vld [vmem:[%s339 + $0xcd0] sm:$0xff]
        %v3556 = vld [vmem:[%s339 + $0xcd8] sm:$0xff]
        %v3557 = vld [vmem:[%s339 + $0xce0] sm:$0xff]
        %v3558 = vld [vmem:[%s339 + $0xce8] sm:$0xff]
        %v3559 = vld [vmem:[%s339 + $0xcf0] sm:$0xff]
        %v3560 = vld [vmem:[%s339 + $0xcf8] sm:$0xff]
        %v3561 = vld [vmem:[%s339 + $0xd00] sm:$0xff]
        %v3562 = vld [vmem:[%s339 + $0xd08] sm:$0xff]
        %v3563 = vld [vmem:[%s339 + $0xd10] sm:$0xff]
        %v3564 = vld [vmem:[%s339 + $0xd18] sm:$0xff]
        %v3565 = vld [vmem:[%s339 + $0xd20] sm:$0xff]
        %v3566 = vld [vmem:[%s339 + $0xd28] sm:$0xff]
        %v3567 = vld [vmem:[%s339 + $0xd30] sm:$0xff]
        %v3568 = vld [vmem:[%s339 + $0xd38] sm:$0xff]
        %v3569 = vld [vmem:[%s339 + $0xd40] sm:$0xff]
        %v3570 = vld [vmem:[%s339 + $0xd48] sm:$0xff]
        %v3571 = vld [vmem:[%s339 + $0xd50] sm:$0xff]
        %v3572 = vld [vmem:[%s339 + $0xd58] sm:$0xff]
        %v3573 = vld [vmem:[%s339 + $0xd60] sm:$0xff]
        %v3574 = vld [vmem:[%s339 + $0xd68] sm:$0xff]
        %v3575 = vld [vmem:[%s339 + $0xd70] sm:$0xff]
        %v3576 = vld [vmem:[%s339 + $0xd78] sm:$0xff]
        %v3577 = vld [vmem:[%s339 + $0xd80] sm:$0xff]
        %v3578 = vld [vmem:[%s339 + $0xd88] sm:$0xff]
        %v3579 = vld [vmem:[%s339 + $0xd90] sm:$0xff]
        %v3580 = vld [vmem:[%s339 + $0xd98] sm:$0xff]
        %v3581 = vld [vmem:[%s339 + $0xda0] sm:$0xff]
        %v3582 = vld [vmem:[%s339 + $0xda8] sm:$0xff]
        %v3583 = vld [vmem:[%s339 + $0xdb0] sm:$0xff]
        %v3584 = vld [vmem:[%s339 + $0xdb8] sm:$0xff]
        %v3585 = vld [vmem:[%s339 + $0xdc0] sm:$0xff]
        %v3586 = vld [vmem:[%s339 + $0xdc8] sm:$0xff]
        %v3587 = vld [vmem:[%s339 + $0xdd0] sm:$0xff]
        %v3588 = vld [vmem:[%s339 + $0xdd8] sm:$0xff]
        %v3589 = vld [vmem:[%s339 + $0xde0] sm:$0xff]
        %v3590 = vld [vmem:[%s339 + $0xde8] sm:$0xff]
        %v3591 = vld [vmem:[%s339 + $0xdf0] sm:$0xff]
        %v3592 = vld [vmem:[%s339 + $0xdf8] sm:$0xff]
        %v3593 = vld [vmem:[%s339 + $0xe00] sm:$0xff]
        %v3594 = vld [vmem:[%s339 + $0xe08] sm:$0xff]
        %v3595 = vld [vmem:[%s339 + $0xe10] sm:$0xff]
        %v3596 = vld [vmem:[%s339 + $0xe18] sm:$0xff]
        %v3597 = vld [vmem:[%s339 + $0xe20] sm:$0xff]
        %v3598 = vld [vmem:[%s339 + $0xe28] sm:$0xff]
        %v3599 = vld [vmem:[%s339 + $0xe30] sm:$0xff]
        %v3600 = vld [vmem:[%s339 + $0xe38] sm:$0xff]
        %v3601 = vld [vmem:[%s339 + $0xe40] sm:$0xff]
        %v3602 = vld [vmem:[%s339 + $0xe48] sm:$0xff]
        %v3603 = vld [vmem:[%s339 + $0xe50] sm:$0xff]
        %v3604 = vld [vmem:[%s339 + $0xe58] sm:$0xff]
        %v3605 = vld [vmem:[%s339 + $0xe60] sm:$0xff]
        %v3606 = vld [vmem:[%s339 + $0xe68] sm:$0xff]
        %v3607 = vld [vmem:[%s339 + $0xe70] sm:$0xff]
        %v3608 = vld [vmem:[%s339 + $0xe78] sm:$0xff]
        %v3609 = vld [vmem:[%s339 + $0xe80] sm:$0xff]
        %v3610 = vld [vmem:[%s339 + $0xe88] sm:$0xff]
        %v3611 = vld [vmem:[%s339 + $0xe90] sm:$0xff]
        %v3612 = vld [vmem:[%s339 + $0xe98] sm:$0xff]
        %v3613 = vld [vmem:[%s339 + $0xea0] sm:$0xff]
        %v3614 = vld [vmem:[%s339 + $0xea8] sm:$0xff]
        %v3615 = vld [vmem:[%s339 + $0xeb0] sm:$0xff]
        %v3616 = vld [vmem:[%s339 + $0xeb8] sm:$0xff]
        %v3617 = vld [vmem:[%s339 + $0xec0] sm:$0xff]
        %v3618 = vld [vmem:[%s339 + $0xec8] sm:$0xff]
        %v3619 = vld [vmem:[%s339 + $0xed0] sm:$0xff]
        %v3620 = vld [vmem:[%s339 + $0xed8] sm:$0xff]
        %v3621 = vld [vmem:[%s339 + $0xee0] sm:$0xff]
        %v3622 = vld [vmem:[%s339 + $0xee8] sm:$0xff]
        %v3623 = vld [vmem:[%s339 + $0xef0] sm:$0xff]
        %v3624 = vld [vmem:[%s339 + $0xef8] sm:$0xff]
        %v3625 = vld [vmem:[%s339 + $0xf00] sm:$0xff]
        %v3626 = vld [vmem:[%s339 + $0xf08] sm:$0xff]
        %v3627 = vld [vmem:[%s339 + $0xf10] sm:$0xff]
        %v3628 = vld [vmem:[%s339 + $0xf18] sm:$0xff]
        %v3629 = vld [vmem:[%s339 + $0xf20] sm:$0xff]
        %v3630 = vld [vmem:[%s339 + $0xf28] sm:$0xff]
        %v3631 = vld [vmem:[%s339 + $0xf30] sm:$0xff]
        %v3632 = vld [vmem:[%s339 + $0xf38] sm:$0xff]
        %v3633 = vld [vmem:[%s339 + $0xf40] sm:$0xff]
        %v3634 = vld [vmem:[%s339 + $0xf48] sm:$0xff]
        %v3635 = vld [vmem:[%s339 + $0xf50] sm:$0xff]
        %v3636 = vld [vmem:[%s339 + $0xf58] sm:$0xff]
        %v3637 = vld [vmem:[%s339 + $0xf60] sm:$0xff]
        %v3638 = vld [vmem:[%s339 + $0xf68] sm:$0xff]
        %v3639 = vld [vmem:[%s339 + $0xf70] sm:$0xff]
        %v3640 = vld [vmem:[%s339 + $0xf78] sm:$0xff]
        %v3641 = vld [vmem:[%s339 + $0xf80] sm:$0xff]
        %v3642 = vld [vmem:[%s339 + $0xf88] sm:$0xff]
        %v3643 = vld [vmem:[%s339 + $0xf90] sm:$0xff]
        %v3644 = vld [vmem:[%s339 + $0xf98] sm:$0xff]
        %v3645 = vld [vmem:[%s339 + $0xfa0] sm:$0xff]
        %v3646 = vld [vmem:[%s339 + $0xfa8] sm:$0xff]
        %v3647 = vld [vmem:[%s339 + $0xfb0] sm:$0xff]
        %v3648 = vld [vmem:[%s339 + $0xfb8] sm:$0xff]
        %v3649 = vld [vmem:[%s339 + $0xfc0] sm:$0xff]
        %v3650 = vld [vmem:[%s339 + $0xfc8] sm:$0xff]
        %v3651 = vld [vmem:[%s339 + $0xfd0] sm:$0xff]
        %v3652 = vld [vmem:[%s339 + $0xfd8] sm:$0xff]
        %v3653 = vld [vmem:[%s339 + $0xfe0] sm:$0xff]
        %v3654 = vld [vmem:[%s339 + $0xfe8] sm:$0xff]
        %v3655 = vld [vmem:[%s339 + $0xff0] sm:$0xff]
        %v3656 = vld [vmem:[%s339 + $0xff8] sm:$0xff]
        %v3657 = vld [vmem:[%s348] sm:$0xff]
        %v3658 = vld [vmem:[%s348 + $0x8] sm:$0xff]
        %v3661 = vlaneseq
        %v3662 = vshrl.u32 %v3661, 7
        %v3663 = vsub.s32 0, %v3662
        %v3664 = vrot.slane %v3657, %v3663
        %v3665 = vlaneseq
        %v3666 = vshrl.u32 %v3665, 7
        %v3667 = vsub.s32 1, %v3666
        %v3668 = vrot.slane %v3657, %v3667
        %v3669 = vlaneseq
        %v3670 = vshrl.u32 %v3669, 7
        %v3671 = vsub.s32 2, %v3670
        %v3672 = vrot.slane %v3657, %v3671
        %v3673 = vlaneseq
        %v3674 = vshrl.u32 %v3673, 7
        %v3675 = vsub.s32 3, %v3674
        %v3676 = vrot.slane %v3657, %v3675
        %v3677 = vlaneseq
        %v3678 = vshrl.u32 %v3677, 7
        %v3679 = vsub.s32 4, %v3678
        %v3680 = vrot.slane %v3657, %v3679
        %v3681 = vlaneseq
        %v3682 = vshrl.u32 %v3681, 7
        %v3683 = vsub.s32 5, %v3682
        %v3684 = vrot.slane %v3657, %v3683
        %v3685 = vlaneseq
        %v3686 = vshrl.u32 %v3685, 7
        %v3687 = vsub.s32 6, %v3686
        %v3688 = vrot.slane %v3657, %v3687
        %v3689 = vlaneseq
        %v3690 = vshrl.u32 %v3689, 7
        %v3691 = vsub.s32 7, %v3690
        %v3692 = vrot.slane %v3657, %v3691
        %v3693 = vlaneseq
        %v3694 = vshrl.u32 %v3693, 7
        %v3695 = vsub.s32 0, %v3694
        %v3696 = vrot.slane %v3658, %v3695
        %v3697 = vlaneseq
        %v3698 = vshrl.u32 %v3697, 7
        %v3699 = vsub.s32 1, %v3698
        %v3700 = vrot.slane %v3658, %v3699
        %v3701 = vlaneseq
        %v3702 = vshrl.u32 %v3701, 7
        %v3703 = vsub.s32 2, %v3702
        %v3704 = vrot.slane %v3658, %v3703
        %v3705 = vlaneseq
        %v3706 = vshrl.u32 %v3705, 7
        %v3707 = vsub.s32 3, %v3706
        %v3708 = vrot.slane %v3658, %v3707
        %v3709 = vlaneseq
        %v3710 = vshrl.u32 %v3709, 7
        %v3711 = vsub.s32 4, %v3710
        %v3712 = vrot.slane %v3658, %v3711
        %v3713 = vlaneseq
        %v3714 = vshrl.u32 %v3713, 7
        %v3715 = vsub.s32 5, %v3714
        %v3716 = vrot.slane %v3658, %v3715
        %v3717 = vlaneseq
        %v3718 = vshrl.u32 %v3717, 7
        %v3719 = vsub.s32 6, %v3718
        %v3720 = vrot.slane %v3658, %v3719
        %v3721 = vlaneseq
        %v3722 = vshrl.u32 %v3721, 7
        %v3723 = vsub.s32 7, %v3722
        %v3724 = vrot.slane %v3658, %v3723
        %v4253 = vunpack.c.l.b16 %v3145
        %v4254 = vunpack.c.h.b16 %v3145
        %v4255 = vunpack.c.l.b16 %v3146
        %v4256 = vunpack.c.h.b16 %v3146
        %v4257 = vunpack.c.l.b16 %v3147
        %v4258 = vunpack.c.h.b16 %v3147
        %v4259 = vunpack.c.l.b16 %v3148
        %v4260 = vunpack.c.h.b16 %v3148
        %v4261 = vunpack.c.l.b16 %v3149
        %v4262 = vunpack.c.h.b16 %v3149
        %v4263 = vunpack.c.l.b16 %v3150
        %v4264 = vunpack.c.h.b16 %v3150
        %v4265 = vunpack.c.l.b16 %v3151
        %v4266 = vunpack.c.h.b16 %v3151
        %v4267 = vunpack.c.l.b16 %v3152
        %v4268 = vunpack.c.h.b16 %v3152
        %v4269 = vunpack.c.l.b16 %v3153
        %v4270 = vunpack.c.h.b16 %v3153
        %v4271 = vunpack.c.l.b16 %v3154
        %v4272 = vunpack.c.h.b16 %v3154
        %v4273 = vunpack.c.l.b16 %v3155
        %v4274 = vunpack.c.h.b16 %v3155
        %v4275 = vunpack.c.l.b16 %v3156
        %v4276 = vunpack.c.h.b16 %v3156
        %v4277 = vunpack.c.l.b16 %v3157
        %v4278 = vunpack.c.h.b16 %v3157
        %v4279 = vunpack.c.l.b16 %v3158
        %v4280 = vunpack.c.h.b16 %v3158
        %v4281 = vunpack.c.l.b16 %v3159
        %v4282 = vunpack.c.h.b16 %v3159
        %v4283 = vunpack.c.l.b16 %v3160
        %v4284 = vunpack.c.h.b16 %v3160
        %v4285 = vunpack.c.l.b16 %v3161
        %v4286 = vunpack.c.h.b16 %v3161
        %v4287 = vunpack.c.l.b16 %v3162
        %v4288 = vunpack.c.h.b16 %v3162
        %v4289 = vunpack.c.l.b16 %v3163
        %v4290 = vunpack.c.h.b16 %v3163
        %v4291 = vunpack.c.l.b16 %v3164
        %v4292 = vunpack.c.h.b16 %v3164
        %v4293 = vunpack.c.l.b16 %v3165
        %v4294 = vunpack.c.h.b16 %v3165
        %v4295 = vunpack.c.l.b16 %v3166
        %v4296 = vunpack.c.h.b16 %v3166
        %v4297 = vunpack.c.l.b16 %v3167
        %v4298 = vunpack.c.h.b16 %v3167
        %v4299 = vunpack.c.l.b16 %v3168
        %v4300 = vunpack.c.h.b16 %v3168
        %v4301 = vunpack.c.l.b16 %v3169
        %v4302 = vunpack.c.h.b16 %v3169
        %v4303 = vunpack.c.l.b16 %v3170
        %v4304 = vunpack.c.h.b16 %v3170
        %v4305 = vunpack.c.l.b16 %v3171
        %v4306 = vunpack.c.h.b16 %v3171
        %v4307 = vunpack.c.l.b16 %v3172
        %v4308 = vunpack.c.h.b16 %v3172
        %v4309 = vunpack.c.l.b16 %v3173
        %v4310 = vunpack.c.h.b16 %v3173
        %v4311 = vunpack.c.l.b16 %v3174
        %v4312 = vunpack.c.h.b16 %v3174
        %v4313 = vunpack.c.l.b16 %v3175
        %v4314 = vunpack.c.h.b16 %v3175
        %v4315 = vunpack.c.l.b16 %v3176
        %v4316 = vunpack.c.h.b16 %v3176
        %v4317 = vunpack.c.l.b16 %v3177
        %v4318 = vunpack.c.h.b16 %v3177
        %v4319 = vunpack.c.l.b16 %v3178
        %v4320 = vunpack.c.h.b16 %v3178
        %v4321 = vunpack.c.l.b16 %v3179
        %v4322 = vunpack.c.h.b16 %v3179
        %v4323 = vunpack.c.l.b16 %v3180
        %v4324 = vunpack.c.h.b16 %v3180
        %v4325 = vunpack.c.l.b16 %v3181
        %v4326 = vunpack.c.h.b16 %v3181
        %v4327 = vunpack.c.l.b16 %v3182
        %v4328 = vunpack.c.h.b16 %v3182
        %v4329 = vunpack.c.l.b16 %v3183
        %v4330 = vunpack.c.h.b16 %v3183
        %v4331 = vunpack.c.l.b16 %v3184
        %v4332 = vunpack.c.h.b16 %v3184
        %v4333 = vunpack.c.l.b16 %v3185
        %v4334 = vunpack.c.h.b16 %v3185
        %v4335 = vunpack.c.l.b16 %v3186
        %v4336 = vunpack.c.h.b16 %v3186
        %v4337 = vunpack.c.l.b16 %v3187
        %v4338 = vunpack.c.h.b16 %v3187
        %v4339 = vunpack.c.l.b16 %v3188
        %v4340 = vunpack.c.h.b16 %v3188
        %v4341 = vunpack.c.l.b16 %v3189
        %v4342 = vunpack.c.h.b16 %v3189
        %v4343 = vunpack.c.l.b16 %v3190
        %v4344 = vunpack.c.h.b16 %v3190
        %v4345 = vunpack.c.l.b16 %v3191
        %v4346 = vunpack.c.h.b16 %v3191
        %v4347 = vunpack.c.l.b16 %v3192
        %v4348 = vunpack.c.h.b16 %v3192
        %v4349 = vunpack.c.l.b16 %v3193
        %v4350 = vunpack.c.h.b16 %v3193
        %v4351 = vunpack.c.l.b16 %v3194
        %v4352 = vunpack.c.h.b16 %v3194
        %v4353 = vunpack.c.l.b16 %v3195
        %v4354 = vunpack.c.h.b16 %v3195
        %v4355 = vunpack.c.l.b16 %v3196
        %v4356 = vunpack.c.h.b16 %v3196
        %v4357 = vunpack.c.l.b16 %v3197
        %v4358 = vunpack.c.h.b16 %v3197
        %v4359 = vunpack.c.l.b16 %v3198
        %v4360 = vunpack.c.h.b16 %v3198
        %v4361 = vunpack.c.l.b16 %v3199
        %v4362 = vunpack.c.h.b16 %v3199
        %v4363 = vunpack.c.l.b16 %v3200
        %v4364 = vunpack.c.h.b16 %v3200
        %v4365 = vunpack.c.l.b16 %v3201
        %v4366 = vunpack.c.h.b16 %v3201
        %v4367 = vunpack.c.l.b16 %v3202
        %v4368 = vunpack.c.h.b16 %v3202
        %v4369 = vunpack.c.l.b16 %v3203
        %v4370 = vunpack.c.h.b16 %v3203
        %v4371 = vunpack.c.l.b16 %v3204
        %v4372 = vunpack.c.h.b16 %v3204
        %v4373 = vunpack.c.l.b16 %v3205
        %v4374 = vunpack.c.h.b16 %v3205
        %v4375 = vunpack.c.l.b16 %v3206
        %v4376 = vunpack.c.h.b16 %v3206
        %v4377 = vunpack.c.l.b16 %v3207
        %v4378 = vunpack.c.h.b16 %v3207
        %v4379 = vunpack.c.l.b16 %v3208
        %v4380 = vunpack.c.h.b16 %v3208
        %v4381 = vunpack.c.l.b16 %v3209
        %v4382 = vunpack.c.h.b16 %v3209
        %v4383 = vunpack.c.l.b16 %v3210
        %v4384 = vunpack.c.h.b16 %v3210
        %v4385 = vunpack.c.l.b16 %v3211
        %v4386 = vunpack.c.h.b16 %v3211
        %v4387 = vunpack.c.l.b16 %v3212
        %v4388 = vunpack.c.h.b16 %v3212
        %v4389 = vunpack.c.l.b16 %v3213
        %v4390 = vunpack.c.h.b16 %v3213
        %v4391 = vunpack.c.l.b16 %v3214
        %v4392 = vunpack.c.h.b16 %v3214
        %v4393 = vunpack.c.l.b16 %v3215
        %v4394 = vunpack.c.h.b16 %v3215
        %v4395 = vunpack.c.l.b16 %v3216
        %v4396 = vunpack.c.h.b16 %v3216
        %v4397 = vunpack.c.l.b16 %v3217
        %v4398 = vunpack.c.h.b16 %v3217
        %v4399 = vunpack.c.l.b16 %v3218
        %v4400 = vunpack.c.h.b16 %v3218
        %v4401 = vunpack.c.l.b16 %v3219
        %v4402 = vunpack.c.h.b16 %v3219
        %v4403 = vunpack.c.l.b16 %v3220
        %v4404 = vunpack.c.h.b16 %v3220
        %v4405 = vunpack.c.l.b16 %v3221
        %v4406 = vunpack.c.h.b16 %v3221
        %v4407 = vunpack.c.l.b16 %v3222
        %v4408 = vunpack.c.h.b16 %v3222
        %v4409 = vunpack.c.l.b16 %v3223
        %v4410 = vunpack.c.h.b16 %v3223
        %v4411 = vunpack.c.l.b16 %v3224
        %v4412 = vunpack.c.h.b16 %v3224
        %v4413 = vunpack.c.l.b16 %v3225
        %v4414 = vunpack.c.h.b16 %v3225
        %v4415 = vunpack.c.l.b16 %v3226
        %v4416 = vunpack.c.h.b16 %v3226
        %v4417 = vunpack.c.l.b16 %v3227
        %v4418 = vunpack.c.h.b16 %v3227
        %v4419 = vunpack.c.l.b16 %v3228
        %v4420 = vunpack.c.h.b16 %v3228
        %v4421 = vunpack.c.l.b16 %v3229
        %v4422 = vunpack.c.h.b16 %v3229
        %v4423 = vunpack.c.l.b16 %v3230
        %v4424 = vunpack.c.h.b16 %v3230
        %v4425 = vunpack.c.l.b16 %v3231
        %v4426 = vunpack.c.h.b16 %v3231
        %v4427 = vunpack.c.l.b16 %v3232
        %v4428 = vunpack.c.h.b16 %v3232
        %v4429 = vunpack.c.l.b16 %v3233
        %v4430 = vunpack.c.h.b16 %v3233
        %v4431 = vunpack.c.l.b16 %v3234
        %v4432 = vunpack.c.h.b16 %v3234
        %v4433 = vunpack.c.l.b16 %v3235
        %v4434 = vunpack.c.h.b16 %v3235
        %v4435 = vunpack.c.l.b16 %v3236
        %v4436 = vunpack.c.h.b16 %v3236
        %v4437 = vunpack.c.l.b16 %v3237
        %v4438 = vunpack.c.h.b16 %v3237
        %v4439 = vunpack.c.l.b16 %v3238
        %v4440 = vunpack.c.h.b16 %v3238
        %v4441 = vunpack.c.l.b16 %v3239
        %v4442 = vunpack.c.h.b16 %v3239
        %v4443 = vunpack.c.l.b16 %v3240
        %v4444 = vunpack.c.h.b16 %v3240
        %v4445 = vunpack.c.l.b16 %v3241
        %v4446 = vunpack.c.h.b16 %v3241
        %v4447 = vunpack.c.l.b16 %v3242
        %v4448 = vunpack.c.h.b16 %v3242
        %v4449 = vunpack.c.l.b16 %v3243
        %v4450 = vunpack.c.h.b16 %v3243
        %v4451 = vunpack.c.l.b16 %v3244
        %v4452 = vunpack.c.h.b16 %v3244
        %v4453 = vunpack.c.l.b16 %v3245
        %v4454 = vunpack.c.h.b16 %v3245
        %v4455 = vunpack.c.l.b16 %v3246
        %v4456 = vunpack.c.h.b16 %v3246
        %v4457 = vunpack.c.l.b16 %v3247
        %v4458 = vunpack.c.h.b16 %v3247
        %v4459 = vunpack.c.l.b16 %v3248
        %v4460 = vunpack.c.h.b16 %v3248
        %v4461 = vunpack.c.l.b16 %v3249
        %v4462 = vunpack.c.h.b16 %v3249
        %v4463 = vunpack.c.l.b16 %v3250
        %v4464 = vunpack.c.h.b16 %v3250
        %v4465 = vunpack.c.l.b16 %v3251
        %v4466 = vunpack.c.h.b16 %v3251
        %v4467 = vunpack.c.l.b16 %v3252
        %v4468 = vunpack.c.h.b16 %v3252
        %v4469 = vunpack.c.l.b16 %v3253
        %v4470 = vunpack.c.h.b16 %v3253
        %v4471 = vunpack.c.l.b16 %v3254
        %v4472 = vunpack.c.h.b16 %v3254
        %v4473 = vunpack.c.l.b16 %v3255
        %v4474 = vunpack.c.h.b16 %v3255
        %v4475 = vunpack.c.l.b16 %v3256
        %v4476 = vunpack.c.h.b16 %v3256
        %v4477 = vunpack.c.l.b16 %v3257
        %v4478 = vunpack.c.h.b16 %v3257
        %v4479 = vunpack.c.l.b16 %v3258
        %v4480 = vunpack.c.h.b16 %v3258
        %v4481 = vunpack.c.l.b16 %v3259
        %v4482 = vunpack.c.h.b16 %v3259
        %v4483 = vunpack.c.l.b16 %v3260
        %v4484 = vunpack.c.h.b16 %v3260
        %v4485 = vunpack.c.l.b16 %v3261
        %v4486 = vunpack.c.h.b16 %v3261
        %v4487 = vunpack.c.l.b16 %v3262
        %v4488 = vunpack.c.h.b16 %v3262
        %v4489 = vunpack.c.l.b16 %v3263
        %v4490 = vunpack.c.h.b16 %v3263
        %v4491 = vunpack.c.l.b16 %v3264
        %v4492 = vunpack.c.h.b16 %v3264
        %v4493 = vunpack.c.l.b16 %v3265
        %v4494 = vunpack.c.h.b16 %v3265
        %v4495 = vunpack.c.l.b16 %v3266
        %v4496 = vunpack.c.h.b16 %v3266
        %v4497 = vunpack.c.l.b16 %v3267
        %v4498 = vunpack.c.h.b16 %v3267
        %v4499 = vunpack.c.l.b16 %v3268
        %v4500 = vunpack.c.h.b16 %v3268
        %v4501 = vunpack.c.l.b16 %v3269
        %v4502 = vunpack.c.h.b16 %v3269
        %v4503 = vunpack.c.l.b16 %v3270
        %v4504 = vunpack.c.h.b16 %v3270
        %v4505 = vunpack.c.l.b16 %v3271
        %v4506 = vunpack.c.h.b16 %v3271
        %v4507 = vunpack.c.l.b16 %v3272
        %v4508 = vunpack.c.h.b16 %v3272
        %v4509 = vunpack.c.l.b16 %v3273
        %v4510 = vunpack.c.h.b16 %v3273
        %v4511 = vunpack.c.l.b16 %v3274
        %v4512 = vunpack.c.h.b16 %v3274
        %v4513 = vunpack.c.l.b16 %v3275
        %v4514 = vunpack.c.h.b16 %v3275
        %v4515 = vunpack.c.l.b16 %v3276
        %v4516 = vunpack.c.h.b16 %v3276
        %v4517 = vunpack.c.l.b16 %v3277
        %v4518 = vunpack.c.h.b16 %v3277
        %v4519 = vunpack.c.l.b16 %v3278
        %v4520 = vunpack.c.h.b16 %v3278
        %v4521 = vunpack.c.l.b16 %v3279
        %v4522 = vunpack.c.h.b16 %v3279
        %v4523 = vunpack.c.l.b16 %v3280
        %v4524 = vunpack.c.h.b16 %v3280
        %v4525 = vunpack.c.l.b16 %v3281
        %v4526 = vunpack.c.h.b16 %v3281
        %v4527 = vunpack.c.l.b16 %v3282
        %v4528 = vunpack.c.h.b16 %v3282
        %v4529 = vunpack.c.l.b16 %v3283
        %v4530 = vunpack.c.h.b16 %v3283
        %v4531 = vunpack.c.l.b16 %v3284
        %v4532 = vunpack.c.h.b16 %v3284
        %v4533 = vunpack.c.l.b16 %v3285
        %v4534 = vunpack.c.h.b16 %v3285
        %v4535 = vunpack.c.l.b16 %v3286
        %v4536 = vunpack.c.h.b16 %v3286
        %v4537 = vunpack.c.l.b16 %v3287
        %v4538 = vunpack.c.h.b16 %v3287
        %v4539 = vunpack.c.l.b16 %v3288
        %v4540 = vunpack.c.h.b16 %v3288
        %v4541 = vunpack.c.l.b16 %v3289
        %v4542 = vunpack.c.h.b16 %v3289
        %v4543 = vunpack.c.l.b16 %v3290
        %v4544 = vunpack.c.h.b16 %v3290
        %v4545 = vunpack.c.l.b16 %v3291
        %v4546 = vunpack.c.h.b16 %v3291
        %v4547 = vunpack.c.l.b16 %v3292
        %v4548 = vunpack.c.h.b16 %v3292
        %v4549 = vunpack.c.l.b16 %v3293
        %v4550 = vunpack.c.h.b16 %v3293
        %v4551 = vunpack.c.l.b16 %v3294
        %v4552 = vunpack.c.h.b16 %v3294
        %v4553 = vunpack.c.l.b16 %v3295
        %v4554 = vunpack.c.h.b16 %v3295
        %v4555 = vunpack.c.l.b16 %v3296
        %v4556 = vunpack.c.h.b16 %v3296
        %v4557 = vunpack.c.l.b16 %v3297
        %v4558 = vunpack.c.h.b16 %v3297
        %v4559 = vunpack.c.l.b16 %v3298
        %v4560 = vunpack.c.h.b16 %v3298
        %v4561 = vunpack.c.l.b16 %v3299
        %v4562 = vunpack.c.h.b16 %v3299
        %v4563 = vunpack.c.l.b16 %v3300
        %v4564 = vunpack.c.h.b16 %v3300
        %v4565 = vunpack.c.l.b16 %v3301
        %v4566 = vunpack.c.h.b16 %v3301
        %v4567 = vunpack.c.l.b16 %v3302
        %v4568 = vunpack.c.h.b16 %v3302
        %v4569 = vunpack.c.l.b16 %v3303
        %v4570 = vunpack.c.h.b16 %v3303
        %v4571 = vunpack.c.l.b16 %v3304
        %v4572 = vunpack.c.h.b16 %v3304
        %v4573 = vunpack.c.l.b16 %v3305
        %v4574 = vunpack.c.h.b16 %v3305
        %v4575 = vunpack.c.l.b16 %v3306
        %v4576 = vunpack.c.h.b16 %v3306
        %v4577 = vunpack.c.l.b16 %v3307
        %v4578 = vunpack.c.h.b16 %v3307
        %v4579 = vunpack.c.l.b16 %v3308
        %v4580 = vunpack.c.h.b16 %v3308
        %v4581 = vunpack.c.l.b16 %v3309
        %v4582 = vunpack.c.h.b16 %v3309
        %v4583 = vunpack.c.l.b16 %v3310
        %v4584 = vunpack.c.h.b16 %v3310
        %v4585 = vunpack.c.l.b16 %v3311
        %v4586 = vunpack.c.h.b16 %v3311
        %v4587 = vunpack.c.l.b16 %v3312
        %v4588 = vunpack.c.h.b16 %v3312
        %v4589 = vunpack.c.l.b16 %v3313
        %v4590 = vunpack.c.h.b16 %v3313
        %v4591 = vunpack.c.l.b16 %v3314
        %v4592 = vunpack.c.h.b16 %v3314
        %v4593 = vunpack.c.l.b16 %v3315
        %v4594 = vunpack.c.h.b16 %v3315
        %v4595 = vunpack.c.l.b16 %v3316
        %v4596 = vunpack.c.h.b16 %v3316
        %v4597 = vunpack.c.l.b16 %v3317
        %v4598 = vunpack.c.h.b16 %v3317
        %v4599 = vunpack.c.l.b16 %v3318
        %v4600 = vunpack.c.h.b16 %v3318
        %v4601 = vunpack.c.l.b16 %v3319
        %v4602 = vunpack.c.h.b16 %v3319
        %v4603 = vunpack.c.l.b16 %v3320
        %v4604 = vunpack.c.h.b16 %v3320
        %v4605 = vunpack.c.l.b16 %v3321
        %v4606 = vunpack.c.h.b16 %v3321
        %v4607 = vunpack.c.l.b16 %v3322
        %v4608 = vunpack.c.h.b16 %v3322
        %v4609 = vunpack.c.l.b16 %v3323
        %v4610 = vunpack.c.h.b16 %v3323
        %v4611 = vunpack.c.l.b16 %v3324
        %v4612 = vunpack.c.h.b16 %v3324
        %v4613 = vunpack.c.l.b16 %v3325
        %v4614 = vunpack.c.h.b16 %v3325
        %v4615 = vunpack.c.l.b16 %v3326
        %v4616 = vunpack.c.h.b16 %v3326
        %v4617 = vunpack.c.l.b16 %v3327
        %v4618 = vunpack.c.h.b16 %v3327
        %v4619 = vunpack.c.l.b16 %v3328
        %v4620 = vunpack.c.h.b16 %v3328
        %v4621 = vunpack.c.l.b16 %v3329
        %v4622 = vunpack.c.h.b16 %v3329
        %v4623 = vunpack.c.l.b16 %v3330
        %v4624 = vunpack.c.h.b16 %v3330
        %v4625 = vunpack.c.l.b16 %v3331
        %v4626 = vunpack.c.h.b16 %v3331
        %v4627 = vunpack.c.l.b16 %v3332
        %v4628 = vunpack.c.h.b16 %v3332
        %v4629 = vunpack.c.l.b16 %v3333
        %v4630 = vunpack.c.h.b16 %v3333
        %v4631 = vunpack.c.l.b16 %v3334
        %v4632 = vunpack.c.h.b16 %v3334
        %v4633 = vunpack.c.l.b16 %v3335
        %v4634 = vunpack.c.h.b16 %v3335
        %v4635 = vunpack.c.l.b16 %v3336
        %v4636 = vunpack.c.h.b16 %v3336
        %v4637 = vunpack.c.l.b16 %v3337
        %v4638 = vunpack.c.h.b16 %v3337
        %v4639 = vunpack.c.l.b16 %v3338
        %v4640 = vunpack.c.h.b16 %v3338
        %v4641 = vunpack.c.l.b16 %v3339
        %v4642 = vunpack.c.h.b16 %v3339
        %v4643 = vunpack.c.l.b16 %v3340
        %v4644 = vunpack.c.h.b16 %v3340
        %v4645 = vunpack.c.l.b16 %v3341
        %v4646 = vunpack.c.h.b16 %v3341
        %v4647 = vunpack.c.l.b16 %v3342
        %v4648 = vunpack.c.h.b16 %v3342
        %v4649 = vunpack.c.l.b16 %v3343
        %v4650 = vunpack.c.h.b16 %v3343
        %v4651 = vunpack.c.l.b16 %v3344
        %v4652 = vunpack.c.h.b16 %v3344
        %v4653 = vunpack.c.l.b16 %v3345
        %v4654 = vunpack.c.h.b16 %v3345
        %v4655 = vunpack.c.l.b16 %v3346
        %v4656 = vunpack.c.h.b16 %v3346
        %v4657 = vunpack.c.l.b16 %v3347
        %v4658 = vunpack.c.h.b16 %v3347
        %v4659 = vunpack.c.l.b16 %v3348
        %v4660 = vunpack.c.h.b16 %v3348
        %v4661 = vunpack.c.l.b16 %v3349
        %v4662 = vunpack.c.h.b16 %v3349
        %v4663 = vunpack.c.l.b16 %v3350
        %v4664 = vunpack.c.h.b16 %v3350
        %v4665 = vunpack.c.l.b16 %v3351
        %v4666 = vunpack.c.h.b16 %v3351
        %v4667 = vunpack.c.l.b16 %v3352
        %v4668 = vunpack.c.h.b16 %v3352
        %v4669 = vunpack.c.l.b16 %v3353
        %v4670 = vunpack.c.h.b16 %v3353
        %v4671 = vunpack.c.l.b16 %v3354
        %v4672 = vunpack.c.h.b16 %v3354
        %v4673 = vunpack.c.l.b16 %v3355
        %v4674 = vunpack.c.h.b16 %v3355
        %v4675 = vunpack.c.l.b16 %v3356
        %v4676 = vunpack.c.h.b16 %v3356
        %v4677 = vunpack.c.l.b16 %v3357
        %v4678 = vunpack.c.h.b16 %v3357
        %v4679 = vunpack.c.l.b16 %v3358
        %v4680 = vunpack.c.h.b16 %v3358
        %v4681 = vunpack.c.l.b16 %v3359
        %v4682 = vunpack.c.h.b16 %v3359
        %v4683 = vunpack.c.l.b16 %v3360
        %v4684 = vunpack.c.h.b16 %v3360
        %v4685 = vunpack.c.l.b16 %v3361
        %v4686 = vunpack.c.h.b16 %v3361
        %v4687 = vunpack.c.l.b16 %v3362
        %v4688 = vunpack.c.h.b16 %v3362
        %v4689 = vunpack.c.l.b16 %v3363
        %v4690 = vunpack.c.h.b16 %v3363
        %v4691 = vunpack.c.l.b16 %v3364
        %v4692 = vunpack.c.h.b16 %v3364
        %v4693 = vunpack.c.l.b16 %v3365
        %v4694 = vunpack.c.h.b16 %v3365
        %v4695 = vunpack.c.l.b16 %v3366
        %v4696 = vunpack.c.h.b16 %v3366
        %v4697 = vunpack.c.l.b16 %v3367
        %v4698 = vunpack.c.h.b16 %v3367
        %v4699 = vunpack.c.l.b16 %v3368
        %v4700 = vunpack.c.h.b16 %v3368
        %v4701 = vunpack.c.l.b16 %v3369
        %v4702 = vunpack.c.h.b16 %v3369
        %v4703 = vunpack.c.l.b16 %v3370
        %v4704 = vunpack.c.h.b16 %v3370
        %v4705 = vunpack.c.l.b16 %v3371
        %v4706 = vunpack.c.h.b16 %v3371
        %v4707 = vunpack.c.l.b16 %v3372
        %v4708 = vunpack.c.h.b16 %v3372
        %v4709 = vunpack.c.l.b16 %v3373
        %v4710 = vunpack.c.h.b16 %v3373
        %v4711 = vunpack.c.l.b16 %v3374
        %v4712 = vunpack.c.h.b16 %v3374
        %v4713 = vunpack.c.l.b16 %v3375
        %v4714 = vunpack.c.h.b16 %v3375
        %v4715 = vunpack.c.l.b16 %v3376
        %v4716 = vunpack.c.h.b16 %v3376
        %v4717 = vunpack.c.l.b16 %v3377
        %v4718 = vunpack.c.h.b16 %v3377
        %v4719 = vunpack.c.l.b16 %v3378
        %v4720 = vunpack.c.h.b16 %v3378
        %v4721 = vunpack.c.l.b16 %v3379
        %v4722 = vunpack.c.h.b16 %v3379
        %v4723 = vunpack.c.l.b16 %v3380
        %v4724 = vunpack.c.h.b16 %v3380
        %v4725 = vunpack.c.l.b16 %v3381
        %v4726 = vunpack.c.h.b16 %v3381
        %v4727 = vunpack.c.l.b16 %v3382
        %v4728 = vunpack.c.h.b16 %v3382
        %v4729 = vunpack.c.l.b16 %v3383
        %v4730 = vunpack.c.h.b16 %v3383
        %v4731 = vunpack.c.l.b16 %v3384
        %v4732 = vunpack.c.h.b16 %v3384
        %v4733 = vunpack.c.l.b16 %v3385
        %v4734 = vunpack.c.h.b16 %v3385
        %v4735 = vunpack.c.l.b16 %v3386
        %v4736 = vunpack.c.h.b16 %v3386
        %v4737 = vunpack.c.l.b16 %v3387
        %v4738 = vunpack.c.h.b16 %v3387
        %v4739 = vunpack.c.l.b16 %v3388
        %v4740 = vunpack.c.h.b16 %v3388
        %v4741 = vunpack.c.l.b16 %v3389
        %v4742 = vunpack.c.h.b16 %v3389
        %v4743 = vunpack.c.l.b16 %v3390
        %v4744 = vunpack.c.h.b16 %v3390
        %v4745 = vunpack.c.l.b16 %v3391
        %v4746 = vunpack.c.h.b16 %v3391
        %v4747 = vunpack.c.l.b16 %v3392
        %v4748 = vunpack.c.h.b16 %v3392
        %v4749 = vunpack.c.l.b16 %v3393
        %v4750 = vunpack.c.h.b16 %v3393
        %v4751 = vunpack.c.l.b16 %v3394
        %v4752 = vunpack.c.h.b16 %v3394
        %v4753 = vunpack.c.l.b16 %v3395
        %v4754 = vunpack.c.h.b16 %v3395
        %v4755 = vunpack.c.l.b16 %v3396
        %v4756 = vunpack.c.h.b16 %v3396
        %v4757 = vunpack.c.l.b16 %v3397
        %v4758 = vunpack.c.h.b16 %v3397
        %v4759 = vunpack.c.l.b16 %v3398
        %v4760 = vunpack.c.h.b16 %v3398
        %v4761 = vunpack.c.l.b16 %v3399
        %v4762 = vunpack.c.h.b16 %v3399
        %v4763 = vunpack.c.l.b16 %v3400
        %v4764 = vunpack.c.h.b16 %v3400
        %v4765 = vunpack.c.l.b16 %v3401
        %v4766 = vunpack.c.h.b16 %v3401
        %v4767 = vunpack.c.l.b16 %v3402
        %v4768 = vunpack.c.h.b16 %v3402
        %v4769 = vunpack.c.l.b16 %v3403
        %v4770 = vunpack.c.h.b16 %v3403
        %v4771 = vunpack.c.l.b16 %v3404
        %v4772 = vunpack.c.h.b16 %v3404
        %v4773 = vunpack.c.l.b16 %v3405
        %v4774 = vunpack.c.h.b16 %v3405
        %v4775 = vunpack.c.l.b16 %v3406
        %v4776 = vunpack.c.h.b16 %v3406
        %v4777 = vunpack.c.l.b16 %v3407
        %v4778 = vunpack.c.h.b16 %v3407
        %v4779 = vunpack.c.l.b16 %v3408
        %v4780 = vunpack.c.h.b16 %v3408
        %v4781 = vunpack.c.l.b16 %v3409
        %v4782 = vunpack.c.h.b16 %v3409
        %v4783 = vunpack.c.l.b16 %v3410
        %v4784 = vunpack.c.h.b16 %v3410
        %v4785 = vunpack.c.l.b16 %v3411
        %v4786 = vunpack.c.h.b16 %v3411
        %v4787 = vunpack.c.l.b16 %v3412
        %v4788 = vunpack.c.h.b16 %v3412
        %v4789 = vunpack.c.l.b16 %v3413
        %v4790 = vunpack.c.h.b16 %v3413
        %v4791 = vunpack.c.l.b16 %v3414
        %v4792 = vunpack.c.h.b16 %v3414
        %v4793 = vunpack.c.l.b16 %v3415
        %v4794 = vunpack.c.h.b16 %v3415
        %v4795 = vunpack.c.l.b16 %v3416
        %v4796 = vunpack.c.h.b16 %v3416
        %v4797 = vunpack.c.l.b16 %v3417
        %v4798 = vunpack.c.h.b16 %v3417
        %v4799 = vunpack.c.l.b16 %v3418
        %v4800 = vunpack.c.h.b16 %v3418
        %v4801 = vunpack.c.l.b16 %v3419
        %v4802 = vunpack.c.h.b16 %v3419
        %v4803 = vunpack.c.l.b16 %v3420
        %v4804 = vunpack.c.h.b16 %v3420
        %v4805 = vunpack.c.l.b16 %v3421
        %v4806 = vunpack.c.h.b16 %v3421
        %v4807 = vunpack.c.l.b16 %v3422
        %v4808 = vunpack.c.h.b16 %v3422
        %v4809 = vunpack.c.l.b16 %v3423
        %v4810 = vunpack.c.h.b16 %v3423
        %v4811 = vunpack.c.l.b16 %v3424
        %v4812 = vunpack.c.h.b16 %v3424
        %v4813 = vunpack.c.l.b16 %v3425
        %v4814 = vunpack.c.h.b16 %v3425
        %v4815 = vunpack.c.l.b16 %v3426
        %v4816 = vunpack.c.h.b16 %v3426
        %v4817 = vunpack.c.l.b16 %v3427
        %v4818 = vunpack.c.h.b16 %v3427
        %v4819 = vunpack.c.l.b16 %v3428
        %v4820 = vunpack.c.h.b16 %v3428
        %v4821 = vunpack.c.l.b16 %v3429
        %v4822 = vunpack.c.h.b16 %v3429
        %v4823 = vunpack.c.l.b16 %v3430
        %v4824 = vunpack.c.h.b16 %v3430
        %v4825 = vunpack.c.l.b16 %v3431
        %v4826 = vunpack.c.h.b16 %v3431
        %v4827 = vunpack.c.l.b16 %v3432
        %v4828 = vunpack.c.h.b16 %v3432
        %v4829 = vunpack.c.l.b16 %v3433
        %v4830 = vunpack.c.h.b16 %v3433
        %v4831 = vunpack.c.l.b16 %v3434
        %v4832 = vunpack.c.h.b16 %v3434
        %v4833 = vunpack.c.l.b16 %v3435
        %v4834 = vunpack.c.h.b16 %v3435
        %v4835 = vunpack.c.l.b16 %v3436
        %v4836 = vunpack.c.h.b16 %v3436
        %v4837 = vunpack.c.l.b16 %v3437
        %v4838 = vunpack.c.h.b16 %v3437
        %v4839 = vunpack.c.l.b16 %v3438
        %v4840 = vunpack.c.h.b16 %v3438
        %v4841 = vunpack.c.l.b16 %v3439
        %v4842 = vunpack.c.h.b16 %v3439
        %v4843 = vunpack.c.l.b16 %v3440
        %v4844 = vunpack.c.h.b16 %v3440
        %v4845 = vunpack.c.l.b16 %v3441
        %v4846 = vunpack.c.h.b16 %v3441
        %v4847 = vunpack.c.l.b16 %v3442
        %v4848 = vunpack.c.h.b16 %v3442
        %v4849 = vunpack.c.l.b16 %v3443
        %v4850 = vunpack.c.h.b16 %v3443
        %v4851 = vunpack.c.l.b16 %v3444
        %v4852 = vunpack.c.h.b16 %v3444
        %v4853 = vunpack.c.l.b16 %v3445
        %v4854 = vunpack.c.h.b16 %v3445
        %v4855 = vunpack.c.l.b16 %v3446
        %v4856 = vunpack.c.h.b16 %v3446
        %v4857 = vunpack.c.l.b16 %v3447
        %v4858 = vunpack.c.h.b16 %v3447
        %v4859 = vunpack.c.l.b16 %v3448
        %v4860 = vunpack.c.h.b16 %v3448
        %v4861 = vunpack.c.l.b16 %v3449
        %v4862 = vunpack.c.h.b16 %v3449
        %v4863 = vunpack.c.l.b16 %v3450
        %v4864 = vunpack.c.h.b16 %v3450
        %v4865 = vunpack.c.l.b16 %v3451
        %v4866 = vunpack.c.h.b16 %v3451
        %v4867 = vunpack.c.l.b16 %v3452
        %v4868 = vunpack.c.h.b16 %v3452
        %v4869 = vunpack.c.l.b16 %v3453
        %v4870 = vunpack.c.h.b16 %v3453
        %v4871 = vunpack.c.l.b16 %v3454
        %v4872 = vunpack.c.h.b16 %v3454
        %v4873 = vunpack.c.l.b16 %v3455
        %v4874 = vunpack.c.h.b16 %v3455
        %v4875 = vunpack.c.l.b16 %v3456
        %v4876 = vunpack.c.h.b16 %v3456
        %v4877 = vunpack.c.l.b16 %v3457
        %v4878 = vunpack.c.h.b16 %v3457
        %v4879 = vunpack.c.l.b16 %v3458
        %v4880 = vunpack.c.h.b16 %v3458
        %v4881 = vunpack.c.l.b16 %v3459
        %v4882 = vunpack.c.h.b16 %v3459
        %v4883 = vunpack.c.l.b16 %v3460
        %v4884 = vunpack.c.h.b16 %v3460
        %v4885 = vunpack.c.l.b16 %v3461
        %v4886 = vunpack.c.h.b16 %v3461
        %v4887 = vunpack.c.l.b16 %v3462
        %v4888 = vunpack.c.h.b16 %v3462
        %v4889 = vunpack.c.l.b16 %v3463
        %v4890 = vunpack.c.h.b16 %v3463
        %v4891 = vunpack.c.l.b16 %v3464
        %v4892 = vunpack.c.h.b16 %v3464
        %v4893 = vunpack.c.l.b16 %v3465
        %v4894 = vunpack.c.h.b16 %v3465
        %v4895 = vunpack.c.l.b16 %v3466
        %v4896 = vunpack.c.h.b16 %v3466
        %v4897 = vunpack.c.l.b16 %v3467
        %v4898 = vunpack.c.h.b16 %v3467
        %v4899 = vunpack.c.l.b16 %v3468
        %v4900 = vunpack.c.h.b16 %v3468
        %v4901 = vunpack.c.l.b16 %v3469
        %v4902 = vunpack.c.h.b16 %v3469
        %v4903 = vunpack.c.l.b16 %v3470
        %v4904 = vunpack.c.h.b16 %v3470
        %v4905 = vunpack.c.l.b16 %v3471
        %v4906 = vunpack.c.h.b16 %v3471
        %v4907 = vunpack.c.l.b16 %v3472
        %v4908 = vunpack.c.h.b16 %v3472
        %v4909 = vunpack.c.l.b16 %v3473
        %v4910 = vunpack.c.h.b16 %v3473
        %v4911 = vunpack.c.l.b16 %v3474
        %v4912 = vunpack.c.h.b16 %v3474
        %v4913 = vunpack.c.l.b16 %v3475
        %v4914 = vunpack.c.h.b16 %v3475
        %v4915 = vunpack.c.l.b16 %v3476
        %v4916 = vunpack.c.h.b16 %v3476
        %v4917 = vunpack.c.l.b16 %v3477
        %v4918 = vunpack.c.h.b16 %v3477
        %v4919 = vunpack.c.l.b16 %v3478
        %v4920 = vunpack.c.h.b16 %v3478
        %v4921 = vunpack.c.l.b16 %v3479
        %v4922 = vunpack.c.h.b16 %v3479
        %v4923 = vunpack.c.l.b16 %v3480
        %v4924 = vunpack.c.h.b16 %v3480
        %v4925 = vunpack.c.l.b16 %v3481
        %v4926 = vunpack.c.h.b16 %v3481
        %v4927 = vunpack.c.l.b16 %v3482
        %v4928 = vunpack.c.h.b16 %v3482
        %v4929 = vunpack.c.l.b16 %v3483
        %v4930 = vunpack.c.h.b16 %v3483
        %v4931 = vunpack.c.l.b16 %v3484
        %v4932 = vunpack.c.h.b16 %v3484
        %v4933 = vunpack.c.l.b16 %v3485
        %v4934 = vunpack.c.h.b16 %v3485
        %v4935 = vunpack.c.l.b16 %v3486
        %v4936 = vunpack.c.h.b16 %v3486
        %v4937 = vunpack.c.l.b16 %v3487
        %v4938 = vunpack.c.h.b16 %v3487
        %v4939 = vunpack.c.l.b16 %v3488
        %v4940 = vunpack.c.h.b16 %v3488
        %v4941 = vunpack.c.l.b16 %v3489
        %v4942 = vunpack.c.h.b16 %v3489
        %v4943 = vunpack.c.l.b16 %v3490
        %v4944 = vunpack.c.h.b16 %v3490
        %v4945 = vunpack.c.l.b16 %v3491
        %v4946 = vunpack.c.h.b16 %v3491
        %v4947 = vunpack.c.l.b16 %v3492
        %v4948 = vunpack.c.h.b16 %v3492
        %v4949 = vunpack.c.l.b16 %v3493
        %v4950 = vunpack.c.h.b16 %v3493
        %v4951 = vunpack.c.l.b16 %v3494
        %v4952 = vunpack.c.h.b16 %v3494
        %v4953 = vunpack.c.l.b16 %v3495
        %v4954 = vunpack.c.h.b16 %v3495
        %v4955 = vunpack.c.l.b16 %v3496
        %v4956 = vunpack.c.h.b16 %v3496
        %v4957 = vunpack.c.l.b16 %v3497
        %v4958 = vunpack.c.h.b16 %v3497
        %v4959 = vunpack.c.l.b16 %v3498
        %v4960 = vunpack.c.h.b16 %v3498
        %v4961 = vunpack.c.l.b16 %v3499
        %v4962 = vunpack.c.h.b16 %v3499
        %v4963 = vunpack.c.l.b16 %v3500
        %v4964 = vunpack.c.h.b16 %v3500
        %v4965 = vunpack.c.l.b16 %v3501
        %v4966 = vunpack.c.h.b16 %v3501
        %v4967 = vunpack.c.l.b16 %v3502
        %v4968 = vunpack.c.h.b16 %v3502
        %v4969 = vunpack.c.l.b16 %v3503
        %v4970 = vunpack.c.h.b16 %v3503
        %v4971 = vunpack.c.l.b16 %v3504
        %v4972 = vunpack.c.h.b16 %v3504
        %v4973 = vunpack.c.l.b16 %v3505
        %v4974 = vunpack.c.h.b16 %v3505
        %v4975 = vunpack.c.l.b16 %v3506
        %v4976 = vunpack.c.h.b16 %v3506
        %v4977 = vunpack.c.l.b16 %v3507
        %v4978 = vunpack.c.h.b16 %v3507
        %v4979 = vunpack.c.l.b16 %v3508
        %v4980 = vunpack.c.h.b16 %v3508
        %v4981 = vunpack.c.l.b16 %v3509
        %v4982 = vunpack.c.h.b16 %v3509
        %v4983 = vunpack.c.l.b16 %v3510
        %v4984 = vunpack.c.h.b16 %v3510
        %v4985 = vunpack.c.l.b16 %v3511
        %v4986 = vunpack.c.h.b16 %v3511
        %v4987 = vunpack.c.l.b16 %v3512
        %v4988 = vunpack.c.h.b16 %v3512
        %v4989 = vunpack.c.l.b16 %v3513
        %v4990 = vunpack.c.h.b16 %v3513
        %v4991 = vunpack.c.l.b16 %v3514
        %v4992 = vunpack.c.h.b16 %v3514
        %v4993 = vunpack.c.l.b16 %v3515
        %v4994 = vunpack.c.h.b16 %v3515
        %v4995 = vunpack.c.l.b16 %v3516
        %v4996 = vunpack.c.h.b16 %v3516
        %v4997 = vunpack.c.l.b16 %v3517
        %v4998 = vunpack.c.h.b16 %v3517
        %v4999 = vunpack.c.l.b16 %v3518
        %v5000 = vunpack.c.h.b16 %v3518
        %v5001 = vunpack.c.l.b16 %v3519
        %v5002 = vunpack.c.h.b16 %v3519
        %v5003 = vunpack.c.l.b16 %v3520
        %v5004 = vunpack.c.h.b16 %v3520
        %v5005 = vunpack.c.l.b16 %v3521
        %v5006 = vunpack.c.h.b16 %v3521
        %v5007 = vunpack.c.l.b16 %v3522
        %v5008 = vunpack.c.h.b16 %v3522
        %v5009 = vunpack.c.l.b16 %v3523
        %v5010 = vunpack.c.h.b16 %v3523
        %v5011 = vunpack.c.l.b16 %v3524
        %v5012 = vunpack.c.h.b16 %v3524
        %v5013 = vunpack.c.l.b16 %v3525
        %v5014 = vunpack.c.h.b16 %v3525
        %v5015 = vunpack.c.l.b16 %v3526
        %v5016 = vunpack.c.h.b16 %v3526
        %v5017 = vunpack.c.l.b16 %v3527
        %v5018 = vunpack.c.h.b16 %v3527
        %v5019 = vunpack.c.l.b16 %v3528
        %v5020 = vunpack.c.h.b16 %v3528
        %v5021 = vunpack.c.l.b16 %v3529
        %v5022 = vunpack.c.h.b16 %v3529
        %v5023 = vunpack.c.l.b16 %v3530
        %v5024 = vunpack.c.h.b16 %v3530
        %v5025 = vunpack.c.l.b16 %v3531
        %v5026 = vunpack.c.h.b16 %v3531
        %v5027 = vunpack.c.l.b16 %v3532
        %v5028 = vunpack.c.h.b16 %v3532
        %v5029 = vunpack.c.l.b16 %v3533
        %v5030 = vunpack.c.h.b16 %v3533
        %v5031 = vunpack.c.l.b16 %v3534
        %v5032 = vunpack.c.h.b16 %v3534
        %v5033 = vunpack.c.l.b16 %v3535
        %v5034 = vunpack.c.h.b16 %v3535
        %v5035 = vunpack.c.l.b16 %v3536
        %v5036 = vunpack.c.h.b16 %v3536
        %v5037 = vunpack.c.l.b16 %v3537
        %v5038 = vunpack.c.h.b16 %v3537
        %v5039 = vunpack.c.l.b16 %v3538
        %v5040 = vunpack.c.h.b16 %v3538
        %v5041 = vunpack.c.l.b16 %v3539
        %v5042 = vunpack.c.h.b16 %v3539
        %v5043 = vunpack.c.l.b16 %v3540
        %v5044 = vunpack.c.h.b16 %v3540
        %v5045 = vunpack.c.l.b16 %v3541
        %v5046 = vunpack.c.h.b16 %v3541
        %v5047 = vunpack.c.l.b16 %v3542
        %v5048 = vunpack.c.h.b16 %v3542
        %v5049 = vunpack.c.l.b16 %v3543
        %v5050 = vunpack.c.h.b16 %v3543
        %v5051 = vunpack.c.l.b16 %v3544
        %v5052 = vunpack.c.h.b16 %v3544
        %v5053 = vunpack.c.l.b16 %v3545
        %v5054 = vunpack.c.h.b16 %v3545
        %v5055 = vunpack.c.l.b16 %v3546
        %v5056 = vunpack.c.h.b16 %v3546
        %v5057 = vunpack.c.l.b16 %v3547
        %v5058 = vunpack.c.h.b16 %v3547
        %v5059 = vunpack.c.l.b16 %v3548
        %v5060 = vunpack.c.h.b16 %v3548
        %v5061 = vunpack.c.l.b16 %v3549
        %v5062 = vunpack.c.h.b16 %v3549
        %v5063 = vunpack.c.l.b16 %v3550
        %v5064 = vunpack.c.h.b16 %v3550
        %v5065 = vunpack.c.l.b16 %v3551
        %v5066 = vunpack.c.h.b16 %v3551
        %v5067 = vunpack.c.l.b16 %v3552
        %v5068 = vunpack.c.h.b16 %v3552
        %v5069 = vunpack.c.l.b16 %v3553
        %v5070 = vunpack.c.h.b16 %v3553
        %v5071 = vunpack.c.l.b16 %v3554
        %v5072 = vunpack.c.h.b16 %v3554
        %v5073 = vunpack.c.l.b16 %v3555
        %v5074 = vunpack.c.h.b16 %v3555
        %v5075 = vunpack.c.l.b16 %v3556
        %v5076 = vunpack.c.h.b16 %v3556
        %v5077 = vunpack.c.l.b16 %v3557
        %v5078 = vunpack.c.h.b16 %v3557
        %v5079 = vunpack.c.l.b16 %v3558
        %v5080 = vunpack.c.h.b16 %v3558
        %v5081 = vunpack.c.l.b16 %v3559
        %v5082 = vunpack.c.h.b16 %v3559
        %v5083 = vunpack.c.l.b16 %v3560
        %v5084 = vunpack.c.h.b16 %v3560
        %v5085 = vunpack.c.l.b16 %v3561
        %v5086 = vunpack.c.h.b16 %v3561
        %v5087 = vunpack.c.l.b16 %v3562
        %v5088 = vunpack.c.h.b16 %v3562
        %v5089 = vunpack.c.l.b16 %v3563
        %v5090 = vunpack.c.h.b16 %v3563
        %v5091 = vunpack.c.l.b16 %v3564
        %v5092 = vunpack.c.h.b16 %v3564
        %v5093 = vunpack.c.l.b16 %v3565
        %v5094 = vunpack.c.h.b16 %v3565
        %v5095 = vunpack.c.l.b16 %v3566
        %v5096 = vunpack.c.h.b16 %v3566
        %v5097 = vunpack.c.l.b16 %v3567
        %v5098 = vunpack.c.h.b16 %v3567
        %v5099 = vunpack.c.l.b16 %v3568
        %v5100 = vunpack.c.h.b16 %v3568
        %v5101 = vunpack.c.l.b16 %v3569
        %v5102 = vunpack.c.h.b16 %v3569
        %v5103 = vunpack.c.l.b16 %v3570
        %v5104 = vunpack.c.h.b16 %v3570
        %v5105 = vunpack.c.l.b16 %v3571
        %v5106 = vunpack.c.h.b16 %v3571
        %v5107 = vunpack.c.l.b16 %v3572
        %v5108 = vunpack.c.h.b16 %v3572
        %v5109 = vunpack.c.l.b16 %v3573
        %v5110 = vunpack.c.h.b16 %v3573
        %v5111 = vunpack.c.l.b16 %v3574
        %v5112 = vunpack.c.h.b16 %v3574
        %v5113 = vunpack.c.l.b16 %v3575
        %v5114 = vunpack.c.h.b16 %v3575
        %v5115 = vunpack.c.l.b16 %v3576
        %v5116 = vunpack.c.h.b16 %v3576
        %v5117 = vunpack.c.l.b16 %v3577
        %v5118 = vunpack.c.h.b16 %v3577
        %v5119 = vunpack.c.l.b16 %v3578
        %v5120 = vunpack.c.h.b16 %v3578
        %v5121 = vunpack.c.l.b16 %v3579
        %v5122 = vunpack.c.h.b16 %v3579
        %v5123 = vunpack.c.l.b16 %v3580
        %v5124 = vunpack.c.h.b16 %v3580
        %v5125 = vunpack.c.l.b16 %v3581
        %v5126 = vunpack.c.h.b16 %v3581
        %v5127 = vunpack.c.l.b16 %v3582
        %v5128 = vunpack.c.h.b16 %v3582
        %v5129 = vunpack.c.l.b16 %v3583
        %v5130 = vunpack.c.h.b16 %v3583
        %v5131 = vunpack.c.l.b16 %v3584
        %v5132 = vunpack.c.h.b16 %v3584
        %v5133 = vunpack.c.l.b16 %v3585
        %v5134 = vunpack.c.h.b16 %v3585
        %v5135 = vunpack.c.l.b16 %v3586
        %v5136 = vunpack.c.h.b16 %v3586
        %v5137 = vunpack.c.l.b16 %v3587
        %v5138 = vunpack.c.h.b16 %v3587
        %v5139 = vunpack.c.l.b16 %v3588
        %v5140 = vunpack.c.h.b16 %v3588
        %v5141 = vunpack.c.l.b16 %v3589
        %v5142 = vunpack.c.h.b16 %v3589
        %v5143 = vunpack.c.l.b16 %v3590
        %v5144 = vunpack.c.h.b16 %v3590
        %v5145 = vunpack.c.l.b16 %v3591
        %v5146 = vunpack.c.h.b16 %v3591
        %v5147 = vunpack.c.l.b16 %v3592
        %v5148 = vunpack.c.h.b16 %v3592
        %v5149 = vunpack.c.l.b16 %v3593
        %v5150 = vunpack.c.h.b16 %v3593
        %v5151 = vunpack.c.l.b16 %v3594
        %v5152 = vunpack.c.h.b16 %v3594
        %v5153 = vunpack.c.l.b16 %v3595
        %v5154 = vunpack.c.h.b16 %v3595
        %v5155 = vunpack.c.l.b16 %v3596
        %v5156 = vunpack.c.h.b16 %v3596
        %v5157 = vunpack.c.l.b16 %v3597
        %v5158 = vunpack.c.h.b16 %v3597
        %v5159 = vunpack.c.l.b16 %v3598
        %v5160 = vunpack.c.h.b16 %v3598
        %v5161 = vunpack.c.l.b16 %v3599
        %v5162 = vunpack.c.h.b16 %v3599
        %v5163 = vunpack.c.l.b16 %v3600
        %v5164 = vunpack.c.h.b16 %v3600
        %v5165 = vunpack.c.l.b16 %v3601
        %v5166 = vunpack.c.h.b16 %v3601
        %v5167 = vunpack.c.l.b16 %v3602
        %v5168 = vunpack.c.h.b16 %v3602
        %v5169 = vunpack.c.l.b16 %v3603
        %v5170 = vunpack.c.h.b16 %v3603
        %v5171 = vunpack.c.l.b16 %v3604
        %v5172 = vunpack.c.h.b16 %v3604
        %v5173 = vunpack.c.l.b16 %v3605
        %v5174 = vunpack.c.h.b16 %v3605
        %v5175 = vunpack.c.l.b16 %v3606
        %v5176 = vunpack.c.h.b16 %v3606
        %v5177 = vunpack.c.l.b16 %v3607
        %v5178 = vunpack.c.h.b16 %v3607
        %v5179 = vunpack.c.l.b16 %v3608
        %v5180 = vunpack.c.h.b16 %v3608
        %v5181 = vunpack.c.l.b16 %v3609
        %v5182 = vunpack.c.h.b16 %v3609
        %v5183 = vunpack.c.l.b16 %v3610
        %v5184 = vunpack.c.h.b16 %v3610
        %v5185 = vunpack.c.l.b16 %v3611
        %v5186 = vunpack.c.h.b16 %v3611
        %v5187 = vunpack.c.l.b16 %v3612
        %v5188 = vunpack.c.h.b16 %v3612
        %v5189 = vunpack.c.l.b16 %v3613
        %v5190 = vunpack.c.h.b16 %v3613
        %v5191 = vunpack.c.l.b16 %v3614
        %v5192 = vunpack.c.h.b16 %v3614
        %v5193 = vunpack.c.l.b16 %v3615
        %v5194 = vunpack.c.h.b16 %v3615
        %v5195 = vunpack.c.l.b16 %v3616
        %v5196 = vunpack.c.h.b16 %v3616
        %v5197 = vunpack.c.l.b16 %v3617
        %v5198 = vunpack.c.h.b16 %v3617
        %v5199 = vunpack.c.l.b16 %v3618
        %v5200 = vunpack.c.h.b16 %v3618
        %v5201 = vunpack.c.l.b16 %v3619
        %v5202 = vunpack.c.h.b16 %v3619
        %v5203 = vunpack.c.l.b16 %v3620
        %v5204 = vunpack.c.h.b16 %v3620
        %v5205 = vunpack.c.l.b16 %v3621
        %v5206 = vunpack.c.h.b16 %v3621
        %v5207 = vunpack.c.l.b16 %v3622
        %v5208 = vunpack.c.h.b16 %v3622
        %v5209 = vunpack.c.l.b16 %v3623
        %v5210 = vunpack.c.h.b16 %v3623
        %v5211 = vunpack.c.l.b16 %v3624
        %v5212 = vunpack.c.h.b16 %v3624
        %v5213 = vunpack.c.l.b16 %v3625
        %v5214 = vunpack.c.h.b16 %v3625
        %v5215 = vunpack.c.l.b16 %v3626
        %v5216 = vunpack.c.h.b16 %v3626
        %v5217 = vunpack.c.l.b16 %v3627
        %v5218 = vunpack.c.h.b16 %v3627
        %v5219 = vunpack.c.l.b16 %v3628
        %v5220 = vunpack.c.h.b16 %v3628
        %v5221 = vunpack.c.l.b16 %v3629
        %v5222 = vunpack.c.h.b16 %v3629
        %v5223 = vunpack.c.l.b16 %v3630
        %v5224 = vunpack.c.h.b16 %v3630
        %v5225 = vunpack.c.l.b16 %v3631
        %v5226 = vunpack.c.h.b16 %v3631
        %v5227 = vunpack.c.l.b16 %v3632
        %v5228 = vunpack.c.h.b16 %v3632
        %v5229 = vunpack.c.l.b16 %v3633
        %v5230 = vunpack.c.h.b16 %v3633
        %v5231 = vunpack.c.l.b16 %v3634
        %v5232 = vunpack.c.h.b16 %v3634
        %v5233 = vunpack.c.l.b16 %v3635
        %v5234 = vunpack.c.h.b16 %v3635
        %v5235 = vunpack.c.l.b16 %v3636
        %v5236 = vunpack.c.h.b16 %v3636
        %v5237 = vunpack.c.l.b16 %v3637
        %v5238 = vunpack.c.h.b16 %v3637
        %v5239 = vunpack.c.l.b16 %v3638
        %v5240 = vunpack.c.h.b16 %v3638
        %v5241 = vunpack.c.l.b16 %v3639
        %v5242 = vunpack.c.h.b16 %v3639
        %v5243 = vunpack.c.l.b16 %v3640
        %v5244 = vunpack.c.h.b16 %v3640
        %v5245 = vunpack.c.l.b16 %v3641
        %v5246 = vunpack.c.h.b16 %v3641
        %v5247 = vunpack.c.l.b16 %v3642
        %v5248 = vunpack.c.h.b16 %v3642
        %v5249 = vunpack.c.l.b16 %v3643
        %v5250 = vunpack.c.h.b16 %v3643
        %v5251 = vunpack.c.l.b16 %v3644
        %v5252 = vunpack.c.h.b16 %v3644
        %v5253 = vunpack.c.l.b16 %v3645
        %v5254 = vunpack.c.h.b16 %v3645
        %v5255 = vunpack.c.l.b16 %v3646
        %v5256 = vunpack.c.h.b16 %v3646
        %v5257 = vunpack.c.l.b16 %v3647
        %v5258 = vunpack.c.h.b16 %v3647
        %v5259 = vunpack.c.l.b16 %v3648
        %v5260 = vunpack.c.h.b16 %v3648
        %v5261 = vunpack.c.l.b16 %v3649
        %v5262 = vunpack.c.h.b16 %v3649
        %v5263 = vunpack.c.l.b16 %v3650
        %v5264 = vunpack.c.h.b16 %v3650
        %v5265 = vunpack.c.l.b16 %v3651
        %v5266 = vunpack.c.h.b16 %v3651
        %v5267 = vunpack.c.l.b16 %v3652
        %v5268 = vunpack.c.h.b16 %v3652
        %v5269 = vunpack.c.l.b16 %v3653
        %v5270 = vunpack.c.h.b16 %v3653
        %v5271 = vunpack.c.l.b16 %v3654
        %v5272 = vunpack.c.h.b16 %v3654
        %v5273 = vunpack.c.l.b16 %v3655
        %v5274 = vunpack.c.h.b16 %v3655
        %v5275 = vunpack.c.l.b16 %v3656
        %v5276 = vunpack.c.h.b16 %v3656
        %v5277 = vpack.c.b16 %v4269, %v4253
        %v5278 = vpack.c.b16 %v4270, %v4254
        %v5279 = vpack.c.b16 %v4271, %v4255
        %v5280 = vpack.c.b16 %v4272, %v4256
        %v5281 = vpack.c.b16 %v4273, %v4257
        %v5282 = vpack.c.b16 %v4274, %v4258
        %v5283 = vpack.c.b16 %v4275, %v4259
        %v5284 = vpack.c.b16 %v4276, %v4260
        %v5285 = vpack.c.b16 %v4277, %v4261
        %v5286 = vpack.c.b16 %v4278, %v4262
        %v5287 = vpack.c.b16 %v4279, %v4263
        %v5288 = vpack.c.b16 %v4280, %v4264
        %v5289 = vpack.c.b16 %v4281, %v4265
        %v5290 = vpack.c.b16 %v4282, %v4266
        %v5291 = vpack.c.b16 %v4283, %v4267
        %v5292 = vpack.c.b16 %v4284, %v4268
        %v5293 = vpack.c.b16 %v4301, %v4285
        %v5294 = vpack.c.b16 %v4302, %v4286
        %v5295 = vpack.c.b16 %v4303, %v4287
        %v5296 = vpack.c.b16 %v4304, %v4288
        %v5297 = vpack.c.b16 %v4305, %v4289
        %v5298 = vpack.c.b16 %v4306, %v4290
        %v5299 = vpack.c.b16 %v4307, %v4291
        %v5300 = vpack.c.b16 %v4308, %v4292
        %v5301 = vpack.c.b16 %v4309, %v4293
        %v5302 = vpack.c.b16 %v4310, %v4294
        %v5303 = vpack.c.b16 %v4311, %v4295
        %v5304 = vpack.c.b16 %v4312, %v4296
        %v5305 = vpack.c.b16 %v4313, %v4297
        %v5306 = vpack.c.b16 %v4314, %v4298
        %v5307 = vpack.c.b16 %v4315, %v4299
        %v5308 = vpack.c.b16 %v4316, %v4300
        %v5309 = vpack.c.b16 %v4333, %v4317
        %v5310 = vpack.c.b16 %v4334, %v4318
        %v5311 = vpack.c.b16 %v4335, %v4319
        %v5312 = vpack.c.b16 %v4336, %v4320
        %v5313 = vpack.c.b16 %v4337, %v4321
        %v5314 = vpack.c.b16 %v4338, %v4322
        %v5315 = vpack.c.b16 %v4339, %v4323
        %v5316 = vpack.c.b16 %v4340, %v4324
        %v5317 = vpack.c.b16 %v4341, %v4325
        %v5318 = vpack.c.b16 %v4342, %v4326
        %v5319 = vpack.c.b16 %v4343, %v4327
        %v5320 = vpack.c.b16 %v4344, %v4328
        %v5321 = vpack.c.b16 %v4345, %v4329
        %v5322 = vpack.c.b16 %v4346, %v4330
        %v5323 = vpack.c.b16 %v4347, %v4331
        %v5324 = vpack.c.b16 %v4348, %v4332
        %v5325 = vpack.c.b16 %v4365, %v4349
        %v5326 = vpack.c.b16 %v4366, %v4350
        %v5327 = vpack.c.b16 %v4367, %v4351
        %v5328 = vpack.c.b16 %v4368, %v4352
        %v5329 = vpack.c.b16 %v4369, %v4353
        %v5330 = vpack.c.b16 %v4370, %v4354
        %v5331 = vpack.c.b16 %v4371, %v4355
        %v5332 = vpack.c.b16 %v4372, %v4356
        %v5333 = vpack.c.b16 %v4373, %v4357
        %v5334 = vpack.c.b16 %v4374, %v4358
        %v5335 = vpack.c.b16 %v4375, %v4359
        %v5336 = vpack.c.b16 %v4376, %v4360
        %v5337 = vpack.c.b16 %v4377, %v4361
        %v5338 = vpack.c.b16 %v4378, %v4362
        %v5339 = vpack.c.b16 %v4379, %v4363
        %v5340 = vpack.c.b16 %v4380, %v4364
        %v5341 = vpack.c.b16 %v4397, %v4381
        %v5342 = vpack.c.b16 %v4398, %v4382
        %v5343 = vpack.c.b16 %v4399, %v4383
        %v5344 = vpack.c.b16 %v4400, %v4384
        %v5345 = vpack.c.b16 %v4401, %v4385
        %v5346 = vpack.c.b16 %v4402, %v4386
        %v5347 = vpack.c.b16 %v4403, %v4387
        %v5348 = vpack.c.b16 %v4404, %v4388
        %v5349 = vpack.c.b16 %v4405, %v4389
        %v5350 = vpack.c.b16 %v4406, %v4390
        %v5351 = vpack.c.b16 %v4407, %v4391
        %v5352 = vpack.c.b16 %v4408, %v4392
        %v5353 = vpack.c.b16 %v4409, %v4393
        %v5354 = vpack.c.b16 %v4410, %v4394
        %v5355 = vpack.c.b16 %v4411, %v4395
        %v5356 = vpack.c.b16 %v4412, %v4396
        %v5357 = vpack.c.b16 %v4429, %v4413
        %v5358 = vpack.c.b16 %v4430, %v4414
        %v5359 = vpack.c.b16 %v4431, %v4415
        %v5360 = vpack.c.b16 %v4432, %v4416
        %v5361 = vpack.c.b16 %v4433, %v4417
        %v5362 = vpack.c.b16 %v4434, %v4418
        %v5363 = vpack.c.b16 %v4435, %v4419
        %v5364 = vpack.c.b16 %v4436, %v4420
        %v5365 = vpack.c.b16 %v4437, %v4421
        %v5366 = vpack.c.b16 %v4438, %v4422
        %v5367 = vpack.c.b16 %v4439, %v4423
        %v5368 = vpack.c.b16 %v4440, %v4424
        %v5369 = vpack.c.b16 %v4441, %v4425
        %v5370 = vpack.c.b16 %v4442, %v4426
        %v5371 = vpack.c.b16 %v4443, %v4427
        %v5372 = vpack.c.b16 %v4444, %v4428
        %v5373 = vpack.c.b16 %v4461, %v4445
        %v5374 = vpack.c.b16 %v4462, %v4446
        %v5375 = vpack.c.b16 %v4463, %v4447
        %v5376 = vpack.c.b16 %v4464, %v4448
        %v5377 = vpack.c.b16 %v4465, %v4449
        %v5378 = vpack.c.b16 %v4466, %v4450
        %v5379 = vpack.c.b16 %v4467, %v4451
        %v5380 = vpack.c.b16 %v4468, %v4452
        %v5381 = vpack.c.b16 %v4469, %v4453
        %v5382 = vpack.c.b16 %v4470, %v4454
        %v5383 = vpack.c.b16 %v4471, %v4455
        %v5384 = vpack.c.b16 %v4472, %v4456
        %v5385 = vpack.c.b16 %v4473, %v4457
        %v5386 = vpack.c.b16 %v4474, %v4458
        %v5387 = vpack.c.b16 %v4475, %v4459
        %v5388 = vpack.c.b16 %v4476, %v4460
        %v5389 = vpack.c.b16 %v4493, %v4477
        %v5390 = vpack.c.b16 %v4494, %v4478
        %v5391 = vpack.c.b16 %v4495, %v4479
        %v5392 = vpack.c.b16 %v4496, %v4480
        %v5393 = vpack.c.b16 %v4497, %v4481
        %v5394 = vpack.c.b16 %v4498, %v4482
        %v5395 = vpack.c.b16 %v4499, %v4483
        %v5396 = vpack.c.b16 %v4500, %v4484
        %v5397 = vpack.c.b16 %v4501, %v4485
        %v5398 = vpack.c.b16 %v4502, %v4486
        %v5399 = vpack.c.b16 %v4503, %v4487
        %v5400 = vpack.c.b16 %v4504, %v4488
        %v5401 = vpack.c.b16 %v4505, %v4489
        %v5402 = vpack.c.b16 %v4506, %v4490
        %v5403 = vpack.c.b16 %v4507, %v4491
        %v5404 = vpack.c.b16 %v4508, %v4492
        %v5405 = vpack.c.b16 %v4525, %v4509
        %v5406 = vpack.c.b16 %v4526, %v4510
        %v5407 = vpack.c.b16 %v4527, %v4511
        %v5408 = vpack.c.b16 %v4528, %v4512
        %v5409 = vpack.c.b16 %v4529, %v4513
        %v5410 = vpack.c.b16 %v4530, %v4514
        %v5411 = vpack.c.b16 %v4531, %v4515
        %v5412 = vpack.c.b16 %v4532, %v4516
        %v5413 = vpack.c.b16 %v4533, %v4517
        %v5414 = vpack.c.b16 %v4534, %v4518
        %v5415 = vpack.c.b16 %v4535, %v4519
        %v5416 = vpack.c.b16 %v4536, %v4520
        %v5417 = vpack.c.b16 %v4537, %v4521
        %v5418 = vpack.c.b16 %v4538, %v4522
        %v5419 = vpack.c.b16 %v4539, %v4523
        %v5420 = vpack.c.b16 %v4540, %v4524
        %v5421 = vpack.c.b16 %v4557, %v4541
        %v5422 = vpack.c.b16 %v4558, %v4542
        %v5423 = vpack.c.b16 %v4559, %v4543
        %v5424 = vpack.c.b16 %v4560, %v4544
        %v5425 = vpack.c.b16 %v4561, %v4545
        %v5426 = vpack.c.b16 %v4562, %v4546
        %v5427 = vpack.c.b16 %v4563, %v4547
        %v5428 = vpack.c.b16 %v4564, %v4548
        %v5429 = vpack.c.b16 %v4565, %v4549
        %v5430 = vpack.c.b16 %v4566, %v4550
        %v5431 = vpack.c.b16 %v4567, %v4551
        %v5432 = vpack.c.b16 %v4568, %v4552
        %v5433 = vpack.c.b16 %v4569, %v4553
        %v5434 = vpack.c.b16 %v4570, %v4554
        %v5435 = vpack.c.b16 %v4571, %v4555
        %v5436 = vpack.c.b16 %v4572, %v4556
        %v5437 = vpack.c.b16 %v4589, %v4573
        %v5438 = vpack.c.b16 %v4590, %v4574
        %v5439 = vpack.c.b16 %v4591, %v4575
        %v5440 = vpack.c.b16 %v4592, %v4576
        %v5441 = vpack.c.b16 %v4593, %v4577
        %v5442 = vpack.c.b16 %v4594, %v4578
        %v5443 = vpack.c.b16 %v4595, %v4579
        %v5444 = vpack.c.b16 %v4596, %v4580
        %v5445 = vpack.c.b16 %v4597, %v4581
        %v5446 = vpack.c.b16 %v4598, %v4582
        %v5447 = vpack.c.b16 %v4599, %v4583
        %v5448 = vpack.c.b16 %v4600, %v4584
        %v5449 = vpack.c.b16 %v4601, %v4585
        %v5450 = vpack.c.b16 %v4602, %v4586
        %v5451 = vpack.c.b16 %v4603, %v4587
        %v5452 = vpack.c.b16 %v4604, %v4588
        %v5453 = vpack.c.b16 %v4621, %v4605
        %v5454 = vpack.c.b16 %v4622, %v4606
        %v5455 = vpack.c.b16 %v4623, %v4607
        %v5456 = vpack.c.b16 %v4624, %v4608
        %v5457 = vpack.c.b16 %v4625, %v4609
        %v5458 = vpack.c.b16 %v4626, %v4610
        %v5459 = vpack.c.b16 %v4627, %v4611
        %v5460 = vpack.c.b16 %v4628, %v4612
        %v5461 = vpack.c.b16 %v4629, %v4613
        %v5462 = vpack.c.b16 %v4630, %v4614
        %v5463 = vpack.c.b16 %v4631, %v4615
        %v5464 = vpack.c.b16 %v4632, %v4616
        %v5465 = vpack.c.b16 %v4633, %v4617
        %v5466 = vpack.c.b16 %v4634, %v4618
        %v5467 = vpack.c.b16 %v4635, %v4619
        %v5468 = vpack.c.b16 %v4636, %v4620
        %v5469 = vpack.c.b16 %v4653, %v4637
        %v5470 = vpack.c.b16 %v4654, %v4638
        %v5471 = vpack.c.b16 %v4655, %v4639
        %v5472 = vpack.c.b16 %v4656, %v4640
        %v5473 = vpack.c.b16 %v4657, %v4641
        %v5474 = vpack.c.b16 %v4658, %v4642
        %v5475 = vpack.c.b16 %v4659, %v4643
        %v5476 = vpack.c.b16 %v4660, %v4644
        %v5477 = vpack.c.b16 %v4661, %v4645
        %v5478 = vpack.c.b16 %v4662, %v4646
        %v5479 = vpack.c.b16 %v4663, %v4647
        %v5480 = vpack.c.b16 %v4664, %v4648
        %v5481 = vpack.c.b16 %v4665, %v4649
        %v5482 = vpack.c.b16 %v4666, %v4650
        %v5483 = vpack.c.b16 %v4667, %v4651
        %v5484 = vpack.c.b16 %v4668, %v4652
        %v5485 = vpack.c.b16 %v4685, %v4669
        %v5486 = vpack.c.b16 %v4686, %v4670
        %v5487 = vpack.c.b16 %v4687, %v4671
        %v5488 = vpack.c.b16 %v4688, %v4672
        %v5489 = vpack.c.b16 %v4689, %v4673
        %v5490 = vpack.c.b16 %v4690, %v4674
        %v5491 = vpack.c.b16 %v4691, %v4675
        %v5492 = vpack.c.b16 %v4692, %v4676
        %v5493 = vpack.c.b16 %v4693, %v4677
        %v5494 = vpack.c.b16 %v4694, %v4678
        %v5495 = vpack.c.b16 %v4695, %v4679
        %v5496 = vpack.c.b16 %v4696, %v4680
        %v5497 = vpack.c.b16 %v4697, %v4681
        %v5498 = vpack.c.b16 %v4698, %v4682
        %v5499 = vpack.c.b16 %v4699, %v4683
        %v5500 = vpack.c.b16 %v4700, %v4684
        %v5501 = vpack.c.b16 %v4717, %v4701
        %v5502 = vpack.c.b16 %v4718, %v4702
        %v5503 = vpack.c.b16 %v4719, %v4703
        %v5504 = vpack.c.b16 %v4720, %v4704
        %v5505 = vpack.c.b16 %v4721, %v4705
        %v5506 = vpack.c.b16 %v4722, %v4706
        %v5507 = vpack.c.b16 %v4723, %v4707
        %v5508 = vpack.c.b16 %v4724, %v4708
        %v5509 = vpack.c.b16 %v4725, %v4709
        %v5510 = vpack.c.b16 %v4726, %v4710
        %v5511 = vpack.c.b16 %v4727, %v4711
        %v5512 = vpack.c.b16 %v4728, %v4712
        %v5513 = vpack.c.b16 %v4729, %v4713
        %v5514 = vpack.c.b16 %v4730, %v4714
        %v5515 = vpack.c.b16 %v4731, %v4715
        %v5516 = vpack.c.b16 %v4732, %v4716
        %v5517 = vpack.c.b16 %v4749, %v4733
        %v5518 = vpack.c.b16 %v4750, %v4734
        %v5519 = vpack.c.b16 %v4751, %v4735
        %v5520 = vpack.c.b16 %v4752, %v4736
        %v5521 = vpack.c.b16 %v4753, %v4737
        %v5522 = vpack.c.b16 %v4754, %v4738
        %v5523 = vpack.c.b16 %v4755, %v4739
        %v5524 = vpack.c.b16 %v4756, %v4740
        %v5525 = vpack.c.b16 %v4757, %v4741
        %v5526 = vpack.c.b16 %v4758, %v4742
        %v5527 = vpack.c.b16 %v4759, %v4743
        %v5528 = vpack.c.b16 %v4760, %v4744
        %v5529 = vpack.c.b16 %v4761, %v4745
        %v5530 = vpack.c.b16 %v4762, %v4746
        %v5531 = vpack.c.b16 %v4763, %v4747
        %v5532 = vpack.c.b16 %v4764, %v4748
        %v5533 = vpack.c.b16 %v4781, %v4765
        %v5534 = vpack.c.b16 %v4782, %v4766
        %v5535 = vpack.c.b16 %v4783, %v4767
        %v5536 = vpack.c.b16 %v4784, %v4768
        %v5537 = vpack.c.b16 %v4785, %v4769
        %v5538 = vpack.c.b16 %v4786, %v4770
        %v5539 = vpack.c.b16 %v4787, %v4771
        %v5540 = vpack.c.b16 %v4788, %v4772
        %v5541 = vpack.c.b16 %v4789, %v4773
        %v5542 = vpack.c.b16 %v4790, %v4774
        %v5543 = vpack.c.b16 %v4791, %v4775
        %v5544 = vpack.c.b16 %v4792, %v4776
        %v5545 = vpack.c.b16 %v4793, %v4777
        %v5546 = vpack.c.b16 %v4794, %v4778
        %v5547 = vpack.c.b16 %v4795, %v4779
        %v5548 = vpack.c.b16 %v4796, %v4780
        %v5549 = vpack.c.b16 %v4813, %v4797
        %v5550 = vpack.c.b16 %v4814, %v4798
        %v5551 = vpack.c.b16 %v4815, %v4799
        %v5552 = vpack.c.b16 %v4816, %v4800
        %v5553 = vpack.c.b16 %v4817, %v4801
        %v5554 = vpack.c.b16 %v4818, %v4802
        %v5555 = vpack.c.b16 %v4819, %v4803
        %v5556 = vpack.c.b16 %v4820, %v4804
        %v5557 = vpack.c.b16 %v4821, %v4805
        %v5558 = vpack.c.b16 %v4822, %v4806
        %v5559 = vpack.c.b16 %v4823, %v4807
        %v5560 = vpack.c.b16 %v4824, %v4808
        %v5561 = vpack.c.b16 %v4825, %v4809
        %v5562 = vpack.c.b16 %v4826, %v4810
        %v5563 = vpack.c.b16 %v4827, %v4811
        %v5564 = vpack.c.b16 %v4828, %v4812
        %v5565 = vpack.c.b16 %v4845, %v4829
        %v5566 = vpack.c.b16 %v4846, %v4830
        %v5567 = vpack.c.b16 %v4847, %v4831
        %v5568 = vpack.c.b16 %v4848, %v4832
        %v5569 = vpack.c.b16 %v4849, %v4833
        %v5570 = vpack.c.b16 %v4850, %v4834
        %v5571 = vpack.c.b16 %v4851, %v4835
        %v5572 = vpack.c.b16 %v4852, %v4836
        %v5573 = vpack.c.b16 %v4853, %v4837
        %v5574 = vpack.c.b16 %v4854, %v4838
        %v5575 = vpack.c.b16 %v4855, %v4839
        %v5576 = vpack.c.b16 %v4856, %v4840
        %v5577 = vpack.c.b16 %v4857, %v4841
        %v5578 = vpack.c.b16 %v4858, %v4842
        %v5579 = vpack.c.b16 %v4859, %v4843
        %v5580 = vpack.c.b16 %v4860, %v4844
        %v5581 = vpack.c.b16 %v4877, %v4861
        %v5582 = vpack.c.b16 %v4878, %v4862
        %v5583 = vpack.c.b16 %v4879, %v4863
        %v5584 = vpack.c.b16 %v4880, %v4864
        %v5585 = vpack.c.b16 %v4881, %v4865
        %v5586 = vpack.c.b16 %v4882, %v4866
        %v5587 = vpack.c.b16 %v4883, %v4867
        %v5588 = vpack.c.b16 %v4884, %v4868
        %v5589 = vpack.c.b16 %v4885, %v4869
        %v5590 = vpack.c.b16 %v4886, %v4870
        %v5591 = vpack.c.b16 %v4887, %v4871
        %v5592 = vpack.c.b16 %v4888, %v4872
        %v5593 = vpack.c.b16 %v4889, %v4873
        %v5594 = vpack.c.b16 %v4890, %v4874
        %v5595 = vpack.c.b16 %v4891, %v4875
        %v5596 = vpack.c.b16 %v4892, %v4876
        %v5597 = vpack.c.b16 %v4909, %v4893
        %v5598 = vpack.c.b16 %v4910, %v4894
        %v5599 = vpack.c.b16 %v4911, %v4895
        %v5600 = vpack.c.b16 %v4912, %v4896
        %v5601 = vpack.c.b16 %v4913, %v4897
        %v5602 = vpack.c.b16 %v4914, %v4898
        %v5603 = vpack.c.b16 %v4915, %v4899
        %v5604 = vpack.c.b16 %v4916, %v4900
        %v5605 = vpack.c.b16 %v4917, %v4901
        %v5606 = vpack.c.b16 %v4918, %v4902
        %v5607 = vpack.c.b16 %v4919, %v4903
        %v5608 = vpack.c.b16 %v4920, %v4904
        %v5609 = vpack.c.b16 %v4921, %v4905
        %v5610 = vpack.c.b16 %v4922, %v4906
        %v5611 = vpack.c.b16 %v4923, %v4907
        %v5612 = vpack.c.b16 %v4924, %v4908
        %v5613 = vpack.c.b16 %v4941, %v4925
        %v5614 = vpack.c.b16 %v4942, %v4926
        %v5615 = vpack.c.b16 %v4943, %v4927
        %v5616 = vpack.c.b16 %v4944, %v4928
        %v5617 = vpack.c.b16 %v4945, %v4929
        %v5618 = vpack.c.b16 %v4946, %v4930
        %v5619 = vpack.c.b16 %v4947, %v4931
        %v5620 = vpack.c.b16 %v4948, %v4932
        %v5621 = vpack.c.b16 %v4949, %v4933
        %v5622 = vpack.c.b16 %v4950, %v4934
        %v5623 = vpack.c.b16 %v4951, %v4935
        %v5624 = vpack.c.b16 %v4952, %v4936
        %v5625 = vpack.c.b16 %v4953, %v4937
        %v5626 = vpack.c.b16 %v4954, %v4938
        %v5627 = vpack.c.b16 %v4955, %v4939
        %v5628 = vpack.c.b16 %v4956, %v4940
        %v5629 = vpack.c.b16 %v4973, %v4957
        %v5630 = vpack.c.b16 %v4974, %v4958
        %v5631 = vpack.c.b16 %v4975, %v4959
        %v5632 = vpack.c.b16 %v4976, %v4960
        %v5633 = vpack.c.b16 %v4977, %v4961
        %v5634 = vpack.c.b16 %v4978, %v4962
        %v5635 = vpack.c.b16 %v4979, %v4963
        %v5636 = vpack.c.b16 %v4980, %v4964
        %v5637 = vpack.c.b16 %v4981, %v4965
        %v5638 = vpack.c.b16 %v4982, %v4966
        %v5639 = vpack.c.b16 %v4983, %v4967
        %v5640 = vpack.c.b16 %v4984, %v4968
        %v5641 = vpack.c.b16 %v4985, %v4969
        %v5642 = vpack.c.b16 %v4986, %v4970
        %v5643 = vpack.c.b16 %v4987, %v4971
        %v5644 = vpack.c.b16 %v4988, %v4972
        %v5645 = vpack.c.b16 %v5005, %v4989
        %v5646 = vpack.c.b16 %v5006, %v4990
        %v5647 = vpack.c.b16 %v5007, %v4991
        %v5648 = vpack.c.b16 %v5008, %v4992
        %v5649 = vpack.c.b16 %v5009, %v4993
        %v5650 = vpack.c.b16 %v5010, %v4994
        %v5651 = vpack.c.b16 %v5011, %v4995
        %v5652 = vpack.c.b16 %v5012, %v4996
        %v5653 = vpack.c.b16 %v5013, %v4997
        %v5654 = vpack.c.b16 %v5014, %v4998
        %v5655 = vpack.c.b16 %v5015, %v4999
        %v5656 = vpack.c.b16 %v5016, %v5000
        %v5657 = vpack.c.b16 %v5017, %v5001
        %v5658 = vpack.c.b16 %v5018, %v5002
        %v5659 = vpack.c.b16 %v5019, %v5003
        %v5660 = vpack.c.b16 %v5020, %v5004
        %v5661 = vpack.c.b16 %v5037, %v5021
        %v5662 = vpack.c.b16 %v5038, %v5022
        %v5663 = vpack.c.b16 %v5039, %v5023
        %v5664 = vpack.c.b16 %v5040, %v5024
        %v5665 = vpack.c.b16 %v5041, %v5025
        %v5666 = vpack.c.b16 %v5042, %v5026
        %v5667 = vpack.c.b16 %v5043, %v5027
        %v5668 = vpack.c.b16 %v5044, %v5028
        %v5669 = vpack.c.b16 %v5045, %v5029
        %v5670 = vpack.c.b16 %v5046, %v5030
        %v5671 = vpack.c.b16 %v5047, %v5031
        %v5672 = vpack.c.b16 %v5048, %v5032
        %v5673 = vpack.c.b16 %v5049, %v5033
        %v5674 = vpack.c.b16 %v5050, %v5034
        %v5675 = vpack.c.b16 %v5051, %v5035
        %v5676 = vpack.c.b16 %v5052, %v5036
        %v5677 = vpack.c.b16 %v5069, %v5053
        %v5678 = vpack.c.b16 %v5070, %v5054
        %v5679 = vpack.c.b16 %v5071, %v5055
        %v5680 = vpack.c.b16 %v5072, %v5056
        %v5681 = vpack.c.b16 %v5073, %v5057
        %v5682 = vpack.c.b16 %v5074, %v5058
        %v5683 = vpack.c.b16 %v5075, %v5059
        %v5684 = vpack.c.b16 %v5076, %v5060
        %v5685 = vpack.c.b16 %v5077, %v5061
        %v5686 = vpack.c.b16 %v5078, %v5062
        %v5687 = vpack.c.b16 %v5079, %v5063
        %v5688 = vpack.c.b16 %v5080, %v5064
        %v5689 = vpack.c.b16 %v5081, %v5065
        %v5690 = vpack.c.b16 %v5082, %v5066
        %v5691 = vpack.c.b16 %v5083, %v5067
        %v5692 = vpack.c.b16 %v5084, %v5068
        %v5693 = vpack.c.b16 %v5101, %v5085
        %v5694 = vpack.c.b16 %v5102, %v5086
        %v5695 = vpack.c.b16 %v5103, %v5087
        %v5696 = vpack.c.b16 %v5104, %v5088
        %v5697 = vpack.c.b16 %v5105, %v5089
        %v5698 = vpack.c.b16 %v5106, %v5090
        %v5699 = vpack.c.b16 %v5107, %v5091
        %v5700 = vpack.c.b16 %v5108, %v5092
        %v5701 = vpack.c.b16 %v5109, %v5093
        %v5702 = vpack.c.b16 %v5110, %v5094
        %v5703 = vpack.c.b16 %v5111, %v5095
        %v5704 = vpack.c.b16 %v5112, %v5096
        %v5705 = vpack.c.b16 %v5113, %v5097
        %v5706 = vpack.c.b16 %v5114, %v5098
        %v5707 = vpack.c.b16 %v5115, %v5099
        %v5708 = vpack.c.b16 %v5116, %v5100
        %v5709 = vpack.c.b16 %v5133, %v5117
        %v5710 = vpack.c.b16 %v5134, %v5118
        %v5711 = vpack.c.b16 %v5135, %v5119
        %v5712 = vpack.c.b16 %v5136, %v5120
        %v5713 = vpack.c.b16 %v5137, %v5121
        %v5714 = vpack.c.b16 %v5138, %v5122
        %v5715 = vpack.c.b16 %v5139, %v5123
        %v5716 = vpack.c.b16 %v5140, %v5124
        %v5717 = vpack.c.b16 %v5141, %v5125
        %v5718 = vpack.c.b16 %v5142, %v5126
        %v5719 = vpack.c.b16 %v5143, %v5127
        %v5720 = vpack.c.b16 %v5144, %v5128
        %v5721 = vpack.c.b16 %v5145, %v5129
        %v5722 = vpack.c.b16 %v5146, %v5130
        %v5723 = vpack.c.b16 %v5147, %v5131
        %v5724 = vpack.c.b16 %v5148, %v5132
        %v5725 = vpack.c.b16 %v5165, %v5149
        %v5726 = vpack.c.b16 %v5166, %v5150
        %v5727 = vpack.c.b16 %v5167, %v5151
        %v5728 = vpack.c.b16 %v5168, %v5152
        %v5729 = vpack.c.b16 %v5169, %v5153
        %v5730 = vpack.c.b16 %v5170, %v5154
        %v5731 = vpack.c.b16 %v5171, %v5155
        %v5732 = vpack.c.b16 %v5172, %v5156
        %v5733 = vpack.c.b16 %v5173, %v5157
        %v5734 = vpack.c.b16 %v5174, %v5158
        %v5735 = vpack.c.b16 %v5175, %v5159
        %v5736 = vpack.c.b16 %v5176, %v5160
        %v5737 = vpack.c.b16 %v5177, %v5161
        %v5738 = vpack.c.b16 %v5178, %v5162
        %v5739 = vpack.c.b16 %v5179, %v5163
        %v5740 = vpack.c.b16 %v5180, %v5164
        %v5741 = vpack.c.b16 %v5197, %v5181
        %v5742 = vpack.c.b16 %v5198, %v5182
        %v5743 = vpack.c.b16 %v5199, %v5183
        %v5744 = vpack.c.b16 %v5200, %v5184
        %v5745 = vpack.c.b16 %v5201, %v5185
        %v5746 = vpack.c.b16 %v5202, %v5186
        %v5747 = vpack.c.b16 %v5203, %v5187
        %v5748 = vpack.c.b16 %v5204, %v5188
        %v5749 = vpack.c.b16 %v5205, %v5189
        %v5750 = vpack.c.b16 %v5206, %v5190
        %v5751 = vpack.c.b16 %v5207, %v5191
        %v5752 = vpack.c.b16 %v5208, %v5192
        %v5753 = vpack.c.b16 %v5209, %v5193
        %v5754 = vpack.c.b16 %v5210, %v5194
        %v5755 = vpack.c.b16 %v5211, %v5195
        %v5756 = vpack.c.b16 %v5212, %v5196
        %v5757 = vpack.c.b16 %v5229, %v5213
        %v5758 = vpack.c.b16 %v5230, %v5214
        %v5759 = vpack.c.b16 %v5231, %v5215
        %v5760 = vpack.c.b16 %v5232, %v5216
        %v5761 = vpack.c.b16 %v5233, %v5217
        %v5762 = vpack.c.b16 %v5234, %v5218
        %v5763 = vpack.c.b16 %v5235, %v5219
        %v5764 = vpack.c.b16 %v5236, %v5220
        %v5765 = vpack.c.b16 %v5237, %v5221
        %v5766 = vpack.c.b16 %v5238, %v5222
        %v5767 = vpack.c.b16 %v5239, %v5223
        %v5768 = vpack.c.b16 %v5240, %v5224
        %v5769 = vpack.c.b16 %v5241, %v5225
        %v5770 = vpack.c.b16 %v5242, %v5226
        %v5771 = vpack.c.b16 %v5243, %v5227
        %v5772 = vpack.c.b16 %v5244, %v5228
        %v5773 = vpack.c.b16 %v5261, %v5245
        %v5774 = vpack.c.b16 %v5262, %v5246
        %v5775 = vpack.c.b16 %v5263, %v5247
        %v5776 = vpack.c.b16 %v5264, %v5248
        %v5777 = vpack.c.b16 %v5265, %v5249
        %v5778 = vpack.c.b16 %v5266, %v5250
        %v5779 = vpack.c.b16 %v5267, %v5251
        %v5780 = vpack.c.b16 %v5268, %v5252
        %v5781 = vpack.c.b16 %v5269, %v5253
        %v5782 = vpack.c.b16 %v5270, %v5254
        %v5783 = vpack.c.b16 %v5271, %v5255
        %v5784 = vpack.c.b16 %v5272, %v5256
        %v5785 = vpack.c.b16 %v5273, %v5257
        %v5786 = vpack.c.b16 %v5274, %v5258
        %v5787 = vpack.c.b16 %v5275, %v5259
        %v5788 = vpack.c.b16 %v5276, %v5260
        %6301 = vmatprep.subr.bf16.mxu0 %v5390
        %6302 = vmatpush1.bf16.msra.mxu0 %v5389
        %6303 = vmatprep.subr.bf16.mxu0 %v5374
        %6304 = vmatpush1.bf16.msra.mxu0 %v5373
        %6305 = vmatprep.subr.bf16.mxu0 %v5358
        %6306 = vmatpush1.bf16.msra.mxu0 %v5357
        %6307 = vmatprep.subr.bf16.mxu0 %v5342
        %6308 = vmatpush1.bf16.msra.mxu0 %v5341
        %6309 = vmatprep.subr.bf16.mxu0 %v5326
        %6310 = vmatpush1.bf16.msra.mxu0 %v5325
        %6311 = vmatprep.subr.bf16.mxu0 %v5310
        %6312 = vmatpush1.bf16.msra.mxu0 %v5309
        %6313 = vmatprep.subr.bf16.mxu0 %v5294
        %6314 = vmatpush1.bf16.msra.mxu0 %v5293
        %6315 = vmatprep.subr.bf16.mxu0 %v5278
        %6316 = vmatpush1.bf16.msra.mxu0 %v5277
        %6317 = vmatprep.subr.bf16.mxu0 %v5518
        %6318 = vmatpush2.bf16.msra.mxu0 %v5517
        %6319 = vmatprep.subr.bf16.mxu0 %v5502
        %6320 = vmatpush2.bf16.msra.mxu0 %v5501
        %6321 = vmatprep.subr.bf16.mxu0 %v5486
        %6322 = vmatpush2.bf16.msra.mxu0 %v5485
        %6323 = vmatprep.subr.bf16.mxu0 %v5470
        %6324 = vmatpush2.bf16.msra.mxu0 %v5469
        %6325 = vmatprep.subr.bf16.mxu0 %v5454
        %6326 = vmatpush2.bf16.msra.mxu0 %v5453
        %6327 = vmatprep.subr.bf16.mxu0 %v5438
        %6328 = vmatpush2.bf16.msra.mxu0 %v5437
        %6329 = vmatprep.subr.bf16.mxu0 %v5422
        %6330 = vmatpush2.bf16.msra.mxu0 %v5421
        %6331 = vmatprep.subr.bf16.mxu0 %v5406
        %6332 = vmatpush2.bf16.msra.mxu0 %v5405
        %6333 = vmatprep.mubr.bf16.mxu0 %v3130
        %6334 = vmatmul.mubr.bf16.gmra.mxu0 %v3129
        %v6335 = vpop.f32.mrf.mxu0
        %v6336 = vadd.f32 %v3664, %v6335
        %v6337 = vpop.f32.mrf.mxu0
        %v6338 = vadd.f32 %v3668, %v6337
        %v6339 = vpop.f32.mrf.mxu0
        %v6340 = vadd.f32 %v3664, %v6339
        %v6341 = vpop.f32.mrf.mxu0
        %v6342 = vadd.f32 %v3668, %v6341
        %6343 = vmatprep.mubr.bf16.mxu0 %v3134
        %6344 = vmatmul.mubr.bf16.gmra.mxu0 %v3133
        %v6345 = vpop.f32.mrf.mxu0
        %v6346 = vadd.f32 %v3664, %v6345
        %v6347 = vpop.f32.mrf.mxu0
        %v6348 = vadd.f32 %v3668, %v6347
        %v6349 = vpop.f32.mrf.mxu0
        %v6350 = vadd.f32 %v3664, %v6349
        %v6351 = vpop.f32.mrf.mxu0
        %v6352 = vadd.f32 %v3668, %v6351
        %6353 = vmatprep.mubr.bf16.mxu0 %v3138
        %6354 = vmatmul.mubr.bf16.gmra.mxu0 %v3137
        %v6355 = vpop.f32.mrf.mxu0
        %v6356 = vadd.f32 %v3664, %v6355
        %v6357 = vpop.f32.mrf.mxu0
        %v6358 = vadd.f32 %v3668, %v6357
        %v6359 = vpop.f32.mrf.mxu0
        %v6360 = vadd.f32 %v3664, %v6359
        %v6361 = vpop.f32.mrf.mxu0
        %v6362 = vadd.f32 %v3668, %v6361
        %6363 = vmatprep.mubr.bf16.mxu0 %v3142
        %6364 = vmatmul.mubr.bf16.gmra.mxu0 %v3141
        %v6365 = vpop.f32.mrf.mxu0
        %v6366 = vadd.f32 %v3664, %v6365
        %v6367 = vpop.f32.mrf.mxu0
        %v6368 = vadd.f32 %v3668, %v6367
        %v6369 = vpop.f32.mrf.mxu0
        %v6370 = vadd.f32 %v3664, %v6369
        %v6371 = vpop.f32.mrf.mxu0
        %v6372 = vadd.f32 %v3668, %v6371
        %6373 = vdwg.mxu0
        %6374 = vmatprep.subr.bf16.mxu0 %v5646
        %6375 = vmatpush1.bf16.msra.mxu0 %v5645
        %6376 = vmatprep.subr.bf16.mxu0 %v5630
        %6377 = vmatpush1.bf16.msra.mxu0 %v5629
        %6378 = vmatprep.subr.bf16.mxu0 %v5614
        %6379 = vmatpush1.bf16.msra.mxu0 %v5613
        %6380 = vmatprep.subr.bf16.mxu0 %v5598
        %6381 = vmatpush1.bf16.msra.mxu0 %v5597
        %6382 = vmatprep.subr.bf16.mxu0 %v5582
        %6383 = vmatpush1.bf16.msra.mxu0 %v5581
        %6384 = vmatprep.subr.bf16.mxu0 %v5566
        %6385 = vmatpush1.bf16.msra.mxu0 %v5565
        %6386 = vmatprep.subr.bf16.mxu0 %v5550
        %6387 = vmatpush1.bf16.msra.mxu0 %v5549
        %6388 = vmatprep.subr.bf16.mxu0 %v5534
        %6389 = vmatpush1.bf16.msra.mxu0 %v5533
        %6390 = vmatprep.subr.bf16.mxu0 %v5774
        %6391 = vmatpush2.bf16.msra.mxu0 %v5773
        %6392 = vmatprep.subr.bf16.mxu0 %v5758
        %6393 = vmatpush2.bf16.msra.mxu0 %v5757
        %6394 = vmatprep.subr.bf16.mxu0 %v5742
        %6395 = vmatpush2.bf16.msra.mxu0 %v5741
        %6396 = vmatprep.subr.bf16.mxu0 %v5726
        %6397 = vmatpush2.bf16.msra.mxu0 %v5725
        %6398 = vmatprep.subr.bf16.mxu0 %v5710
        %6399 = vmatpush2.bf16.msra.mxu0 %v5709
        %6400 = vmatprep.subr.bf16.mxu0 %v5694
        %6401 = vmatpush2.bf16.msra.mxu0 %v5693
        %6402 = vmatprep.subr.bf16.mxu0 %v5678
        %6403 = vmatpush2.bf16.msra.mxu0 %v5677
        %6404 = vmatprep.subr.bf16.mxu0 %v5662
        %6405 = vmatpush2.bf16.msra.mxu0 %v5661
        %6406 = vmatprep.mubr.bf16.mxu0 %v3132
        %6407 = vmatmul.mubr.bf16.gmra.mxu0 %v3131
        %v6408 = vpop.f32.mrf.mxu0
        %v6409 = vadd.f32 %v6336, %v6408
        %v6410 = vpop.f32.mrf.mxu0
        %v6411 = vadd.f32 %v6338, %v6410
        %v6412 = vpop.f32.mrf.mxu0
        %v6413 = vadd.f32 %v6340, %v6412
        %v6414 = vpop.f32.mrf.mxu0
        %v6415 = vadd.f32 %v6342, %v6414
        %6416 = vmatprep.mubr.bf16.mxu0 %v3136
        %6417 = vmatmul.mubr.bf16.gmra.mxu0 %v3135
        %v6418 = vpop.f32.mrf.mxu0
        %v6419 = vadd.f32 %v6346, %v6418
        %v6420 = vpop.f32.mrf.mxu0
        %v6421 = vadd.f32 %v6348, %v6420
        %v6422 = vpop.f32.mrf.mxu0
        %v6423 = vadd.f32 %v6350, %v6422
        %v6424 = vpop.f32.mrf.mxu0
        %v6425 = vadd.f32 %v6352, %v6424
        %6426 = vmatprep.mubr.bf16.mxu0 %v3140
        %6427 = vmatmul.mubr.bf16.gmra.mxu0 %v3139
        %v6428 = vpop.f32.mrf.mxu0
        %v6429 = vadd.f32 %v6356, %v6428
        %v6430 = vpop.f32.mrf.mxu0
        %v6431 = vadd.f32 %v6358, %v6430
        %v6432 = vpop.f32.mrf.mxu0
        %v6433 = vadd.f32 %v6360, %v6432
        %v6434 = vpop.f32.mrf.mxu0
        %v6435 = vadd.f32 %v6362, %v6434
        %6436 = vmatprep.mubr.bf16.mxu0 %v3144
        %6437 = vmatmul.mubr.bf16.gmra.mxu0 %v3143
        %v6438 = vpop.f32.mrf.mxu0
        %v6439 = vadd.f32 %v6366, %v6438
        %v6440 = vpop.f32.mrf.mxu0
        %v6441 = vadd.f32 %v6368, %v6440
        %v6442 = vpop.f32.mrf.mxu0
        %v6443 = vadd.f32 %v6370, %v6442
        %v6444 = vpop.f32.mrf.mxu0
        %v6445 = vadd.f32 %v6372, %v6444
        %6446 = vdwg.mxu0
        %6447 = vmatprep.subr.bf16.mxu0 %v5392
        %6448 = vmatpush1.bf16.msra.mxu0 %v5391
        %6449 = vmatprep.subr.bf16.mxu0 %v5376
        %6450 = vmatpush1.bf16.msra.mxu0 %v5375
        %6451 = vmatprep.subr.bf16.mxu0 %v5360
        %6452 = vmatpush1.bf16.msra.mxu0 %v5359
        %6453 = vmatprep.subr.bf16.mxu0 %v5344
        %6454 = vmatpush1.bf16.msra.mxu0 %v5343
        %6455 = vmatprep.subr.bf16.mxu0 %v5328
        %6456 = vmatpush1.bf16.msra.mxu0 %v5327
        %6457 = vmatprep.subr.bf16.mxu0 %v5312
        %6458 = vmatpush1.bf16.msra.mxu0 %v5311
        %6459 = vmatprep.subr.bf16.mxu0 %v5296
        %6460 = vmatpush1.bf16.msra.mxu0 %v5295
        %6461 = vmatprep.subr.bf16.mxu0 %v5280
        %6462 = vmatpush1.bf16.msra.mxu0 %v5279
        %6463 = vmatprep.subr.bf16.mxu0 %v5520
        %6464 = vmatpush2.bf16.msra.mxu0 %v5519
        %6465 = vmatprep.subr.bf16.mxu0 %v5504
        %6466 = vmatpush2.bf16.msra.mxu0 %v5503
        %6467 = vmatprep.subr.bf16.mxu0 %v5488
        %6468 = vmatpush2.bf16.msra.mxu0 %v5487
        %6469 = vmatprep.subr.bf16.mxu0 %v5472
        %6470 = vmatpush2.bf16.msra.mxu0 %v5471
        %6471 = vmatprep.subr.bf16.mxu0 %v5456
        %6472 = vmatpush2.bf16.msra.mxu0 %v5455
        %6473 = vmatprep.subr.bf16.mxu0 %v5440
        %6474 = vmatpush2.bf16.msra.mxu0 %v5439
        %6475 = vmatprep.subr.bf16.mxu0 %v5424
        %6476 = vmatpush2.bf16.msra.mxu0 %v5423
        %6477 = vmatprep.subr.bf16.mxu0 %v5408
        %6478 = vmatpush2.bf16.msra.mxu0 %v5407
        %6479 = vmatprep.mubr.bf16.mxu0 %v3130
        %6480 = vmatmul.mubr.bf16.gmra.mxu0 %v3129
        %v6481 = vpop.f32.mrf.mxu0
        %v6482 = vadd.f32 %v3672, %v6481
        %v6483 = vpop.f32.mrf.mxu0
        %v6484 = vadd.f32 %v3676, %v6483
        %v6485 = vpop.f32.mrf.mxu0
        %v6486 = vadd.f32 %v3672, %v6485
        %v6487 = vpop.f32.mrf.mxu0
        %v6488 = vadd.f32 %v3676, %v6487
        %6489 = vmatprep.mubr.bf16.mxu0 %v3134
        %6490 = vmatmul.mubr.bf16.gmra.mxu0 %v3133
        %v6491 = vpop.f32.mrf.mxu0
        %v6492 = vadd.f32 %v3672, %v6491
        %v6493 = vpop.f32.mrf.mxu0
        %v6494 = vadd.f32 %v3676, %v6493
        %v6495 = vpop.f32.mrf.mxu0
        %v6496 = vadd.f32 %v3672, %v6495
        %v6497 = vpop.f32.mrf.mxu0
        %v6498 = vadd.f32 %v3676, %v6497
        %6499 = vmatprep.mubr.bf16.mxu0 %v3138
        %6500 = vmatmul.mubr.bf16.gmra.mxu0 %v3137
        %v6501 = vpop.f32.mrf.mxu0
        %v6502 = vadd.f32 %v3672, %v6501
        %v6503 = vpop.f32.mrf.mxu0
        %v6504 = vadd.f32 %v3676, %v6503
        %v6505 = vpop.f32.mrf.mxu0
        %v6506 = vadd.f32 %v3672, %v6505
        %v6507 = vpop.f32.mrf.mxu0
        %v6508 = vadd.f32 %v3676, %v6507
        %6509 = vmatprep.mubr.bf16.mxu0 %v3142
        %6510 = vmatmul.mubr.bf16.gmra.mxu0 %v3141
        %v6511 = vpop.f32.mrf.mxu0
        %v6512 = vadd.f32 %v3672, %v6511
        %v6513 = vpop.f32.mrf.mxu0
        %v6514 = vadd.f32 %v3676, %v6513
        %v6515 = vpop.f32.mrf.mxu0
        %v6516 = vadd.f32 %v3672, %v6515
        %v6517 = vpop.f32.mrf.mxu0
        %v6518 = vadd.f32 %v3676, %v6517
        %6519 = vdwg.mxu0
        %6520 = vmatprep.subr.bf16.mxu0 %v5648
        %6521 = vmatpush1.bf16.msra.mxu0 %v5647
        %6522 = vmatprep.subr.bf16.mxu0 %v5632
        %6523 = vmatpush1.bf16.msra.mxu0 %v5631
        %6524 = vmatprep.subr.bf16.mxu0 %v5616
        %6525 = vmatpush1.bf16.msra.mxu0 %v5615
        %6526 = vmatprep.subr.bf16.mxu0 %v5600
        %6527 = vmatpush1.bf16.msra.mxu0 %v5599
        %6528 = vmatprep.subr.bf16.mxu0 %v5584
        %6529 = vmatpush1.bf16.msra.mxu0 %v5583
        %6530 = vmatprep.subr.bf16.mxu0 %v5568
        %6531 = vmatpush1.bf16.msra.mxu0 %v5567
        %6532 = vmatprep.subr.bf16.mxu0 %v5552
        %6533 = vmatpush1.bf16.msra.mxu0 %v5551
        %6534 = vmatprep.subr.bf16.mxu0 %v5536
        %6535 = vmatpush1.bf16.msra.mxu0 %v5535
        %6536 = vmatprep.subr.bf16.mxu0 %v5776
        %6537 = vmatpush2.bf16.msra.mxu0 %v5775
        %6538 = vmatprep.subr.bf16.mxu0 %v5760
        %6539 = vmatpush2.bf16.msra.mxu0 %v5759
        %6540 = vmatprep.subr.bf16.mxu0 %v5744
        %6541 = vmatpush2.bf16.msra.mxu0 %v5743
        %6542 = vmatprep.subr.bf16.mxu0 %v5728
        %6543 = vmatpush2.bf16.msra.mxu0 %v5727
        %6544 = vmatprep.subr.bf16.mxu0 %v5712
        %6545 = vmatpush2.bf16.msra.mxu0 %v5711
        %6546 = vmatprep.subr.bf16.mxu0 %v5696
        %6547 = vmatpush2.bf16.msra.mxu0 %v5695
        %6548 = vmatprep.subr.bf16.mxu0 %v5680
        %6549 = vmatpush2.bf16.msra.mxu0 %v5679
        %6550 = vmatprep.subr.bf16.mxu0 %v5664
        %6551 = vmatpush2.bf16.msra.mxu0 %v5663
        %6552 = vmatprep.mubr.bf16.mxu0 %v3132
        %6553 = vmatmul.mubr.bf16.gmra.mxu0 %v3131
        %v6554 = vpop.f32.mrf.mxu0
        %v6555 = vadd.f32 %v6482, %v6554
        %v6556 = vpop.f32.mrf.mxu0
        %v6557 = vadd.f32 %v6484, %v6556
        %v6558 = vpop.f32.mrf.mxu0
        %v6559 = vadd.f32 %v6486, %v6558
        %v6560 = vpop.f32.mrf.mxu0
        %v6561 = vadd.f32 %v6488, %v6560
        %6562 = vmatprep.mubr.bf16.mxu0 %v3136
        %6563 = vmatmul.mubr.bf16.gmra.mxu0 %v3135
        %v6564 = vpop.f32.mrf.mxu0
        %v6565 = vadd.f32 %v6492, %v6564
        %v6566 = vpop.f32.mrf.mxu0
        %v6567 = vadd.f32 %v6494, %v6566
        %v6568 = vpop.f32.mrf.mxu0
        %v6569 = vadd.f32 %v6496, %v6568
        %v6570 = vpop.f32.mrf.mxu0
        %v6571 = vadd.f32 %v6498, %v6570
        %6572 = vmatprep.mubr.bf16.mxu0 %v3140
        %6573 = vmatmul.mubr.bf16.gmra.mxu0 %v3139
        %v6574 = vpop.f32.mrf.mxu0
        %v6575 = vadd.f32 %v6502, %v6574
        %v6576 = vpop.f32.mrf.mxu0
        %v6577 = vadd.f32 %v6504, %v6576
        %v6578 = vpop.f32.mrf.mxu0
        %v6579 = vadd.f32 %v6506, %v6578
        %v6580 = vpop.f32.mrf.mxu0
        %v6581 = vadd.f32 %v6508, %v6580
        %6582 = vmatprep.mubr.bf16.mxu0 %v3144
        %6583 = vmatmul.mubr.bf16.gmra.mxu0 %v3143
        %v6584 = vpop.f32.mrf.mxu0
        %v6585 = vadd.f32 %v6512, %v6584
        %v6586 = vpop.f32.mrf.mxu0
        %v6587 = vadd.f32 %v6514, %v6586
        %v6588 = vpop.f32.mrf.mxu0
        %v6589 = vadd.f32 %v6516, %v6588
        %v6590 = vpop.f32.mrf.mxu0
        %v6591 = vadd.f32 %v6518, %v6590
        %6592 = vdwg.mxu0
        %6593 = vmatprep.subr.bf16.mxu0 %v5394
        %6594 = vmatpush1.bf16.msra.mxu0 %v5393
        %6595 = vmatprep.subr.bf16.mxu0 %v5378
        %6596 = vmatpush1.bf16.msra.mxu0 %v5377
        %6597 = vmatprep.subr.bf16.mxu0 %v5362
        %6598 = vmatpush1.bf16.msra.mxu0 %v5361
        %6599 = vmatprep.subr.bf16.mxu0 %v5346
        %6600 = vmatpush1.bf16.msra.mxu0 %v5345
        %6601 = vmatprep.subr.bf16.mxu0 %v5330
        %6602 = vmatpush1.bf16.msra.mxu0 %v5329
        %6603 = vmatprep.subr.bf16.mxu0 %v5314
        %6604 = vmatpush1.bf16.msra.mxu0 %v5313
        %6605 = vmatprep.subr.bf16.mxu0 %v5298
        %6606 = vmatpush1.bf16.msra.mxu0 %v5297
        %6607 = vmatprep.subr.bf16.mxu0 %v5282
        %6608 = vmatpush1.bf16.msra.mxu0 %v5281
        %6609 = vmatprep.subr.bf16.mxu0 %v5522
        %6610 = vmatpush2.bf16.msra.mxu0 %v5521
        %6611 = vmatprep.subr.bf16.mxu0 %v5506
        %6612 = vmatpush2.bf16.msra.mxu0 %v5505
        %6613 = vmatprep.subr.bf16.mxu0 %v5490
        %6614 = vmatpush2.bf16.msra.mxu0 %v5489
        %6615 = vmatprep.subr.bf16.mxu0 %v5474
        %6616 = vmatpush2.bf16.msra.mxu0 %v5473
        %6617 = vmatprep.subr.bf16.mxu0 %v5458
        %6618 = vmatpush2.bf16.msra.mxu0 %v5457
        %6619 = vmatprep.subr.bf16.mxu0 %v5442
        %6620 = vmatpush2.bf16.msra.mxu0 %v5441
        %6621 = vmatprep.subr.bf16.mxu0 %v5426
        %6622 = vmatpush2.bf16.msra.mxu0 %v5425
        %6623 = vmatprep.subr.bf16.mxu0 %v5410
        %6624 = vmatpush2.bf16.msra.mxu0 %v5409
        %6625 = vmatprep.mubr.bf16.mxu0 %v3130
        %6626 = vmatmul.mubr.bf16.gmra.mxu0 %v3129
        %v6627 = vpop.f32.mrf.mxu0
        %v6628 = vadd.f32 %v3680, %v6627
        %v6629 = vpop.f32.mrf.mxu0
        %v6630 = vadd.f32 %v3684, %v6629
        %v6631 = vpop.f32.mrf.mxu0
        %v6632 = vadd.f32 %v3680, %v6631
        %v6633 = vpop.f32.mrf.mxu0
        %v6634 = vadd.f32 %v3684, %v6633
        %6635 = vmatprep.mubr.bf16.mxu0 %v3134
        %6636 = vmatmul.mubr.bf16.gmra.mxu0 %v3133
        %v6637 = vpop.f32.mrf.mxu0
        %v6638 = vadd.f32 %v3680, %v6637
        %v6639 = vpop.f32.mrf.mxu0
        %v6640 = vadd.f32 %v3684, %v6639
        %v6641 = vpop.f32.mrf.mxu0
        %v6642 = vadd.f32 %v3680, %v6641
        %v6643 = vpop.f32.mrf.mxu0
        %v6644 = vadd.f32 %v3684, %v6643
        %6645 = vmatprep.mubr.bf16.mxu0 %v3138
        %6646 = vmatmul.mubr.bf16.gmra.mxu0 %v3137
        %v6647 = vpop.f32.mrf.mxu0
        %v6648 = vadd.f32 %v3680, %v6647
        %v6649 = vpop.f32.mrf.mxu0
        %v6650 = vadd.f32 %v3684, %v6649
        %v6651 = vpop.f32.mrf.mxu0
        %v6652 = vadd.f32 %v3680, %v6651
        %v6653 = vpop.f32.mrf.mxu0
        %v6654 = vadd.f32 %v3684, %v6653
        %6655 = vmatprep.mubr.bf16.mxu0 %v3142
        %6656 = vmatmul.mubr.bf16.gmra.mxu0 %v3141
        %v6657 = vpop.f32.mrf.mxu0
        %v6658 = vadd.f32 %v3680, %v6657
        %v6659 = vpop.f32.mrf.mxu0
        %v6660 = vadd.f32 %v3684, %v6659
        %v6661 = vpop.f32.mrf.mxu0
        %v6662 = vadd.f32 %v3680, %v6661
        %v6663 = vpop.f32.mrf.mxu0
        %v6664 = vadd.f32 %v3684, %v6663
        %6665 = vdwg.mxu0
        %6666 = vmatprep.subr.bf16.mxu0 %v5650
        %6667 = vmatpush1.bf16.msra.mxu0 %v5649
        %6668 = vmatprep.subr.bf16.mxu0 %v5634
        %6669 = vmatpush1.bf16.msra.mxu0 %v5633
        %6670 = vmatprep.subr.bf16.mxu0 %v5618
        %6671 = vmatpush1.bf16.msra.mxu0 %v5617
        %6672 = vmatprep.subr.bf16.mxu0 %v5602
        %6673 = vmatpush1.bf16.msra.mxu0 %v5601
        %6674 = vmatprep.subr.bf16.mxu0 %v5586
        %6675 = vmatpush1.bf16.msra.mxu0 %v5585
        %6676 = vmatprep.subr.bf16.mxu0 %v5570
        %6677 = vmatpush1.bf16.msra.mxu0 %v5569
        %6678 = vmatprep.subr.bf16.mxu0 %v5554
        %6679 = vmatpush1.bf16.msra.mxu0 %v5553
        %6680 = vmatprep.subr.bf16.mxu0 %v5538
        %6681 = vmatpush1.bf16.msra.mxu0 %v5537
        %6682 = vmatprep.subr.bf16.mxu0 %v5778
        %6683 = vmatpush2.bf16.msra.mxu0 %v5777
        %6684 = vmatprep.subr.bf16.mxu0 %v5762
        %6685 = vmatpush2.bf16.msra.mxu0 %v5761
        %6686 = vmatprep.subr.bf16.mxu0 %v5746
        %6687 = vmatpush2.bf16.msra.mxu0 %v5745
        %6688 = vmatprep.subr.bf16.mxu0 %v5730
        %6689 = vmatpush2.bf16.msra.mxu0 %v5729
        %6690 = vmatprep.subr.bf16.mxu0 %v5714
        %6691 = vmatpush2.bf16.msra.mxu0 %v5713
        %6692 = vmatprep.subr.bf16.mxu0 %v5698
        %6693 = vmatpush2.bf16.msra.mxu0 %v5697
        %6694 = vmatprep.subr.bf16.mxu0 %v5682
        %6695 = vmatpush2.bf16.msra.mxu0 %v5681
        %6696 = vmatprep.subr.bf16.mxu0 %v5666
        %6697 = vmatpush2.bf16.msra.mxu0 %v5665
        %6698 = vmatprep.mubr.bf16.mxu0 %v3132
        %6699 = vmatmul.mubr.bf16.gmra.mxu0 %v3131
        %v6700 = vpop.f32.mrf.mxu0
        %v6701 = vadd.f32 %v6628, %v6700
        %v6702 = vpop.f32.mrf.mxu0
        %v6703 = vadd.f32 %v6630, %v6702
        %v6704 = vpop.f32.mrf.mxu0
        %v6705 = vadd.f32 %v6632, %v6704
        %v6706 = vpop.f32.mrf.mxu0
        %v6707 = vadd.f32 %v6634, %v6706
        %6708 = vmatprep.mubr.bf16.mxu0 %v3136
        %6709 = vmatmul.mubr.bf16.gmra.mxu0 %v3135
        %v6710 = vpop.f32.mrf.mxu0
        %v6711 = vadd.f32 %v6638, %v6710
        %v6712 = vpop.f32.mrf.mxu0
        %v6713 = vadd.f32 %v6640, %v6712
        %v6714 = vpop.f32.mrf.mxu0
        %v6715 = vadd.f32 %v6642, %v6714
        %v6716 = vpop.f32.mrf.mxu0
        %v6717 = vadd.f32 %v6644, %v6716
        %6718 = vmatprep.mubr.bf16.mxu0 %v3140
        %6719 = vmatmul.mubr.bf16.gmra.mxu0 %v3139
        %v6720 = vpop.f32.mrf.mxu0
        %v6721 = vadd.f32 %v6648, %v6720
        %v6722 = vpop.f32.mrf.mxu0
        %v6723 = vadd.f32 %v6650, %v6722
        %v6724 = vpop.f32.mrf.mxu0
        %v6725 = vadd.f32 %v6652, %v6724
        %v6726 = vpop.f32.mrf.mxu0
        %v6727 = vadd.f32 %v6654, %v6726
        %6728 = vmatprep.mubr.bf16.mxu0 %v3144
        %6729 = vmatmul.mubr.bf16.gmra.mxu0 %v3143
        %v6730 = vpop.f32.mrf.mxu0
        %v6731 = vadd.f32 %v6658, %v6730
        %v6732 = vpop.f32.mrf.mxu0
        %v6733 = vadd.f32 %v6660, %v6732
        %v6734 = vpop.f32.mrf.mxu0
        %v6735 = vadd.f32 %v6662, %v6734
        %v6736 = vpop.f32.mrf.mxu0
        %v6737 = vadd.f32 %v6664, %v6736
        %6738 = vdwg.mxu0
        %6739 = vmatprep.subr.bf16.mxu0 %v5396
        %6740 = vmatpush1.bf16.msra.mxu0 %v5395
        %6741 = vmatprep.subr.bf16.mxu0 %v5380
        %6742 = vmatpush1.bf16.msra.mxu0 %v5379
        %6743 = vmatprep.subr.bf16.mxu0 %v5364
        %6744 = vmatpush1.bf16.msra.mxu0 %v5363
        %6745 = vmatprep.subr.bf16.mxu0 %v5348
        %6746 = vmatpush1.bf16.msra.mxu0 %v5347
        %6747 = vmatprep.subr.bf16.mxu0 %v5332
        %6748 = vmatpush1.bf16.msra.mxu0 %v5331
        %6749 = vmatprep.subr.bf16.mxu0 %v5316
        %6750 = vmatpush1.bf16.msra.mxu0 %v5315
        %6751 = vmatprep.subr.bf16.mxu0 %v5300
        %6752 = vmatpush1.bf16.msra.mxu0 %v5299
        %6753 = vmatprep.subr.bf16.mxu0 %v5284
        %6754 = vmatpush1.bf16.msra.mxu0 %v5283
        %6755 = vmatprep.subr.bf16.mxu0 %v5524
        %6756 = vmatpush2.bf16.msra.mxu0 %v5523
        %6757 = vmatprep.subr.bf16.mxu0 %v5508
        %6758 = vmatpush2.bf16.msra.mxu0 %v5507
        %6759 = vmatprep.subr.bf16.mxu0 %v5492
        %6760 = vmatpush2.bf16.msra.mxu0 %v5491
        %6761 = vmatprep.subr.bf16.mxu0 %v5476
        %6762 = vmatpush2.bf16.msra.mxu0 %v5475
        %6763 = vmatprep.subr.bf16.mxu0 %v5460
        %6764 = vmatpush2.bf16.msra.mxu0 %v5459
        %6765 = vmatprep.subr.bf16.mxu0 %v5444
        %6766 = vmatpush2.bf16.msra.mxu0 %v5443
        %6767 = vmatprep.subr.bf16.mxu0 %v5428
        %6768 = vmatpush2.bf16.msra.mxu0 %v5427
        %6769 = vmatprep.subr.bf16.mxu0 %v5412
        %6770 = vmatpush2.bf16.msra.mxu0 %v5411
        %6771 = vmatprep.mubr.bf16.mxu0 %v3130
        %6772 = vmatmul.mubr.bf16.gmra.mxu0 %v3129
        %v6773 = vpop.f32.mrf.mxu0
        %v6774 = vadd.f32 %v3688, %v6773
        %v6775 = vpop.f32.mrf.mxu0
        %v6776 = vadd.f32 %v3692, %v6775
        %v6777 = vpop.f32.mrf.mxu0
        %v6778 = vadd.f32 %v3688, %v6777
        %v6779 = vpop.f32.mrf.mxu0
        %v6780 = vadd.f32 %v3692, %v6779
        %6781 = vmatprep.mubr.bf16.mxu0 %v3134
        %6782 = vmatmul.mubr.bf16.gmra.mxu0 %v3133
        %v6783 = vpop.f32.mrf.mxu0
        %v6784 = vadd.f32 %v3688, %v6783
        %v6785 = vpop.f32.mrf.mxu0
        %v6786 = vadd.f32 %v3692, %v6785
        %v6787 = vpop.f32.mrf.mxu0
        %v6788 = vadd.f32 %v3688, %v6787
        %v6789 = vpop.f32.mrf.mxu0
        %v6790 = vadd.f32 %v3692, %v6789
        %6791 = vmatprep.mubr.bf16.mxu0 %v3138
        %6792 = vmatmul.mubr.bf16.gmra.mxu0 %v3137
        %v6793 = vpop.f32.mrf.mxu0
        %v6794 = vadd.f32 %v3688, %v6793
        %v6795 = vpop.f32.mrf.mxu0
        %v6796 = vadd.f32 %v3692, %v6795
        %v6797 = vpop.f32.mrf.mxu0
        %v6798 = vadd.f32 %v3688, %v6797
        %v6799 = vpop.f32.mrf.mxu0
        %v6800 = vadd.f32 %v3692, %v6799
        %6801 = vmatprep.mubr.bf16.mxu0 %v3142
        %6802 = vmatmul.mubr.bf16.gmra.mxu0 %v3141
        %v6803 = vpop.f32.mrf.mxu0
        %v6804 = vadd.f32 %v3688, %v6803
        %v6805 = vpop.f32.mrf.mxu0
        %v6806 = vadd.f32 %v3692, %v6805
        %v6807 = vpop.f32.mrf.mxu0
        %v6808 = vadd.f32 %v3688, %v6807
        %v6809 = vpop.f32.mrf.mxu0
        %v6810 = vadd.f32 %v3692, %v6809
        %6811 = vdwg.mxu0
        %6812 = vmatprep.subr.bf16.mxu0 %v5652
        %6813 = vmatpush1.bf16.msra.mxu0 %v5651
        %6814 = vmatprep.subr.bf16.mxu0 %v5636
        %6815 = vmatpush1.bf16.msra.mxu0 %v5635
        %6816 = vmatprep.subr.bf16.mxu0 %v5620
        %6817 = vmatpush1.bf16.msra.mxu0 %v5619
        %6818 = vmatprep.subr.bf16.mxu0 %v5604
        %6819 = vmatpush1.bf16.msra.mxu0 %v5603
        %6820 = vmatprep.subr.bf16.mxu0 %v5588
        %6821 = vmatpush1.bf16.msra.mxu0 %v5587
        %6822 = vmatprep.subr.bf16.mxu0 %v5572
        %6823 = vmatpush1.bf16.msra.mxu0 %v5571
        %6824 = vmatprep.subr.bf16.mxu0 %v5556
        %6825 = vmatpush1.bf16.msra.mxu0 %v5555
        %6826 = vmatprep.subr.bf16.mxu0 %v5540
        %6827 = vmatpush1.bf16.msra.mxu0 %v5539
        %6828 = vmatprep.subr.bf16.mxu0 %v5780
        %6829 = vmatpush2.bf16.msra.mxu0 %v5779
        %6830 = vmatprep.subr.bf16.mxu0 %v5764
        %6831 = vmatpush2.bf16.msra.mxu0 %v5763
        %6832 = vmatprep.subr.bf16.mxu0 %v5748
        %6833 = vmatpush2.bf16.msra.mxu0 %v5747
        %6834 = vmatprep.subr.bf16.mxu0 %v5732
        %6835 = vmatpush2.bf16.msra.mxu0 %v5731
        %6836 = vmatprep.subr.bf16.mxu0 %v5716
        %6837 = vmatpush2.bf16.msra.mxu0 %v5715
        %6838 = vmatprep.subr.bf16.mxu0 %v5700
        %6839 = vmatpush2.bf16.msra.mxu0 %v5699
        %6840 = vmatprep.subr.bf16.mxu0 %v5684
        %6841 = vmatpush2.bf16.msra.mxu0 %v5683
        %6842 = vmatprep.subr.bf16.mxu0 %v5668
        %6843 = vmatpush2.bf16.msra.mxu0 %v5667
        %6844 = vmatprep.mubr.bf16.mxu0 %v3132
        %6845 = vmatmul.mubr.bf16.gmra.mxu0 %v3131
        %v6846 = vpop.f32.mrf.mxu0
        %v6847 = vadd.f32 %v6774, %v6846
        %v6848 = vpop.f32.mrf.mxu0
        %v6849 = vadd.f32 %v6776, %v6848
        %v6850 = vpop.f32.mrf.mxu0
        %v6851 = vadd.f32 %v6778, %v6850
        %v6852 = vpop.f32.mrf.mxu0
        %v6853 = vadd.f32 %v6780, %v6852
        %6854 = vmatprep.mubr.bf16.mxu0 %v3136
        %6855 = vmatmul.mubr.bf16.gmra.mxu0 %v3135
        %v6856 = vpop.f32.mrf.mxu0
        %v6857 = vadd.f32 %v6784, %v6856
        %v6858 = vpop.f32.mrf.mxu0
        %v6859 = vadd.f32 %v6786, %v6858
        %v6860 = vpop.f32.mrf.mxu0
        %v6861 = vadd.f32 %v6788, %v6860
        %v6862 = vpop.f32.mrf.mxu0
        %v6863 = vadd.f32 %v6790, %v6862
        %6864 = vmatprep.mubr.bf16.mxu0 %v3140
        %6865 = vmatmul.mubr.bf16.gmra.mxu0 %v3139
        %v6866 = vpop.f32.mrf.mxu0
        %v6867 = vadd.f32 %v6794, %v6866
        %v6868 = vpop.f32.mrf.mxu0
        %v6869 = vadd.f32 %v6796, %v6868
        %v6870 = vpop.f32.mrf.mxu0
        %v6871 = vadd.f32 %v6798, %v6870
        %v6872 = vpop.f32.mrf.mxu0
        %v6873 = vadd.f32 %v6800, %v6872
        %6874 = vmatprep.mubr.bf16.mxu0 %v3144
        %6875 = vmatmul.mubr.bf16.gmra.mxu0 %v3143
        %v6876 = vpop.f32.mrf.mxu0
        %v6877 = vadd.f32 %v6804, %v6876
        %v6878 = vpop.f32.mrf.mxu0
        %v6879 = vadd.f32 %v6806, %v6878
        %v6880 = vpop.f32.mrf.mxu0
        %v6881 = vadd.f32 %v6808, %v6880
        %v6882 = vpop.f32.mrf.mxu0
        %v6883 = vadd.f32 %v6810, %v6882
        %6884 = vdwg.mxu0
        %6885 = vmatprep.subr.bf16.mxu0 %v5398
        %6886 = vmatpush1.bf16.msra.mxu0 %v5397
        %6887 = vmatprep.subr.bf16.mxu0 %v5382
        %6888 = vmatpush1.bf16.msra.mxu0 %v5381
        %6889 = vmatprep.subr.bf16.mxu0 %v5366
        %6890 = vmatpush1.bf16.msra.mxu0 %v5365
        %6891 = vmatprep.subr.bf16.mxu0 %v5350
        %6892 = vmatpush1.bf16.msra.mxu0 %v5349
        %6893 = vmatprep.subr.bf16.mxu0 %v5334
        %6894 = vmatpush1.bf16.msra.mxu0 %v5333
        %6895 = vmatprep.subr.bf16.mxu0 %v5318
        %6896 = vmatpush1.bf16.msra.mxu0 %v5317
        %6897 = vmatprep.subr.bf16.mxu0 %v5302
        %6898 = vmatpush1.bf16.msra.mxu0 %v5301
        %6899 = vmatprep.subr.bf16.mxu0 %v5286
        %6900 = vmatpush1.bf16.msra.mxu0 %v5285
        %6901 = vmatprep.subr.bf16.mxu0 %v5526
        %6902 = vmatpush2.bf16.msra.mxu0 %v5525
        %6903 = vmatprep.subr.bf16.mxu0 %v5510
        %6904 = vmatpush2.bf16.msra.mxu0 %v5509
        %6905 = vmatprep.subr.bf16.mxu0 %v5494
        %6906 = vmatpush2.bf16.msra.mxu0 %v5493
        %6907 = vmatprep.subr.bf16.mxu0 %v5478
        %6908 = vmatpush2.bf16.msra.mxu0 %v5477
        %6909 = vmatprep.subr.bf16.mxu0 %v5462
        %6910 = vmatpush2.bf16.msra.mxu0 %v5461
        %6911 = vmatprep.subr.bf16.mxu0 %v5446
        %6912 = vmatpush2.bf16.msra.mxu0 %v5445
        %6913 = vmatprep.subr.bf16.mxu0 %v5430
        %6914 = vmatpush2.bf16.msra.mxu0 %v5429
        %6915 = vmatprep.subr.bf16.mxu0 %v5414
        %6916 = vmatpush2.bf16.msra.mxu0 %v5413
        %6917 = vmatprep.mubr.bf16.mxu0 %v3130
        %6918 = vmatmul.mubr.bf16.gmra.mxu0 %v3129
        %v6919 = vpop.f32.mrf.mxu0
        %v6920 = vadd.f32 %v3696, %v6919
        %v6921 = vpop.f32.mrf.mxu0
        %v6922 = vadd.f32 %v3700, %v6921
        %v6923 = vpop.f32.mrf.mxu0
        %v6924 = vadd.f32 %v3696, %v6923
        %v6925 = vpop.f32.mrf.mxu0
        %v6926 = vadd.f32 %v3700, %v6925
        %6927 = vmatprep.mubr.bf16.mxu0 %v3134
        %6928 = vmatmul.mubr.bf16.gmra.mxu0 %v3133
        %v6929 = vpop.f32.mrf.mxu0
        %v6930 = vadd.f32 %v3696, %v6929
        %v6931 = vpop.f32.mrf.mxu0
        %v6932 = vadd.f32 %v3700, %v6931
        %v6933 = vpop.f32.mrf.mxu0
        %v6934 = vadd.f32 %v3696, %v6933
        %v6935 = vpop.f32.mrf.mxu0
        %v6936 = vadd.f32 %v3700, %v6935
        %6937 = vmatprep.mubr.bf16.mxu0 %v3138
        %6938 = vmatmul.mubr.bf16.gmra.mxu0 %v3137
        %v6939 = vpop.f32.mrf.mxu0
        %v6940 = vadd.f32 %v3696, %v6939
        %v6941 = vpop.f32.mrf.mxu0
        %v6942 = vadd.f32 %v3700, %v6941
        %v6943 = vpop.f32.mrf.mxu0
        %v6944 = vadd.f32 %v3696, %v6943
        %v6945 = vpop.f32.mrf.mxu0
        %v6946 = vadd.f32 %v3700, %v6945
        %6947 = vmatprep.mubr.bf16.mxu0 %v3142
        %6948 = vmatmul.mubr.bf16.gmra.mxu0 %v3141
        %v6949 = vpop.f32.mrf.mxu0
        %v6950 = vadd.f32 %v3696, %v6949
        %v6951 = vpop.f32.mrf.mxu0
        %v6952 = vadd.f32 %v3700, %v6951
        %v6953 = vpop.f32.mrf.mxu0
        %v6954 = vadd.f32 %v3696, %v6953
        %v6955 = vpop.f32.mrf.mxu0
        %v6956 = vadd.f32 %v3700, %v6955
        %6957 = vdwg.mxu0
        %6958 = vmatprep.subr.bf16.mxu0 %v5654
        %6959 = vmatpush1.bf16.msra.mxu0 %v5653
        %6960 = vmatprep.subr.bf16.mxu0 %v5638
        %6961 = vmatpush1.bf16.msra.mxu0 %v5637
        %6962 = vmatprep.subr.bf16.mxu0 %v5622
        %6963 = vmatpush1.bf16.msra.mxu0 %v5621
        %6964 = vmatprep.subr.bf16.mxu0 %v5606
        %6965 = vmatpush1.bf16.msra.mxu0 %v5605
        %6966 = vmatprep.subr.bf16.mxu0 %v5590
        %6967 = vmatpush1.bf16.msra.mxu0 %v5589
        %6968 = vmatprep.subr.bf16.mxu0 %v5574
        %6969 = vmatpush1.bf16.msra.mxu0 %v5573
        %6970 = vmatprep.subr.bf16.mxu0 %v5558
        %6971 = vmatpush1.bf16.msra.mxu0 %v5557
        %6972 = vmatprep.subr.bf16.mxu0 %v5542
        %6973 = vmatpush1.bf16.msra.mxu0 %v5541
        %6974 = vmatprep.subr.bf16.mxu0 %v5782
        %6975 = vmatpush2.bf16.msra.mxu0 %v5781
        %6976 = vmatprep.subr.bf16.mxu0 %v5766
        %6977 = vmatpush2.bf16.msra.mxu0 %v5765
        %6978 = vmatprep.subr.bf16.mxu0 %v5750
        %6979 = vmatpush2.bf16.msra.mxu0 %v5749
        %6980 = vmatprep.subr.bf16.mxu0 %v5734
        %6981 = vmatpush2.bf16.msra.mxu0 %v5733
        %6982 = vmatprep.subr.bf16.mxu0 %v5718
        %6983 = vmatpush2.bf16.msra.mxu0 %v5717
        %6984 = vmatprep.subr.bf16.mxu0 %v5702
        %6985 = vmatpush2.bf16.msra.mxu0 %v5701
        %6986 = vmatprep.subr.bf16.mxu0 %v5686
        %6987 = vmatpush2.bf16.msra.mxu0 %v5685
        %6988 = vmatprep.subr.bf16.mxu0 %v5670
        %6989 = vmatpush2.bf16.msra.mxu0 %v5669
        %6990 = vmatprep.mubr.bf16.mxu0 %v3132
        %6991 = vmatmul.mubr.bf16.gmra.mxu0 %v3131
        %v6992 = vpop.f32.mrf.mxu0
        %v6993 = vadd.f32 %v6920, %v6992
        %v6994 = vpop.f32.mrf.mxu0
        %v6995 = vadd.f32 %v6922, %v6994
        %v6996 = vpop.f32.mrf.mxu0
        %v6997 = vadd.f32 %v6924, %v6996
        %v6998 = vpop.f32.mrf.mxu0
        %v6999 = vadd.f32 %v6926, %v6998
        %7000 = vmatprep.mubr.bf16.mxu0 %v3136
        %7001 = vmatmul.mubr.bf16.gmra.mxu0 %v3135
        %v7002 = vpop.f32.mrf.mxu0
        %v7003 = vadd.f32 %v6930, %v7002
        %v7004 = vpop.f32.mrf.mxu0
        %v7005 = vadd.f32 %v6932, %v7004
        %v7006 = vpop.f32.mrf.mxu0
        %v7007 = vadd.f32 %v6934, %v7006
        %v7008 = vpop.f32.mrf.mxu0
        %v7009 = vadd.f32 %v6936, %v7008
        %7010 = vmatprep.mubr.bf16.mxu0 %v3140
        %7011 = vmatmul.mubr.bf16.gmra.mxu0 %v3139
        %v7012 = vpop.f32.mrf.mxu0
        %v7013 = vadd.f32 %v6940, %v7012
        %v7014 = vpop.f32.mrf.mxu0
        %v7015 = vadd.f32 %v6942, %v7014
        %v7016 = vpop.f32.mrf.mxu0
        %v7017 = vadd.f32 %v6944, %v7016
        %v7018 = vpop.f32.mrf.mxu0
        %v7019 = vadd.f32 %v6946, %v7018
        %7020 = vmatprep.mubr.bf16.mxu0 %v3144
        %7021 = vmatmul.mubr.bf16.gmra.mxu0 %v3143
        %v7022 = vpop.f32.mrf.mxu0
        %v7023 = vadd.f32 %v6950, %v7022
        %v7024 = vpop.f32.mrf.mxu0
        %v7025 = vadd.f32 %v6952, %v7024
        %v7026 = vpop.f32.mrf.mxu0
        %v7027 = vadd.f32 %v6954, %v7026
        %v7028 = vpop.f32.mrf.mxu0
        %v7029 = vadd.f32 %v6956, %v7028
        %7030 = vdwg.mxu0
        %7031 = vmatprep.subr.bf16.mxu0 %v5400
        %7032 = vmatpush1.bf16.msra.mxu0 %v5399
        %7033 = vmatprep.subr.bf16.mxu0 %v5384
        %7034 = vmatpush1.bf16.msra.mxu0 %v5383
        %7035 = vmatprep.subr.bf16.mxu0 %v5368
        %7036 = vmatpush1.bf16.msra.mxu0 %v5367
        %7037 = vmatprep.subr.bf16.mxu0 %v5352
        %7038 = vmatpush1.bf16.msra.mxu0 %v5351
        %7039 = vmatprep.subr.bf16.mxu0 %v5336
        %7040 = vmatpush1.bf16.msra.mxu0 %v5335
        %7041 = vmatprep.subr.bf16.mxu0 %v5320
        %7042 = vmatpush1.bf16.msra.mxu0 %v5319
        %7043 = vmatprep.subr.bf16.mxu0 %v5304
        %7044 = vmatpush1.bf16.msra.mxu0 %v5303
        %7045 = vmatprep.subr.bf16.mxu0 %v5288
        %7046 = vmatpush1.bf16.msra.mxu0 %v5287
        %7047 = vmatprep.subr.bf16.mxu0 %v5528
        %7048 = vmatpush2.bf16.msra.mxu0 %v5527
        %7049 = vmatprep.subr.bf16.mxu0 %v5512
        %7050 = vmatpush2.bf16.msra.mxu0 %v5511
        %7051 = vmatprep.subr.bf16.mxu0 %v5496
        %7052 = vmatpush2.bf16.msra.mxu0 %v5495
        %7053 = vmatprep.subr.bf16.mxu0 %v5480
        %7054 = vmatpush2.bf16.msra.mxu0 %v5479
        %7055 = vmatprep.subr.bf16.mxu0 %v5464
        %7056 = vmatpush2.bf16.msra.mxu0 %v5463
        %7057 = vmatprep.subr.bf16.mxu0 %v5448
        %7058 = vmatpush2.bf16.msra.mxu0 %v5447
        %7059 = vmatprep.subr.bf16.mxu0 %v5432
        %7060 = vmatpush2.bf16.msra.mxu0 %v5431
        %7061 = vmatprep.subr.bf16.mxu0 %v5416
        %7062 = vmatpush2.bf16.msra.mxu0 %v5415
        %7063 = vmatprep.mubr.bf16.mxu0 %v3130
        %7064 = vmatmul.mubr.bf16.gmra.mxu0 %v3129
        %v7065 = vpop.f32.mrf.mxu0
        %v7066 = vadd.f32 %v3704, %v7065
        %v7067 = vpop.f32.mrf.mxu0
        %v7068 = vadd.f32 %v3708, %v7067
        %v7069 = vpop.f32.mrf.mxu0
        %v7070 = vadd.f32 %v3704, %v7069
        %v7071 = vpop.f32.mrf.mxu0
        %v7072 = vadd.f32 %v3708, %v7071
        %7073 = vmatprep.mubr.bf16.mxu0 %v3134
        %7074 = vmatmul.mubr.bf16.gmra.mxu0 %v3133
        %v7075 = vpop.f32.mrf.mxu0
        %v7076 = vadd.f32 %v3704, %v7075
        %v7077 = vpop.f32.mrf.mxu0
        %v7078 = vadd.f32 %v3708, %v7077
        %v7079 = vpop.f32.mrf.mxu0
        %v7080 = vadd.f32 %v3704, %v7079
        %v7081 = vpop.f32.mrf.mxu0
        %v7082 = vadd.f32 %v3708, %v7081
        %7083 = vmatprep.mubr.bf16.mxu0 %v3138
        %7084 = vmatmul.mubr.bf16.gmra.mxu0 %v3137
        %v7085 = vpop.f32.mrf.mxu0
        %v7086 = vadd.f32 %v3704, %v7085
        %v7087 = vpop.f32.mrf.mxu0
        %v7088 = vadd.f32 %v3708, %v7087
        %v7089 = vpop.f32.mrf.mxu0
        %v7090 = vadd.f32 %v3704, %v7089
        %v7091 = vpop.f32.mrf.mxu0
        %v7092 = vadd.f32 %v3708, %v7091
        %7093 = vmatprep.mubr.bf16.mxu0 %v3142
        %7094 = vmatmul.mubr.bf16.gmra.mxu0 %v3141
        %v7095 = vpop.f32.mrf.mxu0
        %v7096 = vadd.f32 %v3704, %v7095
        %v7097 = vpop.f32.mrf.mxu0
        %v7098 = vadd.f32 %v3708, %v7097
        %v7099 = vpop.f32.mrf.mxu0
        %v7100 = vadd.f32 %v3704, %v7099
        %v7101 = vpop.f32.mrf.mxu0
        %v7102 = vadd.f32 %v3708, %v7101
        %7103 = vdwg.mxu0
        %7104 = vmatprep.subr.bf16.mxu0 %v5656
        %7105 = vmatpush1.bf16.msra.mxu0 %v5655
        %7106 = vmatprep.subr.bf16.mxu0 %v5640
        %7107 = vmatpush1.bf16.msra.mxu0 %v5639
        %7108 = vmatprep.subr.bf16.mxu0 %v5624
        %7109 = vmatpush1.bf16.msra.mxu0 %v5623
        %7110 = vmatprep.subr.bf16.mxu0 %v5608
        %7111 = vmatpush1.bf16.msra.mxu0 %v5607
        %7112 = vmatprep.subr.bf16.mxu0 %v5592
        %7113 = vmatpush1.bf16.msra.mxu0 %v5591
        %7114 = vmatprep.subr.bf16.mxu0 %v5576
        %7115 = vmatpush1.bf16.msra.mxu0 %v5575
        %7116 = vmatprep.subr.bf16.mxu0 %v5560
        %7117 = vmatpush1.bf16.msra.mxu0 %v5559
        %7118 = vmatprep.subr.bf16.mxu0 %v5544
        %7119 = vmatpush1.bf16.msra.mxu0 %v5543
        %7120 = vmatprep.subr.bf16.mxu0 %v5784
        %7121 = vmatpush2.bf16.msra.mxu0 %v5783
        %7122 = vmatprep.subr.bf16.mxu0 %v5768
        %7123 = vmatpush2.bf16.msra.mxu0 %v5767
        %7124 = vmatprep.subr.bf16.mxu0 %v5752
        %7125 = vmatpush2.bf16.msra.mxu0 %v5751
        %7126 = vmatprep.subr.bf16.mxu0 %v5736
        %7127 = vmatpush2.bf16.msra.mxu0 %v5735
        %7128 = vmatprep.subr.bf16.mxu0 %v5720
        %7129 = vmatpush2.bf16.msra.mxu0 %v5719
        %7130 = vmatprep.subr.bf16.mxu0 %v5704
        %7131 = vmatpush2.bf16.msra.mxu0 %v5703
        %7132 = vmatprep.subr.bf16.mxu0 %v5688
        %7133 = vmatpush2.bf16.msra.mxu0 %v5687
        %7134 = vmatprep.subr.bf16.mxu0 %v5672
        %7135 = vmatpush2.bf16.msra.mxu0 %v5671
        %7136 = vmatprep.mubr.bf16.mxu0 %v3132
        %7137 = vmatmul.mubr.bf16.gmra.mxu0 %v3131
        %v7138 = vpop.f32.mrf.mxu0
        %v7139 = vadd.f32 %v7066, %v7138
        %v7140 = vpop.f32.mrf.mxu0
        %v7141 = vadd.f32 %v7068, %v7140
        %v7142 = vpop.f32.mrf.mxu0
        %v7143 = vadd.f32 %v7070, %v7142
        %v7144 = vpop.f32.mrf.mxu0
        %v7145 = vadd.f32 %v7072, %v7144
        %7146 = vmatprep.mubr.bf16.mxu0 %v3136
        %7147 = vmatmul.mubr.bf16.gmra.mxu0 %v3135
        %v7148 = vpop.f32.mrf.mxu0
        %v7149 = vadd.f32 %v7076, %v7148
        %v7150 = vpop.f32.mrf.mxu0
        %v7151 = vadd.f32 %v7078, %v7150
        %v7152 = vpop.f32.mrf.mxu0
        %v7153 = vadd.f32 %v7080, %v7152
        %v7154 = vpop.f32.mrf.mxu0
        %v7155 = vadd.f32 %v7082, %v7154
        %7156 = vmatprep.mubr.bf16.mxu0 %v3140
        %7157 = vmatmul.mubr.bf16.gmra.mxu0 %v3139
        %v7158 = vpop.f32.mrf.mxu0
        %v7159 = vadd.f32 %v7086, %v7158
        %v7160 = vpop.f32.mrf.mxu0
        %v7161 = vadd.f32 %v7088, %v7160
        %v7162 = vpop.f32.mrf.mxu0
        %v7163 = vadd.f32 %v7090, %v7162
        %v7164 = vpop.f32.mrf.mxu0
        %v7165 = vadd.f32 %v7092, %v7164
        %7166 = vmatprep.mubr.bf16.mxu0 %v3144
        %7167 = vmatmul.mubr.bf16.gmra.mxu0 %v3143
        %v7168 = vpop.f32.mrf.mxu0
        %v7169 = vadd.f32 %v7096, %v7168
        %v7170 = vpop.f32.mrf.mxu0
        %v7171 = vadd.f32 %v7098, %v7170
        %v7172 = vpop.f32.mrf.mxu0
        %v7173 = vadd.f32 %v7100, %v7172
        %v7174 = vpop.f32.mrf.mxu0
        %v7175 = vadd.f32 %v7102, %v7174
        %7176 = vdwg.mxu0
        %7177 = vmatprep.subr.bf16.mxu0 %v5402
        %7178 = vmatpush1.bf16.msra.mxu0 %v5401
        %7179 = vmatprep.subr.bf16.mxu0 %v5386
        %7180 = vmatpush1.bf16.msra.mxu0 %v5385
        %7181 = vmatprep.subr.bf16.mxu0 %v5370
        %7182 = vmatpush1.bf16.msra.mxu0 %v5369
        %7183 = vmatprep.subr.bf16.mxu0 %v5354
        %7184 = vmatpush1.bf16.msra.mxu0 %v5353
        %7185 = vmatprep.subr.bf16.mxu0 %v5338
        %7186 = vmatpush1.bf16.msra.mxu0 %v5337
        %7187 = vmatprep.subr.bf16.mxu0 %v5322
        %7188 = vmatpush1.bf16.msra.mxu0 %v5321
        %7189 = vmatprep.subr.bf16.mxu0 %v5306
        %7190 = vmatpush1.bf16.msra.mxu0 %v5305
        %7191 = vmatprep.subr.bf16.mxu0 %v5290
        %7192 = vmatpush1.bf16.msra.mxu0 %v5289
        %7193 = vmatprep.subr.bf16.mxu0 %v5530
        %7194 = vmatpush2.bf16.msra.mxu0 %v5529
        %7195 = vmatprep.subr.bf16.mxu0 %v5514
        %7196 = vmatpush2.bf16.msra.mxu0 %v5513
        %7197 = vmatprep.subr.bf16.mxu0 %v5498
        %7198 = vmatpush2.bf16.msra.mxu0 %v5497
        %7199 = vmatprep.subr.bf16.mxu0 %v5482
        %7200 = vmatpush2.bf16.msra.mxu0 %v5481
        %7201 = vmatprep.subr.bf16.mxu0 %v5466
        %7202 = vmatpush2.bf16.msra.mxu0 %v5465
        %7203 = vmatprep.subr.bf16.mxu0 %v5450
        %7204 = vmatpush2.bf16.msra.mxu0 %v5449
        %7205 = vmatprep.subr.bf16.mxu0 %v5434
        %7206 = vmatpush2.bf16.msra.mxu0 %v5433
        %7207 = vmatprep.subr.bf16.mxu0 %v5418
        %7208 = vmatpush2.bf16.msra.mxu0 %v5417
        %7209 = vmatprep.mubr.bf16.mxu0 %v3130
        %7210 = vmatmul.mubr.bf16.gmra.mxu0 %v3129
        %v7211 = vpop.f32.mrf.mxu0
        %v7212 = vadd.f32 %v3712, %v7211
        %v7213 = vpop.f32.mrf.mxu0
        %v7214 = vadd.f32 %v3716, %v7213
        %v7215 = vpop.f32.mrf.mxu0
        %v7216 = vadd.f32 %v3712, %v7215
        %v7217 = vpop.f32.mrf.mxu0
        %v7218 = vadd.f32 %v3716, %v7217
        %7219 = vmatprep.mubr.bf16.mxu0 %v3134
        %7220 = vmatmul.mubr.bf16.gmra.mxu0 %v3133
        %v7221 = vpop.f32.mrf.mxu0
        %v7222 = vadd.f32 %v3712, %v7221
        %v7223 = vpop.f32.mrf.mxu0
        %v7224 = vadd.f32 %v3716, %v7223
        %v7225 = vpop.f32.mrf.mxu0
        %v7226 = vadd.f32 %v3712, %v7225
        %v7227 = vpop.f32.mrf.mxu0
        %v7228 = vadd.f32 %v3716, %v7227
        %7229 = vmatprep.mubr.bf16.mxu0 %v3138
        %7230 = vmatmul.mubr.bf16.gmra.mxu0 %v3137
        %v7231 = vpop.f32.mrf.mxu0
        %v7232 = vadd.f32 %v3712, %v7231
        %v7233 = vpop.f32.mrf.mxu0
        %v7234 = vadd.f32 %v3716, %v7233
        %v7235 = vpop.f32.mrf.mxu0
        %v7236 = vadd.f32 %v3712, %v7235
        %v7237 = vpop.f32.mrf.mxu0
        %v7238 = vadd.f32 %v3716, %v7237
        %7239 = vmatprep.mubr.bf16.mxu0 %v3142
        %7240 = vmatmul.mubr.bf16.gmra.mxu0 %v3141
        %v7241 = vpop.f32.mrf.mxu0
        %v7242 = vadd.f32 %v3712, %v7241
        %v7243 = vpop.f32.mrf.mxu0
        %v7244 = vadd.f32 %v3716, %v7243
        %v7245 = vpop.f32.mrf.mxu0
        %v7246 = vadd.f32 %v3712, %v7245
        %v7247 = vpop.f32.mrf.mxu0
        %v7248 = vadd.f32 %v3716, %v7247
        %7249 = vdwg.mxu0
        %7250 = vmatprep.subr.bf16.mxu0 %v5658
        %7251 = vmatpush1.bf16.msra.mxu0 %v5657
        %7252 = vmatprep.subr.bf16.mxu0 %v5642
        %7253 = vmatpush1.bf16.msra.mxu0 %v5641
        %7254 = vmatprep.subr.bf16.mxu0 %v5626
        %7255 = vmatpush1.bf16.msra.mxu0 %v5625
        %7256 = vmatprep.subr.bf16.mxu0 %v5610
        %7257 = vmatpush1.bf16.msra.mxu0 %v5609
        %7258 = vmatprep.subr.bf16.mxu0 %v5594
        %7259 = vmatpush1.bf16.msra.mxu0 %v5593
        %7260 = vmatprep.subr.bf16.mxu0 %v5578
        %7261 = vmatpush1.bf16.msra.mxu0 %v5577
        %7262 = vmatprep.subr.bf16.mxu0 %v5562
        %7263 = vmatpush1.bf16.msra.mxu0 %v5561
        %7264 = vmatprep.subr.bf16.mxu0 %v5546
        %7265 = vmatpush1.bf16.msra.mxu0 %v5545
        %7266 = vmatprep.subr.bf16.mxu0 %v5786
        %7267 = vmatpush2.bf16.msra.mxu0 %v5785
        %7268 = vmatprep.subr.bf16.mxu0 %v5770
        %7269 = vmatpush2.bf16.msra.mxu0 %v5769
        %7270 = vmatprep.subr.bf16.mxu0 %v5754
        %7271 = vmatpush2.bf16.msra.mxu0 %v5753
        %7272 = vmatprep.subr.bf16.mxu0 %v5738
        %7273 = vmatpush2.bf16.msra.mxu0 %v5737
        %7274 = vmatprep.subr.bf16.mxu0 %v5722
        %7275 = vmatpush2.bf16.msra.mxu0 %v5721
        %7276 = vmatprep.subr.bf16.mxu0 %v5706
        %7277 = vmatpush2.bf16.msra.mxu0 %v5705
        %7278 = vmatprep.subr.bf16.mxu0 %v5690
        %7279 = vmatpush2.bf16.msra.mxu0 %v5689
        %7280 = vmatprep.subr.bf16.mxu0 %v5674
        %7281 = vmatpush2.bf16.msra.mxu0 %v5673
        %7282 = vmatprep.mubr.bf16.mxu0 %v3132
        %7283 = vmatmul.mubr.bf16.gmra.mxu0 %v3131
        %v7284 = vpop.f32.mrf.mxu0
        %v7285 = vadd.f32 %v7212, %v7284
        %v7286 = vpop.f32.mrf.mxu0
        %v7287 = vadd.f32 %v7214, %v7286
        %v7288 = vpop.f32.mrf.mxu0
        %v7289 = vadd.f32 %v7216, %v7288
        %v7290 = vpop.f32.mrf.mxu0
        %v7291 = vadd.f32 %v7218, %v7290
        %7292 = vmatprep.mubr.bf16.mxu0 %v3136
        %7293 = vmatmul.mubr.bf16.gmra.mxu0 %v3135
        %v7294 = vpop.f32.mrf.mxu0
        %v7295 = vadd.f32 %v7222, %v7294
        %v7296 = vpop.f32.mrf.mxu0
        %v7297 = vadd.f32 %v7224, %v7296
        %v7298 = vpop.f32.mrf.mxu0
        %v7299 = vadd.f32 %v7226, %v7298
        %v7300 = vpop.f32.mrf.mxu0
        %v7301 = vadd.f32 %v7228, %v7300
        %7302 = vmatprep.mubr.bf16.mxu0 %v3140
        %7303 = vmatmul.mubr.bf16.gmra.mxu0 %v3139
        %v7304 = vpop.f32.mrf.mxu0
        %v7305 = vadd.f32 %v7232, %v7304
        %v7306 = vpop.f32.mrf.mxu0
        %v7307 = vadd.f32 %v7234, %v7306
        %v7308 = vpop.f32.mrf.mxu0
        %v7309 = vadd.f32 %v7236, %v7308
        %v7310 = vpop.f32.mrf.mxu0
        %v7311 = vadd.f32 %v7238, %v7310
        %7312 = vmatprep.mubr.bf16.mxu0 %v3144
        %7313 = vmatmul.mubr.bf16.gmra.mxu0 %v3143
        %v7314 = vpop.f32.mrf.mxu0
        %v7315 = vadd.f32 %v7242, %v7314
        %v7316 = vpop.f32.mrf.mxu0
        %v7317 = vadd.f32 %v7244, %v7316
        %v7318 = vpop.f32.mrf.mxu0
        %v7319 = vadd.f32 %v7246, %v7318
        %v7320 = vpop.f32.mrf.mxu0
        %v7321 = vadd.f32 %v7248, %v7320
        %7322 = vdwg.mxu0
        %7323 = vmatprep.subr.bf16.mxu0 %v5404
        %7324 = vmatpush1.bf16.msra.mxu0 %v5403
        %7325 = vmatprep.subr.bf16.mxu0 %v5388
        %7326 = vmatpush1.bf16.msra.mxu0 %v5387
        %7327 = vmatprep.subr.bf16.mxu0 %v5372
        %7328 = vmatpush1.bf16.msra.mxu0 %v5371
        %7329 = vmatprep.subr.bf16.mxu0 %v5356
        %7330 = vmatpush1.bf16.msra.mxu0 %v5355
        %7331 = vmatprep.subr.bf16.mxu0 %v5340
        %7332 = vmatpush1.bf16.msra.mxu0 %v5339
        %7333 = vmatprep.subr.bf16.mxu0 %v5324
        %7334 = vmatpush1.bf16.msra.mxu0 %v5323
        %7335 = vmatprep.subr.bf16.mxu0 %v5308
        %7336 = vmatpush1.bf16.msra.mxu0 %v5307
        %7337 = vmatprep.subr.bf16.mxu0 %v5292
        %7338 = vmatpush1.bf16.msra.mxu0 %v5291
        %7339 = vmatprep.subr.bf16.mxu0 %v5532
        %7340 = vmatpush2.bf16.msra.mxu0 %v5531
        %7341 = vmatprep.subr.bf16.mxu0 %v5516
        %7342 = vmatpush2.bf16.msra.mxu0 %v5515
        %7343 = vmatprep.subr.bf16.mxu0 %v5500
        %7344 = vmatpush2.bf16.msra.mxu0 %v5499
        %7345 = vmatprep.subr.bf16.mxu0 %v5484
        %7346 = vmatpush2.bf16.msra.mxu0 %v5483
        %7347 = vmatprep.subr.bf16.mxu0 %v5468
        %7348 = vmatpush2.bf16.msra.mxu0 %v5467
        %7349 = vmatprep.subr.bf16.mxu0 %v5452
        %7350 = vmatpush2.bf16.msra.mxu0 %v5451
        %7351 = vmatprep.subr.bf16.mxu0 %v5436
        %7352 = vmatpush2.bf16.msra.mxu0 %v5435
        %7353 = vmatprep.subr.bf16.mxu0 %v5420
        %7354 = vmatpush2.bf16.msra.mxu0 %v5419
        %7355 = vmatprep.mubr.bf16.mxu0 %v3130
        %7356 = vmatmul.mubr.bf16.gmra.mxu0 %v3129
        %v7357 = vpop.f32.mrf.mxu0
        %v7358 = vadd.f32 %v3720, %v7357
        %v7359 = vpop.f32.mrf.mxu0
        %v7360 = vadd.f32 %v3724, %v7359
        %v7361 = vpop.f32.mrf.mxu0
        %v7362 = vadd.f32 %v3720, %v7361
        %v7363 = vpop.f32.mrf.mxu0
        %v7364 = vadd.f32 %v3724, %v7363
        %7365 = vmatprep.mubr.bf16.mxu0 %v3134
        %7366 = vmatmul.mubr.bf16.gmra.mxu0 %v3133
        %v7367 = vpop.f32.mrf.mxu0
        %v7368 = vadd.f32 %v3720, %v7367
        %v7369 = vpop.f32.mrf.mxu0
        %v7370 = vadd.f32 %v3724, %v7369
        %v7371 = vpop.f32.mrf.mxu0
        %v7372 = vadd.f32 %v3720, %v7371
        %v7373 = vpop.f32.mrf.mxu0
        %v7374 = vadd.f32 %v3724, %v7373
        %7375 = vmatprep.mubr.bf16.mxu0 %v3138
        %7376 = vmatmul.mubr.bf16.gmra.mxu0 %v3137
        %v7377 = vpop.f32.mrf.mxu0
        %v7378 = vadd.f32 %v3720, %v7377
        %v7379 = vpop.f32.mrf.mxu0
        %v7380 = vadd.f32 %v3724, %v7379
        %v7381 = vpop.f32.mrf.mxu0
        %v7382 = vadd.f32 %v3720, %v7381
        %v7383 = vpop.f32.mrf.mxu0
        %v7384 = vadd.f32 %v3724, %v7383
        %7385 = vmatprep.mubr.bf16.mxu0 %v3142
        %7386 = vmatmul.mubr.bf16.gmra.mxu0 %v3141
        %v7387 = vpop.f32.mrf.mxu0
        %v7388 = vadd.f32 %v3720, %v7387
        %v7389 = vpop.f32.mrf.mxu0
        %v7390 = vadd.f32 %v3724, %v7389
        %v7391 = vpop.f32.mrf.mxu0
        %v7392 = vadd.f32 %v3720, %v7391
        %v7393 = vpop.f32.mrf.mxu0
        %v7394 = vadd.f32 %v3724, %v7393
        %7395 = vdwg.mxu0
        %7396 = vmatprep.subr.bf16.mxu0 %v5660
        %7397 = vmatpush1.bf16.msra.mxu0 %v5659
        %7398 = vmatprep.subr.bf16.mxu0 %v5644
        %7399 = vmatpush1.bf16.msra.mxu0 %v5643
        %7400 = vmatprep.subr.bf16.mxu0 %v5628
        %7401 = vmatpush1.bf16.msra.mxu0 %v5627
        %7402 = vmatprep.subr.bf16.mxu0 %v5612
        %7403 = vmatpush1.bf16.msra.mxu0 %v5611
        %7404 = vmatprep.subr.bf16.mxu0 %v5596
        %7405 = vmatpush1.bf16.msra.mxu0 %v5595
        %7406 = vmatprep.subr.bf16.mxu0 %v5580
        %7407 = vmatpush1.bf16.msra.mxu0 %v5579
        %7408 = vmatprep.subr.bf16.mxu0 %v5564
        %7409 = vmatpush1.bf16.msra.mxu0 %v5563
        %7410 = vmatprep.subr.bf16.mxu0 %v5548
        %7411 = vmatpush1.bf16.msra.mxu0 %v5547
        %7412 = vmatprep.subr.bf16.mxu0 %v5788
        %7413 = vmatpush2.bf16.msra.mxu0 %v5787
        %7414 = vmatprep.subr.bf16.mxu0 %v5772
        %7415 = vmatpush2.bf16.msra.mxu0 %v5771
        %7416 = vmatprep.subr.bf16.mxu0 %v5756
        %7417 = vmatpush2.bf16.msra.mxu0 %v5755
        %7418 = vmatprep.subr.bf16.mxu0 %v5740
        %7419 = vmatpush2.bf16.msra.mxu0 %v5739
        %7420 = vmatprep.subr.bf16.mxu0 %v5724
        %7421 = vmatpush2.bf16.msra.mxu0 %v5723
        %7422 = vmatprep.subr.bf16.mxu0 %v5708
        %7423 = vmatpush2.bf16.msra.mxu0 %v5707
        %7424 = vmatprep.subr.bf16.mxu0 %v5692
        %7425 = vmatpush2.bf16.msra.mxu0 %v5691
        %7426 = vmatprep.subr.bf16.mxu0 %v5676
        %7427 = vmatpush2.bf16.msra.mxu0 %v5675
        %7428 = vmatprep.mubr.bf16.mxu0 %v3132
        %7429 = vmatmul.mubr.bf16.gmra.mxu0 %v3131
        %v7430 = vpop.f32.mrf.mxu0
        %v7431 = vadd.f32 %v7358, %v7430
        %v7432 = vpop.f32.mrf.mxu0
        %v7433 = vadd.f32 %v7360, %v7432
        %v7434 = vpop.f32.mrf.mxu0
        %v7435 = vadd.f32 %v7362, %v7434
        %v7436 = vpop.f32.mrf.mxu0
        %v7437 = vadd.f32 %v7364, %v7436
        %7438 = vmatprep.mubr.bf16.mxu0 %v3136
        %7439 = vmatmul.mubr.bf16.gmra.mxu0 %v3135
        %v7440 = vpop.f32.mrf.mxu0
        %v7441 = vadd.f32 %v7368, %v7440
        %v7442 = vpop.f32.mrf.mxu0
        %v7443 = vadd.f32 %v7370, %v7442
        %v7444 = vpop.f32.mrf.mxu0
        %v7445 = vadd.f32 %v7372, %v7444
        %v7446 = vpop.f32.mrf.mxu0
        %v7447 = vadd.f32 %v7374, %v7446
        %7448 = vmatprep.mubr.bf16.mxu0 %v3140
        %7449 = vmatmul.mubr.bf16.gmra.mxu0 %v3139
        %v7450 = vpop.f32.mrf.mxu0
        %v7451 = vadd.f32 %v7378, %v7450
        %v7452 = vpop.f32.mrf.mxu0
        %v7453 = vadd.f32 %v7380, %v7452
        %v7454 = vpop.f32.mrf.mxu0
        %v7455 = vadd.f32 %v7382, %v7454
        %v7456 = vpop.f32.mrf.mxu0
        %v7457 = vadd.f32 %v7384, %v7456
        %7458 = vmatprep.mubr.bf16.mxu0 %v3144
        %7459 = vmatmul.mubr.bf16.gmra.mxu0 %v3143
        %v7460 = vpop.f32.mrf.mxu0
        %v7461 = vadd.f32 %v7388, %v7460
        %v7462 = vpop.f32.mrf.mxu0
        %v7463 = vadd.f32 %v7390, %v7462
        %v7464 = vpop.f32.mrf.mxu0
        %v7465 = vadd.f32 %v7392, %v7464
        %v7466 = vpop.f32.mrf.mxu0
        %v7467 = vadd.f32 %v7394, %v7466
        %7468 = vdwg.mxu0
        %v7469 = vsub.f32 0.0, %v6409
        %v7470 = vsub.f32 0.0, %v6411
        %v7471 = vsub.f32 0.0, %v6555
        %v7472 = vsub.f32 0.0, %v6557
        %v7473 = vsub.f32 0.0, %v6701
        %v7474 = vsub.f32 0.0, %v6703
        %v7475 = vsub.f32 0.0, %v6847
        %v7476 = vsub.f32 0.0, %v6849
        %v7477 = vsub.f32 0.0, %v6993
        %v7478 = vsub.f32 0.0, %v6995
        %v7479 = vsub.f32 0.0, %v7139
        %v7480 = vsub.f32 0.0, %v7141
        %v7481 = vsub.f32 0.0, %v7285
        %v7482 = vsub.f32 0.0, %v7287
        %v7483 = vsub.f32 0.0, %v7431
        %v7484 = vsub.f32 0.0, %v7433
        %v7485 = vsub.f32 0.0, %v6413
        %v7486 = vsub.f32 0.0, %v6415
        %v7487 = vsub.f32 0.0, %v6559
        %v7488 = vsub.f32 0.0, %v6561
        %v7489 = vsub.f32 0.0, %v6705
        %v7490 = vsub.f32 0.0, %v6707
        %v7491 = vsub.f32 0.0, %v6851
        %v7492 = vsub.f32 0.0, %v6853
        %v7493 = vsub.f32 0.0, %v6997
        %v7494 = vsub.f32 0.0, %v6999
        %v7495 = vsub.f32 0.0, %v7143
        %v7496 = vsub.f32 0.0, %v7145
        %v7497 = vsub.f32 0.0, %v7289
        %v7498 = vsub.f32 0.0, %v7291
        %v7499 = vsub.f32 0.0, %v7435
        %v7500 = vsub.f32 0.0, %v7437
        %v7501 = vsub.f32 0.0, %v6419
        %v7502 = vsub.f32 0.0, %v6421
        %v7503 = vsub.f32 0.0, %v6565
        %v7504 = vsub.f32 0.0, %v6567
        %v7505 = vsub.f32 0.0, %v6711
        %v7506 = vsub.f32 0.0, %v6713
        %v7507 = vsub.f32 0.0, %v6857
        %v7508 = vsub.f32 0.0, %v6859
        %v7509 = vsub.f32 0.0, %v7003
        %v7510 = vsub.f32 0.0, %v7005
        %v7511 = vsub.f32 0.0, %v7149
        %v7512 = vsub.f32 0.0, %v7151
        %v7513 = vsub.f32 0.0, %v7295
        %v7514 = vsub.f32 0.0, %v7297
        %v7515 = vsub.f32 0.0, %v7441
        %v7516 = vsub.f32 0.0, %v7443
        %v7517 = vsub.f32 0.0, %v6423
        %v7518 = vsub.f32 0.0, %v6425
        %v7519 = vsub.f32 0.0, %v6569
        %v7520 = vsub.f32 0.0, %v6571
        %v7521 = vsub.f32 0.0, %v6715
        %v7522 = vsub.f32 0.0, %v6717
        %v7523 = vsub.f32 0.0, %v6861
        %v7524 = vsub.f32 0.0, %v6863
        %v7525 = vsub.f32 0.0, %v7007
        %v7526 = vsub.f32 0.0, %v7009
        %v7527 = vsub.f32 0.0, %v7153
        %v7528 = vsub.f32 0.0, %v7155
        %v7529 = vsub.f32 0.0, %v7299
        %v7530 = vsub.f32 0.0, %v7301
        %v7531 = vsub.f32 0.0, %v7445
        %v7532 = vsub.f32 0.0, %v7447
        %v7533 = vsub.f32 0.0, %v6429
        %v7534 = vsub.f32 0.0, %v6431
        %v7535 = vsub.f32 0.0, %v6575
        %v7536 = vsub.f32 0.0, %v6577
        %v7537 = vsub.f32 0.0, %v6721
        %v7538 = vsub.f32 0.0, %v6723
        %v7539 = vsub.f32 0.0, %v6867
        %v7540 = vsub.f32 0.0, %v6869
        %v7541 = vsub.f32 0.0, %v7013
        %v7542 = vsub.f32 0.0, %v7015
        %v7543 = vsub.f32 0.0, %v7159
        %v7544 = vsub.f32 0.0, %v7161
        %v7545 = vsub.f32 0.0, %v7305
        %v7546 = vsub.f32 0.0, %v7307
        %v7547 = vsub.f32 0.0, %v7451
        %v7548 = vsub.f32 0.0, %v7453
        %v7549 = vsub.f32 0.0, %v6433
        %v7550 = vsub.f32 0.0, %v6435
        %v7551 = vsub.f32 0.0, %v6579
        %v7552 = vsub.f32 0.0, %v6581
        %v7553 = vsub.f32 0.0, %v6725
        %v7554 = vsub.f32 0.0, %v6727
        %v7555 = vsub.f32 0.0, %v6871
        %v7556 = vsub.f32 0.0, %v6873
        %v7557 = vsub.f32 0.0, %v7017
        %v7558 = vsub.f32 0.0, %v7019
        %v7559 = vsub.f32 0.0, %v7163
        %v7560 = vsub.f32 0.0, %v7165
        %v7561 = vsub.f32 0.0, %v7309
        %v7562 = vsub.f32 0.0, %v7311
        %v7563 = vsub.f32 0.0, %v7455
        %v7564 = vsub.f32 0.0, %v7457
        %v7565 = vsub.f32 0.0, %v6439
        %v7566 = vsub.f32 0.0, %v6441
        %v7567 = vsub.f32 0.0, %v6585
        %v7568 = vsub.f32 0.0, %v6587
        %v7569 = vsub.f32 0.0, %v6731
        %v7570 = vsub.f32 0.0, %v6733
        %v7571 = vsub.f32 0.0, %v6877
        %v7572 = vsub.f32 0.0, %v6879
        %v7573 = vsub.f32 0.0, %v7023
        %v7574 = vsub.f32 0.0, %v7025
        %v7575 = vsub.f32 0.0, %v7169
        %v7576 = vsub.f32 0.0, %v7171
        %v7577 = vsub.f32 0.0, %v7315
        %v7578 = vsub.f32 0.0, %v7317
        %v7579 = vsub.f32 0.0, %v7461
        %v7580 = vsub.f32 0.0, %v7463
        %v7581 = vsub.f32 0.0, %v6443
        %v7582 = vsub.f32 0.0, %v6445
        %v7583 = vsub.f32 0.0, %v6589
        %v7584 = vsub.f32 0.0, %v6591
        %v7585 = vsub.f32 0.0, %v6735
        %v7586 = vsub.f32 0.0, %v6737
        %v7587 = vsub.f32 0.0, %v6881
        %v7588 = vsub.f32 0.0, %v6883
        %v7589 = vsub.f32 0.0, %v7027
        %v7590 = vsub.f32 0.0, %v7029
        %v7591 = vsub.f32 0.0, %v7173
        %v7592 = vsub.f32 0.0, %v7175
        %v7593 = vsub.f32 0.0, %v7319
        %v7594 = vsub.f32 0.0, %v7321
        %v7595 = vsub.f32 0.0, %v7465
        %v7596 = vsub.f32 0.0, %v7467
        %v7597 = vmul.f32 %v7469, 1.442695
        %v7598 = vpow.pop %v7597
        %v7599 = vmul.f32 %v7470, 1.442695
        %v7600 = vpow.pop %v7599
        %v7601 = vmul.f32 %v7471, 1.442695
        %v7602 = vpow.pop %v7601
        %v7603 = vmul.f32 %v7472, 1.442695
        %v7604 = vpow.pop %v7603
        %v7605 = vmul.f32 %v7473, 1.442695
        %v7606 = vpow.pop %v7605
        %v7607 = vmul.f32 %v7474, 1.442695
        %v7608 = vpow.pop %v7607
        %v7609 = vmul.f32 %v7475, 1.442695
        %v7610 = vpow.pop %v7609
        %v7611 = vmul.f32 %v7476, 1.442695
        %v7612 = vpow.pop %v7611
        %v7613 = vmul.f32 %v7477, 1.442695
        %v7614 = vpow.pop %v7613
        %v7615 = vmul.f32 %v7478, 1.442695
        %v7616 = vpow.pop %v7615
        %v7617 = vmul.f32 %v7479, 1.442695
        %v7618 = vpow.pop %v7617
        %v7619 = vmul.f32 %v7480, 1.442695
        %v7620 = vpow.pop %v7619
        %v7621 = vmul.f32 %v7481, 1.442695
        %v7622 = vpow.pop %v7621
        %v7623 = vmul.f32 %v7482, 1.442695
        %v7624 = vpow.pop %v7623
        %v7625 = vmul.f32 %v7483, 1.442695
        %v7626 = vpow.pop %v7625
        %v7627 = vmul.f32 %v7484, 1.442695
        %v7628 = vpow.pop %v7627
        %v7629 = vmul.f32 %v7485, 1.442695
        %v7630 = vpow.pop %v7629
        %v7631 = vmul.f32 %v7486, 1.442695
        %v7632 = vpow.pop %v7631
        %v7633 = vmul.f32 %v7487, 1.442695
        %v7634 = vpow.pop %v7633
        %v7635 = vmul.f32 %v7488, 1.442695
        %v7636 = vpow.pop %v7635
        %v7637 = vmul.f32 %v7489, 1.442695
        %v7638 = vpow.pop %v7637
        %v7639 = vmul.f32 %v7490, 1.442695
        %v7640 = vpow.pop %v7639
        %v7641 = vmul.f32 %v7491, 1.442695
        %v7642 = vpow.pop %v7641
        %v7643 = vmul.f32 %v7492, 1.442695
        %v7644 = vpow.pop %v7643
        %v7645 = vmul.f32 %v7493, 1.442695
        %v7646 = vpow.pop %v7645
        %v7647 = vmul.f32 %v7494, 1.442695
        %v7648 = vpow.pop %v7647
        %v7649 = vmul.f32 %v7495, 1.442695
        %v7650 = vpow.pop %v7649
        %v7651 = vmul.f32 %v7496, 1.442695
        %v7652 = vpow.pop %v7651
        %v7653 = vmul.f32 %v7497, 1.442695
        %v7654 = vpow.pop %v7653
        %v7655 = vmul.f32 %v7498, 1.442695
        %v7656 = vpow.pop %v7655
        %v7657 = vmul.f32 %v7499, 1.442695
        %v7658 = vpow.pop %v7657
        %v7659 = vmul.f32 %v7500, 1.442695
        %v7660 = vpow.pop %v7659
        %v7661 = vmul.f32 %v7501, 1.442695
        %v7662 = vpow.pop %v7661
        %v7663 = vmul.f32 %v7502, 1.442695
        %v7664 = vpow.pop %v7663
        %v7665 = vmul.f32 %v7503, 1.442695
        %v7666 = vpow.pop %v7665
        %v7667 = vmul.f32 %v7504, 1.442695
        %v7668 = vpow.pop %v7667
        %v7669 = vmul.f32 %v7505, 1.442695
        %v7670 = vpow.pop %v7669
        %v7671 = vmul.f32 %v7506, 1.442695
        %v7672 = vpow.pop %v7671
        %v7673 = vmul.f32 %v7507, 1.442695
        %v7674 = vpow.pop %v7673
        %v7675 = vmul.f32 %v7508, 1.442695
        %v7676 = vpow.pop %v7675
        %v7677 = vmul.f32 %v7509, 1.442695
        %v7678 = vpow.pop %v7677
        %v7679 = vmul.f32 %v7510, 1.442695
        %v7680 = vpow.pop %v7679
        %v7681 = vmul.f32 %v7511, 1.442695
        %v7682 = vpow.pop %v7681
        %v7683 = vmul.f32 %v7512, 1.442695
        %v7684 = vpow.pop %v7683
        %v7685 = vmul.f32 %v7513, 1.442695
        %v7686 = vpow.pop %v7685
        %v7687 = vmul.f32 %v7514, 1.442695
        %v7688 = vpow.pop %v7687
        %v7689 = vmul.f32 %v7515, 1.442695
        %v7690 = vpow.pop %v7689
        %v7691 = vmul.f32 %v7516, 1.442695
        %v7692 = vpow.pop %v7691
        %v7693 = vmul.f32 %v7517, 1.442695
        %v7694 = vpow.pop %v7693
        %v7695 = vmul.f32 %v7518, 1.442695
        %v7696 = vpow.pop %v7695
        %v7697 = vmul.f32 %v7519, 1.442695
        %v7698 = vpow.pop %v7697
        %v7699 = vmul.f32 %v7520, 1.442695
        %v7700 = vpow.pop %v7699
        %v7701 = vmul.f32 %v7521, 1.442695
        %v7702 = vpow.pop %v7701
        %v7703 = vmul.f32 %v7522, 1.442695
        %v7704 = vpow.pop %v7703
        %v7705 = vmul.f32 %v7523, 1.442695
        %v7706 = vpow.pop %v7705
        %v7707 = vmul.f32 %v7524, 1.442695
        %v7708 = vpow.pop %v7707
        %v7709 = vmul.f32 %v7525, 1.442695
        %v7710 = vpow.pop %v7709
        %v7711 = vmul.f32 %v7526, 1.442695
        %v7712 = vpow.pop %v7711
        %v7713 = vmul.f32 %v7527, 1.442695
        %v7714 = vpow.pop %v7713
        %v7715 = vmul.f32 %v7528, 1.442695
        %v7716 = vpow.pop %v7715
        %v7717 = vmul.f32 %v7529, 1.442695
        %v7718 = vpow.pop %v7717
        %v7719 = vmul.f32 %v7530, 1.442695
        %v7720 = vpow.pop %v7719
        %v7721 = vmul.f32 %v7531, 1.442695
        %v7722 = vpow.pop %v7721
        %v7723 = vmul.f32 %v7532, 1.442695
        %v7724 = vpow.pop %v7723
        %v7725 = vmul.f32 %v7533, 1.442695
        %v7726 = vpow.pop %v7725
        %v7727 = vmul.f32 %v7534, 1.442695
        %v7728 = vpow.pop %v7727
        %v7729 = vmul.f32 %v7535, 1.442695
        %v7730 = vpow.pop %v7729
        %v7731 = vmul.f32 %v7536, 1.442695
        %v7732 = vpow.pop %v7731
        %v7733 = vmul.f32 %v7537, 1.442695
        %v7734 = vpow.pop %v7733
        %v7735 = vmul.f32 %v7538, 1.442695
        %v7736 = vpow.pop %v7735
        %v7737 = vmul.f32 %v7539, 1.442695
        %v7738 = vpow.pop %v7737
        %v7739 = vmul.f32 %v7540, 1.442695
        %v7740 = vpow.pop %v7739
        %v7741 = vmul.f32 %v7541, 1.442695
        %v7742 = vpow.pop %v7741
        %v7743 = vmul.f32 %v7542, 1.442695
        %v7744 = vpow.pop %v7743
        %v7745 = vmul.f32 %v7543, 1.442695
        %v7746 = vpow.pop %v7745
        %v7747 = vmul.f32 %v7544, 1.442695
        %v7748 = vpow.pop %v7747
        %v7749 = vmul.f32 %v7545, 1.442695
        %v7750 = vpow.pop %v7749
        %v7751 = vmul.f32 %v7546, 1.442695
        %v7752 = vpow.pop %v7751
        %v7753 = vmul.f32 %v7547, 1.442695
        %v7754 = vpow.pop %v7753
        %v7755 = vmul.f32 %v7548, 1.442695
        %v7756 = vpow.pop %v7755
        %v7757 = vmul.f32 %v7549, 1.442695
        %v7758 = vpow.pop %v7757
        %v7759 = vmul.f32 %v7550, 1.442695
        %v7760 = vpow.pop %v7759
        %v7761 = vmul.f32 %v7551, 1.442695
        %v7762 = vpow.pop %v7761
        %v7763 = vmul.f32 %v7552, 1.442695
        %v7764 = vpow.pop %v7763
        %v7765 = vmul.f32 %v7553, 1.442695
        %v7766 = vpow.pop %v7765
        %v7767 = vmul.f32 %v7554, 1.442695
        %v7768 = vpow.pop %v7767
        %v7769 = vmul.f32 %v7555, 1.442695
        %v7770 = vpow.pop %v7769
        %v7771 = vmul.f32 %v7556, 1.442695
        %v7772 = vpow.pop %v7771
        %v7773 = vmul.f32 %v7557, 1.442695
        %v7774 = vpow.pop %v7773
        %v7775 = vmul.f32 %v7558, 1.442695
        %v7776 = vpow.pop %v7775
        %v7777 = vmul.f32 %v7559, 1.442695
        %v7778 = vpow.pop %v7777
        %v7779 = vmul.f32 %v7560, 1.442695
        %v7780 = vpow.pop %v7779
        %v7781 = vmul.f32 %v7561, 1.442695
        %v7782 = vpow.pop %v7781
        %v7783 = vmul.f32 %v7562, 1.442695
        %v7784 = vpow.pop %v7783
        %v7785 = vmul.f32 %v7563, 1.442695
        %v7786 = vpow.pop %v7785
        %v7787 = vmul.f32 %v7564, 1.442695
        %v7788 = vpow.pop %v7787
        %v7789 = vmul.f32 %v7565, 1.442695
        %v7790 = vpow.pop %v7789
        %v7791 = vmul.f32 %v7566, 1.442695
        %v7792 = vpow.pop %v7791
        %v7793 = vmul.f32 %v7567, 1.442695
        %v7794 = vpow.pop %v7793
        %v7795 = vmul.f32 %v7568, 1.442695
        %v7796 = vpow.pop %v7795
        %v7797 = vmul.f32 %v7569, 1.442695
        %v7798 = vpow.pop %v7797
        %v7799 = vmul.f32 %v7570, 1.442695
        %v7800 = vpow.pop %v7799
        %v7801 = vmul.f32 %v7571, 1.442695
        %v7802 = vpow.pop %v7801
        %v7803 = vmul.f32 %v7572, 1.442695
        %v7804 = vpow.pop %v7803
        %v7805 = vmul.f32 %v7573, 1.442695
        %v7806 = vpow.pop %v7805
        %v7807 = vmul.f32 %v7574, 1.442695
        %v7808 = vpow.pop %v7807
        %v7809 = vmul.f32 %v7575, 1.442695
        %v7810 = vpow.pop %v7809
        %v7811 = vmul.f32 %v7576, 1.442695
        %v7812 = vpow.pop %v7811
        %v7813 = vmul.f32 %v7577, 1.442695
        %v7814 = vpow.pop %v7813
        %v7815 = vmul.f32 %v7578, 1.442695
        %v7816 = vpow.pop %v7815
        %v7817 = vmul.f32 %v7579, 1.442695
        %v7818 = vpow.pop %v7817
        %v7819 = vmul.f32 %v7580, 1.442695
        %v7820 = vpow.pop %v7819
        %v7821 = vmul.f32 %v7581, 1.442695
        %v7822 = vpow.pop %v7821
        %v7823 = vmul.f32 %v7582, 1.442695
        %v7824 = vpow.pop %v7823
        %v7825 = vmul.f32 %v7583, 1.442695
        %v7826 = vpow.pop %v7825
        %v7827 = vmul.f32 %v7584, 1.442695
        %v7828 = vpow.pop %v7827
        %v7829 = vmul.f32 %v7585, 1.442695
        %v7830 = vpow.pop %v7829
        %v7831 = vmul.f32 %v7586, 1.442695
        %v7832 = vpow.pop %v7831
        %v7833 = vmul.f32 %v7587, 1.442695
        %v7834 = vpow.pop %v7833
        %v7835 = vmul.f32 %v7588, 1.442695
        %v7836 = vpow.pop %v7835
        %v7837 = vmul.f32 %v7589, 1.442695
        %v7838 = vpow.pop %v7837
        %v7839 = vmul.f32 %v7590, 1.442695
        %v7840 = vpow.pop %v7839
        %v7841 = vmul.f32 %v7591, 1.442695
        %v7842 = vpow.pop %v7841
        %v7843 = vmul.f32 %v7592, 1.442695
        %v7844 = vpow.pop %v7843
        %v7845 = vmul.f32 %v7593, 1.442695
        %v7846 = vpow.pop %v7845
        %v7847 = vmul.f32 %v7594, 1.442695
        %v7848 = vpow.pop %v7847
        %v7849 = vmul.f32 %v7595, 1.442695
        %v7850 = vpow.pop %v7849
        %v7851 = vmul.f32 %v7596, 1.442695
        %v7852 = vpow.pop %v7851
        %v7853 = vadd.f32 %v7598, 1.0
        %v7854 = vadd.f32 %v7600, 1.0
        %v7855 = vadd.f32 %v7602, 1.0
        %v7856 = vadd.f32 %v7604, 1.0
        %v7857 = vadd.f32 %v7606, 1.0
        %v7858 = vadd.f32 %v7608, 1.0
        %v7859 = vadd.f32 %v7610, 1.0
        %v7860 = vadd.f32 %v7612, 1.0
        %v7861 = vadd.f32 %v7614, 1.0
        %v7862 = vadd.f32 %v7616, 1.0
        %v7863 = vadd.f32 %v7618, 1.0
        %v7864 = vadd.f32 %v7620, 1.0
        %v7865 = vadd.f32 %v7622, 1.0
        %v7866 = vadd.f32 %v7624, 1.0
        %v7867 = vadd.f32 %v7626, 1.0
        %v7868 = vadd.f32 %v7628, 1.0
        %v7869 = vadd.f32 %v7630, 1.0
        %v7870 = vadd.f32 %v7632, 1.0
        %v7871 = vadd.f32 %v7634, 1.0
        %v7872 = vadd.f32 %v7636, 1.0
        %v7873 = vadd.f32 %v7638, 1.0
        %v7874 = vadd.f32 %v7640, 1.0
        %v7875 = vadd.f32 %v7642, 1.0
        %v7876 = vadd.f32 %v7644, 1.0
        %v7877 = vadd.f32 %v7646, 1.0
        %v7878 = vadd.f32 %v7648, 1.0
        %v7879 = vadd.f32 %v7650, 1.0
        %v7880 = vadd.f32 %v7652, 1.0
        %v7881 = vadd.f32 %v7654, 1.0
        %v7882 = vadd.f32 %v7656, 1.0
        %v7883 = vadd.f32 %v7658, 1.0
        %v7884 = vadd.f32 %v7660, 1.0
        %v7885 = vadd.f32 %v7662, 1.0
        %v7886 = vadd.f32 %v7664, 1.0
        %v7887 = vadd.f32 %v7666, 1.0
        %v7888 = vadd.f32 %v7668, 1.0
        %v7889 = vadd.f32 %v7670, 1.0
        %v7890 = vadd.f32 %v7672, 1.0
        %v7891 = vadd.f32 %v7674, 1.0
        %v7892 = vadd.f32 %v7676, 1.0
        %v7893 = vadd.f32 %v7678, 1.0
        %v7894 = vadd.f32 %v7680, 1.0
        %v7895 = vadd.f32 %v7682, 1.0
        %v7896 = vadd.f32 %v7684, 1.0
        %v7897 = vadd.f32 %v7686, 1.0
        %v7898 = vadd.f32 %v7688, 1.0
        %v7899 = vadd.f32 %v7690, 1.0
        %v7900 = vadd.f32 %v7692, 1.0
        %v7901 = vadd.f32 %v7694, 1.0
        %v7902 = vadd.f32 %v7696, 1.0
        %v7903 = vadd.f32 %v7698, 1.0
        %v7904 = vadd.f32 %v7700, 1.0
        %v7905 = vadd.f32 %v7702, 1.0
        %v7906 = vadd.f32 %v7704, 1.0
        %v7907 = vadd.f32 %v7706, 1.0
        %v7908 = vadd.f32 %v7708, 1.0
        %v7909 = vadd.f32 %v7710, 1.0
        %v7910 = vadd.f32 %v7712, 1.0
        %v7911 = vadd.f32 %v7714, 1.0
        %v7912 = vadd.f32 %v7716, 1.0
        %v7913 = vadd.f32 %v7718, 1.0
        %v7914 = vadd.f32 %v7720, 1.0
        %v7915 = vadd.f32 %v7722, 1.0
        %v7916 = vadd.f32 %v7724, 1.0
        %v7917 = vadd.f32 %v7726, 1.0
        %v7918 = vadd.f32 %v7728, 1.0
        %v7919 = vadd.f32 %v7730, 1.0
        %v7920 = vadd.f32 %v7732, 1.0
        %v7921 = vadd.f32 %v7734, 1.0
        %v7922 = vadd.f32 %v7736, 1.0
        %v7923 = vadd.f32 %v7738, 1.0
        %v7924 = vadd.f32 %v7740, 1.0
        %v7925 = vadd.f32 %v7742, 1.0
        %v7926 = vadd.f32 %v7744, 1.0
        %v7927 = vadd.f32 %v7746, 1.0
        %v7928 = vadd.f32 %v7748, 1.0
        %v7929 = vadd.f32 %v7750, 1.0
        %v7930 = vadd.f32 %v7752, 1.0
        %v7931 = vadd.f32 %v7754, 1.0
        %v7932 = vadd.f32 %v7756, 1.0
        %v7933 = vadd.f32 %v7758, 1.0
        %v7934 = vadd.f32 %v7760, 1.0
        %v7935 = vadd.f32 %v7762, 1.0
        %v7936 = vadd.f32 %v7764, 1.0
        %v7937 = vadd.f32 %v7766, 1.0
        %v7938 = vadd.f32 %v7768, 1.0
        %v7939 = vadd.f32 %v7770, 1.0
        %v7940 = vadd.f32 %v7772, 1.0
        %v7941 = vadd.f32 %v7774, 1.0
        %v7942 = vadd.f32 %v7776, 1.0
        %v7943 = vadd.f32 %v7778, 1.0
        %v7944 = vadd.f32 %v7780, 1.0
        %v7945 = vadd.f32 %v7782, 1.0
        %v7946 = vadd.f32 %v7784, 1.0
        %v7947 = vadd.f32 %v7786, 1.0
        %v7948 = vadd.f32 %v7788, 1.0
        %v7949 = vadd.f32 %v7790, 1.0
        %v7950 = vadd.f32 %v7792, 1.0
        %v7951 = vadd.f32 %v7794, 1.0
        %v7952 = vadd.f32 %v7796, 1.0
        %v7953 = vadd.f32 %v7798, 1.0
        %v7954 = vadd.f32 %v7800, 1.0
        %v7955 = vadd.f32 %v7802, 1.0
        %v7956 = vadd.f32 %v7804, 1.0
        %v7957 = vadd.f32 %v7806, 1.0
        %v7958 = vadd.f32 %v7808, 1.0
        %v7959 = vadd.f32 %v7810, 1.0
        %v7960 = vadd.f32 %v7812, 1.0
        %v7961 = vadd.f32 %v7814, 1.0
        %v7962 = vadd.f32 %v7816, 1.0
        %v7963 = vadd.f32 %v7818, 1.0
        %v7964 = vadd.f32 %v7820, 1.0
        %v7965 = vadd.f32 %v7822, 1.0
        %v7966 = vadd.f32 %v7824, 1.0
        %v7967 = vadd.f32 %v7826, 1.0
        %v7968 = vadd.f32 %v7828, 1.0
        %v7969 = vadd.f32 %v7830, 1.0
        %v7970 = vadd.f32 %v7832, 1.0
        %v7971 = vadd.f32 %v7834, 1.0
        %v7972 = vadd.f32 %v7836, 1.0
        %v7973 = vadd.f32 %v7838, 1.0
        %v7974 = vadd.f32 %v7840, 1.0
        %v7975 = vadd.f32 %v7842, 1.0
        %v7976 = vadd.f32 %v7844, 1.0
        %v7977 = vadd.f32 %v7846, 1.0
        %v7978 = vadd.f32 %v7848, 1.0
        %v7979 = vadd.f32 %v7850, 1.0
        %v7980 = vadd.f32 %v7852, 1.0
        %v7981 = vrcp.pop %v7853
        %v7982 = vrcp.pop %v7854
        %v7983 = vrcp.pop %v7855
        %v7984 = vrcp.pop %v7856
        %v7985 = vrcp.pop %v7857
        %v7986 = vrcp.pop %v7858
        %v7987 = vrcp.pop %v7859
        %v7988 = vrcp.pop %v7860
        %v7989 = vrcp.pop %v7861
        %v7990 = vrcp.pop %v7862
        %v7991 = vrcp.pop %v7863
        %v7992 = vrcp.pop %v7864
        %v7993 = vrcp.pop %v7865
        %v7994 = vrcp.pop %v7866
        %v7995 = vrcp.pop %v7867
        %v7996 = vrcp.pop %v7868
        %v7997 = vrcp.pop %v7869
        %v7998 = vrcp.pop %v7870
        %v7999 = vrcp.pop %v7871
        %v8000 = vrcp.pop %v7872
        %v8001 = vrcp.pop %v7873
        %v8002 = vrcp.pop %v7874
        %v8003 = vrcp.pop %v7875
        %v8004 = vrcp.pop %v7876
        %v8005 = vrcp.pop %v7877
        %v8006 = vrcp.pop %v7878
        %v8007 = vrcp.pop %v7879
        %v8008 = vrcp.pop %v7880
        %v8009 = vrcp.pop %v7881
        %v8010 = vrcp.pop %v7882
        %v8011 = vrcp.pop %v7883
        %v8012 = vrcp.pop %v7884
        %v8013 = vrcp.pop %v7885
        %v8014 = vrcp.pop %v7886
        %v8015 = vrcp.pop %v7887
        %v8016 = vrcp.pop %v7888
        %v8017 = vrcp.pop %v7889
        %v8018 = vrcp.pop %v7890
        %v8019 = vrcp.pop %v7891
        %v8020 = vrcp.pop %v7892
        %v8021 = vrcp.pop %v7893
        %v8022 = vrcp.pop %v7894
        %v8023 = vrcp.pop %v7895
        %v8024 = vrcp.pop %v7896
        %v8025 = vrcp.pop %v7897
        %v8026 = vrcp.pop %v7898
        %v8027 = vrcp.pop %v7899
        %v8028 = vrcp.pop %v7900
        %v8029 = vrcp.pop %v7901
        %v8030 = vrcp.pop %v7902
        %v8031 = vrcp.pop %v7903
        %v8032 = vrcp.pop %v7904
        %v8033 = vrcp.pop %v7905
        %v8034 = vrcp.pop %v7906
        %v8035 = vrcp.pop %v7907
        %v8036 = vrcp.pop %v7908
        %v8037 = vrcp.pop %v7909
        %v8038 = vrcp.pop %v7910
        %v8039 = vrcp.pop %v7911
        %v8040 = vrcp.pop %v7912
        %v8041 = vrcp.pop %v7913
        %v8042 = vrcp.pop %v7914
        %v8043 = vrcp.pop %v7915
        %v8044 = vrcp.pop %v7916
        %v8045 = vrcp.pop %v7917
        %v8046 = vrcp.pop %v7918
        %v8047 = vrcp.pop %v7919
        %v8048 = vrcp.pop %v7920
        %v8049 = vrcp.pop %v7921
        %v8050 = vrcp.pop %v7922
        %v8051 = vrcp.pop %v7923
        %v8052 = vrcp.pop %v7924
        %v8053 = vrcp.pop %v7925
        %v8054 = vrcp.pop %v7926
        %v8055 = vrcp.pop %v7927
        %v8056 = vrcp.pop %v7928
        %v8057 = vrcp.pop %v7929
        %v8058 = vrcp.pop %v7930
        %v8059 = vrcp.pop %v7931
        %v8060 = vrcp.pop %v7932
        %v8061 = vrcp.pop %v7933
        %v8062 = vrcp.pop %v7934
        %v8063 = vrcp.pop %v7935
        %v8064 = vrcp.pop %v7936
        %v8065 = vrcp.pop %v7937
        %v8066 = vrcp.pop %v7938
        %v8067 = vrcp.pop %v7939
        %v8068 = vrcp.pop %v7940
        %v8069 = vrcp.pop %v7941
        %v8070 = vrcp.pop %v7942
        %v8071 = vrcp.pop %v7943
        %v8072 = vrcp.pop %v7944
        %v8073 = vrcp.pop %v7945
        %v8074 = vrcp.pop %v7946
        %v8075 = vrcp.pop %v7947
        %v8076 = vrcp.pop %v7948
        %v8077 = vrcp.pop %v7949
        %v8078 = vrcp.pop %v7950
        %v8079 = vrcp.pop %v7951
        %v8080 = vrcp.pop %v7952
        %v8081 = vrcp.pop %v7953
        %v8082 = vrcp.pop %v7954
        %v8083 = vrcp.pop %v7955
        %v8084 = vrcp.pop %v7956
        %v8085 = vrcp.pop %v7957
        %v8086 = vrcp.pop %v7958
        %v8087 = vrcp.pop %v7959
        %v8088 = vrcp.pop %v7960
        %v8089 = vrcp.pop %v7961
        %v8090 = vrcp.pop %v7962
        %v8091 = vrcp.pop %v7963
        %v8092 = vrcp.pop %v7964
        %v8093 = vrcp.pop %v7965
        %v8094 = vrcp.pop %v7966
        %v8095 = vrcp.pop %v7967
        %v8096 = vrcp.pop %v7968
        %v8097 = vrcp.pop %v7969
        %v8098 = vrcp.pop %v7970
        %v8099 = vrcp.pop %v7971
        %v8100 = vrcp.pop %v7972
        %v8101 = vrcp.pop %v7973
        %v8102 = vrcp.pop %v7974
        %v8103 = vrcp.pop %v7975
        %v8104 = vrcp.pop %v7976
        %v8105 = vrcp.pop %v7977
        %v8106 = vrcp.pop %v7978
        %v8107 = vrcp.pop %v7979
        %v8108 = vrcp.pop %v7980
        %v8109 = vpack.c.bf16 %v7997, %v7981
        %v8110 = vpack.c.bf16 %v7998, %v7982
        %v8111 = vpack.c.bf16 %v7999, %v7983
        %v8112 = vpack.c.bf16 %v8000, %v7984
        %v8113 = vpack.c.bf16 %v8001, %v7985
        %v8114 = vpack.c.bf16 %v8002, %v7986
        %v8115 = vpack.c.bf16 %v8003, %v7987
        %v8116 = vpack.c.bf16 %v8004, %v7988
        %v8117 = vpack.c.bf16 %v8005, %v7989
        %v8118 = vpack.c.bf16 %v8006, %v7990
        %v8119 = vpack.c.bf16 %v8007, %v7991
        %v8120 = vpack.c.bf16 %v8008, %v7992
        %v8121 = vpack.c.bf16 %v8009, %v7993
        %v8122 = vpack.c.bf16 %v8010, %v7994
        %v8123 = vpack.c.bf16 %v8011, %v7995
        %v8124 = vpack.c.bf16 %v8012, %v7996
        %v8125 = vpack.c.bf16 %v8029, %v8013
        %v8126 = vpack.c.bf16 %v8030, %v8014
        %v8127 = vpack.c.bf16 %v8031, %v8015
        %v8128 = vpack.c.bf16 %v8032, %v8016
        %v8129 = vpack.c.bf16 %v8033, %v8017
        %v8130 = vpack.c.bf16 %v8034, %v8018
        %v8131 = vpack.c.bf16 %v8035, %v8019
        %v8132 = vpack.c.bf16 %v8036, %v8020
        %v8133 = vpack.c.bf16 %v8037, %v8021
        %v8134 = vpack.c.bf16 %v8038, %v8022
        %v8135 = vpack.c.bf16 %v8039, %v8023
        %v8136 = vpack.c.bf16 %v8040, %v8024
        %v8137 = vpack.c.bf16 %v8041, %v8025
        %v8138 = vpack.c.bf16 %v8042, %v8026
        %v8139 = vpack.c.bf16 %v8043, %v8027
        %v8140 = vpack.c.bf16 %v8044, %v8028
        %v8141 = vpack.c.bf16 %v8061, %v8045
        %v8142 = vpack.c.bf16 %v8062, %v8046
        %v8143 = vpack.c.bf16 %v8063, %v8047
        %v8144 = vpack.c.bf16 %v8064, %v8048
        %v8145 = vpack.c.bf16 %v8065, %v8049
        %v8146 = vpack.c.bf16 %v8066, %v8050
        %v8147 = vpack.c.bf16 %v8067, %v8051
        %v8148 = vpack.c.bf16 %v8068, %v8052
        %v8149 = vpack.c.bf16 %v8069, %v8053
        %v8150 = vpack.c.bf16 %v8070, %v8054
        %v8151 = vpack.c.bf16 %v8071, %v8055
        %v8152 = vpack.c.bf16 %v8072, %v8056
        %v8153 = vpack.c.bf16 %v8073, %v8057
        %v8154 = vpack.c.bf16 %v8074, %v8058
        %v8155 = vpack.c.bf16 %v8075, %v8059
        %v8156 = vpack.c.bf16 %v8076, %v8060
        %v8157 = vpack.c.bf16 %v8093, %v8077
        %v8158 = vpack.c.bf16 %v8094, %v8078
        %v8159 = vpack.c.bf16 %v8095, %v8079
        %v8160 = vpack.c.bf16 %v8096, %v8080
        %v8161 = vpack.c.bf16 %v8097, %v8081
        %v8162 = vpack.c.bf16 %v8098, %v8082
        %v8163 = vpack.c.bf16 %v8099, %v8083
        %v8164 = vpack.c.bf16 %v8100, %v8084
        %v8165 = vpack.c.bf16 %v8101, %v8085
        %v8166 = vpack.c.bf16 %v8102, %v8086
        %v8167 = vpack.c.bf16 %v8103, %v8087
        %v8168 = vpack.c.bf16 %v8104, %v8088
        %v8169 = vpack.c.bf16 %v8105, %v8089
        %v8170 = vpack.c.bf16 %v8106, %v8090
        %v8171 = vpack.c.bf16 %v8107, %v8091
        %v8172 = vpack.c.bf16 %v8108, %v8092
        %v8237 = vunpack.c.l.b16 %v8109
        %v8238 = vunpack.c.l.b16 %v8110
        %v8239 = vunpack.c.l.b16 %v8111
        %v8240 = vunpack.c.l.b16 %v8112
        %v8241 = vunpack.c.l.b16 %v8113
        %v8242 = vunpack.c.l.b16 %v8114
        %v8243 = vunpack.c.l.b16 %v8115
        %v8244 = vunpack.c.l.b16 %v8116
        %v8245 = vunpack.c.l.b16 %v8117
        %v8246 = vunpack.c.l.b16 %v8118
        %v8247 = vunpack.c.l.b16 %v8119
        %v8248 = vunpack.c.l.b16 %v8120
        %v8249 = vunpack.c.l.b16 %v8121
        %v8250 = vunpack.c.l.b16 %v8122
        %v8251 = vunpack.c.l.b16 %v8123
        %v8252 = vunpack.c.l.b16 %v8124
        %v8253 = vunpack.c.h.b16 %v8109
        %v8254 = vunpack.c.h.b16 %v8110
        %v8255 = vunpack.c.h.b16 %v8111
        %v8256 = vunpack.c.h.b16 %v8112
        %v8257 = vunpack.c.h.b16 %v8113
        %v8258 = vunpack.c.h.b16 %v8114
        %v8259 = vunpack.c.h.b16 %v8115
        %v8260 = vunpack.c.h.b16 %v8116
        %v8261 = vunpack.c.h.b16 %v8117
        %v8262 = vunpack.c.h.b16 %v8118
        %v8263 = vunpack.c.h.b16 %v8119
        %v8264 = vunpack.c.h.b16 %v8120
        %v8265 = vunpack.c.h.b16 %v8121
        %v8266 = vunpack.c.h.b16 %v8122
        %v8267 = vunpack.c.h.b16 %v8123
        %v8268 = vunpack.c.h.b16 %v8124
        %v8269 = vunpack.c.l.b16 %v8125
        %v8270 = vunpack.c.l.b16 %v8126
        %v8271 = vunpack.c.l.b16 %v8127
        %v8272 = vunpack.c.l.b16 %v8128
        %v8273 = vunpack.c.l.b16 %v8129
        %v8274 = vunpack.c.l.b16 %v8130
        %v8275 = vunpack.c.l.b16 %v8131
        %v8276 = vunpack.c.l.b16 %v8132
        %v8277 = vunpack.c.l.b16 %v8133
        %v8278 = vunpack.c.l.b16 %v8134
        %v8279 = vunpack.c.l.b16 %v8135
        %v8280 = vunpack.c.l.b16 %v8136
        %v8281 = vunpack.c.l.b16 %v8137
        %v8282 = vunpack.c.l.b16 %v8138
        %v8283 = vunpack.c.l.b16 %v8139
        %v8284 = vunpack.c.l.b16 %v8140
        %v8285 = vunpack.c.h.b16 %v8125
        %v8286 = vunpack.c.h.b16 %v8126
        %v8287 = vunpack.c.h.b16 %v8127
        %v8288 = vunpack.c.h.b16 %v8128
        %v8289 = vunpack.c.h.b16 %v8129
        %v8290 = vunpack.c.h.b16 %v8130
        %v8291 = vunpack.c.h.b16 %v8131
        %v8292 = vunpack.c.h.b16 %v8132
        %v8293 = vunpack.c.h.b16 %v8133
        %v8294 = vunpack.c.h.b16 %v8134
        %v8295 = vunpack.c.h.b16 %v8135
        %v8296 = vunpack.c.h.b16 %v8136
        %v8297 = vunpack.c.h.b16 %v8137
        %v8298 = vunpack.c.h.b16 %v8138
        %v8299 = vunpack.c.h.b16 %v8139
        %v8300 = vunpack.c.h.b16 %v8140
        %v8301 = vunpack.c.l.b16 %v8141
        %v8302 = vunpack.c.l.b16 %v8142
        %v8303 = vunpack.c.l.b16 %v8143
        %v8304 = vunpack.c.l.b16 %v8144
        %v8305 = vunpack.c.l.b16 %v8145
        %v8306 = vunpack.c.l.b16 %v8146
        %v8307 = vunpack.c.l.b16 %v8147
        %v8308 = vunpack.c.l.b16 %v8148
        %v8309 = vunpack.c.l.b16 %v8149
        %v8310 = vunpack.c.l.b16 %v8150
        %v8311 = vunpack.c.l.b16 %v8151
        %v8312 = vunpack.c.l.b16 %v8152
        %v8313 = vunpack.c.l.b16 %v8153
        %v8314 = vunpack.c.l.b16 %v8154
        %v8315 = vunpack.c.l.b16 %v8155
        %v8316 = vunpack.c.l.b16 %v8156
        %v8317 = vunpack.c.h.b16 %v8141
        %v8318 = vunpack.c.h.b16 %v8142
        %v8319 = vunpack.c.h.b16 %v8143
        %v8320 = vunpack.c.h.b16 %v8144
        %v8321 = vunpack.c.h.b16 %v8145
        %v8322 = vunpack.c.h.b16 %v8146
        %v8323 = vunpack.c.h.b16 %v8147
        %v8324 = vunpack.c.h.b16 %v8148
        %v8325 = vunpack.c.h.b16 %v8149
        %v8326 = vunpack.c.h.b16 %v8150
        %v8327 = vunpack.c.h.b16 %v8151
        %v8328 = vunpack.c.h.b16 %v8152
        %v8329 = vunpack.c.h.b16 %v8153
        %v8330 = vunpack.c.h.b16 %v8154
        %v8331 = vunpack.c.h.b16 %v8155
        %v8332 = vunpack.c.h.b16 %v8156
        %v8333 = vunpack.c.l.b16 %v8157
        %v8334 = vunpack.c.l.b16 %v8158
        %v8335 = vunpack.c.l.b16 %v8159
        %v8336 = vunpack.c.l.b16 %v8160
        %v8337 = vunpack.c.l.b16 %v8161
        %v8338 = vunpack.c.l.b16 %v8162
        %v8339 = vunpack.c.l.b16 %v8163
        %v8340 = vunpack.c.l.b16 %v8164
        %v8341 = vunpack.c.l.b16 %v8165
        %v8342 = vunpack.c.l.b16 %v8166
        %v8343 = vunpack.c.l.b16 %v8167
        %v8344 = vunpack.c.l.b16 %v8168
        %v8345 = vunpack.c.l.b16 %v8169
        %v8346 = vunpack.c.l.b16 %v8170
        %v8347 = vunpack.c.l.b16 %v8171
        %v8348 = vunpack.c.l.b16 %v8172
        %v8349 = vunpack.c.h.b16 %v8157
        %v8350 = vunpack.c.h.b16 %v8158
        %v8351 = vunpack.c.h.b16 %v8159
        %v8352 = vunpack.c.h.b16 %v8160
        %v8353 = vunpack.c.h.b16 %v8161
        %v8354 = vunpack.c.h.b16 %v8162
        %v8355 = vunpack.c.h.b16 %v8163
        %v8356 = vunpack.c.h.b16 %v8164
        %v8357 = vunpack.c.h.b16 %v8165
        %v8358 = vunpack.c.h.b16 %v8166
        %v8359 = vunpack.c.h.b16 %v8167
        %v8360 = vunpack.c.h.b16 %v8168
        %v8361 = vunpack.c.h.b16 %v8169
        %v8362 = vunpack.c.h.b16 %v8170
        %v8363 = vunpack.c.h.b16 %v8171
        %v8364 = vunpack.c.h.b16 %v8172
        %v8365 = vpack.c.b16 %v8238, %v8237
        %v8366 = vpack.c.b16 %v8240, %v8239
        %v8367 = vpack.c.b16 %v8242, %v8241
        %v8368 = vpack.c.b16 %v8244, %v8243
        %v8369 = vpack.c.b16 %v8246, %v8245
        %v8370 = vpack.c.b16 %v8248, %v8247
        %v8371 = vpack.c.b16 %v8250, %v8249
        %v8372 = vpack.c.b16 %v8252, %v8251
        %v8373 = vpack.c.b16 %v8254, %v8253
        %v8374 = vpack.c.b16 %v8256, %v8255
        %v8375 = vpack.c.b16 %v8258, %v8257
        %v8376 = vpack.c.b16 %v8260, %v8259
        %v8377 = vpack.c.b16 %v8262, %v8261
        %v8378 = vpack.c.b16 %v8264, %v8263
        %v8379 = vpack.c.b16 %v8266, %v8265
        %v8380 = vpack.c.b16 %v8268, %v8267
        %v8381 = vpack.c.b16 %v8270, %v8269
        %v8382 = vpack.c.b16 %v8272, %v8271
        %v8383 = vpack.c.b16 %v8274, %v8273
        %v8384 = vpack.c.b16 %v8276, %v8275
        %v8385 = vpack.c.b16 %v8278, %v8277
        %v8386 = vpack.c.b16 %v8280, %v8279
        %v8387 = vpack.c.b16 %v8282, %v8281
        %v8388 = vpack.c.b16 %v8284, %v8283
        %v8389 = vpack.c.b16 %v8286, %v8285
        %v8390 = vpack.c.b16 %v8288, %v8287
        %v8391 = vpack.c.b16 %v8290, %v8289
        %v8392 = vpack.c.b16 %v8292, %v8291
        %v8393 = vpack.c.b16 %v8294, %v8293
        %v8394 = vpack.c.b16 %v8296, %v8295
        %v8395 = vpack.c.b16 %v8298, %v8297
        %v8396 = vpack.c.b16 %v8300, %v8299
        %v8397 = vpack.c.b16 %v8302, %v8301
        %v8398 = vpack.c.b16 %v8304, %v8303
        %v8399 = vpack.c.b16 %v8306, %v8305
        %v8400 = vpack.c.b16 %v8308, %v8307
        %v8401 = vpack.c.b16 %v8310, %v8309
        %v8402 = vpack.c.b16 %v8312, %v8311
        %v8403 = vpack.c.b16 %v8314, %v8313
        %v8404 = vpack.c.b16 %v8316, %v8315
        %v8405 = vpack.c.b16 %v8318, %v8317
        %v8406 = vpack.c.b16 %v8320, %v8319
        %v8407 = vpack.c.b16 %v8322, %v8321
        %v8408 = vpack.c.b16 %v8324, %v8323
        %v8409 = vpack.c.b16 %v8326, %v8325
        %v8410 = vpack.c.b16 %v8328, %v8327
        %v8411 = vpack.c.b16 %v8330, %v8329
        %v8412 = vpack.c.b16 %v8332, %v8331
        %v8413 = vpack.c.b16 %v8334, %v8333
        %v8414 = vpack.c.b16 %v8336, %v8335
        %v8415 = vpack.c.b16 %v8338, %v8337
        %v8416 = vpack.c.b16 %v8340, %v8339
        %v8417 = vpack.c.b16 %v8342, %v8341
        %v8418 = vpack.c.b16 %v8344, %v8343
        %v8419 = vpack.c.b16 %v8346, %v8345
        %v8420 = vpack.c.b16 %v8348, %v8347
        %v8421 = vpack.c.b16 %v8350, %v8349
        %v8422 = vpack.c.b16 %v8352, %v8351
        %v8423 = vpack.c.b16 %v8354, %v8353
        %v8424 = vpack.c.b16 %v8356, %v8355
        %v8425 = vpack.c.b16 %v8358, %v8357
        %v8426 = vpack.c.b16 %v8360, %v8359
        %v8427 = vpack.c.b16 %v8362, %v8361
        %v8428 = vpack.c.b16 %v8364, %v8363
        %8493 = vst [vmem:[%s383] sm:$0xff] %v8365
        %8494 = vst [vmem:[%s383 + $0x8] sm:$0xff] %v8366
        %8495 = vst [vmem:[%s383 + $0x10] sm:$0xff] %v8367
        %8496 = vst [vmem:[%s383 + $0x18] sm:$0xff] %v8368
        %8497 = vst [vmem:[%s383 + $0x20] sm:$0xff] %v8369
        %8498 = vst [vmem:[%s383 + $0x28] sm:$0xff] %v8370
        %8499 = vst [vmem:[%s383 + $0x30] sm:$0xff] %v8371
        %8500 = vst [vmem:[%s383 + $0x38] sm:$0xff] %v8372
        %8501 = vst [vmem:[%s383 + $0x40] sm:$0xff] %v8373
        %8502 = vst [vmem:[%s383 + $0x48] sm:$0xff] %v8374
        %8503 = vst [vmem:[%s383 + $0x50] sm:$0xff] %v8375
        %8504 = vst [vmem:[%s383 + $0x58] sm:$0xff] %v8376
        %8505 = vst [vmem:[%s383 + $0x60] sm:$0xff] %v8377
        %8506 = vst [vmem:[%s383 + $0x68] sm:$0xff] %v8378
        %8507 = vst [vmem:[%s383 + $0x70] sm:$0xff] %v8379
        %8508 = vst [vmem:[%s383 + $0x78] sm:$0xff] %v8380
        %8509 = vst [vmem:[%s383 + $0x80] sm:$0xff] %v8381
        %8510 = vst [vmem:[%s383 + $0x88] sm:$0xff] %v8382
        %8511 = vst [vmem:[%s383 + $0x90] sm:$0xff] %v8383
        %8512 = vst [vmem:[%s383 + $0x98] sm:$0xff] %v8384
        %8513 = vst [vmem:[%s383 + $0xa0] sm:$0xff] %v8385
        %8514 = vst [vmem:[%s383 + $0xa8] sm:$0xff] %v8386
        %8515 = vst [vmem:[%s383 + $0xb0] sm:$0xff] %v8387
        %8516 = vst [vmem:[%s383 + $0xb8] sm:$0xff] %v8388
        %8517 = vst [vmem:[%s383 + $0xc0] sm:$0xff] %v8389
        %8518 = vst [vmem:[%s383 + $0xc8] sm:$0xff] %v8390
        %8519 = vst [vmem:[%s383 + $0xd0] sm:$0xff] %v8391
        %8520 = vst [vmem:[%s383 + $0xd8] sm:$0xff] %v8392
        %8521 = vst [vmem:[%s383 + $0xe0] sm:$0xff] %v8393
        %8522 = vst [vmem:[%s383 + $0xe8] sm:$0xff] %v8394
        %8523 = vst [vmem:[%s383 + $0xf0] sm:$0xff] %v8395
        %8524 = vst [vmem:[%s383 + $0xf8] sm:$0xff] %v8396
        %8525 = vst [vmem:[%s383 + $0x100] sm:$0xff] %v8397
        %8526 = vst [vmem:[%s383 + $0x108] sm:$0xff] %v8398
        %8527 = vst [vmem:[%s383 + $0x110] sm:$0xff] %v8399
        %8528 = vst [vmem:[%s383 + $0x118] sm:$0xff] %v8400
        %8529 = vst [vmem:[%s383 + $0x120] sm:$0xff] %v8401
        %8530 = vst [vmem:[%s383 + $0x128] sm:$0xff] %v8402
        %8531 = vst [vmem:[%s383 + $0x130] sm:$0xff] %v8403
        %8532 = vst [vmem:[%s383 + $0x138] sm:$0xff] %v8404
        %8533 = vst [vmem:[%s383 + $0x140] sm:$0xff] %v8405
        %8534 = vst [vmem:[%s383 + $0x148] sm:$0xff] %v8406
        %8535 = vst [vmem:[%s383 + $0x150] sm:$0xff] %v8407
        %8536 = vst [vmem:[%s383 + $0x158] sm:$0xff] %v8408
        %8537 = vst [vmem:[%s383 + $0x160] sm:$0xff] %v8409
        %8538 = vst [vmem:[%s383 + $0x168] sm:$0xff] %v8410
        %8539 = vst [vmem:[%s383 + $0x170] sm:$0xff] %v8411
        %8540 = vst [vmem:[%s383 + $0x178] sm:$0xff] %v8412
        %8541 = vst [vmem:[%s383 + $0x180] sm:$0xff] %v8413
        %8542 = vst [vmem:[%s383 + $0x188] sm:$0xff] %v8414
        %8543 = vst [vmem:[%s383 + $0x190] sm:$0xff] %v8415
        %8544 = vst [vmem:[%s383 + $0x198] sm:$0xff] %v8416
        %8545 = vst [vmem:[%s383 + $0x1a0] sm:$0xff] %v8417
        %8546 = vst [vmem:[%s383 + $0x1a8] sm:$0xff] %v8418
        %8547 = vst [vmem:[%s383 + $0x1b0] sm:$0xff] %v8419
        %8548 = vst [vmem:[%s383 + $0x1b8] sm:$0xff] %v8420
        %8549 = vst [vmem:[%s383 + $0x1c0] sm:$0xff] %v8421
        %8550 = vst [vmem:[%s383 + $0x1c8] sm:$0xff] %v8422
        %8551 = vst [vmem:[%s383 + $0x1d0] sm:$0xff] %v8423
        %8552 = vst [vmem:[%s383 + $0x1d8] sm:$0xff] %v8424
        %8553 = vst [vmem:[%s383 + $0x1e0] sm:$0xff] %v8425
        %8554 = vst [vmem:[%s383 + $0x1e8] sm:$0xff] %v8426
        %8555 = vst [vmem:[%s383 + $0x1f0] sm:$0xff] %v8427
        %8556 = vst [vmem:[%s383 + $0x1f8] sm:$0xff] %v8428
        %s8557 = sand.u32 %s189, 1
        %s8558 = scalar_lea.sflag [#allocation4], %s8557
        %s8559 = sand.u32 %s189, 1
        %s8560 = smul.addr %s8559, 512
        %s8561 = scalar_lea.vmem [#allocation12], %s8560
        // Predicated region
        $region73: #{tpu_custom_call.1} parent=47 // pred_check
          %p8562 = pneg %p199
        $region74: #{tpu_custom_call.1} parent=47 // pred_check_branch
          %8564 = sbr.rel (%p8562) target = $region76
        $region75: #{tpu_custom_call.1} parent=47 // pred_region
          %s8565 = smul.u32 16, %s24
          %s8567 = ssub.s32 8192, 8192
          %8568 = vsyncadd %s8558, %s8567
          %s8569 = smul.addr %s8565, 64
          %s8570 = scalar_lea.hbm %s7, %s8569
          %s8571 = sshll.u32 %s8561, 4
          %s8572 = int_to_ptr.vmem [resolvable:$true] %s8571
          %8577 = dma.vmem_to_hbm [thread:$0]  %s8572, 8192, %s8570, %s8558, 1024, 2048, 64
        $region76: #{tpu_custom_call.1} parent=47 // pred_fallthru
          _
      $region48: #{tpu_custom_call.1} parent=5 // pred_fallthru
        _
      %p8578 = scmp.le.s32.totalorder 2, %s19
      // Predicated region
      $region77: #{tpu_custom_call.1} parent=5 // pred_check
        %p8579 = pneg %p8578
      $region78: #{tpu_custom_call.1} parent=5 // pred_check_branch
        %8581 = sbr.rel (%p8579) target = $region80
      $region79: #{tpu_custom_call.1} parent=5 // pred_region
        %s8582 = ssub.s32 %s19, 2
        // Predicated region
        $region81: #{tpu_custom_call.1} parent=79 // pred_check
          %p8583 = pneg %p205
        $region82: #{tpu_custom_call.1} parent=79 // pred_check_branch
          %8585 = sbr.rel (%p8583) target = $region84
        $region83: #{tpu_custom_call.1} parent=79 // pred_region
          %s8586 = sand.u32 %s190, 1
          %s8587 = scalar_lea.sflag [#allocation4], %s8586
          %s8588 = sand.u32 %s190, 1
          %s8589 = smul.addr %s8588, 512
          %s8590 = scalar_lea.vmem [#allocation12], %s8589
          %8591 = dma.done %s8587, 8192
        $region84: #{tpu_custom_call.1} parent=79 // pred_fallthru
          _
      $region80: #{tpu_custom_call.1} parent=5 // pred_fallthru
        _
    $region6: #{tpu_custom_call.1} parent=1 // loop_footer
      %s23 = sadd.s32 1, %s19
    $region7: #{tpu_custom_call.1} parent=1 // loop_footer_branch
      %18 = sbr.rel target = $region3
    $region8: #{tpu_custom_call.1} parent=1 // loop_exit
      _
    %8592 = vsyncpa [#allocation3], 1
    %s8593 = scalar_lea.sflag [#allocation3], 1
    %8594 = vsyncpa %s8593, 1
    %8595 = vsyncpa [#allocation6], 1
    %8596 = vsyncpa [#allocation9], 1
    %8597 = vsyncpa [#allocation4], 1
    %s8598 = scalar_lea.sflag [#allocation4], 1
    %8599 = vsyncpa %s8598, 1

</llo_original>
